<compile_context>
chip_gen: v6e
topology: v6e:2x2x1
jax: 0.10.0
libtpu: 0.0.40
codegen_flags: <defaults>
</compile_context>

<pallas_src>
import functools

import jax
import jax.numpy as jnp
from jax.experimental import pallas as pl
from jax.experimental.pallas import tpu as pltpu

LANE = 128      # vreg lane width
SUBLANE = 8     # f32 sublane count


def _round_up(n, m):
    return ((n + m - 1) // m) * m


def _divisor_at_most(n, target):
    d = max(1, min(n, target))
    while n % d:
        d -= 1
    return d


def _vmem_limit_bytes():
    """Scoped-VMEM budget derived from the actual device (safe fallback)."""
    try:
        cap = int(pltpu.get_tpu_info().vmem_capacity_bytes)
    except Exception:
        cap = 64 << 20
    # Half of physical VMEM, capped: fine on v5e/v6e (128 MiB) and v7x (64 MiB).
    return int(min(cap // 2, 48 << 20))


def _pick_t_chunk(T, bp, hp, vmem_limit):
    """Largest timestep-chunk whose per-chunk VMEM footprint fits the budget."""
    # per-timestep bytes inside the recurrent kernel:
    #   seq-in  chunk bf16, double-buffered : 2*2*bp*hp
    #   seq-out chunk bf16, double-buffered : 2*2*bp*hp
    #   xw scratch f32, 4*hp wide, x1       : 16*bp*hp
    per_step = 24 * bp * hp
    budget = max(per_step, vmem_limit // 3)   # headroom for weights / pipeline
    return int(max(1, min(T, budget // per_step, 512)))


def _row_tile(t_pad, bp, target_rows=2048):
    """Row tile (timesteps * padded batch) for the feed-forward kernels."""
    tc = _divisor_at_most(t_pad, max(1, target_rows // bp))
    return tc * bp


# ----------------------------- kernels --------------------------------------

def encoder_kernel(x_ref, w1_ref, b1_ref, w2_ref, b2_ref, o_ref):
    # x: (R, Cin) f32, w1: (Cin, Hp) f32, b1: (1, Hp) f32,
    # w2: (Hp, Hp) bf16, b2: (1, Hp) f32, o: (R, Hp) bf16
    h = jnp.dot(x_ref[...], w1_ref[...],
                preferred_element_type=jnp.float32) + b1_ref[...]
    h = jnp.maximum(h, 0.0)                                    # ReLU
    y = jnp.dot(h.astype(w2_ref.dtype), w2_ref[...],
                preferred_element_type=jnp.float32) + b2_ref[...]
    o_ref[...] = y.astype(o_ref.dtype)


def linear_kernel(x_ref, w_ref, b_ref, o_ref):
    # x: (R, K) bf16, w: (K, N) bf16, b: (1, N) f32, o: (R, N) f32
    y = jnp.dot(x_ref[...].astype(w_ref.dtype), w_ref[...],
                preferred_element_type=jnp.float32) + b_ref[...]
    o_ref[...] = y.astype(o_ref.dtype)


def lstm_fused_kernel(x_ref, wih_ref, bias_ref, whh_ref, h0_ref, c0_ref,
                      o_ref, hn_ref, cn_ref, xw_sc, h_sc, c_sc,
                      *, bp, t_chunk, t_true, mask_tail):
    # x:   (Tc*Bp, Hp) bf16 chunk of layer input (encoder output or prev layer h)
    # wih: (Hp, 4Hp) bf16, bias: (1, 4Hp) f32 (= b_ih + b_hh, gate order i,f,g,o)
    # whh: (Hp, 4Hp) bf16, h0/c0: (Bp, Hp) f32
    # o:   (Tc*Bp, Hp) bf16; hn/cn: (Bp, Hp) f32 final states
    # xw_sc: (Tc*Bp, 4Hp) f32 scratch; h_sc/c_sc: (Bp, Hp) f32 carry across chunks
    hp = whh_ref.shape[0]

    @pl.when(pl.program_id(0) == 0)
    def _init():
        h_sc[...] = h0_ref[...]
        c_sc[...] = c0_ref[...]

    # Fused (hoisted) input projection for the whole chunk: one dense MXU matmul.
    # Result stays in VMEM scratch -> no HBM round-trip of the 4*Hp-wide tensor.
    xw_sc[...] = jnp.dot(x_ref[...], wih_ref[...],
                         preferred_element_type=jnp.float32) + bias_ref[...]

    t0 = pl.program_id(0) * t_chunk

    def step(t, carry):
        h, c = carry
        r = pl.multiple_of(t * bp, bp)
        gates = xw_sc[pl.ds(r, bp), :] + jnp.dot(
            h.astype(whh_ref.dtype), whh_ref[...],
            preferred_element_type=jnp.float32)
        # sigmoid(x) = 0.5*(tanh(x/2)+1): single EUP op per gate, shorter chain.
        i_g = 0.5 * (jnp.tanh(0.5 * gates[:, 0 * hp:1 * hp]) + 1.0)
        f_g = 0.5 * (jnp.tanh(0.5 * gates[:, 1 * hp:2 * hp]) + 1.0)
        g_g = jnp.tanh(gates[:, 2 * hp:3 * hp])
        o_g = 0.5 * (jnp.tanh(0.5 * gates[:, 3 * hp:4 * hp]) + 1.0)
        c_new = f_g * c + i_g * g_g
        h_new = o_g * jnp.tanh(c_new)
        if mask_tail:  # freeze the carry on zero-padded tail timesteps
            valid = (t0 + t) < t_true
            c_new = jnp.where(valid, c_new, c)
            h_new = jnp.where(valid, h_new, h)
        o_ref[pl.ds(r, bp), :] = h_new.astype(o_ref.dtype)
        return (h_new, c_new)

    h, c = jax.lax.fori_loop(0, t_chunk, step, (h_sc[...], c_sc[...]),
                             unroll=True if t_chunk <= 8 else 8)
    h_sc[...] = h
    c_sc[...] = c

    # Only the last chunk's value matters for the final states.
    @pl.when(pl.program_id(0) == pl.num_programs(0) - 1)
    def _fin():
        hn_ref[...] = h
        cn_ref[...] = c


# ----------------------------- pallas_call wrappers --------------------------

def _encoder(x2, w1, b1, w2, b2, row_tile, vmem_limit):
    n, cin = x2.shape
    hp = w1.shape[1]
    return pl.pallas_call(
        encoder_kernel,
        out_shape=jax.ShapeDtypeStruct((n, hp), jnp.bfloat16),
        grid=(n // row_tile,),
        in_specs=[
            pl.BlockSpec((row_tile, cin), lambda i: (i, 0)),
            pl.BlockSpec((cin, hp), lambda i: (0, 0)),
            pl.BlockSpec((1, hp), lambda i: (0, 0)),
            pl.BlockSpec((hp, hp), lambda i: (0, 0)),
            pl.BlockSpec((1, hp), lambda i: (0, 0)),
        ],
        out_specs=pl.BlockSpec((row_tile, hp), lambda i: (i, 0)),
        compiler_params=pltpu.CompilerParams(
            dimension_semantics=("parallel",),
            vmem_limit_bytes=vmem_limit),
    )(x2, w1, b1, w2, b2)


def _linear(x2, w, b, row_tile, vmem_limit):
    n, k = x2.shape
    cout = w.shape[1]
    return pl.pallas_call(
        linear_kernel,
        out_shape=jax.ShapeDtypeStruct((n, cout), jnp.float32),
        grid=(n // row_tile,),
        in_specs=[
            pl.BlockSpec((row_tile, k), lambda i: (i, 0)),
            pl.BlockSpec((k, cout), lambda i: (0, 0)),
            pl.BlockSpec((1, cout), lambda i: (0, 0)),
        ],
        out_specs=pl.BlockSpec((row_tile, cout), lambda i: (i, 0)),
        compiler_params=pltpu.CompilerParams(
            dimension_semantics=("parallel",),
            vmem_limit_bytes=vmem_limit),
    )(x2, w, b)


def _lstm_layer(seq, wih, bias, whh, h0, c0, *, bp, t_chunk, t_true, vmem_limit):
    n, hp = seq.shape
    g = 4 * hp
    rows = t_chunk * bp
    kernel = functools.partial(
        lstm_fused_kernel, bp=bp, t_chunk=t_chunk, t_true=t_true,
        mask_tail=(n != t_true * bp))
    return pl.pallas_call(
        kernel,
        out_shape=(jax.ShapeDtypeStruct((n, hp), jnp.bfloat16),
                   jax.ShapeDtypeStruct((bp, hp), jnp.float32),
                   jax.ShapeDtypeStruct((bp, hp), jnp.float32)),
        grid=(n // rows,),
        in_specs=[
            pl.BlockSpec((rows, hp), lambda i: (i, 0)),
            pl.BlockSpec((hp, g), lambda i: (0, 0)),
            pl.BlockSpec((1, g), lambda i: (0, 0)),
            pl.BlockSpec((hp, g), lambda i: (0, 0)),
            pl.BlockSpec((bp, hp), lambda i: (0, 0)),
            pl.BlockSpec((bp, hp), lambda i: (0, 0)),
        ],
        out_specs=(
            pl.BlockSpec((rows, hp), lambda i: (i, 0)),
            pl.BlockSpec((bp, hp), lambda i: (0, 0)),
            pl.BlockSpec((bp, hp), lambda i: (0, 0)),
        ),
        scratch_shapes=[pltpu.VMEM((rows, g), jnp.float32),
                        pltpu.VMEM((bp, hp), jnp.float32),
                        pltpu.VMEM((bp, hp), jnp.float32)],
        compiler_params=pltpu.CompilerParams(
            dimension_semantics=("arbitrary",),
            vmem_limit_bytes=vmem_limit),
    )(seq, wih, bias, whh, h0, c0)


# ----------------------------- params ----------------------------------------

def init_params(key, cfg):
    """PyTorch-style uniform init at the logical (unpadded) shapes."""
    cin = cfg['in_channels']
    m = cfg['mid_channels']
    cout = cfg['out_channels']
    L = cfg['num_layers']
    keys = jax.random.split(key, 6 + 4 * L)

    def u(k, shape, fan_in):
        bound = 1.0 / (fan_in ** 0.5)
        return jax.random.uniform(k, shape, jnp.float32, -bound, bound)

    params = {
        'enc_w1': u(keys[0], (cin, m), cin),
        'enc_b1': u(keys[1], (1, m), cin),
        'enc_w2': u(keys[2], (m, m), m),
        'enc_b2': u(keys[3], (1, m), m),
        'dec_w': u(keys[4], (m, cout), m),
        'dec_b': u(keys[5], (1, cout), m),
        'lstm': [],
    }
    for l in range(L):
        k0, k1, k2, k3 = keys[6 + 4 * l: 10 + 4 * l]
        wih = u(k0, (m, 4 * m), m)                           # weight_ih.T
        whh = u(k1, (m, 4 * m), m)                           # weight_hh.T
        bias = u(k2, (1, 4 * m), m) + u(k3, (1, 4 * m), m)   # b_ih + b_hh
        params['lstm'].append((wih, whh, bias))
    return params


def pad_params(params, cfg, weight_dtype=jnp.bfloat16):
    """Zero-pad feature dims to 128 lanes; large weights -> bf16 (MXU operands).

    Padding is numerically inert: padded gate columns / hidden units produce
    exactly-zero h/c (given zero-padded initial state), and padded rows/cols
    are sliced away at the end.
    """
    m = cfg['mid_channels']
    cout = cfg['out_channels']
    hp = _round_up(m, LANE)
    cout_p = _round_up(cout, LANE)

    def pad_cols(a, n):
        return jnp.pad(a, ((0, 0), (0, n - a.shape[1])))

    def pad_rows(a, n):
        return jnp.pad(a, ((0, n - a.shape[0]), (0, 0)))

    def pad_gates(a):  # (rows, 4*m) -> (rows, 4*hp), zero-pad inside each gate
        r = a.shape[0]
        a4 = a.reshape(r, 4, m)
        a4 = jnp.pad(a4, ((0, 0), (0, 0), (0, hp - m)))
        return a4.reshape(r, 4 * hp)

    out = {
        # first encoder layer stays f32 (tiny Cin contraction dim)
        'enc_w1': pad_cols(params['enc_w1'], hp),
        'enc_b1': pad_cols(params['enc_b1'], hp),
        'enc_w2': pad_rows(pad_cols(params['enc_w2'], hp), hp).astype(weight_dtype),
        'enc_b2': pad_cols(params['enc_b2'], hp),
        'dec_w': pad_rows(pad_cols(params['dec_w'], cout_p), hp).astype(weight_dtype),
        'dec_b': pad_cols(params['dec_b'], cout_p),
        'lstm': [],
    }
    for wih, whh, bias in params['lstm']:
        out['lstm'].append((
            pad_rows(pad_gates(wih), hp).astype(weight_dtype),
            pad_rows(pad_gates(whh), hp).astype(weight_dtype),
            pad_gates(bias),
        ))
    return out


# ----------------------------- forward ---------------------------------------

def make_forward(cfg):
    m = cfg['mid_channels']
    cout = cfg['out_channels']
    L = cfg['num_layers']
    hp = _round_up(m, LANE)
    cout_p = _round_up(cout, LANE)
    vmem_limit = _vmem_limit_bytes()

    def forward(params, x, h0, c0):
        # x: (B, T, Cin) f32; h0/c0: (L, B, m) f32
        B, T, cin = x.shape
        bp = _round_up(B, SUBLANE)
        t_chunk = _pick_t_chunk(T, bp, hp, vmem_limit)
        t_pad = _round_up(T, t_chunk)
        row_tile = _row_tile(t_pad, bp)

        # time-major + batch / time / feature padding (zero-padded states keep
        # the lane padding numerically inert inside the LSTM)
        xt = jnp.transpose(x, (1, 0, 2))                         # (T, B, Cin)
        xt = jnp.pad(xt, ((0, t_pad - T), (0, bp - B), (0, 0)))  # (Tp, Bp, Cin)
        h0p = jnp.pad(h0, ((0, 0), (0, bp - B), (0, hp - m)))    # (L, Bp, Hp)
        c0p = jnp.pad(c0, ((0, 0), (0, bp - B), (0, hp - m)))

        # encoder: Linear -> ReLU -> Linear, row-tiled over Tp*Bp, bf16 output
        seq = _encoder(xt.reshape(t_pad * bp, cin),
                       params['enc_w1'], params['enc_b1'],
                       params['enc_w2'], params['enc_b2'],
                       row_tile, vmem_limit)                     # (Tp*Bp, Hp) bf16

        h_n, c_n = [], []
        for l in range(L):
            wih, whh, bias = params['lstm'][l]
            # fused kernel: per-chunk input projection + serial recurrence
            seq, hn, cn = _lstm_layer(seq, wih, bias, whh, h0p[l], c0p[l],
                                      bp=bp, t_chunk=t_chunk, t_true=T,
                                      vmem_limit=vmem_limit)
            h_n.append(hn)
            c_n.append(cn)

        # decoder
        dec = _linear(seq, params['dec_w'], params['dec_b'],
                      row_tile, vmem_limit)                      # (Tp*Bp, Cout_p)
        out = dec.reshape(t_pad, bp, cout_p)[:T, :B, :cout]
        out = jnp.transpose(out, (1, 0, 2))                      # (B, T, Cout)
        h_n = jnp.stack(h_n)[:, :B, :m]                          # (L, B, m)
        c_n = jnp.stack(c_n)[:, :B, :m]
        return out, (h_n, c_n)

    return forward


# ----------------------------- demo -------------------------------------------

if __name__ == "__main__":
    cfg = dict(in_channels=4, mid_channels=32, out_channels=4, num_layers=2)
    B, T = 2, 8

    key = jax.random.PRNGKey(0)
    k_param, k_x = jax.random.split(key)
    params = pad_params(init_params(k_param, cfg), cfg)

    x = jax.random.normal(k_x, (B, T, cfg['in_channels']), jnp.float32)
    h0 = jnp.zeros((cfg['num_layers'], B, cfg['mid_channels']), jnp.float32)
    c0 = jnp.zeros((cfg['num_layers'], B, cfg['mid_channels']), jnp.float32)

    fwd = jax.jit(make_forward(cfg))
    out, (h_n, c_n) = fwd(params, x, h0, c0)
    jax.block_until_ready(out)
    jax.block_until_ready(h_n)
    jax.block_until_ready(c_n)

    assert out.shape == (B, T, cfg['out_channels'])
    assert h_n.shape == (cfg['num_layers'], B, cfg['mid_channels'])
    assert c_n.shape == (cfg['num_layers'], B, cfg['mid_channels'])
    assert bool(jnp.all(jnp.isfinite(out)))
    print("KERNEL_OK")
</pallas_src>

<mosaic_0001>
module attributes {stable_mosaic.version = 11 : i64} {
  func.func @encoder_kernel(%arg0: i32, %arg1: memref<64x4xf32, #tpu.memory_space<vmem>>, %arg2: memref<4x128xf32, #tpu.memory_space<vmem>>, %arg3: memref<1x128xf32, #tpu.memory_space<vmem>>, %arg4: memref<128x128xbf16, #tpu.memory_space<vmem>>, %arg5: memref<1x128xf32, #tpu.memory_space<vmem>>, %arg6: memref<64x128xbf16, #tpu.memory_space<vmem>>) attributes {dimension_semantics = [#tpu.dimension_semantics<parallel>], iteration_bounds = array<i64: 1>, scalar_prefetch = 0 : i64, scratch_operands = 0 : i64, tpu.core_type = #tpu.core_type<tc>, window_params = [{transform_indices = @transform_0, window_bounds = array<i64: 64, 4>}, {pipeline_mode = #tpu.pipeline_mode<synchronous>, transform_indices = @transform_1, window_bounds = array<i64: 4, 128>}, {pipeline_mode = #tpu.pipeline_mode<synchronous>, transform_indices = @transform_2, window_bounds = array<i64: 1, 128>}, {pipeline_mode = #tpu.pipeline_mode<synchronous>, transform_indices = @transform_3, window_bounds = array<i64: 128, 128>}, {pipeline_mode = #tpu.pipeline_mode<synchronous>, transform_indices = @transform_4, window_bounds = array<i64: 1, 128>}, {transform_indices = @transform_5, window_bounds = array<i64: 64, 128>}]} {
    %c0 = arith.constant 0 : index
    %c0_0 = arith.constant 0 : index
    %0 = vector.load %arg1[%c0, %c0_0] : memref<64x4xf32, #tpu.memory_space<vmem>>, vector<64x4xf32>
    %c0_1 = arith.constant 0 : index
    %c0_2 = arith.constant 0 : index
    %1 = vector.load %arg2[%c0_1, %c0_2] : memref<4x128xf32, #tpu.memory_space<vmem>>, vector<4x128xf32>
    %cst = arith.constant dense<0.000000e+00> : vector<64x128xf32>
    %2 = tpu.matmul %0, %1, %cst {dimension_numbers = #tpu.dot_dimension_numbers<[1], [0], [0], [1], [0, 0, 1, 1], [], []>} : vector<64x4xf32>, vector<4x128xf32>, vector<64x128xf32> -> vector<64x128xf32>
    %c0_3 = arith.constant 0 : index
    %c0_4 = arith.constant 0 : index
    %3 = vector.load %arg3[%c0_3, %c0_4] : memref<1x128xf32, #tpu.memory_space<vmem>>, vector<1x128xf32>
    %4 = vector.broadcast %3 : vector<1x128xf32> to vector<64x128xf32>
    %5 = arith.addf %2, %4 : vector<64x128xf32>
    %cst_5 = arith.constant 0.000000e+00 : f32
    %6 = vector.broadcast %cst_5 : f32 to vector<64x128xf32>
    %7 = arith.maximumf %5, %6 : vector<64x128xf32>
    %8 = arith.truncf %7 : vector<64x128xf32> to vector<64x128xbf16>
    %c0_6 = arith.constant 0 : index
    %c0_7 = arith.constant 0 : index
    %9 = vector.load %arg4[%c0_6, %c0_7] : memref<128x128xbf16, #tpu.memory_space<vmem>>, vector<128x128xbf16>
    %cst_8 = arith.constant dense<0.000000e+00> : vector<64x128xf32>
    %10 = tpu.matmul %8, %9, %cst_8 {dimension_numbers = #tpu.dot_dimension_numbers<[1], [0], [0], [1], [0, 0, 1, 1], [], []>} : vector<64x128xbf16>, vector<128x128xbf16>, vector<64x128xf32> -> vector<64x128xf32>
    %c0_9 = arith.constant 0 : index
    %c0_10 = arith.constant 0 : index
    %11 = vector.load %arg5[%c0_9, %c0_10] : memref<1x128xf32, #tpu.memory_space<vmem>>, vector<1x128xf32>
    %12 = vector.broadcast %11 : vector<1x128xf32> to vector<64x128xf32>
    %13 = arith.addf %10, %12 : vector<64x128xf32>
    %14 = arith.truncf %13 : vector<64x128xf32> to vector<64x128xbf16>
    %c0_11 = arith.constant 0 : index
    %c0_12 = arith.constant 0 : index
    %15 = vector.load %arg6[%c0_11, %c0_12] : memref<64x128xbf16, #tpu.memory_space<vmem>>, vector<64x128xbf16>
    tpu.vector_store %arg6[%c0_11, %c0_12], %14 {strides = array<i32>} : memref<64x128xbf16, #tpu.memory_space<vmem>>, vector<64x128xbf16>,
    return
  }
  func.func @transform_0(%arg0: i32) -> (i32, i32) {
    %c0_i32 = arith.constant 0 : i32
    %c0_i32_0 = arith.constant 0 : i32
    return %arg0, %c0_i32 : i32, i32
  }
  func.func @transform_1(%arg0: i32) -> (i32, i32) {
    %c0_i32 = arith.constant 0 : i32
    %c0_i32_0 = arith.constant 0 : i32
    %c0_i32_1 = arith.constant 0 : i32
    return %c0_i32, %c0_i32_0 : i32, i32
  }
  func.func @transform_2(%arg0: i32) -> (i32, i32) {
    %c0_i32 = arith.constant 0 : i32
    %c0_i32_0 = arith.constant 0 : i32
    %c0_i32_1 = arith.constant 0 : i32
    return %c0_i32, %c0_i32_0 : i32, i32
  }
  func.func @transform_3(%arg0: i32) -> (i32, i32) {
    %c0_i32 = arith.constant 0 : i32
    %c0_i32_0 = arith.constant 0 : i32
    %c0_i32_1 = arith.constant 0 : i32
    return %c0_i32, %c0_i32_0 : i32, i32
  }
  func.func @transform_4(%arg0: i32) -> (i32, i32) {
    %c0_i32 = arith.constant 0 : i32
    %c0_i32_0 = arith.constant 0 : i32
    %c0_i32_1 = arith.constant 0 : i32
    return %c0_i32, %c0_i32_0 : i32, i32
  }
  func.func @transform_5(%arg0: i32) -> (i32, i32) {
    %c0_i32 = arith.constant 0 : i32
    %c0_i32_0 = arith.constant 0 : i32
    return %arg0, %c0_i32 : i32, i32
  }
}

module attributes {stable_mosaic.version = 11 : i64} {
  func.func @lstm_fused_kernel(%arg0: i32, %arg1: memref<64x128xbf16, #tpu.memory_space<vmem>>, %arg2: memref<128x512xbf16, #tpu.memory_space<vmem>>, %arg3: memref<1x512xf32, #tpu.memory_space<vmem>>, %arg4: memref<128x512xbf16, #tpu.memory_space<vmem>>, %arg5: memref<8x128xf32, #tpu.memory_space<vmem>>, %arg6: memref<8x128xf32, #tpu.memory_space<vmem>>, %arg7: memref<64x128xbf16, #tpu.memory_space<vmem>>, %arg8: memref<8x128xf32, #tpu.memory_space<vmem>>, %arg9: memref<8x128xf32, #tpu.memory_space<vmem>>, %arg10: memref<64x512xf32, #tpu.memory_space<vmem>>, %arg11: memref<8x128xf32, #tpu.memory_space<vmem>>, %arg12: memref<8x128xf32, #tpu.memory_space<vmem>>) attributes {dimension_semantics = [#tpu.dimension_semantics<arbitrary>], iteration_bounds = array<i64: 1>, scalar_prefetch = 0 : i64, scratch_operands = 3 : i64, tpu.core_type = #tpu.core_type<tc>, window_params = [{transform_indices = @transform_0, window_bounds = array<i64: 64, 128>}, {pipeline_mode = #tpu.pipeline_mode<synchronous>, transform_indices = @transform_1, window_bounds = array<i64: 128, 512>}, {pipeline_mode = #tpu.pipeline_mode<synchronous>, transform_indices = @transform_2, window_bounds = array<i64: 1, 512>}, {pipeline_mode = #tpu.pipeline_mode<synchronous>, transform_indices = @transform_3, window_bounds = array<i64: 128, 512>}, {pipeline_mode = #tpu.pipeline_mode<synchronous>, transform_indices = @transform_4, window_bounds = array<i64: 8, 128>}, {pipeline_mode = #tpu.pipeline_mode<synchronous>, transform_indices = @transform_5, window_bounds = array<i64: 8, 128>}, {transform_indices = @transform_6, window_bounds = array<i64: 64, 128>}, {pipeline_mode = #tpu.pipeline_mode<synchronous>, transform_indices = @transform_7, window_bounds = array<i64: 8, 128>}, {pipeline_mode = #tpu.pipeline_mode<synchronous>, transform_indices = @transform_8, window_bounds = array<i64: 8, 128>}]} {
    %c0_i32 = arith.constant 0 : i32
    %0 = arith.cmpi eq, %arg0, %c0_i32 : i32
    %1 = arith.extui %0 : i1 to i32
    %c0_i32_0 = arith.constant 0 : i32
    %2 = arith.cmpi ne, %1, %c0_i32_0 : i32
    scf.if %2 {
      %c0_139 = arith.constant 0 : index
      %c0_140 = arith.constant 0 : index
      %353 = vector.load %arg5[%c0_139, %c0_140] : memref<8x128xf32, #tpu.memory_space<vmem>>, vector<8x128xf32>
      %c0_141 = arith.constant 0 : index
      %c0_142 = arith.constant 0 : index
      %354 = vector.load %arg11[%c0_141, %c0_142] : memref<8x128xf32, #tpu.memory_space<vmem>>, vector<8x128xf32>
      tpu.vector_store %arg11[%c0_141, %c0_142], %353 {strides = array<i32>} : memref<8x128xf32, #tpu.memory_space<vmem>>, vector<8x128xf32>,
      %c0_143 = arith.constant 0 : index
      %c0_144 = arith.constant 0 : index
      %355 = vector.load %arg6[%c0_143, %c0_144] : memref<8x128xf32, #tpu.memory_space<vmem>>, vector<8x128xf32>
      %c0_145 = arith.constant 0 : index
      %c0_146 = arith.constant 0 : index
      %356 = vector.load %arg12[%c0_145, %c0_146] : memref<8x128xf32, #tpu.memory_space<vmem>>, vector<8x128xf32>
      tpu.vector_store %arg12[%c0_145, %c0_146], %355 {strides = array<i32>} : memref<8x128xf32, #tpu.memory_space<vmem>>, vector<8x128xf32>,
    } else {
    }
    %c0 = arith.constant 0 : index
    %c0_1 = arith.constant 0 : index
    %3 = vector.load %arg1[%c0, %c0_1] : memref<64x128xbf16, #tpu.memory_space<vmem>>, vector<64x128xbf16>
    %c0_2 = arith.constant 0 : index
    %c0_3 = arith.constant 0 : index
    %4 = vector.load %arg2[%c0_2, %c0_3] : memref<128x512xbf16, #tpu.memory_space<vmem>>, vector<128x512xbf16>
    %cst = arith.constant dense<0.000000e+00> : vector<64x512xf32>
    %5 = tpu.matmul %3, %4, %cst {dimension_numbers = #tpu.dot_dimension_numbers<[1], [0], [0], [1], [0, 0, 1, 1], [], []>} : vector<64x128xbf16>, vector<128x512xbf16>, vector<64x512xf32> -> vector<64x512xf32>
    %c0_4 = arith.constant 0 : index
    %c0_5 = arith.constant 0 : index
    %6 = vector.load %arg3[%c0_4, %c0_5] : memref<1x512xf32, #tpu.memory_space<vmem>>, vector<1x512xf32>
    %7 = vector.broadcast %6 : vector<1x512xf32> to vector<64x512xf32>
    %8 = arith.addf %5, %7 : vector<64x512xf32>
    %c0_6 = arith.constant 0 : index
    %c0_7 = arith.constant 0 : index
    %9 = vector.load %arg10[%c0_6, %c0_7] : memref<64x512xf32, #tpu.memory_space<vmem>>, vector<64x512xf32>
    tpu.vector_store %arg10[%c0_6, %c0_7], %8 {strides = array<i32>} : memref<64x512xf32, #tpu.memory_space<vmem>>, vector<64x512xf32>,
    %c0_8 = arith.constant 0 : index
    %c0_9 = arith.constant 0 : index
    %10 = vector.load %arg11[%c0_8, %c0_9] : memref<8x128xf32, #tpu.memory_space<vmem>>, vector<8x128xf32>
    %c0_10 = arith.constant 0 : index
    %c0_11 = arith.constant 0 : index
    %11 = vector.load %arg12[%c0_10, %c0_11] : memref<8x128xf32, #tpu.memory_space<vmem>>, vector<8x128xf32>
    %c0_i32_12 = arith.constant 0 : i32
    %c8_i32 = arith.constant 8 : i32
    %12 = arith.muli %c0_i32_12, %c8_i32 : i32
    %13 = tpu.assume_multiple %12, 8 : i32
    %14 = arith.index_cast %13 : i32 to index
    %c0_13 = arith.constant 0 : index
    %15 = vector.load %arg10[%14, %c0_13] : memref<64x512xf32, #tpu.memory_space<vmem>>, vector<8x512xf32>
    %16 = arith.truncf %10 : vector<8x128xf32> to vector<8x128xbf16>
    %c0_14 = arith.constant 0 : index
    %c0_15 = arith.constant 0 : index
    %17 = vector.load %arg4[%c0_14, %c0_15] : memref<128x512xbf16, #tpu.memory_space<vmem>>, vector<128x512xbf16>
    %cst_16 = arith.constant dense<0.000000e+00> : vector<8x512xf32>
    %18 = tpu.matmul %16, %17, %cst_16 {dimension_numbers = #tpu.dot_dimension_numbers<[1], [0], [0], [1], [0, 0, 1, 1], [], []>} : vector<8x128xbf16>, vector<128x512xbf16>, vector<8x512xf32> -> vector<8x512xf32>
    %19 = arith.addf %15, %18 : vector<8x512xf32>
    %20 = vector.extract_strided_slice %19 {offsets = [0, 0], sizes = [8, 128], strides = [1, 1]} : vector<8x512xf32> to vector<8x128xf32>
    %cst_17 = arith.constant 5.000000e-01 : f32
    %21 = vector.broadcast %cst_17 : f32 to vector<8x128xf32>
    %22 = arith.mulf %21, %20 : vector<8x128xf32>
    %23 = math.tanh %22 : vector<8x128xf32>
    %cst_18 = arith.constant 1.000000e+00 : f32
    %24 = vector.broadcast %cst_18 : f32 to vector<8x128xf32>
    %25 = arith.addf %23, %24 : vector<8x128xf32>
    %cst_19 = arith.constant 5.000000e-01 : f32
    %26 = vector.broadcast %cst_19 : f32 to vector<8x128xf32>
    %27 = arith.mulf %26, %25 : vector<8x128xf32>
    %28 = vector.extract_strided_slice %19 {offsets = [0, 128], sizes = [8, 128], strides = [1, 1]} : vector<8x512xf32> to vector<8x128xf32>
    %cst_20 = arith.constant 5.000000e-01 : f32
    %29 = vector.broadcast %cst_20 : f32 to vector<8x128xf32>
    %30 = arith.mulf %29, %28 : vector<8x128xf32>
    %31 = math.tanh %30 : vector<8x128xf32>
    %cst_21 = arith.constant 1.000000e+00 : f32
    %32 = vector.broadcast %cst_21 : f32 to vector<8x128xf32>
    %33 = arith.addf %31, %32 : vector<8x128xf32>
    %cst_22 = arith.constant 5.000000e-01 : f32
    %34 = vector.broadcast %cst_22 : f32 to vector<8x128xf32>
    %35 = arith.mulf %34, %33 : vector<8x128xf32>
    %36 = vector.extract_strided_slice %19 {offsets = [0, 256], sizes = [8, 128], strides = [1, 1]} : vector<8x512xf32> to vector<8x128xf32>
    %37 = math.tanh %36 : vector<8x128xf32>
    %38 = vector.extract_strided_slice %19 {offsets = [0, 384], sizes = [8, 128], strides = [1, 1]} : vector<8x512xf32> to vector<8x128xf32>
    %cst_23 = arith.constant 5.000000e-01 : f32
    %39 = vector.broadcast %cst_23 : f32 to vector<8x128xf32>
    %40 = arith.mulf %39, %38 : vector<8x128xf32>
    %41 = math.tanh %40 : vector<8x128xf32>
    %cst_24 = arith.constant 1.000000e+00 : f32
    %42 = vector.broadcast %cst_24 : f32 to vector<8x128xf32>
    %43 = arith.addf %41, %42 : vector<8x128xf32>
    %cst_25 = arith.constant 5.000000e-01 : f32
    %44 = vector.broadcast %cst_25 : f32 to vector<8x128xf32>
    %45 = arith.mulf %44, %43 : vector<8x128xf32>
    %46 = arith.mulf %35, %11 : vector<8x128xf32>
    %47 = arith.mulf %27, %37 : vector<8x128xf32>
    %48 = arith.addf %46, %47 : vector<8x128xf32>
    %49 = math.tanh %48 : vector<8x128xf32>
    %50 = arith.mulf %45, %49 : vector<8x128xf32>
    %51 = arith.truncf %50 : vector<8x128xf32> to vector<8x128xbf16>
    %52 = arith.index_cast %13 : i32 to index
    %c0_26 = arith.constant 0 : index
    %53 = vector.load %arg7[%52, %c0_26] : memref<64x128xbf16, #tpu.memory_space<vmem>>, vector<8x128xbf16>
    tpu.vector_store %arg7[%52, %c0_26], %51 {strides = array<i32>} : memref<64x128xbf16, #tpu.memory_space<vmem>>, vector<8x128xbf16>,
    %c1_i32 = arith.constant 1 : i32
    %c8_i32_27 = arith.constant 8 : i32
    %54 = arith.muli %c1_i32, %c8_i32_27 : i32
    %55 = tpu.assume_multiple %54, 8 : i32
    %56 = arith.index_cast %55 : i32 to index
    %c0_28 = arith.constant 0 : index
    %57 = vector.load %arg10[%56, %c0_28] : memref<64x512xf32, #tpu.memory_space<vmem>>, vector<8x512xf32>
    %58 = arith.truncf %50 : vector<8x128xf32> to vector<8x128xbf16>
    %c0_29 = arith.constant 0 : index
    %c0_30 = arith.constant 0 : index
    %59 = vector.load %arg4[%c0_29, %c0_30] : memref<128x512xbf16, #tpu.memory_space<vmem>>, vector<128x512xbf16>
    %cst_31 = arith.constant dense<0.000000e+00> : vector<8x512xf32>
    %60 = tpu.matmul %58, %59, %cst_31 {dimension_numbers = #tpu.dot_dimension_numbers<[1], [0], [0], [1], [0, 0, 1, 1], [], []>} : vector<8x128xbf16>, vector<128x512xbf16>, vector<8x512xf32> -> vector<8x512xf32>
    %61 = arith.addf %57, %60 : vector<8x512xf32>
    %62 = vector.extract_strided_slice %61 {offsets = [0, 0], sizes = [8, 128], strides = [1, 1]} : vector<8x512xf32> to vector<8x128xf32>
    %cst_32 = arith.constant 5.000000e-01 : f32
    %63 = vector.broadcast %cst_32 : f32 to vector<8x128xf32>
    %64 = arith.mulf %63, %62 : vector<8x128xf32>
    %65 = math.tanh %64 : vector<8x128xf32>
    %cst_33 = arith.constant 1.000000e+00 : f32
    %66 = vector.broadcast %cst_33 : f32 to vector<8x128xf32>
    %67 = arith.addf %65, %66 : vector<8x128xf32>
    %cst_34 = arith.constant 5.000000e-01 : f32
    %68 = vector.broadcast %cst_34 : f32 to vector<8x128xf32>
    %69 = arith.mulf %68, %67 : vector<8x128xf32>
    %70 = vector.extract_strided_slice %61 {offsets = [0, 128], sizes = [8, 128], strides = [1, 1]} : vector<8x512xf32> to vector<8x128xf32>
    %cst_35 = arith.constant 5.000000e-01 : f32
    %71 = vector.broadcast %cst_35 : f32 to vector<8x128xf32>
    %72 = arith.mulf %71, %70 : vector<8x128xf32>
    %73 = math.tanh %72 : vector<8x128xf32>
    %cst_36 = arith.constant 1.000000e+00 : f32
    %74 = vector.broadcast %cst_36 : f32 to vector<8x128xf32>
    %75 = arith.addf %73, %74 : vector<8x128xf32>
    %cst_37 = arith.constant 5.000000e-01 : f32
    %76 = vector.broadcast %cst_37 : f32 to vector<8x128xf32>
    %77 = arith.mulf %76, %75 : vector<8x128xf32>
    %78 = vector.extract_strided_slice %61 {offsets = [0, 256], sizes = [8, 128], strides = [1, 1]} : vector<8x512xf32> to vector<8x128xf32>
    %79 = math.tanh %78 : vector<8x128xf32>
    %80 = vector.extract_strided_slice %61 {offsets = [0, 384], sizes = [8, 128], strides = [1, 1]} : vector<8x512xf32> to vector<8x128xf32>
    %cst_38 = arith.constant 5.000000e-01 : f32
    %81 = vector.broadcast %cst_38 : f32 to vector<8x128xf32>
    %82 = arith.mulf %81, %80 : vector<8x128xf32>
    %83 = math.tanh %82 : vector<8x128xf32>
    %cst_39 = arith.constant 1.000000e+00 : f32
    %84 = vector.broadcast %cst_39 : f32 to vector<8x128xf32>
    %85 = arith.addf %83, %84 : vector<8x128xf32>
    %cst_40 = arith.constant 5.000000e-01 : f32
    %86 = vector.broadcast %cst_40 : f32 to vector<8x128xf32>
    %87 = arith.mulf %86, %85 : vector<8x128xf32>
    %88 = arith.mulf %77, %48 : vector<8x128xf32>
    %89 = arith.mulf %69, %79 : vector<8x128xf32>
    %90 = arith.addf %88, %89 : vector<8x128xf32>
    %91 = math.tanh %90 : vector<8x128xf32>
    %92 = arith.mulf %87, %91 : vector<8x128xf32>
    %93 = arith.truncf %92 : vector<8x128xf32> to vector<8x128xbf16>
    %94 = arith.index_cast %55 : i32 to index
    %c0_41 = arith.constant 0 : index
    %95 = vector.load %arg7[%94, %c0_41] : memref<64x128xbf16, #tpu.memory_space<vmem>>, vector<8x128xbf16>
    tpu.vector_store %arg7[%94, %c0_41], %93 {strides = array<i32>} : memref<64x128xbf16, #tpu.memory_space<vmem>>, vector<8x128xbf16>,
    %c2_i32 = arith.constant 2 : i32
    %c8_i32_42 = arith.constant 8 : i32
    %96 = arith.muli %c2_i32, %c8_i32_42 : i32
    %97 = tpu.assume_multiple %96, 8 : i32
    %98 = arith.index_cast %97 : i32 to index
    %c0_43 = arith.constant 0 : index
    %99 = vector.load %arg10[%98, %c0_43] : memref<64x512xf32, #tpu.memory_space<vmem>>, vector<8x512xf32>
    %100 = arith.truncf %92 : vector<8x128xf32> to vector<8x128xbf16>
    %c0_44 = arith.constant 0 : index
    %c0_45 = arith.constant 0 : index
    %101 = vector.load %arg4[%c0_44, %c0_45] : memref<128x512xbf16, #tpu.memory_space<vmem>>, vector<128x512xbf16>
    %cst_46 = arith.constant dense<0.000000e+00> : vector<8x512xf32>
    %102 = tpu.matmul %100, %101, %cst_46 {dimension_numbers = #tpu.dot_dimension_numbers<[1], [0], [0], [1], [0, 0, 1, 1], [], []>} : vector<8x128xbf16>, vector<128x512xbf16>, vector<8x512xf32> -> vector<8x512xf32>
    %103 = arith.addf %99, %102 : vector<8x512xf32>
    %104 = vector.extract_strided_slice %103 {offsets = [0, 0], sizes = [8, 128], strides = [1, 1]} : vector<8x512xf32> to vector<8x128xf32>
    %cst_47 = arith.constant 5.000000e-01 : f32
    %105 = vector.broadcast %cst_47 : f32 to vector<8x128xf32>
    %106 = arith.mulf %105, %104 : vector<8x128xf32>
    %107 = math.tanh %106 : vector<8x128xf32>
    %cst_48 = arith.constant 1.000000e+00 : f32
    %108 = vector.broadcast %cst_48 : f32 to vector<8x128xf32>
    %109 = arith.addf %107, %108 : vector<8x128xf32>
    %cst_49 = arith.constant 5.000000e-01 : f32
    %110 = vector.broadcast %cst_49 : f32 to vector<8x128xf32>
    %111 = arith.mulf %110, %109 : vector<8x128xf32>
    %112 = vector.extract_strided_slice %103 {offsets = [0, 128], sizes = [8, 128], strides = [1, 1]} : vector<8x512xf32> to vector<8x128xf32>
    %cst_50 = arith.constant 5.000000e-01 : f32
    %113 = vector.broadcast %cst_50 : f32 to vector<8x128xf32>
    %114 = arith.mulf %113, %112 : vector<8x128xf32>
    %115 = math.tanh %114 : vector<8x128xf32>
    %cst_51 = arith.constant 1.000000e+00 : f32
    %116 = vector.broadcast %cst_51 : f32 to vector<8x128xf32>
    %117 = arith.addf %115, %116 : vector<8x128xf32>
    %cst_52 = arith.constant 5.000000e-01 : f32
    %118 = vector.broadcast %cst_52 : f32 to vector<8x128xf32>
    %119 = arith.mulf %118, %117 : vector<8x128xf32>
    %120 = vector.extract_strided_slice %103 {offsets = [0, 256], sizes = [8, 128], strides = [1, 1]} : vector<8x512xf32> to vector<8x128xf32>
    %121 = math.tanh %120 : vector<8x128xf32>
    %122 = vector.extract_strided_slice %103 {offsets = [0, 384], sizes = [8, 128], strides = [1, 1]} : vector<8x512xf32> to vector<8x128xf32>
    %cst_53 = arith.constant 5.000000e-01 : f32
    %123 = vector.broadcast %cst_53 : f32 to vector<8x128xf32>
    %124 = arith.mulf %123, %122 : vector<8x128xf32>
    %125 = math.tanh %124 : vector<8x128xf32>
    %cst_54 = arith.constant 1.000000e+00 : f32
    %126 = vector.broadcast %cst_54 : f32 to vector<8x128xf32>
    %127 = arith.addf %125, %126 : vector<8x128xf32>
    %cst_55 = arith.constant 5.000000e-01 : f32
    %128 = vector.broadcast %cst_55 : f32 to vector<8x128xf32>
    %129 = arith.mulf %128, %127 : vector<8x128xf32>
    %130 = arith.mulf %119, %90 : vector<8x128xf32>
    %131 = arith.mulf %111, %121 : vector<8x128xf32>
    %132 = arith.addf %130, %131 : vector<8x128xf32>
    %133 = math.tanh %132 : vector<8x128xf32>
    %134 = arith.mulf %129, %133 : vector<8x128xf32>
    %135 = arith.truncf %134 : vector<8x128xf32> to vector<8x128xbf16>
    %136 = arith.index_cast %97 : i32 to index
    %c0_56 = arith.constant 0 : index
    %137 = vector.load %arg7[%136, %c0_56] : memref<64x128xbf16, #tpu.memory_space<vmem>>, vector<8x128xbf16>
    tpu.vector_store %arg7[%136, %c0_56], %135 {strides = array<i32>} : memref<64x128xbf16, #tpu.memory_space<vmem>>, vector<8x128xbf16>,
    %c3_i32 = arith.constant 3 : i32
    %c8_i32_57 = arith.constant 8 : i32
    %138 = arith.muli %c3_i32, %c8_i32_57 : i32
    %139 = tpu.assume_multiple %138, 8 : i32
    %140 = arith.index_cast %139 : i32 to index
    %c0_58 = arith.constant 0 : index
    %141 = vector.load %arg10[%140, %c0_58] : memref<64x512xf32, #tpu.memory_space<vmem>>, vector<8x512xf32>
    %142 = arith.truncf %134 : vector<8x128xf32> to vector<8x128xbf16>
    %c0_59 = arith.constant 0 : index
    %c0_60 = arith.constant 0 : index
    %143 = vector.load %arg4[%c0_59, %c0_60] : memref<128x512xbf16, #tpu.memory_space<vmem>>, vector<128x512xbf16>
    %cst_61 = arith.constant dense<0.000000e+00> : vector<8x512xf32>
    %144 = tpu.matmul %142, %143, %cst_61 {dimension_numbers = #tpu.dot_dimension_numbers<[1], [0], [0], [1], [0, 0, 1, 1], [], []>} : vector<8x128xbf16>, vector<128x512xbf16>, vector<8x512xf32> -> vector<8x512xf32>
    %145 = arith.addf %141, %144 : vector<8x512xf32>
    %146 = vector.extract_strided_slice %145 {offsets = [0, 0], sizes = [8, 128], strides = [1, 1]} : vector<8x512xf32> to vector<8x128xf32>
    %cst_62 = arith.constant 5.000000e-01 : f32
    %147 = vector.broadcast %cst_62 : f32 to vector<8x128xf32>
    %148 = arith.mulf %147, %146 : vector<8x128xf32>
    %149 = math.tanh %148 : vector<8x128xf32>
    %cst_63 = arith.constant 1.000000e+00 : f32
    %150 = vector.broadcast %cst_63 : f32 to vector<8x128xf32>
    %151 = arith.addf %149, %150 : vector<8x128xf32>
    %cst_64 = arith.constant 5.000000e-01 : f32
    %152 = vector.broadcast %cst_64 : f32 to vector<8x128xf32>
    %153 = arith.mulf %152, %151 : vector<8x128xf32>
    %154 = vector.extract_strided_slice %145 {offsets = [0, 128], sizes = [8, 128], strides = [1, 1]} : vector<8x512xf32> to vector<8x128xf32>
    %cst_65 = arith.constant 5.000000e-01 : f32
    %155 = vector.broadcast %cst_65 : f32 to vector<8x128xf32>
    %156 = arith.mulf %155, %154 : vector<8x128xf32>
    %157 = math.tanh %156 : vector<8x128xf32>
    %cst_66 = arith.constant 1.000000e+00 : f32
    %158 = vector.broadcast %cst_66 : f32 to vector<8x128xf32>
    %159 = arith.addf %157, %158 : vector<8x128xf32>
    %cst_67 = arith.constant 5.000000e-01 : f32
    %160 = vector.broadcast %cst_67 : f32 to vector<8x128xf32>
    %161 = arith.mulf %160, %159 : vector<8x128xf32>
    %162 = vector.extract_strided_slice %145 {offsets = [0, 256], sizes = [8, 128], strides = [1, 1]} : vector<8x512xf32> to vector<8x128xf32>
    %163 = math.tanh %162 : vector<8x128xf32>
    %164 = vector.extract_strided_slice %145 {offsets = [0, 384], sizes = [8, 128], strides = [1, 1]} : vector<8x512xf32> to vector<8x128xf32>
    %cst_68 = arith.constant 5.000000e-01 : f32
    %165 = vector.broadcast %cst_68 : f32 to vector<8x128xf32>
    %166 = arith.mulf %165, %164 : vector<8x128xf32>
    %167 = math.tanh %166 : vector<8x128xf32>
    %cst_69 = arith.constant 1.000000e+00 : f32
    %168 = vector.broadcast %cst_69 : f32 to vector<8x128xf32>
    %169 = arith.addf %167, %168 : vector<8x128xf32>
    %cst_70 = arith.constant 5.000000e-01 : f32
    %170 = vector.broadcast %cst_70 : f32 to vector<8x128xf32>
    %171 = arith.mulf %170, %169 : vector<8x128xf32>
    %172 = arith.mulf %161, %132 : vector<8x128xf32>
    %173 = arith.mulf %153, %163 : vector<8x128xf32>
    %174 = arith.addf %172, %173 : vector<8x128xf32>
    %175 = math.tanh %174 : vector<8x128xf32>
    %176 = arith.mulf %171, %175 : vector<8x128xf32>
    %177 = arith.truncf %176 : vector<8x128xf32> to vector<8x128xbf16>
    %178 = arith.index_cast %139 : i32 to index
    %c0_71 = arith.constant 0 : index
    %179 = vector.load %arg7[%178, %c0_71] : memref<64x128xbf16, #tpu.memory_space<vmem>>, vector<8x128xbf16>
    tpu.vector_store %arg7[%178, %c0_71], %177 {strides = array<i32>} : memref<64x128xbf16, #tpu.memory_space<vmem>>, vector<8x128xbf16>,
    %c4_i32 = arith.constant 4 : i32
    %c8_i32_72 = arith.constant 8 : i32
    %180 = arith.muli %c4_i32, %c8_i32_72 : i32
    %181 = tpu.assume_multiple %180, 8 : i32
    %182 = arith.index_cast %181 : i32 to index
    %c0_73 = arith.constant 0 : index
    %183 = vector.load %arg10[%182, %c0_73] : memref<64x512xf32, #tpu.memory_space<vmem>>, vector<8x512xf32>
    %184 = arith.truncf %176 : vector<8x128xf32> to vector<8x128xbf16>
    %c0_74 = arith.constant 0 : index
    %c0_75 = arith.constant 0 : index
    %185 = vector.load %arg4[%c0_74, %c0_75] : memref<128x512xbf16, #tpu.memory_space<vmem>>, vector<128x512xbf16>
    %cst_76 = arith.constant dense<0.000000e+00> : vector<8x512xf32>
    %186 = tpu.matmul %184, %185, %cst_76 {dimension_numbers = #tpu.dot_dimension_numbers<[1], [0], [0], [1], [0, 0, 1, 1], [], []>} : vector<8x128xbf16>, vector<128x512xbf16>, vector<8x512xf32> -> vector<8x512xf32>
    %187 = arith.addf %183, %186 : vector<8x512xf32>
    %188 = vector.extract_strided_slice %187 {offsets = [0, 0], sizes = [8, 128], strides = [1, 1]} : vector<8x512xf32> to vector<8x128xf32>
    %cst_77 = arith.constant 5.000000e-01 : f32
    %189 = vector.broadcast %cst_77 : f32 to vector<8x128xf32>
    %190 = arith.mulf %189, %188 : vector<8x128xf32>
    %191 = math.tanh %190 : vector<8x128xf32>
    %cst_78 = arith.constant 1.000000e+00 : f32
    %192 = vector.broadcast %cst_78 : f32 to vector<8x128xf32>
    %193 = arith.addf %191, %192 : vector<8x128xf32>
    %cst_79 = arith.constant 5.000000e-01 : f32
    %194 = vector.broadcast %cst_79 : f32 to vector<8x128xf32>
    %195 = arith.mulf %194, %193 : vector<8x128xf32>
    %196 = vector.extract_strided_slice %187 {offsets = [0, 128], sizes = [8, 128], strides = [1, 1]} : vector<8x512xf32> to vector<8x128xf32>
    %cst_80 = arith.constant 5.000000e-01 : f32
    %197 = vector.broadcast %cst_80 : f32 to vector<8x128xf32>
    %198 = arith.mulf %197, %196 : vector<8x128xf32>
    %199 = math.tanh %198 : vector<8x128xf32>
    %cst_81 = arith.constant 1.000000e+00 : f32
    %200 = vector.broadcast %cst_81 : f32 to vector<8x128xf32>
    %201 = arith.addf %199, %200 : vector<8x128xf32>
    %cst_82 = arith.constant 5.000000e-01 : f32
    %202 = vector.broadcast %cst_82 : f32 to vector<8x128xf32>
    %203 = arith.mulf %202, %201 : vector<8x128xf32>
    %204 = vector.extract_strided_slice %187 {offsets = [0, 256], sizes = [8, 128], strides = [1, 1]} : vector<8x512xf32> to vector<8x128xf32>
    %205 = math.tanh %204 : vector<8x128xf32>
    %206 = vector.extract_strided_slice %187 {offsets = [0, 384], sizes = [8, 128], strides = [1, 1]} : vector<8x512xf32> to vector<8x128xf32>
    %cst_83 = arith.constant 5.000000e-01 : f32
    %207 = vector.broadcast %cst_83 : f32 to vector<8x128xf32>
    %208 = arith.mulf %207, %206 : vector<8x128xf32>
    %209 = math.tanh %208 : vector<8x128xf32>
    %cst_84 = arith.constant 1.000000e+00 : f32
    %210 = vector.broadcast %cst_84 : f32 to vector<8x128xf32>
    %211 = arith.addf %209, %210 : vector<8x128xf32>
    %cst_85 = arith.constant 5.000000e-01 : f32
    %212 = vector.broadcast %cst_85 : f32 to vector<8x128xf32>
    %213 = arith.mulf %212, %211 : vector<8x128xf32>
    %214 = arith.mulf %203, %174 : vector<8x128xf32>
    %215 = arith.mulf %195, %205 : vector<8x128xf32>
    %216 = arith.addf %214, %215 : vector<8x128xf32>
    %217 = math.tanh %216 : vector<8x128xf32>
    %218 = arith.mulf %213, %217 : vector<8x128xf32>
    %219 = arith.truncf %218 : vector<8x128xf32> to vector<8x128xbf16>
    %220 = arith.index_cast %181 : i32 to index
    %c0_86 = arith.constant 0 : index
    %221 = vector.load %arg7[%220, %c0_86] : memref<64x128xbf16, #tpu.memory_space<vmem>>, vector<8x128xbf16>
    tpu.vector_store %arg7[%220, %c0_86], %219 {strides = array<i32>} : memref<64x128xbf16, #tpu.memory_space<vmem>>, vector<8x128xbf16>,
    %c5_i32 = arith.constant 5 : i32
    %c8_i32_87 = arith.constant 8 : i32
    %222 = arith.muli %c5_i32, %c8_i32_87 : i32
    %223 = tpu.assume_multiple %222, 8 : i32
    %224 = arith.index_cast %223 : i32 to index
    %c0_88 = arith.constant 0 : index
    %225 = vector.load %arg10[%224, %c0_88] : memref<64x512xf32, #tpu.memory_space<vmem>>, vector<8x512xf32>
    %226 = arith.truncf %218 : vector<8x128xf32> to vector<8x128xbf16>
    %c0_89 = arith.constant 0 : index
    %c0_90 = arith.constant 0 : index
    %227 = vector.load %arg4[%c0_89, %c0_90] : memref<128x512xbf16, #tpu.memory_space<vmem>>, vector<128x512xbf16>
    %cst_91 = arith.constant dense<0.000000e+00> : vector<8x512xf32>
    %228 = tpu.matmul %226, %227, %cst_91 {dimension_numbers = #tpu.dot_dimension_numbers<[1], [0], [0], [1], [0, 0, 1, 1], [], []>} : vector<8x128xbf16>, vector<128x512xbf16>, vector<8x512xf32> -> vector<8x512xf32>
    %229 = arith.addf %225, %228 : vector<8x512xf32>
    %230 = vector.extract_strided_slice %229 {offsets = [0, 0], sizes = [8, 128], strides = [1, 1]} : vector<8x512xf32> to vector<8x128xf32>
    %cst_92 = arith.constant 5.000000e-01 : f32
    %231 = vector.broadcast %cst_92 : f32 to vector<8x128xf32>
    %232 = arith.mulf %231, %230 : vector<8x128xf32>
    %233 = math.tanh %232 : vector<8x128xf32>
    %cst_93 = arith.constant 1.000000e+00 : f32
    %234 = vector.broadcast %cst_93 : f32 to vector<8x128xf32>
    %235 = arith.addf %233, %234 : vector<8x128xf32>
    %cst_94 = arith.constant 5.000000e-01 : f32
    %236 = vector.broadcast %cst_94 : f32 to vector<8x128xf32>
    %237 = arith.mulf %236, %235 : vector<8x128xf32>
    %238 = vector.extract_strided_slice %229 {offsets = [0, 128], sizes = [8, 128], strides = [1, 1]} : vector<8x512xf32> to vector<8x128xf32>
    %cst_95 = arith.constant 5.000000e-01 : f32
    %239 = vector.broadcast %cst_95 : f32 to vector<8x128xf32>
    %240 = arith.mulf %239, %238 : vector<8x128xf32>
    %241 = math.tanh %240 : vector<8x128xf32>
    %cst_96 = arith.constant 1.000000e+00 : f32
    %242 = vector.broadcast %cst_96 : f32 to vector<8x128xf32>
    %243 = arith.addf %241, %242 : vector<8x128xf32>
    %cst_97 = arith.constant 5.000000e-01 : f32
    %244 = vector.broadcast %cst_97 : f32 to vector<8x128xf32>
    %245 = arith.mulf %244, %243 : vector<8x128xf32>
    %246 = vector.extract_strided_slice %229 {offsets = [0, 256], sizes = [8, 128], strides = [1, 1]} : vector<8x512xf32> to vector<8x128xf32>
    %247 = math.tanh %246 : vector<8x128xf32>
    %248 = vector.extract_strided_slice %229 {offsets = [0, 384], sizes = [8, 128], strides = [1, 1]} : vector<8x512xf32> to vector<8x128xf32>
    %cst_98 = arith.constant 5.000000e-01 : f32
    %249 = vector.broadcast %cst_98 : f32 to vector<8x128xf32>
    %250 = arith.mulf %249, %248 : vector<8x128xf32>
    %251 = math.tanh %250 : vector<8x128xf32>
    %cst_99 = arith.constant 1.000000e+00 : f32
    %252 = vector.broadcast %cst_99 : f32 to vector<8x128xf32>
    %253 = arith.addf %251, %252 : vector<8x128xf32>
    %cst_100 = arith.constant 5.000000e-01 : f32
    %254 = vector.broadcast %cst_100 : f32 to vector<8x128xf32>
    %255 = arith.mulf %254, %253 : vector<8x128xf32>
    %256 = arith.mulf %245, %216 : vector<8x128xf32>
    %257 = arith.mulf %237, %247 : vector<8x128xf32>
    %258 = arith.addf %256, %257 : vector<8x128xf32>
    %259 = math.tanh %258 : vector<8x128xf32>
    %260 = arith.mulf %255, %259 : vector<8x128xf32>
    %261 = arith.truncf %260 : vector<8x128xf32> to vector<8x128xbf16>
    %262 = arith.index_cast %223 : i32 to index
    %c0_101 = arith.constant 0 : index
    %263 = vector.load %arg7[%262, %c0_101] : memref<64x128xbf16, #tpu.memory_space<vmem>>, vector<8x128xbf16>
    tpu.vector_store %arg7[%262, %c0_101], %261 {strides = array<i32>} : memref<64x128xbf16, #tpu.memory_space<vmem>>, vector<8x128xbf16>,
    %c6_i32 = arith.constant 6 : i32
    %c8_i32_102 = arith.constant 8 : i32
    %264 = arith.muli %c6_i32, %c8_i32_102 : i32
    %265 = tpu.assume_multiple %264, 8 : i32
    %266 = arith.index_cast %265 : i32 to index
    %c0_103 = arith.constant 0 : index
    %267 = vector.load %arg10[%266, %c0_103] : memref<64x512xf32, #tpu.memory_space<vmem>>, vector<8x512xf32>
    %268 = arith.truncf %260 : vector<8x128xf32> to vector<8x128xbf16>
    %c0_104 = arith.constant 0 : index
    %c0_105 = arith.constant 0 : index
    %269 = vector.load %arg4[%c0_104, %c0_105] : memref<128x512xbf16, #tpu.memory_space<vmem>>, vector<128x512xbf16>
    %cst_106 = arith.constant dense<0.000000e+00> : vector<8x512xf32>
    %270 = tpu.matmul %268, %269, %cst_106 {dimension_numbers = #tpu.dot_dimension_numbers<[1], [0], [0], [1], [0, 0, 1, 1], [], []>} : vector<8x128xbf16>, vector<128x512xbf16>, vector<8x512xf32> -> vector<8x512xf32>
    %271 = arith.addf %267, %270 : vector<8x512xf32>
    %272 = vector.extract_strided_slice %271 {offsets = [0, 0], sizes = [8, 128], strides = [1, 1]} : vector<8x512xf32> to vector<8x128xf32>
    %cst_107 = arith.constant 5.000000e-01 : f32
    %273 = vector.broadcast %cst_107 : f32 to vector<8x128xf32>
    %274 = arith.mulf %273, %272 : vector<8x128xf32>
    %275 = math.tanh %274 : vector<8x128xf32>
    %cst_108 = arith.constant 1.000000e+00 : f32
    %276 = vector.broadcast %cst_108 : f32 to vector<8x128xf32>
    %277 = arith.addf %275, %276 : vector<8x128xf32>
    %cst_109 = arith.constant 5.000000e-01 : f32
    %278 = vector.broadcast %cst_109 : f32 to vector<8x128xf32>
    %279 = arith.mulf %278, %277 : vector<8x128xf32>
    %280 = vector.extract_strided_slice %271 {offsets = [0, 128], sizes = [8, 128], strides = [1, 1]} : vector<8x512xf32> to vector<8x128xf32>
    %cst_110 = arith.constant 5.000000e-01 : f32
    %281 = vector.broadcast %cst_110 : f32 to vector<8x128xf32>
    %282 = arith.mulf %281, %280 : vector<8x128xf32>
    %283 = math.tanh %282 : vector<8x128xf32>
    %cst_111 = arith.constant 1.000000e+00 : f32
    %284 = vector.broadcast %cst_111 : f32 to vector<8x128xf32>
    %285 = arith.addf %283, %284 : vector<8x128xf32>
    %cst_112 = arith.constant 5.000000e-01 : f32
    %286 = vector.broadcast %cst_112 : f32 to vector<8x128xf32>
    %287 = arith.mulf %286, %285 : vector<8x128xf32>
    %288 = vector.extract_strided_slice %271 {offsets = [0, 256], sizes = [8, 128], strides = [1, 1]} : vector<8x512xf32> to vector<8x128xf32>
    %289 = math.tanh %288 : vector<8x128xf32>
    %290 = vector.extract_strided_slice %271 {offsets = [0, 384], sizes = [8, 128], strides = [1, 1]} : vector<8x512xf32> to vector<8x128xf32>
    %cst_113 = arith.constant 5.000000e-01 : f32
    %291 = vector.broadcast %cst_113 : f32 to vector<8x128xf32>
    %292 = arith.mulf %291, %290 : vector<8x128xf32>
    %293 = math.tanh %292 : vector<8x128xf32>
    %cst_114 = arith.constant 1.000000e+00 : f32
    %294 = vector.broadcast %cst_114 : f32 to vector<8x128xf32>
    %295 = arith.addf %293, %294 : vector<8x128xf32>
    %cst_115 = arith.constant 5.000000e-01 : f32
    %296 = vector.broadcast %cst_115 : f32 to vector<8x128xf32>
    %297 = arith.mulf %296, %295 : vector<8x128xf32>
    %298 = arith.mulf %287, %258 : vector<8x128xf32>
    %299 = arith.mulf %279, %289 : vector<8x128xf32>
    %300 = arith.addf %298, %299 : vector<8x128xf32>
    %301 = math.tanh %300 : vector<8x128xf32>
    %302 = arith.mulf %297, %301 : vector<8x128xf32>
    %303 = arith.truncf %302 : vector<8x128xf32> to vector<8x128xbf16>
    %304 = arith.index_cast %265 : i32 to index
    %c0_116 = arith.constant 0 : index
    %305 = vector.load %arg7[%304, %c0_116] : memref<64x128xbf16, #tpu.memory_space<vmem>>, vector<8x128xbf16>
    tpu.vector_store %arg7[%304, %c0_116], %303 {strides = array<i32>} : memref<64x128xbf16, #tpu.memory_space<vmem>>, vector<8x128xbf16>,
    %c7_i32 = arith.constant 7 : i32
    %c8_i32_117 = arith.constant 8 : i32
    %306 = arith.muli %c7_i32, %c8_i32_117 : i32
    %307 = tpu.assume_multiple %306, 8 : i32
    %308 = arith.index_cast %307 : i32 to index
    %c0_118 = arith.constant 0 : index
    %309 = vector.load %arg10[%308, %c0_118] : memref<64x512xf32, #tpu.memory_space<vmem>>, vector<8x512xf32>
    %310 = arith.truncf %302 : vector<8x128xf32> to vector<8x128xbf16>
    %c0_119 = arith.constant 0 : index
    %c0_120 = arith.constant 0 : index
    %311 = vector.load %arg4[%c0_119, %c0_120] : memref<128x512xbf16, #tpu.memory_space<vmem>>, vector<128x512xbf16>
    %cst_121 = arith.constant dense<0.000000e+00> : vector<8x512xf32>
    %312 = tpu.matmul %310, %311, %cst_121 {dimension_numbers = #tpu.dot_dimension_numbers<[1], [0], [0], [1], [0, 0, 1, 1], [], []>} : vector<8x128xbf16>, vector<128x512xbf16>, vector<8x512xf32> -> vector<8x512xf32>
    %313 = arith.addf %309, %312 : vector<8x512xf32>
    %314 = vector.extract_strided_slice %313 {offsets = [0, 0], sizes = [8, 128], strides = [1, 1]} : vector<8x512xf32> to vector<8x128xf32>
    %cst_122 = arith.constant 5.000000e-01 : f32
    %315 = vector.broadcast %cst_122 : f32 to vector<8x128xf32>
    %316 = arith.mulf %315, %314 : vector<8x128xf32>
    %317 = math.tanh %316 : vector<8x128xf32>
    %cst_123 = arith.constant 1.000000e+00 : f32
    %318 = vector.broadcast %cst_123 : f32 to vector<8x128xf32>
    %319 = arith.addf %317, %318 : vector<8x128xf32>
    %cst_124 = arith.constant 5.000000e-01 : f32
    %320 = vector.broadcast %cst_124 : f32 to vector<8x128xf32>
    %321 = arith.mulf %320, %319 : vector<8x128xf32>
    %322 = vector.extract_strided_slice %313 {offsets = [0, 128], sizes = [8, 128], strides = [1, 1]} : vector<8x512xf32> to vector<8x128xf32>
    %cst_125 = arith.constant 5.000000e-01 : f32
    %323 = vector.broadcast %cst_125 : f32 to vector<8x128xf32>
    %324 = arith.mulf %323, %322 : vector<8x128xf32>
    %325 = math.tanh %324 : vector<8x128xf32>
    %cst_126 = arith.constant 1.000000e+00 : f32
    %326 = vector.broadcast %cst_126 : f32 to vector<8x128xf32>
    %327 = arith.addf %325, %326 : vector<8x128xf32>
    %cst_127 = arith.constant 5.000000e-01 : f32
    %328 = vector.broadcast %cst_127 : f32 to vector<8x128xf32>
    %329 = arith.mulf %328, %327 : vector<8x128xf32>
    %330 = vector.extract_strided_slice %313 {offsets = [0, 256], sizes = [8, 128], strides = [1, 1]} : vector<8x512xf32> to vector<8x128xf32>
    %331 = math.tanh %330 : vector<8x128xf32>
    %332 = vector.extract_strided_slice %313 {offsets = [0, 384], sizes = [8, 128], strides = [1, 1]} : vector<8x512xf32> to vector<8x128xf32>
    %cst_128 = arith.constant 5.000000e-01 : f32
    %333 = vector.broadcast %cst_128 : f32 to vector<8x128xf32>
    %334 = arith.mulf %333, %332 : vector<8x128xf32>
    %335 = math.tanh %334 : vector<8x128xf32>
    %cst_129 = arith.constant 1.000000e+00 : f32
    %336 = vector.broadcast %cst_129 : f32 to vector<8x128xf32>
    %337 = arith.addf %335, %336 : vector<8x128xf32>
    %cst_130 = arith.constant 5.000000e-01 : f32
    %338 = vector.broadcast %cst_130 : f32 to vector<8x128xf32>
    %339 = arith.mulf %338, %337 : vector<8x128xf32>
    %340 = arith.mulf %329, %300 : vector<8x128xf32>
    %341 = arith.mulf %321, %331 : vector<8x128xf32>
    %342 = arith.addf %340, %341 : vector<8x128xf32>
    %343 = math.tanh %342 : vector<8x128xf32>
    %344 = arith.mulf %339, %343 : vector<8x128xf32>
    %345 = arith.truncf %344 : vector<8x128xf32> to vector<8x128xbf16>
    %346 = arith.index_cast %307 : i32 to index
    %c0_131 = arith.constant 0 : index
    %347 = vector.load %arg7[%346, %c0_131] : memref<64x128xbf16, #tpu.memory_space<vmem>>, vector<8x128xbf16>
    tpu.vector_store %arg7[%346, %c0_131], %345 {strides = array<i32>} : memref<64x128xbf16, #tpu.memory_space<vmem>>, vector<8x128xbf16>,
    %c8_i32_132 = arith.constant 8 : i32
    %c0_133 = arith.constant 0 : index
    %c0_134 = arith.constant 0 : index
    %348 = vector.load %arg11[%c0_133, %c0_134] : memref<8x128xf32, #tpu.memory_space<vmem>>, vector<8x128xf32>
    tpu.vector_store %arg11[%c0_133, %c0_134], %344 {strides = array<i32>} : memref<8x128xf32, #tpu.memory_space<vmem>>, vector<8x128xf32>,
    %c0_135 = arith.constant 0 : index
    %c0_136 = arith.constant 0 : index
    %349 = vector.load %arg12[%c0_135, %c0_136] : memref<8x128xf32, #tpu.memory_space<vmem>>, vector<8x128xf32>
    tpu.vector_store %arg12[%c0_135, %c0_136], %342 {strides = array<i32>} : memref<8x128xf32, #tpu.memory_space<vmem>>, vector<8x128xf32>,
    %c0_i32_137 = arith.constant 0 : i32
    %350 = arith.cmpi eq, %arg0, %c0_i32_137 : i32
    %351 = arith.extui %350 : i1 to i32
    %c0_i32_138 = arith.constant 0 : i32
    %352 = arith.cmpi ne, %351, %c0_i32_138 : i32
    scf.if %352 {
      %c0_139 = arith.constant 0 : index
      %c0_140 = arith.constant 0 : index
      %353 = vector.load %arg8[%c0_139, %c0_140] : memref<8x128xf32, #tpu.memory_space<vmem>>, vector<8x128xf32>
      tpu.vector_store %arg8[%c0_139, %c0_140], %344 {strides = array<i32>} : memref<8x128xf32, #tpu.memory_space<vmem>>, vector<8x128xf32>,
      %c0_141 = arith.constant 0 : index
      %c0_142 = arith.constant 0 : index
      %354 = vector.load %arg9[%c0_141, %c0_142] : memref<8x128xf32, #tpu.memory_space<vmem>>, vector<8x128xf32>
      tpu.vector_store %arg9[%c0_141, %c0_142], %342 {strides = array<i32>} : memref<8x128xf32, #tpu.memory_space<vmem>>, vector<8x128xf32>,
    } else {
    }
    return
  }
  func.func @transform_0(%arg0: i32) -> (i32, i32) {
    %c0_i32 = arith.constant 0 : i32
    %c0_i32_0 = arith.constant 0 : i32
    return %arg0, %c0_i32 : i32, i32
  }
  func.func @transform_1(%arg0: i32) -> (i32, i32) {
    %c0_i32 = arith.constant 0 : i32
    %c0_i32_0 = arith.constant 0 : i32
    %c0_i32_1 = arith.constant 0 : i32
    return %c0_i32, %c0_i32_0 : i32, i32
  }
  func.func @transform_2(%arg0: i32) -> (i32, i32) {
    %c0_i32 = arith.constant 0 : i32
    %c0_i32_0 = arith.constant 0 : i32
    %c0_i32_1 = arith.constant 0 : i32
    return %c0_i32, %c0_i32_0 : i32, i32
  }
  func.func @transform_3(%arg0: i32) -> (i32, i32) {
    %c0_i32 = arith.constant 0 : i32
    %c0_i32_0 = arith.constant 0 : i32
    %c0_i32_1 = arith.constant 0 : i32
    return %c0_i32, %c0_i32_0 : i32, i32
  }
  func.func @transform_4(%arg0: i32) -> (i32, i32) {
    %c0_i32 = arith.constant 0 : i32
    %c0_i32_0 = arith.constant 0 : i32
    %c0_i32_1 = arith.constant 0 : i32
    return %c0_i32, %c0_i32_0 : i32, i32
  }
  func.func @transform_5(%arg0: i32) -> (i32, i32) {
    %c0_i32 = arith.constant 0 : i32
    %c0_i32_0 = arith.constant 0 : i32
    %c0_i32_1 = arith.constant 0 : i32
    return %c0_i32, %c0_i32_0 : i32, i32
  }
  func.func @transform_6(%arg0: i32) -> (i32, i32) {
    %c0_i32 = arith.constant 0 : i32
    %c0_i32_0 = arith.constant 0 : i32
    return %arg0, %c0_i32 : i32, i32
  }
  func.func @transform_7(%arg0: i32) -> (i32, i32) {
    %c0_i32 = arith.constant 0 : i32
    %c0_i32_0 = arith.constant 0 : i32
    %c0_i32_1 = arith.constant 0 : i32
    return %c0_i32, %c0_i32_0 : i32, i32
  }
  func.func @transform_8(%arg0: i32) -> (i32, i32) {
    %c0_i32 = arith.constant 0 : i32
    %c0_i32_0 = arith.constant 0 : i32
    %c0_i32_1 = arith.constant 0 : i32
    return %c0_i32, %c0_i32_0 : i32, i32
  }
}

module attributes {stable_mosaic.version = 11 : i64} {
  func.func @lstm_fused_kernel(%arg0: i32, %arg1: memref<64x128xbf16, #tpu.memory_space<vmem>>, %arg2: memref<128x512xbf16, #tpu.memory_space<vmem>>, %arg3: memref<1x512xf32, #tpu.memory_space<vmem>>, %arg4: memref<128x512xbf16, #tpu.memory_space<vmem>>, %arg5: memref<8x128xf32, #tpu.memory_space<vmem>>, %arg6: memref<8x128xf32, #tpu.memory_space<vmem>>, %arg7: memref<64x128xbf16, #tpu.memory_space<vmem>>, %arg8: memref<8x128xf32, #tpu.memory_space<vmem>>, %arg9: memref<8x128xf32, #tpu.memory_space<vmem>>, %arg10: memref<64x512xf32, #tpu.memory_space<vmem>>, %arg11: memref<8x128xf32, #tpu.memory_space<vmem>>, %arg12: memref<8x128xf32, #tpu.memory_space<vmem>>) attributes {dimension_semantics = [#tpu.dimension_semantics<arbitrary>], iteration_bounds = array<i64: 1>, scalar_prefetch = 0 : i64, scratch_operands = 3 : i64, tpu.core_type = #tpu.core_type<tc>, window_params = [{transform_indices = @transform_0, window_bounds = array<i64: 64, 128>}, {pipeline_mode = #tpu.pipeline_mode<synchronous>, transform_indices = @transform_1, window_bounds = array<i64: 128, 512>}, {pipeline_mode = #tpu.pipeline_mode<synchronous>, transform_indices = @transform_2, window_bounds = array<i64: 1, 512>}, {pipeline_mode = #tpu.pipeline_mode<synchronous>, transform_indices = @transform_3, window_bounds = array<i64: 128, 512>}, {pipeline_mode = #tpu.pipeline_mode<synchronous>, transform_indices = @transform_4, window_bounds = array<i64: 8, 128>}, {pipeline_mode = #tpu.pipeline_mode<synchronous>, transform_indices = @transform_5, window_bounds = array<i64: 8, 128>}, {transform_indices = @transform_6, window_bounds = array<i64: 64, 128>}, {pipeline_mode = #tpu.pipeline_mode<synchronous>, transform_indices = @transform_7, window_bounds = array<i64: 8, 128>}, {pipeline_mode = #tpu.pipeline_mode<synchronous>, transform_indices = @transform_8, window_bounds = array<i64: 8, 128>}]} {
    %c0_i32 = arith.constant 0 : i32
    %0 = arith.cmpi eq, %arg0, %c0_i32 : i32
    %1 = arith.extui %0 : i1 to i32
    %c0_i32_0 = arith.constant 0 : i32
    %2 = arith.cmpi ne, %1, %c0_i32_0 : i32
    scf.if %2 {
      %c0_139 = arith.constant 0 : index
      %c0_140 = arith.constant 0 : index
      %353 = vector.load %arg5[%c0_139, %c0_140] : memref<8x128xf32, #tpu.memory_space<vmem>>, vector<8x128xf32>
      %c0_141 = arith.constant 0 : index
      %c0_142 = arith.constant 0 : index
      %354 = vector.load %arg11[%c0_141, %c0_142] : memref<8x128xf32, #tpu.memory_space<vmem>>, vector<8x128xf32>
      tpu.vector_store %arg11[%c0_141, %c0_142], %353 {strides = array<i32>} : memref<8x128xf32, #tpu.memory_space<vmem>>, vector<8x128xf32>,
      %c0_143 = arith.constant 0 : index
      %c0_144 = arith.constant 0 : index
      %355 = vector.load %arg6[%c0_143, %c0_144] : memref<8x128xf32, #tpu.memory_space<vmem>>, vector<8x128xf32>
      %c0_145 = arith.constant 0 : index
      %c0_146 = arith.constant 0 : index
      %356 = vector.load %arg12[%c0_145, %c0_146] : memref<8x128xf32, #tpu.memory_space<vmem>>, vector<8x128xf32>
      tpu.vector_store %arg12[%c0_145, %c0_146], %355 {strides = array<i32>} : memref<8x128xf32, #tpu.memory_space<vmem>>, vector<8x128xf32>,
    } else {
    }
    %c0 = arith.constant 0 : index
    %c0_1 = arith.constant 0 : index
    %3 = vector.load %arg1[%c0, %c0_1] : memref<64x128xbf16, #tpu.memory_space<vmem>>, vector<64x128xbf16>
    %c0_2 = arith.constant 0 : index
    %c0_3 = arith.constant 0 : index
    %4 = vector.load %arg2[%c0_2, %c0_3] : memref<128x512xbf16, #tpu.memory_space<vmem>>, vector<128x512xbf16>
    %cst = arith.constant dense<0.000000e+00> : vector<64x512xf32>
    %5 = tpu.matmul %3, %4, %cst {dimension_numbers = #tpu.dot_dimension_numbers<[1], [0], [0], [1], [0, 0, 1, 1], [], []>} : vector<64x128xbf16>, vector<128x512xbf16>, vector<64x512xf32> -> vector<64x512xf32>
    %c0_4 = arith.constant 0 : index
    %c0_5 = arith.constant 0 : index
    %6 = vector.load %arg3[%c0_4, %c0_5] : memref<1x512xf32, #tpu.memory_space<vmem>>, vector<1x512xf32>
    %7 = vector.broadcast %6 : vector<1x512xf32> to vector<64x512xf32>
    %8 = arith.addf %5, %7 : vector<64x512xf32>
    %c0_6 = arith.constant 0 : index
    %c0_7 = arith.constant 0 : index
    %9 = vector.load %arg10[%c0_6, %c0_7] : memref<64x512xf32, #tpu.memory_space<vmem>>, vector<64x512xf32>
    tpu.vector_store %arg10[%c0_6, %c0_7], %8 {strides = array<i32>} : memref<64x512xf32, #tpu.memory_space<vmem>>, vector<64x512xf32>,
    %c0_8 = arith.constant 0 : index
    %c0_9 = arith.constant 0 : index
    %10 = vector.load %arg11[%c0_8, %c0_9] : memref<8x128xf32, #tpu.memory_space<vmem>>, vector<8x128xf32>
    %c0_10 = arith.constant 0 : index
    %c0_11 = arith.constant 0 : index
    %11 = vector.load %arg12[%c0_10, %c0_11] : memref<8x128xf32, #tpu.memory_space<vmem>>, vector<8x128xf32>
    %c0_i32_12 = arith.constant 0 : i32
    %c8_i32 = arith.constant 8 : i32
    %12 = arith.muli %c0_i32_12, %c8_i32 : i32
    %13 = tpu.assume_multiple %12, 8 : i32
    %14 = arith.index_cast %13 : i32 to index
    %c0_13 = arith.constant 0 : index
    %15 = vector.load %arg10[%14, %c0_13] : memref<64x512xf32, #tpu.memory_space<vmem>>, vector<8x512xf32>
    %16 = arith.truncf %10 : vector<8x128xf32> to vector<8x128xbf16>
    %c0_14 = arith.constant 0 : index
    %c0_15 = arith.constant 0 : index
    %17 = vector.load %arg4[%c0_14, %c0_15] : memref<128x512xbf16, #tpu.memory_space<vmem>>, vector<128x512xbf16>
    %cst_16 = arith.constant dense<0.000000e+00> : vector<8x512xf32>
    %18 = tpu.matmul %16, %17, %cst_16 {dimension_numbers = #tpu.dot_dimension_numbers<[1], [0], [0], [1], [0, 0, 1, 1], [], []>} : vector<8x128xbf16>, vector<128x512xbf16>, vector<8x512xf32> -> vector<8x512xf32>
    %19 = arith.addf %15, %18 : vector<8x512xf32>
    %20 = vector.extract_strided_slice %19 {offsets = [0, 0], sizes = [8, 128], strides = [1, 1]} : vector<8x512xf32> to vector<8x128xf32>
    %cst_17 = arith.constant 5.000000e-01 : f32
    %21 = vector.broadcast %cst_17 : f32 to vector<8x128xf32>
    %22 = arith.mulf %21, %20 : vector<8x128xf32>
    %23 = math.tanh %22 : vector<8x128xf32>
    %cst_18 = arith.constant 1.000000e+00 : f32
    %24 = vector.broadcast %cst_18 : f32 to vector<8x128xf32>
    %25 = arith.addf %23, %24 : vector<8x128xf32>
    %cst_19 = arith.constant 5.000000e-01 : f32
    %26 = vector.broadcast %cst_19 : f32 to vector<8x128xf32>
    %27 = arith.mulf %26, %25 : vector<8x128xf32>
    %28 = vector.extract_strided_slice %19 {offsets = [0, 128], sizes = [8, 128], strides = [1, 1]} : vector<8x512xf32> to vector<8x128xf32>
    %cst_20 = arith.constant 5.000000e-01 : f32
    %29 = vector.broadcast %cst_20 : f32 to vector<8x128xf32>
    %30 = arith.mulf %29, %28 : vector<8x128xf32>
    %31 = math.tanh %30 : vector<8x128xf32>
    %cst_21 = arith.constant 1.000000e+00 : f32
    %32 = vector.broadcast %cst_21 : f32 to vector<8x128xf32>
    %33 = arith.addf %31, %32 : vector<8x128xf32>
    %cst_22 = arith.constant 5.000000e-01 : f32
    %34 = vector.broadcast %cst_22 : f32 to vector<8x128xf32>
    %35 = arith.mulf %34, %33 : vector<8x128xf32>
    %36 = vector.extract_strided_slice %19 {offsets = [0, 256], sizes = [8, 128], strides = [1, 1]} : vector<8x512xf32> to vector<8x128xf32>
    %37 = math.tanh %36 : vector<8x128xf32>
    %38 = vector.extract_strided_slice %19 {offsets = [0, 384], sizes = [8, 128], strides = [1, 1]} : vector<8x512xf32> to vector<8x128xf32>
    %cst_23 = arith.constant 5.000000e-01 : f32
    %39 = vector.broadcast %cst_23 : f32 to vector<8x128xf32>
    %40 = arith.mulf %39, %38 : vector<8x128xf32>
    %41 = math.tanh %40 : vector<8x128xf32>
    %cst_24 = arith.constant 1.000000e+00 : f32
    %42 = vector.broadcast %cst_24 : f32 to vector<8x128xf32>
    %43 = arith.addf %41, %42 : vector<8x128xf32>
    %cst_25 = arith.constant 5.000000e-01 : f32
    %44 = vector.broadcast %cst_25 : f32 to vector<8x128xf32>
    %45 = arith.mulf %44, %43 : vector<8x128xf32>
    %46 = arith.mulf %35, %11 : vector<8x128xf32>
    %47 = arith.mulf %27, %37 : vector<8x128xf32>
    %48 = arith.addf %46, %47 : vector<8x128xf32>
    %49 = math.tanh %48 : vector<8x128xf32>
    %50 = arith.mulf %45, %49 : vector<8x128xf32>
    %51 = arith.truncf %50 : vector<8x128xf32> to vector<8x128xbf16>
    %52 = arith.index_cast %13 : i32 to index
    %c0_26 = arith.constant 0 : index
    %53 = vector.load %arg7[%52, %c0_26] : memref<64x128xbf16, #tpu.memory_space<vmem>>, vector<8x128xbf16>
    tpu.vector_store %arg7[%52, %c0_26], %51 {strides = array<i32>} : memref<64x128xbf16, #tpu.memory_space<vmem>>, vector<8x128xbf16>,
    %c1_i32 = arith.constant 1 : i32
    %c8_i32_27 = arith.constant 8 : i32
    %54 = arith.muli %c1_i32, %c8_i32_27 : i32
    %55 = tpu.assume_multiple %54, 8 : i32
    %56 = arith.index_cast %55 : i32 to index
    %c0_28 = arith.constant 0 : index
    %57 = vector.load %arg10[%56, %c0_28] : memref<64x512xf32, #tpu.memory_space<vmem>>, vector<8x512xf32>
    %58 = arith.truncf %50 : vector<8x128xf32> to vector<8x128xbf16>
    %c0_29 = arith.constant 0 : index
    %c0_30 = arith.constant 0 : index
    %59 = vector.load %arg4[%c0_29, %c0_30] : memref<128x512xbf16, #tpu.memory_space<vmem>>, vector<128x512xbf16>
    %cst_31 = arith.constant dense<0.000000e+00> : vector<8x512xf32>
    %60 = tpu.matmul %58, %59, %cst_31 {dimension_numbers = #tpu.dot_dimension_numbers<[1], [0], [0], [1], [0, 0, 1, 1], [], []>} : vector<8x128xbf16>, vector<128x512xbf16>, vector<8x512xf32> -> vector<8x512xf32>
    %61 = arith.addf %57, %60 : vector<8x512xf32>
    %62 = vector.extract_strided_slice %61 {offsets = [0, 0], sizes = [8, 128], strides = [1, 1]} : vector<8x512xf32> to vector<8x128xf32>
    %cst_32 = arith.constant 5.000000e-01 : f32
    %63 = vector.broadcast %cst_32 : f32 to vector<8x128xf32>
    %64 = arith.mulf %63, %62 : vector<8x128xf32>
    %65 = math.tanh %64 : vector<8x128xf32>
    %cst_33 = arith.constant 1.000000e+00 : f32
    %66 = vector.broadcast %cst_33 : f32 to vector<8x128xf32>
    %67 = arith.addf %65, %66 : vector<8x128xf32>
    %cst_34 = arith.constant 5.000000e-01 : f32
    %68 = vector.broadcast %cst_34 : f32 to vector<8x128xf32>
    %69 = arith.mulf %68, %67 : vector<8x128xf32>
    %70 = vector.extract_strided_slice %61 {offsets = [0, 128], sizes = [8, 128], strides = [1, 1]} : vector<8x512xf32> to vector<8x128xf32>
    %cst_35 = arith.constant 5.000000e-01 : f32
    %71 = vector.broadcast %cst_35 : f32 to vector<8x128xf32>
    %72 = arith.mulf %71, %70 : vector<8x128xf32>
    %73 = math.tanh %72 : vector<8x128xf32>
    %cst_36 = arith.constant 1.000000e+00 : f32
    %74 = vector.broadcast %cst_36 : f32 to vector<8x128xf32>
    %75 = arith.addf %73, %74 : vector<8x128xf32>
    %cst_37 = arith.constant 5.000000e-01 : f32
    %76 = vector.broadcast %cst_37 : f32 to vector<8x128xf32>
    %77 = arith.mulf %76, %75 : vector<8x128xf32>
    %78 = vector.extract_strided_slice %61 {offsets = [0, 256], sizes = [8, 128], strides = [1, 1]} : vector<8x512xf32> to vector<8x128xf32>
    %79 = math.tanh %78 : vector<8x128xf32>
    %80 = vector.extract_strided_slice %61 {offsets = [0, 384], sizes = [8, 128], strides = [1, 1]} : vector<8x512xf32> to vector<8x128xf32>
    %cst_38 = arith.constant 5.000000e-01 : f32
    %81 = vector.broadcast %cst_38 : f32 to vector<8x128xf32>
    %82 = arith.mulf %81, %80 : vector<8x128xf32>
    %83 = math.tanh %82 : vector<8x128xf32>
    %cst_39 = arith.constant 1.000000e+00 : f32
    %84 = vector.broadcast %cst_39 : f32 to vector<8x128xf32>
    %85 = arith.addf %83, %84 : vector<8x128xf32>
    %cst_40 = arith.constant 5.000000e-01 : f32
    %86 = vector.broadcast %cst_40 : f32 to vector<8x128xf32>
    %87 = arith.mulf %86, %85 : vector<8x128xf32>
    %88 = arith.mulf %77, %48 : vector<8x128xf32>
    %89 = arith.mulf %69, %79 : vector<8x128xf32>
    %90 = arith.addf %88, %89 : vector<8x128xf32>
    %91 = math.tanh %90 : vector<8x128xf32>
    %92 = arith.mulf %87, %91 : vector<8x128xf32>
    %93 = arith.truncf %92 : vector<8x128xf32> to vector<8x128xbf16>
    %94 = arith.index_cast %55 : i32 to index
    %c0_41 = arith.constant 0 : index
    %95 = vector.load %arg7[%94, %c0_41] : memref<64x128xbf16, #tpu.memory_space<vmem>>, vector<8x128xbf16>
    tpu.vector_store %arg7[%94, %c0_41], %93 {strides = array<i32>} : memref<64x128xbf16, #tpu.memory_space<vmem>>, vector<8x128xbf16>,
    %c2_i32 = arith.constant 2 : i32
    %c8_i32_42 = arith.constant 8 : i32
    %96 = arith.muli %c2_i32, %c8_i32_42 : i32
    %97 = tpu.assume_multiple %96, 8 : i32
    %98 = arith.index_cast %97 : i32 to index
    %c0_43 = arith.constant 0 : index
    %99 = vector.load %arg10[%98, %c0_43] : memref<64x512xf32, #tpu.memory_space<vmem>>, vector<8x512xf32>
    %100 = arith.truncf %92 : vector<8x128xf32> to vector<8x128xbf16>
    %c0_44 = arith.constant 0 : index
    %c0_45 = arith.constant 0 : index
    %101 = vector.load %arg4[%c0_44, %c0_45] : memref<128x512xbf16, #tpu.memory_space<vmem>>, vector<128x512xbf16>
    %cst_46 = arith.constant dense<0.000000e+00> : vector<8x512xf32>
    %102 = tpu.matmul %100, %101, %cst_46 {dimension_numbers = #tpu.dot_dimension_numbers<[1], [0], [0], [1], [0, 0, 1, 1], [], []>} : vector<8x128xbf16>, vector<128x512xbf16>, vector<8x512xf32> -> vector<8x512xf32>
    %103 = arith.addf %99, %102 : vector<8x512xf32>
    %104 = vector.extract_strided_slice %103 {offsets = [0, 0], sizes = [8, 128], strides = [1, 1]} : vector<8x512xf32> to vector<8x128xf32>
    %cst_47 = arith.constant 5.000000e-01 : f32
    %105 = vector.broadcast %cst_47 : f32 to vector<8x128xf32>
    %106 = arith.mulf %105, %104 : vector<8x128xf32>
    %107 = math.tanh %106 : vector<8x128xf32>
    %cst_48 = arith.constant 1.000000e+00 : f32
    %108 = vector.broadcast %cst_48 : f32 to vector<8x128xf32>
    %109 = arith.addf %107, %108 : vector<8x128xf32>
    %cst_49 = arith.constant 5.000000e-01 : f32
    %110 = vector.broadcast %cst_49 : f32 to vector<8x128xf32>
    %111 = arith.mulf %110, %109 : vector<8x128xf32>
    %112 = vector.extract_strided_slice %103 {offsets = [0, 128], sizes = [8, 128], strides = [1, 1]} : vector<8x512xf32> to vector<8x128xf32>
    %cst_50 = arith.constant 5.000000e-01 : f32
    %113 = vector.broadcast %cst_50 : f32 to vector<8x128xf32>
    %114 = arith.mulf %113, %112 : vector<8x128xf32>
    %115 = math.tanh %114 : vector<8x128xf32>
    %cst_51 = arith.constant 1.000000e+00 : f32
    %116 = vector.broadcast %cst_51 : f32 to vector<8x128xf32>
    %117 = arith.addf %115, %116 : vector<8x128xf32>
    %cst_52 = arith.constant 5.000000e-01 : f32
    %118 = vector.broadcast %cst_52 : f32 to vector<8x128xf32>
    %119 = arith.mulf %118, %117 : vector<8x128xf32>
    %120 = vector.extract_strided_slice %103 {offsets = [0, 256], sizes = [8, 128], strides = [1, 1]} : vector<8x512xf32> to vector<8x128xf32>
    %121 = math.tanh %120 : vector<8x128xf32>
    %122 = vector.extract_strided_slice %103 {offsets = [0, 384], sizes = [8, 128], strides = [1, 1]} : vector<8x512xf32> to vector<8x128xf32>
    %cst_53 = arith.constant 5.000000e-01 : f32
    %123 = vector.broadcast %cst_53 : f32 to vector<8x128xf32>
    %124 = arith.mulf %123, %122 : vector<8x128xf32>
    %125 = math.tanh %124 : vector<8x128xf32>
    %cst_54 = arith.constant 1.000000e+00 : f32
    %126 = vector.broadcast %cst_54 : f32 to vector<8x128xf32>
    %127 = arith.addf %125, %126 : vector<8x128xf32>
    %cst_55 = arith.constant 5.000000e-01 : f32
    %128 = vector.broadcast %cst_55 : f32 to vector<8x128xf32>
    %129 = arith.mulf %128, %127 : vector<8x128xf32>
    %130 = arith.mulf %119, %90 : vector<8x128xf32>
    %131 = arith.mulf %111, %121 : vector<8x128xf32>
    %132 = arith.addf %130, %131 : vector<8x128xf32>
    %133 = math.tanh %132 : vector<8x128xf32>
    %134 = arith.mulf %129, %133 : vector<8x128xf32>
    %135 = arith.truncf %134 : vector<8x128xf32> to vector<8x128xbf16>
    %136 = arith.index_cast %97 : i32 to index
    %c0_56 = arith.constant 0 : index
    %137 = vector.load %arg7[%136, %c0_56] : memref<64x128xbf16, #tpu.memory_space<vmem>>, vector<8x128xbf16>
    tpu.vector_store %arg7[%136, %c0_56], %135 {strides = array<i32>} : memref<64x128xbf16, #tpu.memory_space<vmem>>, vector<8x128xbf16>,
    %c3_i32 = arith.constant 3 : i32
    %c8_i32_57 = arith.constant 8 : i32
    %138 = arith.muli %c3_i32, %c8_i32_57 : i32
    %139 = tpu.assume_multiple %138, 8 : i32
    %140 = arith.index_cast %139 : i32 to index
    %c0_58 = arith.constant 0 : index
    %141 = vector.load %arg10[%140, %c0_58] : memref<64x512xf32, #tpu.memory_space<vmem>>, vector<8x512xf32>
    %142 = arith.truncf %134 : vector<8x128xf32> to vector<8x128xbf16>
    %c0_59 = arith.constant 0 : index
    %c0_60 = arith.constant 0 : index
    %143 = vector.load %arg4[%c0_59, %c0_60] : memref<128x512xbf16, #tpu.memory_space<vmem>>, vector<128x512xbf16>
    %cst_61 = arith.constant dense<0.000000e+00> : vector<8x512xf32>
    %144 = tpu.matmul %142, %143, %cst_61 {dimension_numbers = #tpu.dot_dimension_numbers<[1], [0], [0], [1], [0, 0, 1, 1], [], []>} : vector<8x128xbf16>, vector<128x512xbf16>, vector<8x512xf32> -> vector<8x512xf32>
    %145 = arith.addf %141, %144 : vector<8x512xf32>
    %146 = vector.extract_strided_slice %145 {offsets = [0, 0], sizes = [8, 128], strides = [1, 1]} : vector<8x512xf32> to vector<8x128xf32>
    %cst_62 = arith.constant 5.000000e-01 : f32
    %147 = vector.broadcast %cst_62 : f32 to vector<8x128xf32>
    %148 = arith.mulf %147, %146 : vector<8x128xf32>
    %149 = math.tanh %148 : vector<8x128xf32>
    %cst_63 = arith.constant 1.000000e+00 : f32
    %150 = vector.broadcast %cst_63 : f32 to vector<8x128xf32>
    %151 = arith.addf %149, %150 : vector<8x128xf32>
    %cst_64 = arith.constant 5.000000e-01 : f32
    %152 = vector.broadcast %cst_64 : f32 to vector<8x128xf32>
    %153 = arith.mulf %152, %151 : vector<8x128xf32>
    %154 = vector.extract_strided_slice %145 {offsets = [0, 128], sizes = [8, 128], strides = [1, 1]} : vector<8x512xf32> to vector<8x128xf32>
    %cst_65 = arith.constant 5.000000e-01 : f32
    %155 = vector.broadcast %cst_65 : f32 to vector<8x128xf32>
    %156 = arith.mulf %155, %154 : vector<8x128xf32>
    %157 = math.tanh %156 : vector<8x128xf32>
    %cst_66 = arith.constant 1.000000e+00 : f32
    %158 = vector.broadcast %cst_66 : f32 to vector<8x128xf32>
    %159 = arith.addf %157, %158 : vector<8x128xf32>
    %cst_67 = arith.constant 5.000000e-01 : f32
    %160 = vector.broadcast %cst_67 : f32 to vector<8x128xf32>
    %161 = arith.mulf %160, %159 : vector<8x128xf32>
    %162 = vector.extract_strided_slice %145 {offsets = [0, 256], sizes = [8, 128], strides = [1, 1]} : vector<8x512xf32> to vector<8x128xf32>
    %163 = math.tanh %162 : vector<8x128xf32>
    %164 = vector.extract_strided_slice %145 {offsets = [0, 384], sizes = [8, 128], strides = [1, 1]} : vector<8x512xf32> to vector<8x128xf32>
    %cst_68 = arith.constant 5.000000e-01 : f32
    %165 = vector.broadcast %cst_68 : f32 to vector<8x128xf32>
    %166 = arith.mulf %165, %164 : vector<8x128xf32>
    %167 = math.tanh %166 : vector<8x128xf32>
    %cst_69 = arith.constant 1.000000e+00 : f32
    %168 = vector.broadcast %cst_69 : f32 to vector<8x128xf32>
    %169 = arith.addf %167, %168 : vector<8x128xf32>
    %cst_70 = arith.constant 5.000000e-01 : f32
    %170 = vector.broadcast %cst_70 : f32 to vector<8x128xf32>
    %171 = arith.mulf %170, %169 : vector<8x128xf32>
    %172 = arith.mulf %161, %132 : vector<8x128xf32>
    %173 = arith.mulf %153, %163 : vector<8x128xf32>
    %174 = arith.addf %172, %173 : vector<8x128xf32>
    %175 = math.tanh %174 : vector<8x128xf32>
    %176 = arith.mulf %171, %175 : vector<8x128xf32>
    %177 = arith.truncf %176 : vector<8x128xf32> to vector<8x128xbf16>
    %178 = arith.index_cast %139 : i32 to index
    %c0_71 = arith.constant 0 : index
    %179 = vector.load %arg7[%178, %c0_71] : memref<64x128xbf16, #tpu.memory_space<vmem>>, vector<8x128xbf16>
    tpu.vector_store %arg7[%178, %c0_71], %177 {strides = array<i32>} : memref<64x128xbf16, #tpu.memory_space<vmem>>, vector<8x128xbf16>,
    %c4_i32 = arith.constant 4 : i32
    %c8_i32_72 = arith.constant 8 : i32
    %180 = arith.muli %c4_i32, %c8_i32_72 : i32
    %181 = tpu.assume_multiple %180, 8 : i32
    %182 = arith.index_cast %181 : i32 to index
    %c0_73 = arith.constant 0 : index
    %183 = vector.load %arg10[%182, %c0_73] : memref<64x512xf32, #tpu.memory_space<vmem>>, vector<8x512xf32>
    %184 = arith.truncf %176 : vector<8x128xf32> to vector<8x128xbf16>
    %c0_74 = arith.constant 0 : index
    %c0_75 = arith.constant 0 : index
    %185 = vector.load %arg4[%c0_74, %c0_75] : memref<128x512xbf16, #tpu.memory_space<vmem>>, vector<128x512xbf16>
    %cst_76 = arith.constant dense<0.000000e+00> : vector<8x512xf32>
    %186 = tpu.matmul %184, %185, %cst_76 {dimension_numbers = #tpu.dot_dimension_numbers<[1], [0], [0], [1], [0, 0, 1, 1], [], []>} : vector<8x128xbf16>, vector<128x512xbf16>, vector<8x512xf32> -> vector<8x512xf32>
    %187 = arith.addf %183, %186 : vector<8x512xf32>
    %188 = vector.extract_strided_slice %187 {offsets = [0, 0], sizes = [8, 128], strides = [1, 1]} : vector<8x512xf32> to vector<8x128xf32>
    %cst_77 = arith.constant 5.000000e-01 : f32
    %189 = vector.broadcast %cst_77 : f32 to vector<8x128xf32>
    %190 = arith.mulf %189, %188 : vector<8x128xf32>
    %191 = math.tanh %190 : vector<8x128xf32>
    %cst_78 = arith.constant 1.000000e+00 : f32
    %192 = vector.broadcast %cst_78 : f32 to vector<8x128xf32>
    %193 = arith.addf %191, %192 : vector<8x128xf32>
    %cst_79 = arith.constant 5.000000e-01 : f32
    %194 = vector.broadcast %cst_79 : f32 to vector<8x128xf32>
    %195 = arith.mulf %194, %193 : vector<8x128xf32>
    %196 = vector.extract_strided_slice %187 {offsets = [0, 128], sizes = [8, 128], strides = [1, 1]} : vector<8x512xf32> to vector<8x128xf32>
    %cst_80 = arith.constant 5.000000e-01 : f32
    %197 = vector.broadcast %cst_80 : f32 to vector<8x128xf32>
    %198 = arith.mulf %197, %196 : vector<8x128xf32>
    %199 = math.tanh %198 : vector<8x128xf32>
    %cst_81 = arith.constant 1.000000e+00 : f32
    %200 = vector.broadcast %cst_81 : f32 to vector<8x128xf32>
    %201 = arith.addf %199, %200 : vector<8x128xf32>
    %cst_82 = arith.constant 5.000000e-01 : f32
    %202 = vector.broadcast %cst_82 : f32 to vector<8x128xf32>
    %203 = arith.mulf %202, %201 : vector<8x128xf32>
    %204 = vector.extract_strided_slice %187 {offsets = [0, 256], sizes = [8, 128], strides = [1, 1]} : vector<8x512xf32> to vector<8x128xf32>
    %205 = math.tanh %204 : vector<8x128xf32>
    %206 = vector.extract_strided_slice %187 {offsets = [0, 384], sizes = [8, 128], strides = [1, 1]} : vector<8x512xf32> to vector<8x128xf32>
    %cst_83 = arith.constant 5.000000e-01 : f32
    %207 = vector.broadcast %cst_83 : f32 to vector<8x128xf32>
    %208 = arith.mulf %207, %206 : vector<8x128xf32>
    %209 = math.tanh %208 : vector<8x128xf32>
    %cst_84 = arith.constant 1.000000e+00 : f32
    %210 = vector.broadcast %cst_84 : f32 to vector<8x128xf32>
    %211 = arith.addf %209, %210 : vector<8x128xf32>
    %cst_85 = arith.constant 5.000000e-01 : f32
    %212 = vector.broadcast %cst_85 : f32 to vector<8x128xf32>
    %213 = arith.mulf %212, %211 : vector<8x128xf32>
    %214 = arith.mulf %203, %174 : vector<8x128xf32>
    %215 = arith.mulf %195, %205 : vector<8x128xf32>
    %216 = arith.addf %214, %215 : vector<8x128xf32>
    %217 = math.tanh %216 : vector<8x128xf32>
    %218 = arith.mulf %213, %217 : vector<8x128xf32>
    %219 = arith.truncf %218 : vector<8x128xf32> to vector<8x128xbf16>
    %220 = arith.index_cast %181 : i32 to index
    %c0_86 = arith.constant 0 : index
    %221 = vector.load %arg7[%220, %c0_86] : memref<64x128xbf16, #tpu.memory_space<vmem>>, vector<8x128xbf16>
    tpu.vector_store %arg7[%220, %c0_86], %219 {strides = array<i32>} : memref<64x128xbf16, #tpu.memory_space<vmem>>, vector<8x128xbf16>,
    %c5_i32 = arith.constant 5 : i32
    %c8_i32_87 = arith.constant 8 : i32
    %222 = arith.muli %c5_i32, %c8_i32_87 : i32
    %223 = tpu.assume_multiple %222, 8 : i32
    %224 = arith.index_cast %223 : i32 to index
    %c0_88 = arith.constant 0 : index
    %225 = vector.load %arg10[%224, %c0_88] : memref<64x512xf32, #tpu.memory_space<vmem>>, vector<8x512xf32>
    %226 = arith.truncf %218 : vector<8x128xf32> to vector<8x128xbf16>
    %c0_89 = arith.constant 0 : index
    %c0_90 = arith.constant 0 : index
    %227 = vector.load %arg4[%c0_89, %c0_90] : memref<128x512xbf16, #tpu.memory_space<vmem>>, vector<128x512xbf16>
    %cst_91 = arith.constant dense<0.000000e+00> : vector<8x512xf32>
    %228 = tpu.matmul %226, %227, %cst_91 {dimension_numbers = #tpu.dot_dimension_numbers<[1], [0], [0], [1], [0, 0, 1, 1], [], []>} : vector<8x128xbf16>, vector<128x512xbf16>, vector<8x512xf32> -> vector<8x512xf32>
    %229 = arith.addf %225, %228 : vector<8x512xf32>
    %230 = vector.extract_strided_slice %229 {offsets = [0, 0], sizes = [8, 128], strides = [1, 1]} : vector<8x512xf32> to vector<8x128xf32>
    %cst_92 = arith.constant 5.000000e-01 : f32
    %231 = vector.broadcast %cst_92 : f32 to vector<8x128xf32>
    %232 = arith.mulf %231, %230 : vector<8x128xf32>
    %233 = math.tanh %232 : vector<8x128xf32>
    %cst_93 = arith.constant 1.000000e+00 : f32
    %234 = vector.broadcast %cst_93 : f32 to vector<8x128xf32>
    %235 = arith.addf %233, %234 : vector<8x128xf32>
    %cst_94 = arith.constant 5.000000e-01 : f32
    %236 = vector.broadcast %cst_94 : f32 to vector<8x128xf32>
    %237 = arith.mulf %236, %235 : vector<8x128xf32>
    %238 = vector.extract_strided_slice %229 {offsets = [0, 128], sizes = [8, 128], strides = [1, 1]} : vector<8x512xf32> to vector<8x128xf32>
    %cst_95 = arith.constant 5.000000e-01 : f32
    %239 = vector.broadcast %cst_95 : f32 to vector<8x128xf32>
    %240 = arith.mulf %239, %238 : vector<8x128xf32>
    %241 = math.tanh %240 : vector<8x128xf32>
    %cst_96 = arith.constant 1.000000e+00 : f32
    %242 = vector.broadcast %cst_96 : f32 to vector<8x128xf32>
    %243 = arith.addf %241, %242 : vector<8x128xf32>
    %cst_97 = arith.constant 5.000000e-01 : f32
    %244 = vector.broadcast %cst_97 : f32 to vector<8x128xf32>
    %245 = arith.mulf %244, %243 : vector<8x128xf32>
    %246 = vector.extract_strided_slice %229 {offsets = [0, 256], sizes = [8, 128], strides = [1, 1]} : vector<8x512xf32> to vector<8x128xf32>
    %247 = math.tanh %246 : vector<8x128xf32>
    %248 = vector.extract_strided_slice %229 {offsets = [0, 384], sizes = [8, 128], strides = [1, 1]} : vector<8x512xf32> to vector<8x128xf32>
    %cst_98 = arith.constant 5.000000e-01 : f32
    %249 = vector.broadcast %cst_98 : f32 to vector<8x128xf32>
    %250 = arith.mulf %249, %248 : vector<8x128xf32>
    %251 = math.tanh %250 : vector<8x128xf32>
    %cst_99 = arith.constant 1.000000e+00 : f32
    %252 = vector.broadcast %cst_99 : f32 to vector<8x128xf32>
    %253 = arith.addf %251, %252 : vector<8x128xf32>
    %cst_100 = arith.constant 5.000000e-01 : f32
    %254 = vector.broadcast %cst_100 : f32 to vector<8x128xf32>
    %255 = arith.mulf %254, %253 : vector<8x128xf32>
    %256 = arith.mulf %245, %216 : vector<8x128xf32>
    %257 = arith.mulf %237, %247 : vector<8x128xf32>
    %258 = arith.addf %256, %257 : vector<8x128xf32>
    %259 = math.tanh %258 : vector<8x128xf32>
    %260 = arith.mulf %255, %259 : vector<8x128xf32>
    %261 = arith.truncf %260 : vector<8x128xf32> to vector<8x128xbf16>
    %262 = arith.index_cast %223 : i32 to index
    %c0_101 = arith.constant 0 : index
    %263 = vector.load %arg7[%262, %c0_101] : memref<64x128xbf16, #tpu.memory_space<vmem>>, vector<8x128xbf16>
    tpu.vector_store %arg7[%262, %c0_101], %261 {strides = array<i32>} : memref<64x128xbf16, #tpu.memory_space<vmem>>, vector<8x128xbf16>,
    %c6_i32 = arith.constant 6 : i32
    %c8_i32_102 = arith.constant 8 : i32
    %264 = arith.muli %c6_i32, %c8_i32_102 : i32
    %265 = tpu.assume_multiple %264, 8 : i32
    %266 = arith.index_cast %265 : i32 to index
    %c0_103 = arith.constant 0 : index
    %267 = vector.load %arg10[%266, %c0_103] : memref<64x512xf32, #tpu.memory_space<vmem>>, vector<8x512xf32>
    %268 = arith.truncf %260 : vector<8x128xf32> to vector<8x128xbf16>
    %c0_104 = arith.constant 0 : index
    %c0_105 = arith.constant 0 : index
    %269 = vector.load %arg4[%c0_104, %c0_105] : memref<128x512xbf16, #tpu.memory_space<vmem>>, vector<128x512xbf16>
    %cst_106 = arith.constant dense<0.000000e+00> : vector<8x512xf32>
    %270 = tpu.matmul %268, %269, %cst_106 {dimension_numbers = #tpu.dot_dimension_numbers<[1], [0], [0], [1], [0, 0, 1, 1], [], []>} : vector<8x128xbf16>, vector<128x512xbf16>, vector<8x512xf32> -> vector<8x512xf32>
    %271 = arith.addf %267, %270 : vector<8x512xf32>
    %272 = vector.extract_strided_slice %271 {offsets = [0, 0], sizes = [8, 128], strides = [1, 1]} : vector<8x512xf32> to vector<8x128xf32>
    %cst_107 = arith.constant 5.000000e-01 : f32
    %273 = vector.broadcast %cst_107 : f32 to vector<8x128xf32>
    %274 = arith.mulf %273, %272 : vector<8x128xf32>
    %275 = math.tanh %274 : vector<8x128xf32>
    %cst_108 = arith.constant 1.000000e+00 : f32
    %276 = vector.broadcast %cst_108 : f32 to vector<8x128xf32>
    %277 = arith.addf %275, %276 : vector<8x128xf32>
    %cst_109 = arith.constant 5.000000e-01 : f32
    %278 = vector.broadcast %cst_109 : f32 to vector<8x128xf32>
    %279 = arith.mulf %278, %277 : vector<8x128xf32>
    %280 = vector.extract_strided_slice %271 {offsets = [0, 128], sizes = [8, 128], strides = [1, 1]} : vector<8x512xf32> to vector<8x128xf32>
    %cst_110 = arith.constant 5.000000e-01 : f32
    %281 = vector.broadcast %cst_110 : f32 to vector<8x128xf32>
    %282 = arith.mulf %281, %280 : vector<8x128xf32>
    %283 = math.tanh %282 : vector<8x128xf32>
    %cst_111 = arith.constant 1.000000e+00 : f32
    %284 = vector.broadcast %cst_111 : f32 to vector<8x128xf32>
    %285 = arith.addf %283, %284 : vector<8x128xf32>
    %cst_112 = arith.constant 5.000000e-01 : f32
    %286 = vector.broadcast %cst_112 : f32 to vector<8x128xf32>
    %287 = arith.mulf %286, %285 : vector<8x128xf32>
    %288 = vector.extract_strided_slice %271 {offsets = [0, 256], sizes = [8, 128], strides = [1, 1]} : vector<8x512xf32> to vector<8x128xf32>
    %289 = math.tanh %288 : vector<8x128xf32>
    %290 = vector.extract_strided_slice %271 {offsets = [0, 384], sizes = [8, 128], strides = [1, 1]} : vector<8x512xf32> to vector<8x128xf32>
    %cst_113 = arith.constant 5.000000e-01 : f32
    %291 = vector.broadcast %cst_113 : f32 to vector<8x128xf32>
    %292 = arith.mulf %291, %290 : vector<8x128xf32>
    %293 = math.tanh %292 : vector<8x128xf32>
    %cst_114 = arith.constant 1.000000e+00 : f32
    %294 = vector.broadcast %cst_114 : f32 to vector<8x128xf32>
    %295 = arith.addf %293, %294 : vector<8x128xf32>
    %cst_115 = arith.constant 5.000000e-01 : f32
    %296 = vector.broadcast %cst_115 : f32 to vector<8x128xf32>
    %297 = arith.mulf %296, %295 : vector<8x128xf32>
    %298 = arith.mulf %287, %258 : vector<8x128xf32>
    %299 = arith.mulf %279, %289 : vector<8x128xf32>
    %300 = arith.addf %298, %299 : vector<8x128xf32>
    %301 = math.tanh %300 : vector<8x128xf32>
    %302 = arith.mulf %297, %301 : vector<8x128xf32>
    %303 = arith.truncf %302 : vector<8x128xf32> to vector<8x128xbf16>
    %304 = arith.index_cast %265 : i32 to index
    %c0_116 = arith.constant 0 : index
    %305 = vector.load %arg7[%304, %c0_116] : memref<64x128xbf16, #tpu.memory_space<vmem>>, vector<8x128xbf16>
    tpu.vector_store %arg7[%304, %c0_116], %303 {strides = array<i32>} : memref<64x128xbf16, #tpu.memory_space<vmem>>, vector<8x128xbf16>,
    %c7_i32 = arith.constant 7 : i32
    %c8_i32_117 = arith.constant 8 : i32
    %306 = arith.muli %c7_i32, %c8_i32_117 : i32
    %307 = tpu.assume_multiple %306, 8 : i32
    %308 = arith.index_cast %307 : i32 to index
    %c0_118 = arith.constant 0 : index
    %309 = vector.load %arg10[%308, %c0_118] : memref<64x512xf32, #tpu.memory_space<vmem>>, vector<8x512xf32>
    %310 = arith.truncf %302 : vector<8x128xf32> to vector<8x128xbf16>
    %c0_119 = arith.constant 0 : index
    %c0_120 = arith.constant 0 : index
    %311 = vector.load %arg4[%c0_119, %c0_120] : memref<128x512xbf16, #tpu.memory_space<vmem>>, vector<128x512xbf16>
    %cst_121 = arith.constant dense<0.000000e+00> : vector<8x512xf32>
    %312 = tpu.matmul %310, %311, %cst_121 {dimension_numbers = #tpu.dot_dimension_numbers<[1], [0], [0], [1], [0, 0, 1, 1], [], []>} : vector<8x128xbf16>, vector<128x512xbf16>, vector<8x512xf32> -> vector<8x512xf32>
    %313 = arith.addf %309, %312 : vector<8x512xf32>
    %314 = vector.extract_strided_slice %313 {offsets = [0, 0], sizes = [8, 128], strides = [1, 1]} : vector<8x512xf32> to vector<8x128xf32>
    %cst_122 = arith.constant 5.000000e-01 : f32
    %315 = vector.broadcast %cst_122 : f32 to vector<8x128xf32>
    %316 = arith.mulf %315, %314 : vector<8x128xf32>
    %317 = math.tanh %316 : vector<8x128xf32>
    %cst_123 = arith.constant 1.000000e+00 : f32
    %318 = vector.broadcast %cst_123 : f32 to vector<8x128xf32>
    %319 = arith.addf %317, %318 : vector<8x128xf32>
    %cst_124 = arith.constant 5.000000e-01 : f32
    %320 = vector.broadcast %cst_124 : f32 to vector<8x128xf32>
    %321 = arith.mulf %320, %319 : vector<8x128xf32>
    %322 = vector.extract_strided_slice %313 {offsets = [0, 128], sizes = [8, 128], strides = [1, 1]} : vector<8x512xf32> to vector<8x128xf32>
    %cst_125 = arith.constant 5.000000e-01 : f32
    %323 = vector.broadcast %cst_125 : f32 to vector<8x128xf32>
    %324 = arith.mulf %323, %322 : vector<8x128xf32>
    %325 = math.tanh %324 : vector<8x128xf32>
    %cst_126 = arith.constant 1.000000e+00 : f32
    %326 = vector.broadcast %cst_126 : f32 to vector<8x128xf32>
    %327 = arith.addf %325, %326 : vector<8x128xf32>
    %cst_127 = arith.constant 5.000000e-01 : f32
    %328 = vector.broadcast %cst_127 : f32 to vector<8x128xf32>
    %329 = arith.mulf %328, %327 : vector<8x128xf32>
    %330 = vector.extract_strided_slice %313 {offsets = [0, 256], sizes = [8, 128], strides = [1, 1]} : vector<8x512xf32> to vector<8x128xf32>
    %331 = math.tanh %330 : vector<8x128xf32>
    %332 = vector.extract_strided_slice %313 {offsets = [0, 384], sizes = [8, 128], strides = [1, 1]} : vector<8x512xf32> to vector<8x128xf32>
    %cst_128 = arith.constant 5.000000e-01 : f32
    %333 = vector.broadcast %cst_128 : f32 to vector<8x128xf32>
    %334 = arith.mulf %333, %332 : vector<8x128xf32>
    %335 = math.tanh %334 : vector<8x128xf32>
    %cst_129 = arith.constant 1.000000e+00 : f32
    %336 = vector.broadcast %cst_129 : f32 to vector<8x128xf32>
    %337 = arith.addf %335, %336 : vector<8x128xf32>
    %cst_130 = arith.constant 5.000000e-01 : f32
    %338 = vector.broadcast %cst_130 : f32 to vector<8x128xf32>
    %339 = arith.mulf %338, %337 : vector<8x128xf32>
    %340 = arith.mulf %329, %300 : vector<8x128xf32>
    %341 = arith.mulf %321, %331 : vector<8x128xf32>
    %342 = arith.addf %340, %341 : vector<8x128xf32>
    %343 = math.tanh %342 : vector<8x128xf32>
    %344 = arith.mulf %339, %343 : vector<8x128xf32>
    %345 = arith.truncf %344 : vector<8x128xf32> to vector<8x128xbf16>
    %346 = arith.index_cast %307 : i32 to index
    %c0_131 = arith.constant 0 : index
    %347 = vector.load %arg7[%346, %c0_131] : memref<64x128xbf16, #tpu.memory_space<vmem>>, vector<8x128xbf16>
    tpu.vector_store %arg7[%346, %c0_131], %345 {strides = array<i32>} : memref<64x128xbf16, #tpu.memory_space<vmem>>, vector<8x128xbf16>,
    %c8_i32_132 = arith.constant 8 : i32
    %c0_133 = arith.constant 0 : index
    %c0_134 = arith.constant 0 : index
    %348 = vector.load %arg11[%c0_133, %c0_134] : memref<8x128xf32, #tpu.memory_space<vmem>>, vector<8x128xf32>
    tpu.vector_store %arg11[%c0_133, %c0_134], %344 {strides = array<i32>} : memref<8x128xf32, #tpu.memory_space<vmem>>, vector<8x128xf32>,
    %c0_135 = arith.constant 0 : index
    %c0_136 = arith.constant 0 : index
    %349 = vector.load %arg12[%c0_135, %c0_136] : memref<8x128xf32, #tpu.memory_space<vmem>>, vector<8x128xf32>
    tpu.vector_store %arg12[%c0_135, %c0_136], %342 {strides = array<i32>} : memref<8x128xf32, #tpu.memory_space<vmem>>, vector<8x128xf32>,
    %c0_i32_137 = arith.constant 0 : i32
    %350 = arith.cmpi eq, %arg0, %c0_i32_137 : i32
    %351 = arith.extui %350 : i1 to i32
    %c0_i32_138 = arith.constant 0 : i32
    %352 = arith.cmpi ne, %351, %c0_i32_138 : i32
    scf.if %352 {
      %c0_139 = arith.constant 0 : index
      %c0_140 = arith.constant 0 : index
      %353 = vector.load %arg8[%c0_139, %c0_140] : memref<8x128xf32, #tpu.memory_space<vmem>>, vector<8x128xf32>
      tpu.vector_store %arg8[%c0_139, %c0_140], %344 {strides = array<i32>} : memref<8x128xf32, #tpu.memory_space<vmem>>, vector<8x128xf32>,
      %c0_141 = arith.constant 0 : index
      %c0_142 = arith.constant 0 : index
      %354 = vector.load %arg9[%c0_141, %c0_142] : memref<8x128xf32, #tpu.memory_space<vmem>>, vector<8x128xf32>
      tpu.vector_store %arg9[%c0_141, %c0_142], %342 {strides = array<i32>} : memref<8x128xf32, #tpu.memory_space<vmem>>, vector<8x128xf32>,
    } else {
    }
    return
  }
  func.func @transform_0(%arg0: i32) -> (i32, i32) {
    %c0_i32 = arith.constant 0 : i32
    %c0_i32_0 = arith.constant 0 : i32
    return %arg0, %c0_i32 : i32, i32
  }
  func.func @transform_1(%arg0: i32) -> (i32, i32) {
    %c0_i32 = arith.constant 0 : i32
    %c0_i32_0 = arith.constant 0 : i32
    %c0_i32_1 = arith.constant 0 : i32
    return %c0_i32, %c0_i32_0 : i32, i32
  }
  func.func @transform_2(%arg0: i32) -> (i32, i32) {
    %c0_i32 = arith.constant 0 : i32
    %c0_i32_0 = arith.constant 0 : i32
    %c0_i32_1 = arith.constant 0 : i32
    return %c0_i32, %c0_i32_0 : i32, i32
  }
  func.func @transform_3(%arg0: i32) -> (i32, i32) {
    %c0_i32 = arith.constant 0 : i32
    %c0_i32_0 = arith.constant 0 : i32
    %c0_i32_1 = arith.constant 0 : i32
    return %c0_i32, %c0_i32_0 : i32, i32
  }
  func.func @transform_4(%arg0: i32) -> (i32, i32) {
    %c0_i32 = arith.constant 0 : i32
    %c0_i32_0 = arith.constant 0 : i32
    %c0_i32_1 = arith.constant 0 : i32
    return %c0_i32, %c0_i32_0 : i32, i32
  }
  func.func @transform_5(%arg0: i32) -> (i32, i32) {
    %c0_i32 = arith.constant 0 : i32
    %c0_i32_0 = arith.constant 0 : i32
    %c0_i32_1 = arith.constant 0 : i32
    return %c0_i32, %c0_i32_0 : i32, i32
  }
  func.func @transform_6(%arg0: i32) -> (i32, i32) {
    %c0_i32 = arith.constant 0 : i32
    %c0_i32_0 = arith.constant 0 : i32
    return %arg0, %c0_i32 : i32, i32
  }
  func.func @transform_7(%arg0: i32) -> (i32, i32) {
    %c0_i32 = arith.constant 0 : i32
    %c0_i32_0 = arith.constant 0 : i32
    %c0_i32_1 = arith.constant 0 : i32
    return %c0_i32, %c0_i32_0 : i32, i32
  }
  func.func @transform_8(%arg0: i32) -> (i32, i32) {
    %c0_i32 = arith.constant 0 : i32
    %c0_i32_0 = arith.constant 0 : i32
    %c0_i32_1 = arith.constant 0 : i32
    return %c0_i32, %c0_i32_0 : i32, i32
  }
}

module attributes {stable_mosaic.version = 11 : i64} {
  func.func @linear_kernel(%arg0: i32, %arg1: memref<64x128xbf16, #tpu.memory_space<vmem>>, %arg2: memref<128x128xbf16, #tpu.memory_space<vmem>>, %arg3: memref<1x128xf32, #tpu.memory_space<vmem>>, %arg4: memref<64x128xf32, #tpu.memory_space<vmem>>) attributes {dimension_semantics = [#tpu.dimension_semantics<parallel>], iteration_bounds = array<i64: 1>, scalar_prefetch = 0 : i64, scratch_operands = 0 : i64, tpu.core_type = #tpu.core_type<tc>, window_params = [{transform_indices = @transform_0, window_bounds = array<i64: 64, 128>}, {pipeline_mode = #tpu.pipeline_mode<synchronous>, transform_indices = @transform_1, window_bounds = array<i64: 128, 128>}, {pipeline_mode = #tpu.pipeline_mode<synchronous>, transform_indices = @transform_2, window_bounds = array<i64: 1, 128>}, {transform_indices = @transform_3, window_bounds = array<i64: 64, 128>}]} {
    %c0 = arith.constant 0 : index
    %c0_0 = arith.constant 0 : index
    %0 = vector.load %arg1[%c0, %c0_0] : memref<64x128xbf16, #tpu.memory_space<vmem>>, vector<64x128xbf16>
    %c0_1 = arith.constant 0 : index
    %c0_2 = arith.constant 0 : index
    %1 = vector.load %arg2[%c0_1, %c0_2] : memref<128x128xbf16, #tpu.memory_space<vmem>>, vector<128x128xbf16>
    %cst = arith.constant dense<0.000000e+00> : vector<64x128xf32>
    %2 = tpu.matmul %0, %1, %cst {dimension_numbers = #tpu.dot_dimension_numbers<[1], [0], [0], [1], [0, 0, 1, 1], [], []>} : vector<64x128xbf16>, vector<128x128xbf16>, vector<64x128xf32> -> vector<64x128xf32>
    %c0_3 = arith.constant 0 : index
    %c0_4 = arith.constant 0 : index
    %3 = vector.load %arg3[%c0_3, %c0_4] : memref<1x128xf32, #tpu.memory_space<vmem>>, vector<1x128xf32>
    %4 = vector.broadcast %3 : vector<1x128xf32> to vector<64x128xf32>
    %5 = arith.addf %2, %4 : vector<64x128xf32>
    %c0_5 = arith.constant 0 : index
    %c0_6 = arith.constant 0 : index
    %6 = vector.load %arg4[%c0_5, %c0_6] : memref<64x128xf32, #tpu.memory_space<vmem>>, vector<64x128xf32>
    tpu.vector_store %arg4[%c0_5, %c0_6], %5 {strides = array<i32>} : memref<64x128xf32, #tpu.memory_space<vmem>>, vector<64x128xf32>,
    return
  }
  func.func @transform_0(%arg0: i32) -> (i32, i32) {
    %c0_i32 = arith.constant 0 : i32
    %c0_i32_0 = arith.constant 0 : i32
    return %arg0, %c0_i32 : i32, i32
  }
  func.func @transform_1(%arg0: i32) -> (i32, i32) {
    %c0_i32 = arith.constant 0 : i32
    %c0_i32_0 = arith.constant 0 : i32
    %c0_i32_1 = arith.constant 0 : i32
    return %c0_i32, %c0_i32_0 : i32, i32
  }
  func.func @transform_2(%arg0: i32) -> (i32, i32) {
    %c0_i32 = arith.constant 0 : i32
    %c0_i32_0 = arith.constant 0 : i32
    %c0_i32_1 = arith.constant 0 : i32
    return %c0_i32, %c0_i32_0 : i32, i32
  }
  func.func @transform_3(%arg0: i32) -> (i32, i32) {
    %c0_i32 = arith.constant 0 : i32
    %c0_i32_0 = arith.constant 0 : i32
    return %arg0, %c0_i32 : i32, i32
  }
}

</mosaic_0001>

<llo_original>
// kernel: forward.4
$region0: #{forward.4}
  #allocation0 [shape = 'u32[]', space=smem, size = 0x4, offset = 0x4, fixed_abs, tag = 'smem constant byte address 0x4 - core index']
  #allocation1 [shape = 'u32[144,128]{1,0:T(1,128)}', space=vmem, size = 0x12000, scoped, tag = 'internal scratch']
  %s0 = inlined_call_operand.vmem [shape: f32[64,4], index: 0, kind: input, shape index: {}]
  %s1 = inlined_call_operand.hbm [shape: f32[4,128], index: 1, kind: input, shape index: {}]
  %s2 = inlined_call_operand.hbm [shape: f32[1,128], index: 2, kind: input, shape index: {}]
  %s3 = inlined_call_operand.hbm [shape: bf16[128,128], index: 3, kind: input, shape index: {}]
  %s4 = inlined_call_operand.hbm [shape: f32[1,128], index: 4, kind: input, shape index: {}]
  %s5 = inlined_call_operand.vmem [shape: bf16[64,128], index: 5, kind: output, shape index: {}]
  %s6 = sld [smem:[#allocation0]]
  $region46: #{forward.4} parent=0
    _
  %s8 = ssub.s32 1, %s6
  %s9 = scalar_select 0, %s8, %s6
  $region1: #{forward.4} parent=0
    #allocation2 [shape = 'u8[2048]{0}', space=vmem, size = 0x800, scoped, tag = 'input window, operand 1, single buffered']
    #allocation3 [shape = 's32[1]{0}', space=sflag, size = 0x4, scoped, tag = 'scoped memory for forward.4']
    #allocation4 [shape = 'u8[512]{0}', space=vmem, size = 0x400, scoped, tag = 'input window, operand 2, single buffered']
    #allocation5 [shape = 's32[1]{0}', space=sflag, size = 0x4, scoped, tag = 'scoped memory for forward.4']
    #allocation6 [shape = 'u8[32768]{0}', space=vmem, size = 0x8000, scoped, tag = 'input window, operand 3, single buffered']
    #allocation7 [shape = 'u8[512]{0}', space=vmem, size = 0x400, scoped, tag = 'input window, operand 4, single buffered']
    #allocation8 [shape = 's32[1]{0}', space=sflag, size = 0x4, scoped, tag = 'scoped memory for forward.4']
    %10 = vsyncpa [#allocation3], 0
    %11 = vsyncpa [#allocation5], 0
    %12 = vsyncpa [#allocation8], 0
    // Predicated region
    $region2: #{forward.4} parent=1 // pred_check
      _
    $region3: #{forward.4} parent=1 // pred_check_branch
      %14 = sbr.rel (0) target = $region5
    $region4: #{forward.4} parent=1 // pred_region
      _
    $region5: #{forward.4} parent=1 // pred_fallthru
      _
    // Predicated region
    $region6: #{forward.4} parent=1 // pred_check
      _
    $region7: #{forward.4} parent=1 // pred_check_branch
      %16 = sbr.rel (0) target = $region9
    $region8: #{forward.4} parent=1 // pred_region
      %s18 = ssub.s32 64, 64
      %19 = vsyncadd [#allocation3], %s18
      %s21 = sshll.u32 [#allocation2], 4
      %s22 = int_to_ptr.vmem [resolvable:$true] %s21
      %24 = dma.hbm_to_vmem [thread:$0]  %s1, 64, %s22, [#allocation3]
    $region9: #{forward.4} parent=1 // pred_fallthru
      _
    // Predicated region
    $region10: #{forward.4} parent=1 // pred_check
      _
    $region11: #{forward.4} parent=1 // pred_check_branch
      %26 = sbr.rel (0) target = $region13
    $region12: #{forward.4} parent=1 // pred_region
      %s28 = ssub.s32 16, 16
      %29 = vsyncadd [#allocation5], %s28
      %s31 = sshll.u32 [#allocation4], 4
      %s32 = int_to_ptr.vmem [resolvable:$true] %s31
      %34 = dma.hbm_to_vmem [thread:$0]  %s2, 16, %s32, [#allocation5]
    $region13: #{forward.4} parent=1 // pred_fallthru
      _
    // Predicated region
    $region14: #{forward.4} parent=1 // pred_check
      _
    $region15: #{forward.4} parent=1 // pred_check_branch
      %36 = sbr.rel (0) target = $region17
    $region16: #{forward.4} parent=1 // pred_region
      %s38 = ssub.s32 1024, 1024
      %39 = vsyncadd [#allocation5], %s38
      %s40 = sshll.u32 [#allocation6], 4
      %s41 = int_to_ptr.vmem [resolvable:$true] %s40
      %46 = dma.hbm_to_vmem [thread:$0]  %s3, 1024, %s41, [#allocation5], 64, 64, 4
    $region17: #{forward.4} parent=1 // pred_fallthru
      _
    // Predicated region
    $region18: #{forward.4} parent=1 // pred_check
      _
    $region19: #{forward.4} parent=1 // pred_check_branch
      %48 = sbr.rel (0) target = $region21
    $region20: #{forward.4} parent=1 // pred_region
      %s50 = ssub.s32 16, 16
      %51 = vsyncadd [#allocation8], %s50
      %s53 = sshll.u32 [#allocation7], 4
      %s54 = int_to_ptr.vmem [resolvable:$true] %s53
      %56 = dma.hbm_to_vmem [thread:$0]  %s4, 16, %s54, [#allocation8]
    $region21: #{forward.4} parent=1 // pred_fallthru
      _
    // Predicated region
    $region22: #{forward.4} parent=1 // pred_check
      _
    $region23: #{forward.4} parent=1 // pred_check_branch
      %58 = sbr.rel (0) target = $region25
    $region24: #{forward.4} parent=1 // pred_region
      %59 = dma.done [#allocation3], 64
    $region25: #{forward.4} parent=1 // pred_fallthru
      _
    // Predicated region
    $region26: #{forward.4} parent=1 // pred_check
      _
    $region27: #{forward.4} parent=1 // pred_check_branch
      %61 = sbr.rel (0) target = $region29
    $region28: #{forward.4} parent=1 // pred_region
      %62 = dma.done [#allocation5], 16
    $region29: #{forward.4} parent=1 // pred_fallthru
      _
    // Predicated region
    $region30: #{forward.4} parent=1 // pred_check
      _
    $region31: #{forward.4} parent=1 // pred_check_branch
      %64 = sbr.rel (0) target = $region33
    $region32: #{forward.4} parent=1 // pred_region
      %65 = dma.done [#allocation5], 1024
    $region33: #{forward.4} parent=1 // pred_fallthru
      _
    // Predicated region
    $region34: #{forward.4} parent=1 // pred_check
      _
    $region35: #{forward.4} parent=1 // pred_check_branch
      %67 = sbr.rel (0) target = $region37
    $region36: #{forward.4} parent=1 // pred_region
      %68 = dma.done [#allocation8], 16
    $region37: #{forward.4} parent=1 // pred_fallthru
      _
    %v70 = vld [vmem:[%s0] sm:$0xff]
    %v71 = vld [vmem:[%s0 + $0x8] sm:$0xff]
    %v72 = vld [vmem:[%s0 + $0x10] sm:$0xff]
    %v73 = vld [vmem:[%s0 + $0x18] sm:$0xff]
    %v74 = vld [vmem:[%s0 + $0x20] sm:$0xff]
    %v75 = vld [vmem:[%s0 + $0x28] sm:$0xff]
    %v76 = vld [vmem:[%s0 + $0x30] sm:$0xff]
    %v77 = vld [vmem:[%s0 + $0x38] sm:$0xff]
    %v78 = vld [vmem:[#allocation2] sm:$0xf]
    %v79 = vld [vmem:[#allocation4] sm:$0x1]
    %v81 = vlaneseq
    %v82 = vshrl.u32 %v81, 7
    %v83 = vsub.s32 0, %v82
    %v84 = vrot.slane %v79, %v83
    %vm86 = vcmask 31744
    %v88 = vsel %vm86, %v70, 0
    %v91 = vsel %vm86, %v71, 0
    %v94 = vsel %vm86, %v72, 0
    %v97 = vsel %vm86, %v73, 0
    %v100 = vsel %vm86, %v74, 0
    %v103 = vsel %vm86, %v75, 0
    %v106 = vsel %vm86, %v76, 0
    %v109 = vsel %vm86, %v77, 0
    %vm111 = vcmask 1043456
    %v113 = vsel %vm111, %v78, 0
    %115 = vmatprep.subr.mxu0 0.0
    %116 = vmatpush1.msra.mxu0 0.0
    %117 = vmatprep.subr.mxu0 0.0
    %118 = vmatpush1.msra.mxu0 0.0
    %119 = vmatprep.subr.mxu0 0.0
    %120 = vmatpush1.msra.mxu0 0.0
    %121 = vmatprep.subr.mxu0 0.0
    %122 = vmatpush1.msra.mxu0 0.0
    %123 = vmatprep.subr.mxu0 0.0
    %124 = vmatpush1.msra.mxu0 0.0
    %125 = vmatprep.subr.mxu0 0.0
    %126 = vmatpush1.msra.mxu0 0.0
    %127 = vmatprep.subr.mxu0 0.0
    %128 = vmatpush1.msra.mxu0 0.0
    %129 = vmatprep.subr.mxu0 0.0
    %130 = vmatpush1.msra.mxu0 0.0
    %131 = vmatprep.subr.mxu0 0.0
    %132 = vmatpush1.msra.mxu0 0.0
    %133 = vmatprep.subr.mxu0 0.0
    %134 = vmatpush1.msra.mxu0 0.0
    %135 = vmatprep.subr.mxu0 0.0
    %136 = vmatpush1.msra.mxu0 0.0
    %137 = vmatprep.subr.mxu0 0.0
    %138 = vmatpush1.msra.mxu0 0.0
    %139 = vmatprep.subr.mxu0 0.0
    %140 = vmatpush1.msra.mxu0 0.0
    %141 = vmatprep.subr.mxu0 0.0
    %142 = vmatpush1.msra.mxu0 0.0
    %143 = vmatprep.subr.mxu0 0.0
    %144 = vmatpush1.msra.mxu0 0.0
    %145 = vmatprep.subr.mxu0 0.0
    %146 = vmatpush1.msra.mxu0 %v113
    %147 = vmatprep.subr.mxu0 0.0
    %148 = vmatpush2.msra.mxu0 0.0
    %149 = vmatprep.subr.mxu0 0.0
    %150 = vmatpush2.msra.mxu0 0.0
    %151 = vmatprep.subr.mxu0 0.0
    %152 = vmatpush2.msra.mxu0 0.0
    %153 = vmatprep.subr.mxu0 0.0
    %154 = vmatpush2.msra.mxu0 0.0
    %155 = vmatprep.subr.mxu0 0.0
    %156 = vmatpush2.msra.mxu0 0.0
    %157 = vmatprep.subr.mxu0 0.0
    %158 = vmatpush2.msra.mxu0 0.0
    %159 = vmatprep.subr.mxu0 0.0
    %160 = vmatpush2.msra.mxu0 0.0
    %161 = vmatprep.subr.mxu0 0.0
    %162 = vmatpush2.msra.mxu0 0.0
    %163 = vmatprep.subr.mxu0 0.0
    %164 = vmatpush2.msra.mxu0 0.0
    %165 = vmatprep.subr.mxu0 0.0
    %166 = vmatpush2.msra.mxu0 0.0
    %167 = vmatprep.subr.mxu0 0.0
    %168 = vmatpush2.msra.mxu0 0.0
    %169 = vmatprep.subr.mxu0 0.0
    %170 = vmatpush2.msra.mxu0 0.0
    %171 = vmatprep.subr.mxu0 0.0
    %172 = vmatpush2.msra.mxu0 0.0
    %173 = vmatprep.subr.mxu0 0.0
    %174 = vmatpush2.msra.mxu0 0.0
    %175 = vmatprep.subr.mxu0 0.0
    %176 = vmatpush2.msra.mxu0 0.0
    %177 = vmatprep.subr.mxu0 0.0
    %178 = vmatpush2.msra.mxu0 0.0
    %179 = vmatprep.mubr.f32.mxu0 0.0
    %180 = vmatmul.mubr.f32.gmra.mxu0 %v88
    %v181 = vpop.f32.mrf.mxu0
    %v182 = vadd.f32 %v84, %v181
    %v183 = vpop.f32.mrf.mxu0
    %184 = vmatprep.mubr.f32.mxu0 0.0
    %185 = vmatmul.mubr.f32.gmra.mxu0 %v91
    %v186 = vpop.f32.mrf.mxu0
    %v187 = vadd.f32 %v84, %v186
    %v188 = vpop.f32.mrf.mxu0
    %189 = vmatprep.mubr.f32.mxu0 0.0
    %190 = vmatmul.mubr.f32.gmra.mxu0 %v94
    %v191 = vpop.f32.mrf.mxu0
    %v192 = vadd.f32 %v84, %v191
    %v193 = vpop.f32.mrf.mxu0
    %194 = vmatprep.mubr.f32.mxu0 0.0
    %195 = vmatmul.mubr.f32.gmra.mxu0 %v97
    %v196 = vpop.f32.mrf.mxu0
    %v197 = vadd.f32 %v84, %v196
    %v198 = vpop.f32.mrf.mxu0
    %199 = vmatprep.mubr.f32.mxu0 0.0
    %200 = vmatmul.mubr.f32.gmra.mxu0 %v100
    %v201 = vpop.f32.mrf.mxu0
    %v202 = vadd.f32 %v84, %v201
    %v203 = vpop.f32.mrf.mxu0
    %204 = vmatprep.mubr.f32.mxu0 0.0
    %205 = vmatmul.mubr.f32.gmra.mxu0 %v103
    %v206 = vpop.f32.mrf.mxu0
    %v207 = vadd.f32 %v84, %v206
    %v208 = vpop.f32.mrf.mxu0
    %209 = vmatprep.mubr.f32.mxu0 0.0
    %210 = vmatmul.mubr.f32.gmra.mxu0 %v106
    %v211 = vpop.f32.mrf.mxu0
    %v212 = vadd.f32 %v84, %v211
    %v213 = vpop.f32.mrf.mxu0
    %214 = vmatprep.mubr.f32.mxu0 0.0
    %215 = vmatmul.mubr.f32.gmra.mxu0 %v109
    %v216 = vpop.f32.mrf.mxu0
    %v217 = vadd.f32 %v84, %v216
    %v218 = vpop.f32.mrf.mxu0
    %219 = vdwg.mxu0
    %v220 = vmax.f32 %v182, 0.0
    %v221 = vmax.f32 %v187, 0.0
    %v222 = vmax.f32 %v192, 0.0
    %v223 = vmax.f32 %v197, 0.0
    %v224 = vmax.f32 %v202, 0.0
    %v225 = vmax.f32 %v207, 0.0
    %v226 = vmax.f32 %v212, 0.0
    %v227 = vmax.f32 %v217, 0.0
    %v228 = vpack.c.bf16 %v221, %v220
    %v229 = vpack.c.bf16 %v223, %v222
    %v230 = vpack.c.bf16 %v225, %v224
    %v231 = vpack.c.bf16 %v227, %v226
    %v232 = vld [vmem:[#allocation6] sm:$0xf]
    %v233 = vld [vmem:[#allocation6 + $0x4] sm:$0xf]
    %v234 = vld [vmem:[#allocation6 + $0x8] sm:$0xf]
    %v235 = vld [vmem:[#allocation6 + $0xc] sm:$0xf]
    %v236 = vld [vmem:[#allocation6 + $0x10] sm:$0xf]
    %v237 = vld [vmem:[#allocation6 + $0x14] sm:$0xf]
    %v238 = vld [vmem:[#allocation6 + $0x18] sm:$0xf]
    %v239 = vld [vmem:[#allocation6 + $0x1c] sm:$0xf]
    %v240 = vld [vmem:[#allocation6 + $0x20] sm:$0xf]
    %v241 = vld [vmem:[#allocation6 + $0x24] sm:$0xf]
    %v242 = vld [vmem:[#allocation6 + $0x28] sm:$0xf]
    %v243 = vld [vmem:[#allocation6 + $0x2c] sm:$0xf]
    %v244 = vld [vmem:[#allocation6 + $0x30] sm:$0xf]
    %v245 = vld [vmem:[#allocation6 + $0x34] sm:$0xf]
    %v246 = vld [vmem:[#allocation6 + $0x38] sm:$0xf]
    %v247 = vld [vmem:[#allocation6 + $0x3c] sm:$0xf]
    %v248 = vld [vmem:[#allocation7] sm:$0x1]
    %v250 = vlaneseq
    %v251 = vshrl.u32 %v250, 7
    %v252 = vsub.s32 0, %v251
    %v253 = vrot.slane %v248, %v252
    %v271 = vunpack.c.l.b16 %v232
    %v272 = vunpack.c.l.b16 %v233
    %v273 = vunpack.c.l.b16 %v234
    %v274 = vunpack.c.l.b16 %v235
    %v275 = vunpack.c.l.b16 %v236
    %v276 = vunpack.c.l.b16 %v237
    %v277 = vunpack.c.l.b16 %v238
    %v278 = vunpack.c.l.b16 %v239
    %v279 = vunpack.c.l.b16 %v240
    %v280 = vunpack.c.l.b16 %v241
    %v281 = vunpack.c.l.b16 %v242
    %v282 = vunpack.c.l.b16 %v243
    %v283 = vunpack.c.l.b16 %v244
    %v284 = vunpack.c.l.b16 %v245
    %v285 = vunpack.c.l.b16 %v246
    %v286 = vunpack.c.l.b16 %v247
    %v287 = vpack.c.b16 %v272, %v271
    %v288 = vpack.c.b16 %v274, %v273
    %v289 = vpack.c.b16 %v276, %v275
    %v290 = vpack.c.b16 %v278, %v277
    %v291 = vpack.c.b16 %v280, %v279
    %v292 = vpack.c.b16 %v282, %v281
    %v293 = vpack.c.b16 %v284, %v283
    %v294 = vpack.c.b16 %v286, %v285
    %303 = vmatprep.subr.bf16.mxu0 0
    %304 = vmatpush1.bf16.msra.mxu0 %v294
    %305 = vmatprep.subr.bf16.mxu0 0
    %306 = vmatpush1.bf16.msra.mxu0 %v293
    %307 = vmatprep.subr.bf16.mxu0 0
    %308 = vmatpush1.bf16.msra.mxu0 %v292
    %309 = vmatprep.subr.bf16.mxu0 0
    %310 = vmatpush1.bf16.msra.mxu0 %v291
    %311 = vmatprep.subr.bf16.mxu0 0
    %312 = vmatpush1.bf16.msra.mxu0 %v290
    %313 = vmatprep.subr.bf16.mxu0 0
    %314 = vmatpush1.bf16.msra.mxu0 %v289
    %315 = vmatprep.subr.bf16.mxu0 0
    %316 = vmatpush1.bf16.msra.mxu0 %v288
    %317 = vmatprep.subr.bf16.mxu0 0
    %318 = vmatpush1.bf16.msra.mxu0 %v287
    %319 = vmatprep.subr.bf16.mxu0 0
    %320 = vmatpush2.bf16.msra.mxu0 0
    %321 = vmatprep.subr.bf16.mxu0 0
    %322 = vmatpush2.bf16.msra.mxu0 0
    %323 = vmatprep.subr.bf16.mxu0 0
    %324 = vmatpush2.bf16.msra.mxu0 0
    %325 = vmatprep.subr.bf16.mxu0 0
    %326 = vmatpush2.bf16.msra.mxu0 0
    %327 = vmatprep.subr.bf16.mxu0 0
    %328 = vmatpush2.bf16.msra.mxu0 0
    %329 = vmatprep.subr.bf16.mxu0 0
    %330 = vmatpush2.bf16.msra.mxu0 0
    %331 = vmatprep.subr.bf16.mxu0 0
    %332 = vmatpush2.bf16.msra.mxu0 0
    %333 = vmatprep.subr.bf16.mxu0 0
    %334 = vmatpush2.bf16.msra.mxu0 0
    %335 = vmatprep.mubr.bf16.mxu0 0
    %336 = vmatmul.mubr.bf16.gmra.mxu0 %v228
    %v337 = vpop.f32.mrf.mxu0
    %v338 = vadd.f32 %v253, %v337
    %v339 = vpop.f32.mrf.mxu0
    %v340 = vpop.f32.mrf.mxu0
    %v341 = vadd.f32 %v253, %v340
    %v342 = vpop.f32.mrf.mxu0
    %343 = vmatprep.mubr.bf16.mxu0 0
    %344 = vmatmul.mubr.bf16.gmra.mxu0 %v229
    %v345 = vpop.f32.mrf.mxu0
    %v346 = vadd.f32 %v253, %v345
    %v347 = vpop.f32.mrf.mxu0
    %v348 = vpop.f32.mrf.mxu0
    %v349 = vadd.f32 %v253, %v348
    %v350 = vpop.f32.mrf.mxu0
    %351 = vmatprep.mubr.bf16.mxu0 0
    %352 = vmatmul.mubr.bf16.gmra.mxu0 %v230
    %v353 = vpop.f32.mrf.mxu0
    %v354 = vadd.f32 %v253, %v353
    %v355 = vpop.f32.mrf.mxu0
    %v356 = vpop.f32.mrf.mxu0
    %v357 = vadd.f32 %v253, %v356
    %v358 = vpop.f32.mrf.mxu0
    %359 = vmatprep.mubr.bf16.mxu0 0
    %360 = vmatmul.mubr.bf16.gmra.mxu0 %v231
    %v361 = vpop.f32.mrf.mxu0
    %v362 = vadd.f32 %v253, %v361
    %v363 = vpop.f32.mrf.mxu0
    %v364 = vpop.f32.mrf.mxu0
    %v365 = vadd.f32 %v253, %v364
    %v366 = vpop.f32.mrf.mxu0
    %367 = vdwg.mxu0
    %v368 = vpack.c.bf16 %v341, %v338
    %v369 = vpack.c.bf16 %v349, %v346
    %v370 = vpack.c.bf16 %v357, %v354
    %v371 = vpack.c.bf16 %v365, %v362
    %v376 = vunpack.c.l.b16 %v368
    %v377 = vunpack.c.h.b16 %v368
    %v378 = vunpack.c.l.b16 %v369
    %v379 = vunpack.c.h.b16 %v369
    %v380 = vunpack.c.l.b16 %v370
    %v381 = vunpack.c.h.b16 %v370
    %v382 = vunpack.c.l.b16 %v371
    %v383 = vunpack.c.h.b16 %v371
    %v384 = vpack.c.b16 %v376, %v376
    %v385 = vpack.c.b16 %v377, %v377
    %v386 = vpack.c.b16 %v378, %v378
    %v387 = vpack.c.b16 %v379, %v379
    %v388 = vpack.c.b16 %v380, %v380
    %v389 = vpack.c.b16 %v381, %v381
    %v390 = vpack.c.b16 %v382, %v382
    %v391 = vpack.c.b16 %v383, %v383
    %400 = vst [vmem:[%s5] sm:$0xf] %v384
    %401 = vst [vmem:[%s5 + $0x4] sm:$0xf] %v385
    %402 = vst [vmem:[%s5 + $0x8] sm:$0xf] %v386
    %403 = vst [vmem:[%s5 + $0xc] sm:$0xf] %v387
    %404 = vst [vmem:[%s5 + $0x10] sm:$0xf] %v388
    %405 = vst [vmem:[%s5 + $0x14] sm:$0xf] %v389
    %406 = vst [vmem:[%s5 + $0x18] sm:$0xf] %v390
    %407 = vst [vmem:[%s5 + $0x1c] sm:$0xf] %v391
    // Predicated region
    $region38: #{forward.4} parent=1 // pred_check
      _
    $region39: #{forward.4} parent=1 // pred_check_branch
      %409 = sbr.rel (0) target = $region41
    $region40: #{forward.4} parent=1 // pred_region
      _
    $region41: #{forward.4} parent=1 // pred_fallthru
      _
    // Predicated region
    $region42: #{forward.4} parent=1 // pred_check
      _
    $region43: #{forward.4} parent=1 // pred_check_branch
      %411 = sbr.rel (0) target = $region45
    $region44: #{forward.4} parent=1 // pred_region
      _
    $region45: #{forward.4} parent=1 // pred_fallthru
      _
    %412 = vsyncpa [#allocation3], 1
    %413 = vsyncpa [#allocation5], 1
    %414 = vsyncpa [#allocation8], 1

// kernel: forward.7
$region0: #{forward.7}
  #allocation0 [shape = 'u32[]', space=smem, size = 0x4, offset = 0x4, fixed_abs, tag = 'smem constant byte address 0x4 - core index']
  #allocation1 [shape = 'u32[144,128]{1,0:T(1,128)}', space=vmem, size = 0x12000, scoped, tag = 'internal scratch']
  %s0 = inlined_call_operand.vmem [shape: bf16[64,128], index: 0, kind: input, shape index: {}]
  %s1 = inlined_call_operand.vmem [shape: bf16[128,128], index: 1, kind: input, shape index: {}]
  %s2 = inlined_call_operand.vmem [shape: f32[1,128], index: 2, kind: input, shape index: {}]
  %s3 = inlined_call_operand.vmem [shape: f32[64,128], index: 3, kind: output, shape index: {}]
  %s4 = sld [smem:[#allocation0]]
  $region22: #{forward.7} parent=0
    _
  %s6 = ssub.s32 1, %s4
  %s7 = scalar_select 0, %s6, %s4
  // Predicated region
  $region2: #{forward.7} parent=0 // pred_check
    _
  $region3: #{forward.7} parent=0 // pred_check_branch
    %9 = sbr.rel (0) target = $region5
  $region4: #{forward.7} parent=0 // pred_region
    _
  $region5: #{forward.7} parent=0 // pred_fallthru
    _
  // Predicated region
  $region6: #{forward.7} parent=0 // pred_check
    _
  $region7: #{forward.7} parent=0 // pred_check_branch
    %11 = sbr.rel (0) target = $region9
  $region8: #{forward.7} parent=0 // pred_region
    _
  $region9: #{forward.7} parent=0 // pred_fallthru
    _
  // Predicated region
  $region10: #{forward.7} parent=0 // pred_check
    _
  $region11: #{forward.7} parent=0 // pred_check_branch
    %13 = sbr.rel (0) target = $region13
  $region12: #{forward.7} parent=0 // pred_region
    _
  $region13: #{forward.7} parent=0 // pred_fallthru
    _
  %v15 = vld [vmem:[%s0] sm:$0xf]
  %v16 = vld [vmem:[%s0 + $0x4] sm:$0xf]
  %v17 = vld [vmem:[%s0 + $0x8] sm:$0xf]
  %v18 = vld [vmem:[%s0 + $0xc] sm:$0xf]
  %v19 = vld [vmem:[%s0 + $0x10] sm:$0xf]
  %v20 = vld [vmem:[%s0 + $0x14] sm:$0xf]
  %v21 = vld [vmem:[%s0 + $0x18] sm:$0xf]
  %v22 = vld [vmem:[%s0 + $0x1c] sm:$0xf]
  %v23 = vld [vmem:[%s1] sm:$0xf]
  %v24 = vld [vmem:[%s1 + $0x4] sm:$0xf]
  %v25 = vld [vmem:[%s1 + $0x8] sm:$0xf]
  %v26 = vld [vmem:[%s1 + $0xc] sm:$0xf]
  %v27 = vld [vmem:[%s1 + $0x10] sm:$0xf]
  %v28 = vld [vmem:[%s1 + $0x14] sm:$0xf]
  %v29 = vld [vmem:[%s1 + $0x18] sm:$0xf]
  %v30 = vld [vmem:[%s1 + $0x1c] sm:$0xf]
  %v31 = vld [vmem:[%s1 + $0x20] sm:$0xf]
  %v32 = vld [vmem:[%s1 + $0x24] sm:$0xf]
  %v33 = vld [vmem:[%s1 + $0x28] sm:$0xf]
  %v34 = vld [vmem:[%s1 + $0x2c] sm:$0xf]
  %v35 = vld [vmem:[%s1 + $0x30] sm:$0xf]
  %v36 = vld [vmem:[%s1 + $0x34] sm:$0xf]
  %v37 = vld [vmem:[%s1 + $0x38] sm:$0xf]
  %v38 = vld [vmem:[%s1 + $0x3c] sm:$0xf]
  %v39 = vld [vmem:[%s2] sm:$0x1]
  %v41 = vlaneseq
  %v42 = vshrl.u32 %v41, 7
  %v43 = vsub.s32 0, %v42
  %v44 = vrot.slane %v39, %v43
  %v54 = vunpack.c.l.b16 %v15
  %v55 = vunpack.c.l.b16 %v16
  %v56 = vunpack.c.l.b16 %v17
  %v57 = vunpack.c.l.b16 %v18
  %v58 = vunpack.c.l.b16 %v19
  %v59 = vunpack.c.l.b16 %v20
  %v60 = vunpack.c.l.b16 %v21
  %v61 = vunpack.c.l.b16 %v22
  %v62 = vpack.c.b16 %v55, %v54
  %v63 = vpack.c.b16 %v57, %v56
  %v64 = vpack.c.b16 %v59, %v58
  %v65 = vpack.c.b16 %v61, %v60
  %v86 = vunpack.c.l.b16 %v23
  %v87 = vunpack.c.l.b16 %v24
  %v88 = vunpack.c.l.b16 %v25
  %v89 = vunpack.c.l.b16 %v26
  %v90 = vunpack.c.l.b16 %v27
  %v91 = vunpack.c.l.b16 %v28
  %v92 = vunpack.c.l.b16 %v29
  %v93 = vunpack.c.l.b16 %v30
  %v94 = vunpack.c.l.b16 %v31
  %v95 = vunpack.c.l.b16 %v32
  %v96 = vunpack.c.l.b16 %v33
  %v97 = vunpack.c.l.b16 %v34
  %v98 = vunpack.c.l.b16 %v35
  %v99 = vunpack.c.l.b16 %v36
  %v100 = vunpack.c.l.b16 %v37
  %v101 = vunpack.c.l.b16 %v38
  %v102 = vpack.c.b16 %v87, %v86
  %v103 = vpack.c.b16 %v89, %v88
  %v104 = vpack.c.b16 %v91, %v90
  %v105 = vpack.c.b16 %v93, %v92
  %v106 = vpack.c.b16 %v95, %v94
  %v107 = vpack.c.b16 %v97, %v96
  %v108 = vpack.c.b16 %v99, %v98
  %v109 = vpack.c.b16 %v101, %v100
  %118 = vmatprep.subr.bf16.mxu0 0
  %119 = vmatpush1.bf16.msra.mxu0 %v109
  %120 = vmatprep.subr.bf16.mxu0 0
  %121 = vmatpush1.bf16.msra.mxu0 %v108
  %122 = vmatprep.subr.bf16.mxu0 0
  %123 = vmatpush1.bf16.msra.mxu0 %v107
  %124 = vmatprep.subr.bf16.mxu0 0
  %125 = vmatpush1.bf16.msra.mxu0 %v106
  %126 = vmatprep.subr.bf16.mxu0 0
  %127 = vmatpush1.bf16.msra.mxu0 %v105
  %128 = vmatprep.subr.bf16.mxu0 0
  %129 = vmatpush1.bf16.msra.mxu0 %v104
  %130 = vmatprep.subr.bf16.mxu0 0
  %131 = vmatpush1.bf16.msra.mxu0 %v103
  %132 = vmatprep.subr.bf16.mxu0 0
  %133 = vmatpush1.bf16.msra.mxu0 %v102
  %134 = vmatprep.subr.bf16.mxu0 0
  %135 = vmatpush2.bf16.msra.mxu0 0
  %136 = vmatprep.subr.bf16.mxu0 0
  %137 = vmatpush2.bf16.msra.mxu0 0
  %138 = vmatprep.subr.bf16.mxu0 0
  %139 = vmatpush2.bf16.msra.mxu0 0
  %140 = vmatprep.subr.bf16.mxu0 0
  %141 = vmatpush2.bf16.msra.mxu0 0
  %142 = vmatprep.subr.bf16.mxu0 0
  %143 = vmatpush2.bf16.msra.mxu0 0
  %144 = vmatprep.subr.bf16.mxu0 0
  %145 = vmatpush2.bf16.msra.mxu0 0
  %146 = vmatprep.subr.bf16.mxu0 0
  %147 = vmatpush2.bf16.msra.mxu0 0
  %148 = vmatprep.subr.bf16.mxu0 0
  %149 = vmatpush2.bf16.msra.mxu0 0
  %150 = vmatprep.mubr.bf16.mxu0 0
  %151 = vmatmul.mubr.bf16.gmra.mxu0 %v62
  %v152 = vpop.f32.mrf.mxu0
  %v153 = vadd.f32 %v44, %v152
  %v154 = vpop.f32.mrf.mxu0
  %v155 = vpop.f32.mrf.mxu0
  %v156 = vadd.f32 %v44, %v155
  %v157 = vpop.f32.mrf.mxu0
  %158 = vmatprep.mubr.bf16.mxu0 0
  %159 = vmatmul.mubr.bf16.gmra.mxu0 %v63
  %v160 = vpop.f32.mrf.mxu0
  %v161 = vadd.f32 %v44, %v160
  %v162 = vpop.f32.mrf.mxu0
  %v163 = vpop.f32.mrf.mxu0
  %v164 = vadd.f32 %v44, %v163
  %v165 = vpop.f32.mrf.mxu0
  %166 = vmatprep.mubr.bf16.mxu0 0
  %167 = vmatmul.mubr.bf16.gmra.mxu0 %v64
  %v168 = vpop.f32.mrf.mxu0
  %v169 = vadd.f32 %v44, %v168
  %v170 = vpop.f32.mrf.mxu0
  %v171 = vpop.f32.mrf.mxu0
  %v172 = vadd.f32 %v44, %v171
  %v173 = vpop.f32.mrf.mxu0
  %174 = vmatprep.mubr.bf16.mxu0 0
  %175 = vmatmul.mubr.bf16.gmra.mxu0 %v65
  %v176 = vpop.f32.mrf.mxu0
  %v177 = vadd.f32 %v44, %v176
  %v178 = vpop.f32.mrf.mxu0
  %v179 = vpop.f32.mrf.mxu0
  %v180 = vadd.f32 %v44, %v179
  %v181 = vpop.f32.mrf.mxu0
  %182 = vdwg.mxu0
  %183 = vst [vmem:[%s3] sm:$0xff] %v153
  %184 = vst [vmem:[%s3 + $0x8] sm:$0xff] %v156
  %185 = vst [vmem:[%s3 + $0x10] sm:$0xff] %v161
  %186 = vst [vmem:[%s3 + $0x18] sm:$0xff] %v164
  %187 = vst [vmem:[%s3 + $0x20] sm:$0xff] %v169
  %188 = vst [vmem:[%s3 + $0x28] sm:$0xff] %v172
  %189 = vst [vmem:[%s3 + $0x30] sm:$0xff] %v177
  %190 = vst [vmem:[%s3 + $0x38] sm:$0xff] %v180
  // Predicated region
  $region14: #{forward.7} parent=0 // pred_check
    _
  $region15: #{forward.7} parent=0 // pred_check_branch
    %192 = sbr.rel (0) target = $region17
  $region16: #{forward.7} parent=0 // pred_region
    _
  $region17: #{forward.7} parent=0 // pred_fallthru
    _
  // Predicated region
  $region18: #{forward.7} parent=0 // pred_check
    _
  $region19: #{forward.7} parent=0 // pred_check_branch
    %194 = sbr.rel (0) target = $region21
  $region20: #{forward.7} parent=0 // pred_region
    _
  $region21: #{forward.7} parent=0 // pred_fallthru
    _

// kernel: forward.5
$region0: #{forward.5}
  #allocation0 [shape = 'u32[]', space=smem, size = 0x4, offset = 0x4, fixed_abs, tag = 'smem constant byte address 0x4 - core index']
  #allocation1 [shape = 'u32[144,128]{1,0:T(1,128)}', space=vmem, size = 0x12000, scoped, tag = 'internal scratch']
  #allocation2 [shape = 'f32[64,512]{1,0:T(8,128)}', space=vmem, size = 0x20000, scoped, tag = 'scratch operand']
  #allocation3 [shape = 'f32[8,128]{1,0:T(8,128)}', space=vmem, size = 0x1000, scoped, tag = 'scratch operand']
  #allocation4 [shape = 'f32[8,128]{1,0:T(8,128)}', space=vmem, size = 0x1000, scoped, tag = 'scratch operand']
  %s0 = inlined_call_operand.vmem [shape: bf16[64,128], index: 0, kind: input, shape index: {}]
  %s1 = inlined_call_operand.vmem [shape: bf16[128,512], index: 1, kind: input, shape index: {}]
  %s2 = inlined_call_operand.vmem [shape: f32[1,512], index: 2, kind: input, shape index: {}]
  %s3 = inlined_call_operand.hbm [shape: bf16[128,512], index: 3, kind: input, shape index: {}]
  %s4 = inlined_call_operand.vmem [shape: f32[8,128], index: 4, kind: input, shape index: {}]
  %s5 = inlined_call_operand.vmem [shape: f32[8,128], index: 5, kind: input, shape index: {}]
  %s6 = inlined_call_operand.vmem [shape: bf16[64,128], index: 6, kind: output, shape index: {0}]
  %s7 = inlined_call_operand.vmem [shape: f32[8,128], index: 7, kind: output, shape index: {1}]
  %s8 = inlined_call_operand.vmem [shape: f32[8,128], index: 8, kind: output, shape index: {2}]
  %9 = xla_tuple %s6, %s7, %s8
  %s10 = sld [smem:[#allocation0]]
  $region62: #{forward.5} parent=0
    _
  %s12 = ssub.s32 1, %s10
  %s13 = scalar_select 0, %s12, %s10
  $region1: #{forward.5} parent=0
    #allocation5 [shape = 'u8[131072]{0}', space=vmem, size = 0x20000, scoped, tag = 'input window, operand 3, single buffered']
    #allocation6 [shape = 's32[1]{0}', space=sflag, size = 0x4, scoped, tag = 'scoped memory for forward.5']
    %14 = vsyncpa [#allocation6], 0
    // Predicated region
    $region2: #{forward.5} parent=1 // pred_check
      _
    $region3: #{forward.5} parent=1 // pred_check_branch
      %16 = sbr.rel (0) target = $region5
    $region4: #{forward.5} parent=1 // pred_region
      _
    $region5: #{forward.5} parent=1 // pred_fallthru
      _
    // Predicated region
    $region6: #{forward.5} parent=1 // pred_check
      _
    $region7: #{forward.5} parent=1 // pred_check_branch
      %18 = sbr.rel (0) target = $region9
    $region8: #{forward.5} parent=1 // pred_region
      _
    $region9: #{forward.5} parent=1 // pred_fallthru
      _
    // Predicated region
    $region10: #{forward.5} parent=1 // pred_check
      _
    $region11: #{forward.5} parent=1 // pred_check_branch
      %20 = sbr.rel (0) target = $region13
    $region12: #{forward.5} parent=1 // pred_region
      _
    $region13: #{forward.5} parent=1 // pred_fallthru
      _
    // Predicated region
    $region14: #{forward.5} parent=1 // pred_check
      _
    $region15: #{forward.5} parent=1 // pred_check_branch
      %22 = sbr.rel (0) target = $region17
    $region16: #{forward.5} parent=1 // pred_region
      %s24 = ssub.s32 4096, 4096
      %25 = vsyncadd [#allocation6], %s24
      %s26 = sshll.u32 [#allocation5], 4
      %s27 = int_to_ptr.vmem [resolvable:$true] %s26
      %32 = dma.hbm_to_vmem [thread:$0]  %s3, 4096, %s27, [#allocation6], 256, 256, 16
    $region17: #{forward.5} parent=1 // pred_fallthru
      _
    // Predicated region
    $region18: #{forward.5} parent=1 // pred_check
      _
    $region19: #{forward.5} parent=1 // pred_check_branch
      %34 = sbr.rel (0) target = $region21
    $region20: #{forward.5} parent=1 // pred_region
      _
    $region21: #{forward.5} parent=1 // pred_fallthru
      _
    // Predicated region
    $region22: #{forward.5} parent=1 // pred_check
      _
    $region23: #{forward.5} parent=1 // pred_check_branch
      %36 = sbr.rel (0) target = $region25
    $region24: #{forward.5} parent=1 // pred_region
      _
    $region25: #{forward.5} parent=1 // pred_fallthru
      _
    // Predicated region
    $region26: #{forward.5} parent=1 // pred_check
      _
    $region27: #{forward.5} parent=1 // pred_check_branch
      %38 = sbr.rel (0) target = $region29
    $region28: #{forward.5} parent=1 // pred_region
      %39 = dma.done [#allocation6], 4096
    $region29: #{forward.5} parent=1 // pred_fallthru
      _
    %p41 = scmp.eq.s32.totalorder 0, 0
    // Predicated region
    $region30: #{forward.5} parent=1 // pred_check
      %p42 = pneg %p41
    $region31: #{forward.5} parent=1 // pred_check_branch
      %44 = sbr.rel (%p42) target = $region33
    $region32: #{forward.5} parent=1 // pred_region
      %v45 = vld [vmem:[%s4] sm:$0xff]
      %46 = vst [vmem:[#allocation3] sm:$0xff] %v45
      %v47 = vld [vmem:[%s5] sm:$0xff]
      %48 = vst [vmem:[#allocation4] sm:$0xff] %v47
    $region33: #{forward.5} parent=1 // pred_fallthru
      _
    %v49 = vld [vmem:[%s0] sm:$0xf]
    %v50 = vld [vmem:[%s0 + $0x4] sm:$0xf]
    %v51 = vld [vmem:[%s0 + $0x8] sm:$0xf]
    %v52 = vld [vmem:[%s0 + $0xc] sm:$0xf]
    %v53 = vld [vmem:[%s0 + $0x10] sm:$0xf]
    %v54 = vld [vmem:[%s0 + $0x14] sm:$0xf]
    %v55 = vld [vmem:[%s0 + $0x18] sm:$0xf]
    %v56 = vld [vmem:[%s0 + $0x1c] sm:$0xf]
    %v57 = vld [vmem:[%s1] sm:$0xff]
    %v58 = vld [vmem:[%s1 + $0x8] sm:$0xff]
    %v59 = vld [vmem:[%s1 + $0x10] sm:$0xff]
    %v60 = vld [vmem:[%s1 + $0x18] sm:$0xff]
    %v61 = vld [vmem:[%s1 + $0x20] sm:$0xff]
    %v62 = vld [vmem:[%s1 + $0x28] sm:$0xff]
    %v63 = vld [vmem:[%s1 + $0x30] sm:$0xff]
    %v64 = vld [vmem:[%s1 + $0x38] sm:$0xff]
    %v65 = vld [vmem:[%s1 + $0x40] sm:$0xff]
    %v66 = vld [vmem:[%s1 + $0x48] sm:$0xff]
    %v67 = vld [vmem:[%s1 + $0x50] sm:$0xff]
    %v68 = vld [vmem:[%s1 + $0x58] sm:$0xff]
    %v69 = vld [vmem:[%s1 + $0x60] sm:$0xff]
    %v70 = vld [vmem:[%s1 + $0x68] sm:$0xff]
    %v71 = vld [vmem:[%s1 + $0x70] sm:$0xff]
    %v72 = vld [vmem:[%s1 + $0x78] sm:$0xff]
    %v73 = vld [vmem:[%s1 + $0x80] sm:$0xff]
    %v74 = vld [vmem:[%s1 + $0x88] sm:$0xff]
    %v75 = vld [vmem:[%s1 + $0x90] sm:$0xff]
    %v76 = vld [vmem:[%s1 + $0x98] sm:$0xff]
    %v77 = vld [vmem:[%s1 + $0xa0] sm:$0xff]
    %v78 = vld [vmem:[%s1 + $0xa8] sm:$0xff]
    %v79 = vld [vmem:[%s1 + $0xb0] sm:$0xff]
    %v80 = vld [vmem:[%s1 + $0xb8] sm:$0xff]
    %v81 = vld [vmem:[%s1 + $0xc0] sm:$0xff]
    %v82 = vld [vmem:[%s1 + $0xc8] sm:$0xff]
    %v83 = vld [vmem:[%s1 + $0xd0] sm:$0xff]
    %v84 = vld [vmem:[%s1 + $0xd8] sm:$0xff]
    %v85 = vld [vmem:[%s1 + $0xe0] sm:$0xff]
    %v86 = vld [vmem:[%s1 + $0xe8] sm:$0xff]
    %v87 = vld [vmem:[%s1 + $0xf0] sm:$0xff]
    %v88 = vld [vmem:[%s1 + $0xf8] sm:$0xff]
    %v89 = vld [vmem:[%s2] sm:$0xf]
    %v91 = vlaneseq
    %v92 = vshrl.u32 %v91, 7
    %v93 = vsub.s32 0, %v92
    %v94 = vrot.slane %v89, %v93
    %v95 = vlaneseq
    %v96 = vshrl.u32 %v95, 7
    %v97 = vsub.s32 1, %v96
    %v98 = vrot.slane %v89, %v97
    %v99 = vlaneseq
    %v100 = vshrl.u32 %v99, 7
    %v101 = vsub.s32 2, %v100
    %v102 = vrot.slane %v89, %v101
    %v103 = vlaneseq
    %v104 = vshrl.u32 %v103, 7
    %v105 = vsub.s32 3, %v104
    %v106 = vrot.slane %v89, %v105
    %v119 = vunpack.c.l.b16 %v49
    %v120 = vunpack.c.l.b16 %v50
    %v121 = vunpack.c.l.b16 %v51
    %v122 = vunpack.c.l.b16 %v52
    %v123 = vunpack.c.l.b16 %v53
    %v124 = vunpack.c.l.b16 %v54
    %v125 = vunpack.c.l.b16 %v55
    %v126 = vunpack.c.l.b16 %v56
    %v127 = vpack.c.b16 %v120, %v119
    %v128 = vpack.c.b16 %v122, %v121
    %v129 = vpack.c.b16 %v124, %v123
    %v130 = vpack.c.b16 %v126, %v125
    %v167 = vunpack.c.l.b16 %v57
    %v168 = vunpack.c.h.b16 %v57
    %v169 = vunpack.c.l.b16 %v58
    %v170 = vunpack.c.h.b16 %v58
    %v171 = vunpack.c.l.b16 %v59
    %v172 = vunpack.c.h.b16 %v59
    %v173 = vunpack.c.l.b16 %v60
    %v174 = vunpack.c.h.b16 %v60
    %v175 = vunpack.c.l.b16 %v61
    %v176 = vunpack.c.h.b16 %v61
    %v177 = vunpack.c.l.b16 %v62
    %v178 = vunpack.c.h.b16 %v62
    %v179 = vunpack.c.l.b16 %v63
    %v180 = vunpack.c.h.b16 %v63
    %v181 = vunpack.c.l.b16 %v64
    %v182 = vunpack.c.h.b16 %v64
    %v183 = vunpack.c.l.b16 %v65
    %v184 = vunpack.c.h.b16 %v65
    %v185 = vunpack.c.l.b16 %v66
    %v186 = vunpack.c.h.b16 %v66
    %v187 = vunpack.c.l.b16 %v67
    %v188 = vunpack.c.h.b16 %v67
    %v189 = vunpack.c.l.b16 %v68
    %v190 = vunpack.c.h.b16 %v68
    %v191 = vunpack.c.l.b16 %v69
    %v192 = vunpack.c.h.b16 %v69
    %v193 = vunpack.c.l.b16 %v70
    %v194 = vunpack.c.h.b16 %v70
    %v195 = vunpack.c.l.b16 %v71
    %v196 = vunpack.c.h.b16 %v71
    %v197 = vunpack.c.l.b16 %v72
    %v198 = vunpack.c.h.b16 %v72
    %v199 = vunpack.c.l.b16 %v73
    %v200 = vunpack.c.h.b16 %v73
    %v201 = vunpack.c.l.b16 %v74
    %v202 = vunpack.c.h.b16 %v74
    %v203 = vunpack.c.l.b16 %v75
    %v204 = vunpack.c.h.b16 %v75
    %v205 = vunpack.c.l.b16 %v76
    %v206 = vunpack.c.h.b16 %v76
    %v207 = vunpack.c.l.b16 %v77
    %v208 = vunpack.c.h.b16 %v77
    %v209 = vunpack.c.l.b16 %v78
    %v210 = vunpack.c.h.b16 %v78
    %v211 = vunpack.c.l.b16 %v79
    %v212 = vunpack.c.h.b16 %v79
    %v213 = vunpack.c.l.b16 %v80
    %v214 = vunpack.c.h.b16 %v80
    %v215 = vunpack.c.l.b16 %v81
    %v216 = vunpack.c.h.b16 %v81
    %v217 = vunpack.c.l.b16 %v82
    %v218 = vunpack.c.h.b16 %v82
    %v219 = vunpack.c.l.b16 %v83
    %v220 = vunpack.c.h.b16 %v83
    %v221 = vunpack.c.l.b16 %v84
    %v222 = vunpack.c.h.b16 %v84
    %v223 = vunpack.c.l.b16 %v85
    %v224 = vunpack.c.h.b16 %v85
    %v225 = vunpack.c.l.b16 %v86
    %v226 = vunpack.c.h.b16 %v86
    %v227 = vunpack.c.l.b16 %v87
    %v228 = vunpack.c.h.b16 %v87
    %v229 = vunpack.c.l.b16 %v88
    %v230 = vunpack.c.h.b16 %v88
    %v231 = vpack.c.b16 %v171, %v167
    %v232 = vpack.c.b16 %v172, %v168
    %v233 = vpack.c.b16 %v173, %v169
    %v234 = vpack.c.b16 %v174, %v170
    %v235 = vpack.c.b16 %v179, %v175
    %v236 = vpack.c.b16 %v180, %v176
    %v237 = vpack.c.b16 %v181, %v177
    %v238 = vpack.c.b16 %v182, %v178
    %v239 = vpack.c.b16 %v187, %v183
    %v240 = vpack.c.b16 %v188, %v184
    %v241 = vpack.c.b16 %v189, %v185
    %v242 = vpack.c.b16 %v190, %v186
    %v243 = vpack.c.b16 %v195, %v191
    %v244 = vpack.c.b16 %v196, %v192
    %v245 = vpack.c.b16 %v197, %v193
    %v246 = vpack.c.b16 %v198, %v194
    %v247 = vpack.c.b16 %v203, %v199
    %v248 = vpack.c.b16 %v204, %v200
    %v249 = vpack.c.b16 %v205, %v201
    %v250 = vpack.c.b16 %v206, %v202
    %v251 = vpack.c.b16 %v211, %v207
    %v252 = vpack.c.b16 %v212, %v208
    %v253 = vpack.c.b16 %v213, %v209
    %v254 = vpack.c.b16 %v214, %v210
    %v255 = vpack.c.b16 %v219, %v215
    %v256 = vpack.c.b16 %v220, %v216
    %v257 = vpack.c.b16 %v221, %v217
    %v258 = vpack.c.b16 %v222, %v218
    %v259 = vpack.c.b16 %v227, %v223
    %v260 = vpack.c.b16 %v228, %v224
    %v261 = vpack.c.b16 %v229, %v225
    %v262 = vpack.c.b16 %v230, %v226
    %295 = vmatprep.subr.bf16.mxu0 %v260
    %296 = vmatpush1.bf16.msra.mxu0 %v259
    %297 = vmatprep.subr.bf16.mxu0 %v256
    %298 = vmatpush1.bf16.msra.mxu0 %v255
    %299 = vmatprep.subr.bf16.mxu0 %v252
    %300 = vmatpush1.bf16.msra.mxu0 %v251
    %301 = vmatprep.subr.bf16.mxu0 %v248
    %302 = vmatpush1.bf16.msra.mxu0 %v247
    %303 = vmatprep.subr.bf16.mxu0 %v244
    %304 = vmatpush1.bf16.msra.mxu0 %v243
    %305 = vmatprep.subr.bf16.mxu0 %v240
    %306 = vmatpush1.bf16.msra.mxu0 %v239
    %307 = vmatprep.subr.bf16.mxu0 %v236
    %308 = vmatpush1.bf16.msra.mxu0 %v235
    %309 = vmatprep.subr.bf16.mxu0 %v232
    %310 = vmatpush1.bf16.msra.mxu0 %v231
    %311 = vmatprep.subr.bf16.mxu0 0
    %312 = vmatpush2.bf16.msra.mxu0 0
    %313 = vmatprep.subr.bf16.mxu0 0
    %314 = vmatpush2.bf16.msra.mxu0 0
    %315 = vmatprep.subr.bf16.mxu0 0
    %316 = vmatpush2.bf16.msra.mxu0 0
    %317 = vmatprep.subr.bf16.mxu0 0
    %318 = vmatpush2.bf16.msra.mxu0 0
    %319 = vmatprep.subr.bf16.mxu0 0
    %320 = vmatpush2.bf16.msra.mxu0 0
    %321 = vmatprep.subr.bf16.mxu0 0
    %322 = vmatpush2.bf16.msra.mxu0 0
    %323 = vmatprep.subr.bf16.mxu0 0
    %324 = vmatpush2.bf16.msra.mxu0 0
    %325 = vmatprep.subr.bf16.mxu0 0
    %326 = vmatpush2.bf16.msra.mxu0 0
    %327 = vmatprep.mubr.bf16.mxu0 0
    %328 = vmatmul.mubr.bf16.gmra.mxu0 %v127
    %v329 = vpop.f32.mrf.mxu0
    %v330 = vadd.f32 %v94, %v329
    %v331 = vpop.f32.mrf.mxu0
    %v332 = vadd.f32 %v98, %v331
    %v333 = vpop.f32.mrf.mxu0
    %v334 = vadd.f32 %v94, %v333
    %v335 = vpop.f32.mrf.mxu0
    %v336 = vadd.f32 %v98, %v335
    %337 = vmatprep.mubr.bf16.mxu0 0
    %338 = vmatmul.mubr.bf16.gmra.mxu0 %v128
    %v339 = vpop.f32.mrf.mxu0
    %v340 = vadd.f32 %v94, %v339
    %v341 = vpop.f32.mrf.mxu0
    %v342 = vadd.f32 %v98, %v341
    %v343 = vpop.f32.mrf.mxu0
    %v344 = vadd.f32 %v94, %v343
    %v345 = vpop.f32.mrf.mxu0
    %v346 = vadd.f32 %v98, %v345
    %347 = vmatprep.mubr.bf16.mxu0 0
    %348 = vmatmul.mubr.bf16.gmra.mxu0 %v129
    %v349 = vpop.f32.mrf.mxu0
    %v350 = vadd.f32 %v94, %v349
    %v351 = vpop.f32.mrf.mxu0
    %v352 = vadd.f32 %v98, %v351
    %v353 = vpop.f32.mrf.mxu0
    %v354 = vadd.f32 %v94, %v353
    %v355 = vpop.f32.mrf.mxu0
    %v356 = vadd.f32 %v98, %v355
    %357 = vmatprep.mubr.bf16.mxu0 0
    %358 = vmatmul.mubr.bf16.gmra.mxu0 %v130
    %v359 = vpop.f32.mrf.mxu0
    %v360 = vadd.f32 %v94, %v359
    %v361 = vpop.f32.mrf.mxu0
    %v362 = vadd.f32 %v98, %v361
    %v363 = vpop.f32.mrf.mxu0
    %v364 = vadd.f32 %v94, %v363
    %v365 = vpop.f32.mrf.mxu0
    %v366 = vadd.f32 %v98, %v365
    %367 = vdwg.mxu0
    %368 = vmatprep.subr.bf16.mxu0 %v262
    %369 = vmatpush1.bf16.msra.mxu0 %v261
    %370 = vmatprep.subr.bf16.mxu0 %v258
    %371 = vmatpush1.bf16.msra.mxu0 %v257
    %372 = vmatprep.subr.bf16.mxu0 %v254
    %373 = vmatpush1.bf16.msra.mxu0 %v253
    %374 = vmatprep.subr.bf16.mxu0 %v250
    %375 = vmatpush1.bf16.msra.mxu0 %v249
    %376 = vmatprep.subr.bf16.mxu0 %v246
    %377 = vmatpush1.bf16.msra.mxu0 %v245
    %378 = vmatprep.subr.bf16.mxu0 %v242
    %379 = vmatpush1.bf16.msra.mxu0 %v241
    %380 = vmatprep.subr.bf16.mxu0 %v238
    %381 = vmatpush1.bf16.msra.mxu0 %v237
    %382 = vmatprep.subr.bf16.mxu0 %v234
    %383 = vmatpush1.bf16.msra.mxu0 %v233
    %384 = vmatprep.subr.bf16.mxu0 0
    %385 = vmatpush2.bf16.msra.mxu0 0
    %386 = vmatprep.subr.bf16.mxu0 0
    %387 = vmatpush2.bf16.msra.mxu0 0
    %388 = vmatprep.subr.bf16.mxu0 0
    %389 = vmatpush2.bf16.msra.mxu0 0
    %390 = vmatprep.subr.bf16.mxu0 0
    %391 = vmatpush2.bf16.msra.mxu0 0
    %392 = vmatprep.subr.bf16.mxu0 0
    %393 = vmatpush2.bf16.msra.mxu0 0
    %394 = vmatprep.subr.bf16.mxu0 0
    %395 = vmatpush2.bf16.msra.mxu0 0
    %396 = vmatprep.subr.bf16.mxu0 0
    %397 = vmatpush2.bf16.msra.mxu0 0
    %398 = vmatprep.subr.bf16.mxu0 0
    %399 = vmatpush2.bf16.msra.mxu0 0
    %400 = vmatprep.mubr.bf16.mxu0 0
    %401 = vmatmul.mubr.bf16.gmra.mxu0 %v127
    %v402 = vpop.f32.mrf.mxu0
    %v403 = vadd.f32 %v102, %v402
    %v404 = vpop.f32.mrf.mxu0
    %v405 = vadd.f32 %v106, %v404
    %v406 = vpop.f32.mrf.mxu0
    %v407 = vadd.f32 %v102, %v406
    %v408 = vpop.f32.mrf.mxu0
    %v409 = vadd.f32 %v106, %v408
    %410 = vmatprep.mubr.bf16.mxu0 0
    %411 = vmatmul.mubr.bf16.gmra.mxu0 %v128
    %v412 = vpop.f32.mrf.mxu0
    %v413 = vadd.f32 %v102, %v412
    %v414 = vpop.f32.mrf.mxu0
    %v415 = vadd.f32 %v106, %v414
    %v416 = vpop.f32.mrf.mxu0
    %v417 = vadd.f32 %v102, %v416
    %v418 = vpop.f32.mrf.mxu0
    %v419 = vadd.f32 %v106, %v418
    %420 = vmatprep.mubr.bf16.mxu0 0
    %421 = vmatmul.mubr.bf16.gmra.mxu0 %v129
    %v422 = vpop.f32.mrf.mxu0
    %v423 = vadd.f32 %v102, %v422
    %v424 = vpop.f32.mrf.mxu0
    %v425 = vadd.f32 %v106, %v424
    %v426 = vpop.f32.mrf.mxu0
    %v427 = vadd.f32 %v102, %v426
    %v428 = vpop.f32.mrf.mxu0
    %v429 = vadd.f32 %v106, %v428
    %430 = vmatprep.mubr.bf16.mxu0 0
    %431 = vmatmul.mubr.bf16.gmra.mxu0 %v130
    %v432 = vpop.f32.mrf.mxu0
    %v433 = vadd.f32 %v102, %v432
    %v434 = vpop.f32.mrf.mxu0
    %v435 = vadd.f32 %v106, %v434
    %v436 = vpop.f32.mrf.mxu0
    %v437 = vadd.f32 %v102, %v436
    %v438 = vpop.f32.mrf.mxu0
    %v439 = vadd.f32 %v106, %v438
    %440 = vdwg.mxu0
    %441 = vst [vmem:[#allocation2] sm:$0xff] %v330
    %442 = vst [vmem:[#allocation2 + $0x8] sm:$0xff] %v332
    %443 = vst [vmem:[#allocation2 + $0x10] sm:$0xff] %v403
    %444 = vst [vmem:[#allocation2 + $0x18] sm:$0xff] %v405
    %445 = vst [vmem:[#allocation2 + $0x20] sm:$0xff] %v334
    %446 = vst [vmem:[#allocation2 + $0x28] sm:$0xff] %v336
    %447 = vst [vmem:[#allocation2 + $0x30] sm:$0xff] %v407
    %448 = vst [vmem:[#allocation2 + $0x38] sm:$0xff] %v409
    %449 = vst [vmem:[#allocation2 + $0x40] sm:$0xff] %v340
    %450 = vst [vmem:[#allocation2 + $0x48] sm:$0xff] %v342
    %451 = vst [vmem:[#allocation2 + $0x50] sm:$0xff] %v413
    %452 = vst [vmem:[#allocation2 + $0x58] sm:$0xff] %v415
    %453 = vst [vmem:[#allocation2 + $0x60] sm:$0xff] %v344
    %454 = vst [vmem:[#allocation2 + $0x68] sm:$0xff] %v346
    %455 = vst [vmem:[#allocation2 + $0x70] sm:$0xff] %v417
    %456 = vst [vmem:[#allocation2 + $0x78] sm:$0xff] %v419
    %457 = vst [vmem:[#allocation2 + $0x80] sm:$0xff] %v350
    %458 = vst [vmem:[#allocation2 + $0x88] sm:$0xff] %v352
    %459 = vst [vmem:[#allocation2 + $0x90] sm:$0xff] %v423
    %460 = vst [vmem:[#allocation2 + $0x98] sm:$0xff] %v425
    %461 = vst [vmem:[#allocation2 + $0xa0] sm:$0xff] %v354
    %462 = vst [vmem:[#allocation2 + $0xa8] sm:$0xff] %v356
    %463 = vst [vmem:[#allocation2 + $0xb0] sm:$0xff] %v427
    %464 = vst [vmem:[#allocation2 + $0xb8] sm:$0xff] %v429
    %465 = vst [vmem:[#allocation2 + $0xc0] sm:$0xff] %v360
    %466 = vst [vmem:[#allocation2 + $0xc8] sm:$0xff] %v362
    %467 = vst [vmem:[#allocation2 + $0xd0] sm:$0xff] %v433
    %468 = vst [vmem:[#allocation2 + $0xd8] sm:$0xff] %v435
    %469 = vst [vmem:[#allocation2 + $0xe0] sm:$0xff] %v364
    %470 = vst [vmem:[#allocation2 + $0xe8] sm:$0xff] %v366
    %471 = vst [vmem:[#allocation2 + $0xf0] sm:$0xff] %v437
    %472 = vst [vmem:[#allocation2 + $0xf8] sm:$0xff] %v439
    %v473 = vld [vmem:[#allocation3] sm:$0xff]
    %v474 = vld [vmem:[#allocation4] sm:$0xff]
    %s475 = smul.u32 0, 4
    %s476 = smul.addr %s475, 8
    %s477 = scalar_lea.vmem [#allocation2], %s476
    %v478 = vld [vmem:[%s477] sm:$0xff]
    %v479 = vld [vmem:[%s477 + $0x8] sm:$0xff]
    %v480 = vld [vmem:[%s477 + $0x10] sm:$0xff]
    %v481 = vld [vmem:[%s477 + $0x18] sm:$0xff]
    %v482 = vpack.c.bf16 %v473, %v473
    %v483 = vld [vmem:[#allocation5] sm:$0xff]
    %v484 = vld [vmem:[#allocation5 + $0x8] sm:$0xff]
    %v485 = vld [vmem:[#allocation5 + $0x10] sm:$0xff]
    %v486 = vld [vmem:[#allocation5 + $0x18] sm:$0xff]
    %v487 = vld [vmem:[#allocation5 + $0x20] sm:$0xff]
    %v488 = vld [vmem:[#allocation5 + $0x28] sm:$0xff]
    %v489 = vld [vmem:[#allocation5 + $0x30] sm:$0xff]
    %v490 = vld [vmem:[#allocation5 + $0x38] sm:$0xff]
    %v491 = vld [vmem:[#allocation5 + $0x40] sm:$0xff]
    %v492 = vld [vmem:[#allocation5 + $0x48] sm:$0xff]
    %v493 = vld [vmem:[#allocation5 + $0x50] sm:$0xff]
    %v494 = vld [vmem:[#allocation5 + $0x58] sm:$0xff]
    %v495 = vld [vmem:[#allocation5 + $0x60] sm:$0xff]
    %v496 = vld [vmem:[#allocation5 + $0x68] sm:$0xff]
    %v497 = vld [vmem:[#allocation5 + $0x70] sm:$0xff]
    %v498 = vld [vmem:[#allocation5 + $0x78] sm:$0xff]
    %v499 = vld [vmem:[#allocation5 + $0x80] sm:$0xff]
    %v500 = vld [vmem:[#allocation5 + $0x88] sm:$0xff]
    %v501 = vld [vmem:[#allocation5 + $0x90] sm:$0xff]
    %v502 = vld [vmem:[#allocation5 + $0x98] sm:$0xff]
    %v503 = vld [vmem:[#allocation5 + $0xa0] sm:$0xff]
    %v504 = vld [vmem:[#allocation5 + $0xa8] sm:$0xff]
    %v505 = vld [vmem:[#allocation5 + $0xb0] sm:$0xff]
    %v506 = vld [vmem:[#allocation5 + $0xb8] sm:$0xff]
    %v507 = vld [vmem:[#allocation5 + $0xc0] sm:$0xff]
    %v508 = vld [vmem:[#allocation5 + $0xc8] sm:$0xff]
    %v509 = vld [vmem:[#allocation5 + $0xd0] sm:$0xff]
    %v510 = vld [vmem:[#allocation5 + $0xd8] sm:$0xff]
    %v511 = vld [vmem:[#allocation5 + $0xe0] sm:$0xff]
    %v512 = vld [vmem:[#allocation5 + $0xe8] sm:$0xff]
    %v513 = vld [vmem:[#allocation5 + $0xf0] sm:$0xff]
    %v514 = vld [vmem:[#allocation5 + $0xf8] sm:$0xff]
    %v547 = vunpack.c.l.b16 %v483
    %v548 = vunpack.c.h.b16 %v483
    %v549 = vunpack.c.l.b16 %v484
    %v550 = vunpack.c.h.b16 %v484
    %v551 = vunpack.c.l.b16 %v485
    %v552 = vunpack.c.h.b16 %v485
    %v553 = vunpack.c.l.b16 %v486
    %v554 = vunpack.c.h.b16 %v486
    %v555 = vunpack.c.l.b16 %v487
    %v556 = vunpack.c.h.b16 %v487
    %v557 = vunpack.c.l.b16 %v488
    %v558 = vunpack.c.h.b16 %v488
    %v559 = vunpack.c.l.b16 %v489
    %v560 = vunpack.c.h.b16 %v489
    %v561 = vunpack.c.l.b16 %v490
    %v562 = vunpack.c.h.b16 %v490
    %v563 = vunpack.c.l.b16 %v491
    %v564 = vunpack.c.h.b16 %v491
    %v565 = vunpack.c.l.b16 %v492
    %v566 = vunpack.c.h.b16 %v492
    %v567 = vunpack.c.l.b16 %v493
    %v568 = vunpack.c.h.b16 %v493
    %v569 = vunpack.c.l.b16 %v494
    %v570 = vunpack.c.h.b16 %v494
    %v571 = vunpack.c.l.b16 %v495
    %v572 = vunpack.c.h.b16 %v495
    %v573 = vunpack.c.l.b16 %v496
    %v574 = vunpack.c.h.b16 %v496
    %v575 = vunpack.c.l.b16 %v497
    %v576 = vunpack.c.h.b16 %v497
    %v577 = vunpack.c.l.b16 %v498
    %v578 = vunpack.c.h.b16 %v498
    %v579 = vunpack.c.l.b16 %v499
    %v580 = vunpack.c.h.b16 %v499
    %v581 = vunpack.c.l.b16 %v500
    %v582 = vunpack.c.h.b16 %v500
    %v583 = vunpack.c.l.b16 %v501
    %v584 = vunpack.c.h.b16 %v501
    %v585 = vunpack.c.l.b16 %v502
    %v586 = vunpack.c.h.b16 %v502
    %v587 = vunpack.c.l.b16 %v503
    %v588 = vunpack.c.h.b16 %v503
    %v589 = vunpack.c.l.b16 %v504
    %v590 = vunpack.c.h.b16 %v504
    %v591 = vunpack.c.l.b16 %v505
    %v592 = vunpack.c.h.b16 %v505
    %v593 = vunpack.c.l.b16 %v506
    %v594 = vunpack.c.h.b16 %v506
    %v595 = vunpack.c.l.b16 %v507
    %v596 = vunpack.c.h.b16 %v507
    %v597 = vunpack.c.l.b16 %v508
    %v598 = vunpack.c.h.b16 %v508
    %v599 = vunpack.c.l.b16 %v509
    %v600 = vunpack.c.h.b16 %v509
    %v601 = vunpack.c.l.b16 %v510
    %v602 = vunpack.c.h.b16 %v510
    %v603 = vunpack.c.l.b16 %v511
    %v604 = vunpack.c.h.b16 %v511
    %v605 = vunpack.c.l.b16 %v512
    %v606 = vunpack.c.h.b16 %v512
    %v607 = vunpack.c.l.b16 %v513
    %v608 = vunpack.c.h.b16 %v513
    %v609 = vunpack.c.l.b16 %v514
    %v610 = vunpack.c.h.b16 %v514
    %v611 = vpack.c.b16 %v551, %v547
    %v612 = vpack.c.b16 %v552, %v548
    %v613 = vpack.c.b16 %v553, %v549
    %v614 = vpack.c.b16 %v554, %v550
    %v615 = vpack.c.b16 %v559, %v555
    %v616 = vpack.c.b16 %v560, %v556
    %v617 = vpack.c.b16 %v561, %v557
    %v618 = vpack.c.b16 %v562, %v558
    %v619 = vpack.c.b16 %v567, %v563
    %v620 = vpack.c.b16 %v568, %v564
    %v621 = vpack.c.b16 %v569, %v565
    %v622 = vpack.c.b16 %v570, %v566
    %v623 = vpack.c.b16 %v575, %v571
    %v624 = vpack.c.b16 %v576, %v572
    %v625 = vpack.c.b16 %v577, %v573
    %v626 = vpack.c.b16 %v578, %v574
    %v627 = vpack.c.b16 %v583, %v579
    %v628 = vpack.c.b16 %v584, %v580
    %v629 = vpack.c.b16 %v585, %v581
    %v630 = vpack.c.b16 %v586, %v582
    %v631 = vpack.c.b16 %v591, %v587
    %v632 = vpack.c.b16 %v592, %v588
    %v633 = vpack.c.b16 %v593, %v589
    %v634 = vpack.c.b16 %v594, %v590
    %v635 = vpack.c.b16 %v599, %v595
    %v636 = vpack.c.b16 %v600, %v596
    %v637 = vpack.c.b16 %v601, %v597
    %v638 = vpack.c.b16 %v602, %v598
    %v639 = vpack.c.b16 %v607, %v603
    %v640 = vpack.c.b16 %v608, %v604
    %v641 = vpack.c.b16 %v609, %v605
    %v642 = vpack.c.b16 %v610, %v606
    %675 = vmatprep.subr.bf16.mxu0 %v640
    %676 = vmatpush1.bf16.msra.mxu0 %v639
    %677 = vmatprep.subr.bf16.mxu0 %v636
    %678 = vmatpush1.bf16.msra.mxu0 %v635
    %679 = vmatprep.subr.bf16.mxu0 %v632
    %680 = vmatpush1.bf16.msra.mxu0 %v631
    %681 = vmatprep.subr.bf16.mxu0 %v628
    %682 = vmatpush1.bf16.msra.mxu0 %v627
    %683 = vmatprep.subr.bf16.mxu0 %v624
    %684 = vmatpush1.bf16.msra.mxu0 %v623
    %685 = vmatprep.subr.bf16.mxu0 %v620
    %686 = vmatpush1.bf16.msra.mxu0 %v619
    %687 = vmatprep.subr.bf16.mxu0 %v616
    %688 = vmatpush1.bf16.msra.mxu0 %v615
    %689 = vmatprep.subr.bf16.mxu0 %v612
    %690 = vmatpush1.bf16.msra.mxu0 %v611
    %691 = vmatprep.subr.bf16.mxu0 0
    %692 = vmatpush2.bf16.msra.mxu0 0
    %693 = vmatprep.subr.bf16.mxu0 0
    %694 = vmatpush2.bf16.msra.mxu0 0
    %695 = vmatprep.subr.bf16.mxu0 0
    %696 = vmatpush2.bf16.msra.mxu0 0
    %697 = vmatprep.subr.bf16.mxu0 0
    %698 = vmatpush2.bf16.msra.mxu0 0
    %699 = vmatprep.subr.bf16.mxu0 0
    %700 = vmatpush2.bf16.msra.mxu0 0
    %701 = vmatprep.subr.bf16.mxu0 0
    %702 = vmatpush2.bf16.msra.mxu0 0
    %703 = vmatprep.subr.bf16.mxu0 0
    %704 = vmatpush2.bf16.msra.mxu0 0
    %705 = vmatprep.subr.bf16.mxu0 0
    %706 = vmatpush2.bf16.msra.mxu0 0
    %707 = vmatprep.mubr.bf16.mxu0 0
    %708 = vmatmul.mubr.bf16.gmra.mxu0 %v482
    %v709 = vpop.f32.mrf.mxu0
    %v710 = vadd.f32 0.0, %v709
    %v711 = vpop.f32.mrf.mxu0
    %v712 = vadd.f32 0.0, %v711
    %v713 = vpop.f32.mrf.mxu0
    %v714 = vpop.f32.mrf.mxu0
    %715 = vdwg.mxu0
    %716 = vmatprep.subr.bf16.mxu0 %v642
    %717 = vmatpush1.bf16.msra.mxu0 %v641
    %718 = vmatprep.subr.bf16.mxu0 %v638
    %719 = vmatpush1.bf16.msra.mxu0 %v637
    %720 = vmatprep.subr.bf16.mxu0 %v634
    %721 = vmatpush1.bf16.msra.mxu0 %v633
    %722 = vmatprep.subr.bf16.mxu0 %v630
    %723 = vmatpush1.bf16.msra.mxu0 %v629
    %724 = vmatprep.subr.bf16.mxu0 %v626
    %725 = vmatpush1.bf16.msra.mxu0 %v625
    %726 = vmatprep.subr.bf16.mxu0 %v622
    %727 = vmatpush1.bf16.msra.mxu0 %v621
    %728 = vmatprep.subr.bf16.mxu0 %v618
    %729 = vmatpush1.bf16.msra.mxu0 %v617
    %730 = vmatprep.subr.bf16.mxu0 %v614
    %731 = vmatpush1.bf16.msra.mxu0 %v613
    %732 = vmatprep.subr.bf16.mxu0 0
    %733 = vmatpush2.bf16.msra.mxu0 0
    %734 = vmatprep.subr.bf16.mxu0 0
    %735 = vmatpush2.bf16.msra.mxu0 0
    %736 = vmatprep.subr.bf16.mxu0 0
    %737 = vmatpush2.bf16.msra.mxu0 0
    %738 = vmatprep.subr.bf16.mxu0 0
    %739 = vmatpush2.bf16.msra.mxu0 0
    %740 = vmatprep.subr.bf16.mxu0 0
    %741 = vmatpush2.bf16.msra.mxu0 0
    %742 = vmatprep.subr.bf16.mxu0 0
    %743 = vmatpush2.bf16.msra.mxu0 0
    %744 = vmatprep.subr.bf16.mxu0 0
    %745 = vmatpush2.bf16.msra.mxu0 0
    %746 = vmatprep.subr.bf16.mxu0 0
    %747 = vmatpush2.bf16.msra.mxu0 0
    %748 = vmatprep.mubr.bf16.mxu0 0
    %749 = vmatmul.mubr.bf16.gmra.mxu0 %v482
    %v750 = vpop.f32.mrf.mxu0
    %v751 = vadd.f32 0.0, %v750
    %v752 = vpop.f32.mrf.mxu0
    %v753 = vadd.f32 0.0, %v752
    %v754 = vpop.f32.mrf.mxu0
    %v755 = vpop.f32.mrf.mxu0
    %756 = vdwg.mxu0
    %v757 = vadd.f32 %v478, %v710
    %v758 = vadd.f32 %v479, %v712
    %v759 = vadd.f32 %v480, %v751
    %v760 = vadd.f32 %v481, %v753
    %v761 = vmul.f32 %v757, 0.5
    %v762 = vtanh.pop %v761
    %v763 = vadd.f32 %v762, 1.0
    %v764 = vmul.f32 %v763, 0.5
    %v765 = vmul.f32 %v758, 0.5
    %v766 = vtanh.pop %v765
    %v767 = vadd.f32 %v766, 1.0
    %v768 = vmul.f32 %v767, 0.5
    %v769 = vtanh.pop %v759
    %v770 = vmul.f32 %v760, 0.5
    %v771 = vtanh.pop %v770
    %v772 = vadd.f32 %v771, 1.0
    %v773 = vmul.f32 %v772, 0.5
    %v774 = vmul.f32 %v768, %v474
    %v775 = vmul.f32 %v764, %v769
    %v776 = vadd.f32 %v774, %v775
    %v777 = vtanh.pop %v776
    %v778 = vmul.f32 %v773, %v777
    %v779 = vpack.c.bf16 %v778, %v778
    %780 = vst [vmem:[%s6] sm:$0xf] %v779
    %s781 = smul.u32 1, 4
    %s782 = smul.addr %s781, 8
    %s783 = scalar_lea.vmem [#allocation2], %s782
    %v784 = vld [vmem:[%s783] sm:$0xff]
    %v785 = vld [vmem:[%s783 + $0x8] sm:$0xff]
    %v786 = vld [vmem:[%s783 + $0x10] sm:$0xff]
    %v787 = vld [vmem:[%s783 + $0x18] sm:$0xff]
    %v788 = vld [vmem:[#allocation5] sm:$0xff]
    %v789 = vld [vmem:[#allocation5 + $0x8] sm:$0xff]
    %v790 = vld [vmem:[#allocation5 + $0x10] sm:$0xff]
    %v791 = vld [vmem:[#allocation5 + $0x18] sm:$0xff]
    %v792 = vld [vmem:[#allocation5 + $0x20] sm:$0xff]
    %v793 = vld [vmem:[#allocation5 + $0x28] sm:$0xff]
    %v794 = vld [vmem:[#allocation5 + $0x30] sm:$0xff]
    %v795 = vld [vmem:[#allocation5 + $0x38] sm:$0xff]
    %v796 = vld [vmem:[#allocation5 + $0x40] sm:$0xff]
    %v797 = vld [vmem:[#allocation5 + $0x48] sm:$0xff]
    %v798 = vld [vmem:[#allocation5 + $0x50] sm:$0xff]
    %v799 = vld [vmem:[#allocation5 + $0x58] sm:$0xff]
    %v800 = vld [vmem:[#allocation5 + $0x60] sm:$0xff]
    %v801 = vld [vmem:[#allocation5 + $0x68] sm:$0xff]
    %v802 = vld [vmem:[#allocation5 + $0x70] sm:$0xff]
    %v803 = vld [vmem:[#allocation5 + $0x78] sm:$0xff]
    %v804 = vld [vmem:[#allocation5 + $0x80] sm:$0xff]
    %v805 = vld [vmem:[#allocation5 + $0x88] sm:$0xff]
    %v806 = vld [vmem:[#allocation5 + $0x90] sm:$0xff]
    %v807 = vld [vmem:[#allocation5 + $0x98] sm:$0xff]
    %v808 = vld [vmem:[#allocation5 + $0xa0] sm:$0xff]
    %v809 = vld [vmem:[#allocation5 + $0xa8] sm:$0xff]
    %v810 = vld [vmem:[#allocation5 + $0xb0] sm:$0xff]
    %v811 = vld [vmem:[#allocation5 + $0xb8] sm:$0xff]
    %v812 = vld [vmem:[#allocation5 + $0xc0] sm:$0xff]
    %v813 = vld [vmem:[#allocation5 + $0xc8] sm:$0xff]
    %v814 = vld [vmem:[#allocation5 + $0xd0] sm:$0xff]
    %v815 = vld [vmem:[#allocation5 + $0xd8] sm:$0xff]
    %v816 = vld [vmem:[#allocation5 + $0xe0] sm:$0xff]
    %v817 = vld [vmem:[#allocation5 + $0xe8] sm:$0xff]
    %v818 = vld [vmem:[#allocation5 + $0xf0] sm:$0xff]
    %v819 = vld [vmem:[#allocation5 + $0xf8] sm:$0xff]
    %v852 = vunpack.c.l.b16 %v788
    %v853 = vunpack.c.h.b16 %v788
    %v854 = vunpack.c.l.b16 %v789
    %v855 = vunpack.c.h.b16 %v789
    %v856 = vunpack.c.l.b16 %v790
    %v857 = vunpack.c.h.b16 %v790
    %v858 = vunpack.c.l.b16 %v791
    %v859 = vunpack.c.h.b16 %v791
    %v860 = vunpack.c.l.b16 %v792
    %v861 = vunpack.c.h.b16 %v792
    %v862 = vunpack.c.l.b16 %v793
    %v863 = vunpack.c.h.b16 %v793
    %v864 = vunpack.c.l.b16 %v794
    %v865 = vunpack.c.h.b16 %v794
    %v866 = vunpack.c.l.b16 %v795
    %v867 = vunpack.c.h.b16 %v795
    %v868 = vunpack.c.l.b16 %v796
    %v869 = vunpack.c.h.b16 %v796
    %v870 = vunpack.c.l.b16 %v797
    %v871 = vunpack.c.h.b16 %v797
    %v872 = vunpack.c.l.b16 %v798
    %v873 = vunpack.c.h.b16 %v798
    %v874 = vunpack.c.l.b16 %v799
    %v875 = vunpack.c.h.b16 %v799
    %v876 = vunpack.c.l.b16 %v800
    %v877 = vunpack.c.h.b16 %v800
    %v878 = vunpack.c.l.b16 %v801
    %v879 = vunpack.c.h.b16 %v801
    %v880 = vunpack.c.l.b16 %v802
    %v881 = vunpack.c.h.b16 %v802
    %v882 = vunpack.c.l.b16 %v803
    %v883 = vunpack.c.h.b16 %v803
    %v884 = vunpack.c.l.b16 %v804
    %v885 = vunpack.c.h.b16 %v804
    %v886 = vunpack.c.l.b16 %v805
    %v887 = vunpack.c.h.b16 %v805
    %v888 = vunpack.c.l.b16 %v806
    %v889 = vunpack.c.h.b16 %v806
    %v890 = vunpack.c.l.b16 %v807
    %v891 = vunpack.c.h.b16 %v807
    %v892 = vunpack.c.l.b16 %v808
    %v893 = vunpack.c.h.b16 %v808
    %v894 = vunpack.c.l.b16 %v809
    %v895 = vunpack.c.h.b16 %v809
    %v896 = vunpack.c.l.b16 %v810
    %v897 = vunpack.c.h.b16 %v810
    %v898 = vunpack.c.l.b16 %v811
    %v899 = vunpack.c.h.b16 %v811
    %v900 = vunpack.c.l.b16 %v812
    %v901 = vunpack.c.h.b16 %v812
    %v902 = vunpack.c.l.b16 %v813
    %v903 = vunpack.c.h.b16 %v813
    %v904 = vunpack.c.l.b16 %v814
    %v905 = vunpack.c.h.b16 %v814
    %v906 = vunpack.c.l.b16 %v815
    %v907 = vunpack.c.h.b16 %v815
    %v908 = vunpack.c.l.b16 %v816
    %v909 = vunpack.c.h.b16 %v816
    %v910 = vunpack.c.l.b16 %v817
    %v911 = vunpack.c.h.b16 %v817
    %v912 = vunpack.c.l.b16 %v818
    %v913 = vunpack.c.h.b16 %v818
    %v914 = vunpack.c.l.b16 %v819
    %v915 = vunpack.c.h.b16 %v819
    %v916 = vpack.c.b16 %v856, %v852
    %v917 = vpack.c.b16 %v857, %v853
    %v918 = vpack.c.b16 %v858, %v854
    %v919 = vpack.c.b16 %v859, %v855
    %v920 = vpack.c.b16 %v864, %v860
    %v921 = vpack.c.b16 %v865, %v861
    %v922 = vpack.c.b16 %v866, %v862
    %v923 = vpack.c.b16 %v867, %v863
    %v924 = vpack.c.b16 %v872, %v868
    %v925 = vpack.c.b16 %v873, %v869
    %v926 = vpack.c.b16 %v874, %v870
    %v927 = vpack.c.b16 %v875, %v871
    %v928 = vpack.c.b16 %v880, %v876
    %v929 = vpack.c.b16 %v881, %v877
    %v930 = vpack.c.b16 %v882, %v878
    %v931 = vpack.c.b16 %v883, %v879
    %v932 = vpack.c.b16 %v888, %v884
    %v933 = vpack.c.b16 %v889, %v885
    %v934 = vpack.c.b16 %v890, %v886
    %v935 = vpack.c.b16 %v891, %v887
    %v936 = vpack.c.b16 %v896, %v892
    %v937 = vpack.c.b16 %v897, %v893
    %v938 = vpack.c.b16 %v898, %v894
    %v939 = vpack.c.b16 %v899, %v895
    %v940 = vpack.c.b16 %v904, %v900
    %v941 = vpack.c.b16 %v905, %v901
    %v942 = vpack.c.b16 %v906, %v902
    %v943 = vpack.c.b16 %v907, %v903
    %v944 = vpack.c.b16 %v912, %v908
    %v945 = vpack.c.b16 %v913, %v909
    %v946 = vpack.c.b16 %v914, %v910
    %v947 = vpack.c.b16 %v915, %v911
    %980 = vmatprep.subr.bf16.mxu0 %v945
    %981 = vmatpush1.bf16.msra.mxu0 %v944
    %982 = vmatprep.subr.bf16.mxu0 %v941
    %983 = vmatpush1.bf16.msra.mxu0 %v940
    %984 = vmatprep.subr.bf16.mxu0 %v937
    %985 = vmatpush1.bf16.msra.mxu0 %v936
    %986 = vmatprep.subr.bf16.mxu0 %v933
    %987 = vmatpush1.bf16.msra.mxu0 %v932
    %988 = vmatprep.subr.bf16.mxu0 %v929
    %989 = vmatpush1.bf16.msra.mxu0 %v928
    %990 = vmatprep.subr.bf16.mxu0 %v925
    %991 = vmatpush1.bf16.msra.mxu0 %v924
    %992 = vmatprep.subr.bf16.mxu0 %v921
    %993 = vmatpush1.bf16.msra.mxu0 %v920
    %994 = vmatprep.subr.bf16.mxu0 %v917
    %995 = vmatpush1.bf16.msra.mxu0 %v916
    %996 = vmatprep.subr.bf16.mxu0 0
    %997 = vmatpush2.bf16.msra.mxu0 0
    %998 = vmatprep.subr.bf16.mxu0 0
    %999 = vmatpush2.bf16.msra.mxu0 0
    %1000 = vmatprep.subr.bf16.mxu0 0
    %1001 = vmatpush2.bf16.msra.mxu0 0
    %1002 = vmatprep.subr.bf16.mxu0 0
    %1003 = vmatpush2.bf16.msra.mxu0 0
    %1004 = vmatprep.subr.bf16.mxu0 0
    %1005 = vmatpush2.bf16.msra.mxu0 0
    %1006 = vmatprep.subr.bf16.mxu0 0
    %1007 = vmatpush2.bf16.msra.mxu0 0
    %1008 = vmatprep.subr.bf16.mxu0 0
    %1009 = vmatpush2.bf16.msra.mxu0 0
    %1010 = vmatprep.subr.bf16.mxu0 0
    %1011 = vmatpush2.bf16.msra.mxu0 0
    %1012 = vmatprep.mubr.bf16.mxu0 0
    %1013 = vmatmul.mubr.bf16.gmra.mxu0 %v779
    %v1014 = vpop.f32.mrf.mxu0
    %v1015 = vadd.f32 0.0, %v1014
    %v1016 = vpop.f32.mrf.mxu0
    %v1017 = vadd.f32 0.0, %v1016
    %v1018 = vpop.f32.mrf.mxu0
    %v1019 = vpop.f32.mrf.mxu0
    %1020 = vdwg.mxu0
    %1021 = vmatprep.subr.bf16.mxu0 %v947
    %1022 = vmatpush1.bf16.msra.mxu0 %v946
    %1023 = vmatprep.subr.bf16.mxu0 %v943
    %1024 = vmatpush1.bf16.msra.mxu0 %v942
    %1025 = vmatprep.subr.bf16.mxu0 %v939
    %1026 = vmatpush1.bf16.msra.mxu0 %v938
    %1027 = vmatprep.subr.bf16.mxu0 %v935
    %1028 = vmatpush1.bf16.msra.mxu0 %v934
    %1029 = vmatprep.subr.bf16.mxu0 %v931
    %1030 = vmatpush1.bf16.msra.mxu0 %v930
    %1031 = vmatprep.subr.bf16.mxu0 %v927
    %1032 = vmatpush1.bf16.msra.mxu0 %v926
    %1033 = vmatprep.subr.bf16.mxu0 %v923
    %1034 = vmatpush1.bf16.msra.mxu0 %v922
    %1035 = vmatprep.subr.bf16.mxu0 %v919
    %1036 = vmatpush1.bf16.msra.mxu0 %v918
    %1037 = vmatprep.subr.bf16.mxu0 0
    %1038 = vmatpush2.bf16.msra.mxu0 0
    %1039 = vmatprep.subr.bf16.mxu0 0
    %1040 = vmatpush2.bf16.msra.mxu0 0
    %1041 = vmatprep.subr.bf16.mxu0 0
    %1042 = vmatpush2.bf16.msra.mxu0 0
    %1043 = vmatprep.subr.bf16.mxu0 0
    %1044 = vmatpush2.bf16.msra.mxu0 0
    %1045 = vmatprep.subr.bf16.mxu0 0
    %1046 = vmatpush2.bf16.msra.mxu0 0
    %1047 = vmatprep.subr.bf16.mxu0 0
    %1048 = vmatpush2.bf16.msra.mxu0 0
    %1049 = vmatprep.subr.bf16.mxu0 0
    %1050 = vmatpush2.bf16.msra.mxu0 0
    %1051 = vmatprep.subr.bf16.mxu0 0
    %1052 = vmatpush2.bf16.msra.mxu0 0
    %1053 = vmatprep.mubr.bf16.mxu0 0
    %1054 = vmatmul.mubr.bf16.gmra.mxu0 %v779
    %v1055 = vpop.f32.mrf.mxu0
    %v1056 = vadd.f32 0.0, %v1055
    %v1057 = vpop.f32.mrf.mxu0
    %v1058 = vadd.f32 0.0, %v1057
    %v1059 = vpop.f32.mrf.mxu0
    %v1060 = vpop.f32.mrf.mxu0
    %1061 = vdwg.mxu0
    %v1062 = vadd.f32 %v784, %v1015
    %v1063 = vadd.f32 %v785, %v1017
    %v1064 = vadd.f32 %v786, %v1056
    %v1065 = vadd.f32 %v787, %v1058
    %v1066 = vmul.f32 %v1062, 0.5
    %v1067 = vtanh.pop %v1066
    %v1068 = vadd.f32 %v1067, 1.0
    %v1069 = vmul.f32 %v1068, 0.5
    %v1070 = vmul.f32 %v1063, 0.5
    %v1071 = vtanh.pop %v1070
    %v1072 = vadd.f32 %v1071, 1.0
    %v1073 = vmul.f32 %v1072, 0.5
    %v1074 = vtanh.pop %v1064
    %v1075 = vmul.f32 %v1065, 0.5
    %v1076 = vtanh.pop %v1075
    %v1077 = vadd.f32 %v1076, 1.0
    %v1078 = vmul.f32 %v1077, 0.5
    %v1079 = vmul.f32 %v1073, %v776
    %v1080 = vmul.f32 %v1069, %v1074
    %v1081 = vadd.f32 %v1079, %v1080
    %v1082 = vtanh.pop %v1081
    %v1083 = vmul.f32 %v1078, %v1082
    %v1084 = vpack.c.bf16 %v1083, %v1083
    %s1085 = scalar_lea.vmem %s6, 4
    %1086 = vst [vmem:[%s1085] sm:$0xf] %v1084
    %s1087 = smul.u32 2, 4
    %s1088 = smul.addr %s1087, 8
    %s1089 = scalar_lea.vmem [#allocation2], %s1088
    %v1090 = vld [vmem:[%s1089] sm:$0xff]
    %v1091 = vld [vmem:[%s1089 + $0x8] sm:$0xff]
    %v1092 = vld [vmem:[%s1089 + $0x10] sm:$0xff]
    %v1093 = vld [vmem:[%s1089 + $0x18] sm:$0xff]
    %v1094 = vld [vmem:[#allocation5] sm:$0xff]
    %v1095 = vld [vmem:[#allocation5 + $0x8] sm:$0xff]
    %v1096 = vld [vmem:[#allocation5 + $0x10] sm:$0xff]
    %v1097 = vld [vmem:[#allocation5 + $0x18] sm:$0xff]
    %v1098 = vld [vmem:[#allocation5 + $0x20] sm:$0xff]
    %v1099 = vld [vmem:[#allocation5 + $0x28] sm:$0xff]
    %v1100 = vld [vmem:[#allocation5 + $0x30] sm:$0xff]
    %v1101 = vld [vmem:[#allocation5 + $0x38] sm:$0xff]
    %v1102 = vld [vmem:[#allocation5 + $0x40] sm:$0xff]
    %v1103 = vld [vmem:[#allocation5 + $0x48] sm:$0xff]
    %v1104 = vld [vmem:[#allocation5 + $0x50] sm:$0xff]
    %v1105 = vld [vmem:[#allocation5 + $0x58] sm:$0xff]
    %v1106 = vld [vmem:[#allocation5 + $0x60] sm:$0xff]
    %v1107 = vld [vmem:[#allocation5 + $0x68] sm:$0xff]
    %v1108 = vld [vmem:[#allocation5 + $0x70] sm:$0xff]
    %v1109 = vld [vmem:[#allocation5 + $0x78] sm:$0xff]
    %v1110 = vld [vmem:[#allocation5 + $0x80] sm:$0xff]
    %v1111 = vld [vmem:[#allocation5 + $0x88] sm:$0xff]
    %v1112 = vld [vmem:[#allocation5 + $0x90] sm:$0xff]
    %v1113 = vld [vmem:[#allocation5 + $0x98] sm:$0xff]
    %v1114 = vld [vmem:[#allocation5 + $0xa0] sm:$0xff]
    %v1115 = vld [vmem:[#allocation5 + $0xa8] sm:$0xff]
    %v1116 = vld [vmem:[#allocation5 + $0xb0] sm:$0xff]
    %v1117 = vld [vmem:[#allocation5 + $0xb8] sm:$0xff]
    %v1118 = vld [vmem:[#allocation5 + $0xc0] sm:$0xff]
    %v1119 = vld [vmem:[#allocation5 + $0xc8] sm:$0xff]
    %v1120 = vld [vmem:[#allocation5 + $0xd0] sm:$0xff]
    %v1121 = vld [vmem:[#allocation5 + $0xd8] sm:$0xff]
    %v1122 = vld [vmem:[#allocation5 + $0xe0] sm:$0xff]
    %v1123 = vld [vmem:[#allocation5 + $0xe8] sm:$0xff]
    %v1124 = vld [vmem:[#allocation5 + $0xf0] sm:$0xff]
    %v1125 = vld [vmem:[#allocation5 + $0xf8] sm:$0xff]
    %v1158 = vunpack.c.l.b16 %v1094
    %v1159 = vunpack.c.h.b16 %v1094
    %v1160 = vunpack.c.l.b16 %v1095
    %v1161 = vunpack.c.h.b16 %v1095
    %v1162 = vunpack.c.l.b16 %v1096
    %v1163 = vunpack.c.h.b16 %v1096
    %v1164 = vunpack.c.l.b16 %v1097
    %v1165 = vunpack.c.h.b16 %v1097
    %v1166 = vunpack.c.l.b16 %v1098
    %v1167 = vunpack.c.h.b16 %v1098
    %v1168 = vunpack.c.l.b16 %v1099
    %v1169 = vunpack.c.h.b16 %v1099
    %v1170 = vunpack.c.l.b16 %v1100
    %v1171 = vunpack.c.h.b16 %v1100
    %v1172 = vunpack.c.l.b16 %v1101
    %v1173 = vunpack.c.h.b16 %v1101
    %v1174 = vunpack.c.l.b16 %v1102
    %v1175 = vunpack.c.h.b16 %v1102
    %v1176 = vunpack.c.l.b16 %v1103
    %v1177 = vunpack.c.h.b16 %v1103
    %v1178 = vunpack.c.l.b16 %v1104
    %v1179 = vunpack.c.h.b16 %v1104
    %v1180 = vunpack.c.l.b16 %v1105
    %v1181 = vunpack.c.h.b16 %v1105
    %v1182 = vunpack.c.l.b16 %v1106
    %v1183 = vunpack.c.h.b16 %v1106
    %v1184 = vunpack.c.l.b16 %v1107
    %v1185 = vunpack.c.h.b16 %v1107
    %v1186 = vunpack.c.l.b16 %v1108
    %v1187 = vunpack.c.h.b16 %v1108
    %v1188 = vunpack.c.l.b16 %v1109
    %v1189 = vunpack.c.h.b16 %v1109
    %v1190 = vunpack.c.l.b16 %v1110
    %v1191 = vunpack.c.h.b16 %v1110
    %v1192 = vunpack.c.l.b16 %v1111
    %v1193 = vunpack.c.h.b16 %v1111
    %v1194 = vunpack.c.l.b16 %v1112
    %v1195 = vunpack.c.h.b16 %v1112
    %v1196 = vunpack.c.l.b16 %v1113
    %v1197 = vunpack.c.h.b16 %v1113
    %v1198 = vunpack.c.l.b16 %v1114
    %v1199 = vunpack.c.h.b16 %v1114
    %v1200 = vunpack.c.l.b16 %v1115
    %v1201 = vunpack.c.h.b16 %v1115
    %v1202 = vunpack.c.l.b16 %v1116
    %v1203 = vunpack.c.h.b16 %v1116
    %v1204 = vunpack.c.l.b16 %v1117
    %v1205 = vunpack.c.h.b16 %v1117
    %v1206 = vunpack.c.l.b16 %v1118
    %v1207 = vunpack.c.h.b16 %v1118
    %v1208 = vunpack.c.l.b16 %v1119
    %v1209 = vunpack.c.h.b16 %v1119
    %v1210 = vunpack.c.l.b16 %v1120
    %v1211 = vunpack.c.h.b16 %v1120
    %v1212 = vunpack.c.l.b16 %v1121
    %v1213 = vunpack.c.h.b16 %v1121
    %v1214 = vunpack.c.l.b16 %v1122
    %v1215 = vunpack.c.h.b16 %v1122
    %v1216 = vunpack.c.l.b16 %v1123
    %v1217 = vunpack.c.h.b16 %v1123
    %v1218 = vunpack.c.l.b16 %v1124
    %v1219 = vunpack.c.h.b16 %v1124
    %v1220 = vunpack.c.l.b16 %v1125
    %v1221 = vunpack.c.h.b16 %v1125
    %v1222 = vpack.c.b16 %v1162, %v1158
    %v1223 = vpack.c.b16 %v1163, %v1159
    %v1224 = vpack.c.b16 %v1164, %v1160
    %v1225 = vpack.c.b16 %v1165, %v1161
    %v1226 = vpack.c.b16 %v1170, %v1166
    %v1227 = vpack.c.b16 %v1171, %v1167
    %v1228 = vpack.c.b16 %v1172, %v1168
    %v1229 = vpack.c.b16 %v1173, %v1169
    %v1230 = vpack.c.b16 %v1178, %v1174
    %v1231 = vpack.c.b16 %v1179, %v1175
    %v1232 = vpack.c.b16 %v1180, %v1176
    %v1233 = vpack.c.b16 %v1181, %v1177
    %v1234 = vpack.c.b16 %v1186, %v1182
    %v1235 = vpack.c.b16 %v1187, %v1183
    %v1236 = vpack.c.b16 %v1188, %v1184
    %v1237 = vpack.c.b16 %v1189, %v1185
    %v1238 = vpack.c.b16 %v1194, %v1190
    %v1239 = vpack.c.b16 %v1195, %v1191
    %v1240 = vpack.c.b16 %v1196, %v1192
    %v1241 = vpack.c.b16 %v1197, %v1193
    %v1242 = vpack.c.b16 %v1202, %v1198
    %v1243 = vpack.c.b16 %v1203, %v1199
    %v1244 = vpack.c.b16 %v1204, %v1200
    %v1245 = vpack.c.b16 %v1205, %v1201
    %v1246 = vpack.c.b16 %v1210, %v1206
    %v1247 = vpack.c.b16 %v1211, %v1207
    %v1248 = vpack.c.b16 %v1212, %v1208
    %v1249 = vpack.c.b16 %v1213, %v1209
    %v1250 = vpack.c.b16 %v1218, %v1214
    %v1251 = vpack.c.b16 %v1219, %v1215
    %v1252 = vpack.c.b16 %v1220, %v1216
    %v1253 = vpack.c.b16 %v1221, %v1217
    %1286 = vmatprep.subr.bf16.mxu0 %v1251
    %1287 = vmatpush1.bf16.msra.mxu0 %v1250
    %1288 = vmatprep.subr.bf16.mxu0 %v1247
    %1289 = vmatpush1.bf16.msra.mxu0 %v1246
    %1290 = vmatprep.subr.bf16.mxu0 %v1243
    %1291 = vmatpush1.bf16.msra.mxu0 %v1242
    %1292 = vmatprep.subr.bf16.mxu0 %v1239
    %1293 = vmatpush1.bf16.msra.mxu0 %v1238
    %1294 = vmatprep.subr.bf16.mxu0 %v1235
    %1295 = vmatpush1.bf16.msra.mxu0 %v1234
    %1296 = vmatprep.subr.bf16.mxu0 %v1231
    %1297 = vmatpush1.bf16.msra.mxu0 %v1230
    %1298 = vmatprep.subr.bf16.mxu0 %v1227
    %1299 = vmatpush1.bf16.msra.mxu0 %v1226
    %1300 = vmatprep.subr.bf16.mxu0 %v1223
    %1301 = vmatpush1.bf16.msra.mxu0 %v1222
    %1302 = vmatprep.subr.bf16.mxu0 0
    %1303 = vmatpush2.bf16.msra.mxu0 0
    %1304 = vmatprep.subr.bf16.mxu0 0
    %1305 = vmatpush2.bf16.msra.mxu0 0
    %1306 = vmatprep.subr.bf16.mxu0 0
    %1307 = vmatpush2.bf16.msra.mxu0 0
    %1308 = vmatprep.subr.bf16.mxu0 0
    %1309 = vmatpush2.bf16.msra.mxu0 0
    %1310 = vmatprep.subr.bf16.mxu0 0
    %1311 = vmatpush2.bf16.msra.mxu0 0
    %1312 = vmatprep.subr.bf16.mxu0 0
    %1313 = vmatpush2.bf16.msra.mxu0 0
    %1314 = vmatprep.subr.bf16.mxu0 0
    %1315 = vmatpush2.bf16.msra.mxu0 0
    %1316 = vmatprep.subr.bf16.mxu0 0
    %1317 = vmatpush2.bf16.msra.mxu0 0
    %1318 = vmatprep.mubr.bf16.mxu0 0
    %1319 = vmatmul.mubr.bf16.gmra.mxu0 %v1084
    %v1320 = vpop.f32.mrf.mxu0
    %v1321 = vadd.f32 0.0, %v1320
    %v1322 = vpop.f32.mrf.mxu0
    %v1323 = vadd.f32 0.0, %v1322
    %v1324 = vpop.f32.mrf.mxu0
    %v1325 = vpop.f32.mrf.mxu0
    %1326 = vdwg.mxu0
    %1327 = vmatprep.subr.bf16.mxu0 %v1253
    %1328 = vmatpush1.bf16.msra.mxu0 %v1252
    %1329 = vmatprep.subr.bf16.mxu0 %v1249
    %1330 = vmatpush1.bf16.msra.mxu0 %v1248
    %1331 = vmatprep.subr.bf16.mxu0 %v1245
    %1332 = vmatpush1.bf16.msra.mxu0 %v1244
    %1333 = vmatprep.subr.bf16.mxu0 %v1241
    %1334 = vmatpush1.bf16.msra.mxu0 %v1240
    %1335 = vmatprep.subr.bf16.mxu0 %v1237
    %1336 = vmatpush1.bf16.msra.mxu0 %v1236
    %1337 = vmatprep.subr.bf16.mxu0 %v1233
    %1338 = vmatpush1.bf16.msra.mxu0 %v1232
    %1339 = vmatprep.subr.bf16.mxu0 %v1229
    %1340 = vmatpush1.bf16.msra.mxu0 %v1228
    %1341 = vmatprep.subr.bf16.mxu0 %v1225
    %1342 = vmatpush1.bf16.msra.mxu0 %v1224
    %1343 = vmatprep.subr.bf16.mxu0 0
    %1344 = vmatpush2.bf16.msra.mxu0 0
    %1345 = vmatprep.subr.bf16.mxu0 0
    %1346 = vmatpush2.bf16.msra.mxu0 0
    %1347 = vmatprep.subr.bf16.mxu0 0
    %1348 = vmatpush2.bf16.msra.mxu0 0
    %1349 = vmatprep.subr.bf16.mxu0 0
    %1350 = vmatpush2.bf16.msra.mxu0 0
    %1351 = vmatprep.subr.bf16.mxu0 0
    %1352 = vmatpush2.bf16.msra.mxu0 0
    %1353 = vmatprep.subr.bf16.mxu0 0
    %1354 = vmatpush2.bf16.msra.mxu0 0
    %1355 = vmatprep.subr.bf16.mxu0 0
    %1356 = vmatpush2.bf16.msra.mxu0 0
    %1357 = vmatprep.subr.bf16.mxu0 0
    %1358 = vmatpush2.bf16.msra.mxu0 0
    %1359 = vmatprep.mubr.bf16.mxu0 0
    %1360 = vmatmul.mubr.bf16.gmra.mxu0 %v1084
    %v1361 = vpop.f32.mrf.mxu0
    %v1362 = vadd.f32 0.0, %v1361
    %v1363 = vpop.f32.mrf.mxu0
    %v1364 = vadd.f32 0.0, %v1363
    %v1365 = vpop.f32.mrf.mxu0
    %v1366 = vpop.f32.mrf.mxu0
    %1367 = vdwg.mxu0
    %v1368 = vadd.f32 %v1090, %v1321
    %v1369 = vadd.f32 %v1091, %v1323
    %v1370 = vadd.f32 %v1092, %v1362
    %v1371 = vadd.f32 %v1093, %v1364
    %v1372 = vmul.f32 %v1368, 0.5
    %v1373 = vtanh.pop %v1372
    %v1374 = vadd.f32 %v1373, 1.0
    %v1375 = vmul.f32 %v1374, 0.5
    %v1376 = vmul.f32 %v1369, 0.5
    %v1377 = vtanh.pop %v1376
    %v1378 = vadd.f32 %v1377, 1.0
    %v1379 = vmul.f32 %v1378, 0.5
    %v1380 = vtanh.pop %v1370
    %v1381 = vmul.f32 %v1371, 0.5
    %v1382 = vtanh.pop %v1381
    %v1383 = vadd.f32 %v1382, 1.0
    %v1384 = vmul.f32 %v1383, 0.5
    %v1385 = vmul.f32 %v1379, %v1081
    %v1386 = vmul.f32 %v1375, %v1380
    %v1387 = vadd.f32 %v1385, %v1386
    %v1388 = vtanh.pop %v1387
    %v1389 = vmul.f32 %v1384, %v1388
    %v1390 = vpack.c.bf16 %v1389, %v1389
    %s1391 = scalar_lea.vmem %s6, 8
    %1392 = vst [vmem:[%s1391] sm:$0xf] %v1390
    %s1393 = smul.u32 3, 4
    %s1394 = smul.addr %s1393, 8
    %s1395 = scalar_lea.vmem [#allocation2], %s1394
    %v1396 = vld [vmem:[%s1395] sm:$0xff]
    %v1397 = vld [vmem:[%s1395 + $0x8] sm:$0xff]
    %v1398 = vld [vmem:[%s1395 + $0x10] sm:$0xff]
    %v1399 = vld [vmem:[%s1395 + $0x18] sm:$0xff]
    %v1400 = vld [vmem:[#allocation5] sm:$0xff]
    %v1401 = vld [vmem:[#allocation5 + $0x8] sm:$0xff]
    %v1402 = vld [vmem:[#allocation5 + $0x10] sm:$0xff]
    %v1403 = vld [vmem:[#allocation5 + $0x18] sm:$0xff]
    %v1404 = vld [vmem:[#allocation5 + $0x20] sm:$0xff]
    %v1405 = vld [vmem:[#allocation5 + $0x28] sm:$0xff]
    %v1406 = vld [vmem:[#allocation5 + $0x30] sm:$0xff]
    %v1407 = vld [vmem:[#allocation5 + $0x38] sm:$0xff]
    %v1408 = vld [vmem:[#allocation5 + $0x40] sm:$0xff]
    %v1409 = vld [vmem:[#allocation5 + $0x48] sm:$0xff]
    %v1410 = vld [vmem:[#allocation5 + $0x50] sm:$0xff]
    %v1411 = vld [vmem:[#allocation5 + $0x58] sm:$0xff]
    %v1412 = vld [vmem:[#allocation5 + $0x60] sm:$0xff]
    %v1413 = vld [vmem:[#allocation5 + $0x68] sm:$0xff]
    %v1414 = vld [vmem:[#allocation5 + $0x70] sm:$0xff]
    %v1415 = vld [vmem:[#allocation5 + $0x78] sm:$0xff]
    %v1416 = vld [vmem:[#allocation5 + $0x80] sm:$0xff]
    %v1417 = vld [vmem:[#allocation5 + $0x88] sm:$0xff]
    %v1418 = vld [vmem:[#allocation5 + $0x90] sm:$0xff]
    %v1419 = vld [vmem:[#allocation5 + $0x98] sm:$0xff]
    %v1420 = vld [vmem:[#allocation5 + $0xa0] sm:$0xff]
    %v1421 = vld [vmem:[#allocation5 + $0xa8] sm:$0xff]
    %v1422 = vld [vmem:[#allocation5 + $0xb0] sm:$0xff]
    %v1423 = vld [vmem:[#allocation5 + $0xb8] sm:$0xff]
    %v1424 = vld [vmem:[#allocation5 + $0xc0] sm:$0xff]
    %v1425 = vld [vmem:[#allocation5 + $0xc8] sm:$0xff]
    %v1426 = vld [vmem:[#allocation5 + $0xd0] sm:$0xff]
    %v1427 = vld [vmem:[#allocation5 + $0xd8] sm:$0xff]
    %v1428 = vld [vmem:[#allocation5 + $0xe0] sm:$0xff]
    %v1429 = vld [vmem:[#allocation5 + $0xe8] sm:$0xff]
    %v1430 = vld [vmem:[#allocation5 + $0xf0] sm:$0xff]
    %v1431 = vld [vmem:[#allocation5 + $0xf8] sm:$0xff]
    %v1464 = vunpack.c.l.b16 %v1400
    %v1465 = vunpack.c.h.b16 %v1400
    %v1466 = vunpack.c.l.b16 %v1401
    %v1467 = vunpack.c.h.b16 %v1401
    %v1468 = vunpack.c.l.b16 %v1402
    %v1469 = vunpack.c.h.b16 %v1402
    %v1470 = vunpack.c.l.b16 %v1403
    %v1471 = vunpack.c.h.b16 %v1403
    %v1472 = vunpack.c.l.b16 %v1404
    %v1473 = vunpack.c.h.b16 %v1404
    %v1474 = vunpack.c.l.b16 %v1405
    %v1475 = vunpack.c.h.b16 %v1405
    %v1476 = vunpack.c.l.b16 %v1406
    %v1477 = vunpack.c.h.b16 %v1406
    %v1478 = vunpack.c.l.b16 %v1407
    %v1479 = vunpack.c.h.b16 %v1407
    %v1480 = vunpack.c.l.b16 %v1408
    %v1481 = vunpack.c.h.b16 %v1408
    %v1482 = vunpack.c.l.b16 %v1409
    %v1483 = vunpack.c.h.b16 %v1409
    %v1484 = vunpack.c.l.b16 %v1410
    %v1485 = vunpack.c.h.b16 %v1410
    %v1486 = vunpack.c.l.b16 %v1411
    %v1487 = vunpack.c.h.b16 %v1411
    %v1488 = vunpack.c.l.b16 %v1412
    %v1489 = vunpack.c.h.b16 %v1412
    %v1490 = vunpack.c.l.b16 %v1413
    %v1491 = vunpack.c.h.b16 %v1413
    %v1492 = vunpack.c.l.b16 %v1414
    %v1493 = vunpack.c.h.b16 %v1414
    %v1494 = vunpack.c.l.b16 %v1415
    %v1495 = vunpack.c.h.b16 %v1415
    %v1496 = vunpack.c.l.b16 %v1416
    %v1497 = vunpack.c.h.b16 %v1416
    %v1498 = vunpack.c.l.b16 %v1417
    %v1499 = vunpack.c.h.b16 %v1417
    %v1500 = vunpack.c.l.b16 %v1418
    %v1501 = vunpack.c.h.b16 %v1418
    %v1502 = vunpack.c.l.b16 %v1419
    %v1503 = vunpack.c.h.b16 %v1419
    %v1504 = vunpack.c.l.b16 %v1420
    %v1505 = vunpack.c.h.b16 %v1420
    %v1506 = vunpack.c.l.b16 %v1421
    %v1507 = vunpack.c.h.b16 %v1421
    %v1508 = vunpack.c.l.b16 %v1422
    %v1509 = vunpack.c.h.b16 %v1422
    %v1510 = vunpack.c.l.b16 %v1423
    %v1511 = vunpack.c.h.b16 %v1423
    %v1512 = vunpack.c.l.b16 %v1424
    %v1513 = vunpack.c.h.b16 %v1424
    %v1514 = vunpack.c.l.b16 %v1425
    %v1515 = vunpack.c.h.b16 %v1425
    %v1516 = vunpack.c.l.b16 %v1426
    %v1517 = vunpack.c.h.b16 %v1426
    %v1518 = vunpack.c.l.b16 %v1427
    %v1519 = vunpack.c.h.b16 %v1427
    %v1520 = vunpack.c.l.b16 %v1428
    %v1521 = vunpack.c.h.b16 %v1428
    %v1522 = vunpack.c.l.b16 %v1429
    %v1523 = vunpack.c.h.b16 %v1429
    %v1524 = vunpack.c.l.b16 %v1430
    %v1525 = vunpack.c.h.b16 %v1430
    %v1526 = vunpack.c.l.b16 %v1431
    %v1527 = vunpack.c.h.b16 %v1431
    %v1528 = vpack.c.b16 %v1468, %v1464
    %v1529 = vpack.c.b16 %v1469, %v1465
    %v1530 = vpack.c.b16 %v1470, %v1466
    %v1531 = vpack.c.b16 %v1471, %v1467
    %v1532 = vpack.c.b16 %v1476, %v1472
    %v1533 = vpack.c.b16 %v1477, %v1473
    %v1534 = vpack.c.b16 %v1478, %v1474
    %v1535 = vpack.c.b16 %v1479, %v1475
    %v1536 = vpack.c.b16 %v1484, %v1480
    %v1537 = vpack.c.b16 %v1485, %v1481
    %v1538 = vpack.c.b16 %v1486, %v1482
    %v1539 = vpack.c.b16 %v1487, %v1483
    %v1540 = vpack.c.b16 %v1492, %v1488
    %v1541 = vpack.c.b16 %v1493, %v1489
    %v1542 = vpack.c.b16 %v1494, %v1490
    %v1543 = vpack.c.b16 %v1495, %v1491
    %v1544 = vpack.c.b16 %v1500, %v1496
    %v1545 = vpack.c.b16 %v1501, %v1497
    %v1546 = vpack.c.b16 %v1502, %v1498
    %v1547 = vpack.c.b16 %v1503, %v1499
    %v1548 = vpack.c.b16 %v1508, %v1504
    %v1549 = vpack.c.b16 %v1509, %v1505
    %v1550 = vpack.c.b16 %v1510, %v1506
    %v1551 = vpack.c.b16 %v1511, %v1507
    %v1552 = vpack.c.b16 %v1516, %v1512
    %v1553 = vpack.c.b16 %v1517, %v1513
    %v1554 = vpack.c.b16 %v1518, %v1514
    %v1555 = vpack.c.b16 %v1519, %v1515
    %v1556 = vpack.c.b16 %v1524, %v1520
    %v1557 = vpack.c.b16 %v1525, %v1521
    %v1558 = vpack.c.b16 %v1526, %v1522
    %v1559 = vpack.c.b16 %v1527, %v1523
    %1592 = vmatprep.subr.bf16.mxu0 %v1557
    %1593 = vmatpush1.bf16.msra.mxu0 %v1556
    %1594 = vmatprep.subr.bf16.mxu0 %v1553
    %1595 = vmatpush1.bf16.msra.mxu0 %v1552
    %1596 = vmatprep.subr.bf16.mxu0 %v1549
    %1597 = vmatpush1.bf16.msra.mxu0 %v1548
    %1598 = vmatprep.subr.bf16.mxu0 %v1545
    %1599 = vmatpush1.bf16.msra.mxu0 %v1544
    %1600 = vmatprep.subr.bf16.mxu0 %v1541
    %1601 = vmatpush1.bf16.msra.mxu0 %v1540
    %1602 = vmatprep.subr.bf16.mxu0 %v1537
    %1603 = vmatpush1.bf16.msra.mxu0 %v1536
    %1604 = vmatprep.subr.bf16.mxu0 %v1533
    %1605 = vmatpush1.bf16.msra.mxu0 %v1532
    %1606 = vmatprep.subr.bf16.mxu0 %v1529
    %1607 = vmatpush1.bf16.msra.mxu0 %v1528
    %1608 = vmatprep.subr.bf16.mxu0 0
    %1609 = vmatpush2.bf16.msra.mxu0 0
    %1610 = vmatprep.subr.bf16.mxu0 0
    %1611 = vmatpush2.bf16.msra.mxu0 0
    %1612 = vmatprep.subr.bf16.mxu0 0
    %1613 = vmatpush2.bf16.msra.mxu0 0
    %1614 = vmatprep.subr.bf16.mxu0 0
    %1615 = vmatpush2.bf16.msra.mxu0 0
    %1616 = vmatprep.subr.bf16.mxu0 0
    %1617 = vmatpush2.bf16.msra.mxu0 0
    %1618 = vmatprep.subr.bf16.mxu0 0
    %1619 = vmatpush2.bf16.msra.mxu0 0
    %1620 = vmatprep.subr.bf16.mxu0 0
    %1621 = vmatpush2.bf16.msra.mxu0 0
    %1622 = vmatprep.subr.bf16.mxu0 0
    %1623 = vmatpush2.bf16.msra.mxu0 0
    %1624 = vmatprep.mubr.bf16.mxu0 0
    %1625 = vmatmul.mubr.bf16.gmra.mxu0 %v1390
    %v1626 = vpop.f32.mrf.mxu0
    %v1627 = vadd.f32 0.0, %v1626
    %v1628 = vpop.f32.mrf.mxu0
    %v1629 = vadd.f32 0.0, %v1628
    %v1630 = vpop.f32.mrf.mxu0
    %v1631 = vpop.f32.mrf.mxu0
    %1632 = vdwg.mxu0
    %1633 = vmatprep.subr.bf16.mxu0 %v1559
    %1634 = vmatpush1.bf16.msra.mxu0 %v1558
    %1635 = vmatprep.subr.bf16.mxu0 %v1555
    %1636 = vmatpush1.bf16.msra.mxu0 %v1554
    %1637 = vmatprep.subr.bf16.mxu0 %v1551
    %1638 = vmatpush1.bf16.msra.mxu0 %v1550
    %1639 = vmatprep.subr.bf16.mxu0 %v1547
    %1640 = vmatpush1.bf16.msra.mxu0 %v1546
    %1641 = vmatprep.subr.bf16.mxu0 %v1543
    %1642 = vmatpush1.bf16.msra.mxu0 %v1542
    %1643 = vmatprep.subr.bf16.mxu0 %v1539
    %1644 = vmatpush1.bf16.msra.mxu0 %v1538
    %1645 = vmatprep.subr.bf16.mxu0 %v1535
    %1646 = vmatpush1.bf16.msra.mxu0 %v1534
    %1647 = vmatprep.subr.bf16.mxu0 %v1531
    %1648 = vmatpush1.bf16.msra.mxu0 %v1530
    %1649 = vmatprep.subr.bf16.mxu0 0
    %1650 = vmatpush2.bf16.msra.mxu0 0
    %1651 = vmatprep.subr.bf16.mxu0 0
    %1652 = vmatpush2.bf16.msra.mxu0 0
    %1653 = vmatprep.subr.bf16.mxu0 0
    %1654 = vmatpush2.bf16.msra.mxu0 0
    %1655 = vmatprep.subr.bf16.mxu0 0
    %1656 = vmatpush2.bf16.msra.mxu0 0
    %1657 = vmatprep.subr.bf16.mxu0 0
    %1658 = vmatpush2.bf16.msra.mxu0 0
    %1659 = vmatprep.subr.bf16.mxu0 0
    %1660 = vmatpush2.bf16.msra.mxu0 0
    %1661 = vmatprep.subr.bf16.mxu0 0
    %1662 = vmatpush2.bf16.msra.mxu0 0
    %1663 = vmatprep.subr.bf16.mxu0 0
    %1664 = vmatpush2.bf16.msra.mxu0 0
    %1665 = vmatprep.mubr.bf16.mxu0 0
    %1666 = vmatmul.mubr.bf16.gmra.mxu0 %v1390
    %v1667 = vpop.f32.mrf.mxu0
    %v1668 = vadd.f32 0.0, %v1667
    %v1669 = vpop.f32.mrf.mxu0
    %v1670 = vadd.f32 0.0, %v1669
    %v1671 = vpop.f32.mrf.mxu0
    %v1672 = vpop.f32.mrf.mxu0
    %1673 = vdwg.mxu0
    %v1674 = vadd.f32 %v1396, %v1627
    %v1675 = vadd.f32 %v1397, %v1629
    %v1676 = vadd.f32 %v1398, %v1668
    %v1677 = vadd.f32 %v1399, %v1670
    %v1678 = vmul.f32 %v1674, 0.5
    %v1679 = vtanh.pop %v1678
    %v1680 = vadd.f32 %v1679, 1.0
    %v1681 = vmul.f32 %v1680, 0.5
    %v1682 = vmul.f32 %v1675, 0.5
    %v1683 = vtanh.pop %v1682
    %v1684 = vadd.f32 %v1683, 1.0
    %v1685 = vmul.f32 %v1684, 0.5
    %v1686 = vtanh.pop %v1676
    %v1687 = vmul.f32 %v1677, 0.5
    %v1688 = vtanh.pop %v1687
    %v1689 = vadd.f32 %v1688, 1.0
    %v1690 = vmul.f32 %v1689, 0.5
    %v1691 = vmul.f32 %v1685, %v1387
    %v1692 = vmul.f32 %v1681, %v1686
    %v1693 = vadd.f32 %v1691, %v1692
    %v1694 = vtanh.pop %v1693
    %v1695 = vmul.f32 %v1690, %v1694
    %v1696 = vpack.c.bf16 %v1695, %v1695
    %s1697 = scalar_lea.vmem %s6, 12
    %1698 = vst [vmem:[%s1697] sm:$0xf] %v1696
    %s1699 = smul.u32 4, 4
    %s1700 = smul.addr %s1699, 8
    %s1701 = scalar_lea.vmem [#allocation2], %s1700
    %v1702 = vld [vmem:[%s1701] sm:$0xff]
    %v1703 = vld [vmem:[%s1701 + $0x8] sm:$0xff]
    %v1704 = vld [vmem:[%s1701 + $0x10] sm:$0xff]
    %v1705 = vld [vmem:[%s1701 + $0x18] sm:$0xff]
    %v1706 = vld [vmem:[#allocation5] sm:$0xff]
    %v1707 = vld [vmem:[#allocation5 + $0x8] sm:$0xff]
    %v1708 = vld [vmem:[#allocation5 + $0x10] sm:$0xff]
    %v1709 = vld [vmem:[#allocation5 + $0x18] sm:$0xff]
    %v1710 = vld [vmem:[#allocation5 + $0x20] sm:$0xff]
    %v1711 = vld [vmem:[#allocation5 + $0x28] sm:$0xff]
    %v1712 = vld [vmem:[#allocation5 + $0x30] sm:$0xff]
    %v1713 = vld [vmem:[#allocation5 + $0x38] sm:$0xff]
    %v1714 = vld [vmem:[#allocation5 + $0x40] sm:$0xff]
    %v1715 = vld [vmem:[#allocation5 + $0x48] sm:$0xff]
    %v1716 = vld [vmem:[#allocation5 + $0x50] sm:$0xff]
    %v1717 = vld [vmem:[#allocation5 + $0x58] sm:$0xff]
    %v1718 = vld [vmem:[#allocation5 + $0x60] sm:$0xff]
    %v1719 = vld [vmem:[#allocation5 + $0x68] sm:$0xff]
    %v1720 = vld [vmem:[#allocation5 + $0x70] sm:$0xff]
    %v1721 = vld [vmem:[#allocation5 + $0x78] sm:$0xff]
    %v1722 = vld [vmem:[#allocation5 + $0x80] sm:$0xff]
    %v1723 = vld [vmem:[#allocation5 + $0x88] sm:$0xff]
    %v1724 = vld [vmem:[#allocation5 + $0x90] sm:$0xff]
    %v1725 = vld [vmem:[#allocation5 + $0x98] sm:$0xff]
    %v1726 = vld [vmem:[#allocation5 + $0xa0] sm:$0xff]
    %v1727 = vld [vmem:[#allocation5 + $0xa8] sm:$0xff]
    %v1728 = vld [vmem:[#allocation5 + $0xb0] sm:$0xff]
    %v1729 = vld [vmem:[#allocation5 + $0xb8] sm:$0xff]
    %v1730 = vld [vmem:[#allocation5 + $0xc0] sm:$0xff]
    %v1731 = vld [vmem:[#allocation5 + $0xc8] sm:$0xff]
    %v1732 = vld [vmem:[#allocation5 + $0xd0] sm:$0xff]
    %v1733 = vld [vmem:[#allocation5 + $0xd8] sm:$0xff]
    %v1734 = vld [vmem:[#allocation5 + $0xe0] sm:$0xff]
    %v1735 = vld [vmem:[#allocation5 + $0xe8] sm:$0xff]
    %v1736 = vld [vmem:[#allocation5 + $0xf0] sm:$0xff]
    %v1737 = vld [vmem:[#allocation5 + $0xf8] sm:$0xff]
    %v1770 = vunpack.c.l.b16 %v1706
    %v1771 = vunpack.c.h.b16 %v1706
    %v1772 = vunpack.c.l.b16 %v1707
    %v1773 = vunpack.c.h.b16 %v1707
    %v1774 = vunpack.c.l.b16 %v1708
    %v1775 = vunpack.c.h.b16 %v1708
    %v1776 = vunpack.c.l.b16 %v1709
    %v1777 = vunpack.c.h.b16 %v1709
    %v1778 = vunpack.c.l.b16 %v1710
    %v1779 = vunpack.c.h.b16 %v1710
    %v1780 = vunpack.c.l.b16 %v1711
    %v1781 = vunpack.c.h.b16 %v1711
    %v1782 = vunpack.c.l.b16 %v1712
    %v1783 = vunpack.c.h.b16 %v1712
    %v1784 = vunpack.c.l.b16 %v1713
    %v1785 = vunpack.c.h.b16 %v1713
    %v1786 = vunpack.c.l.b16 %v1714
    %v1787 = vunpack.c.h.b16 %v1714
    %v1788 = vunpack.c.l.b16 %v1715
    %v1789 = vunpack.c.h.b16 %v1715
    %v1790 = vunpack.c.l.b16 %v1716
    %v1791 = vunpack.c.h.b16 %v1716
    %v1792 = vunpack.c.l.b16 %v1717
    %v1793 = vunpack.c.h.b16 %v1717
    %v1794 = vunpack.c.l.b16 %v1718
    %v1795 = vunpack.c.h.b16 %v1718
    %v1796 = vunpack.c.l.b16 %v1719
    %v1797 = vunpack.c.h.b16 %v1719
    %v1798 = vunpack.c.l.b16 %v1720
    %v1799 = vunpack.c.h.b16 %v1720
    %v1800 = vunpack.c.l.b16 %v1721
    %v1801 = vunpack.c.h.b16 %v1721
    %v1802 = vunpack.c.l.b16 %v1722
    %v1803 = vunpack.c.h.b16 %v1722
    %v1804 = vunpack.c.l.b16 %v1723
    %v1805 = vunpack.c.h.b16 %v1723
    %v1806 = vunpack.c.l.b16 %v1724
    %v1807 = vunpack.c.h.b16 %v1724
    %v1808 = vunpack.c.l.b16 %v1725
    %v1809 = vunpack.c.h.b16 %v1725
    %v1810 = vunpack.c.l.b16 %v1726
    %v1811 = vunpack.c.h.b16 %v1726
    %v1812 = vunpack.c.l.b16 %v1727
    %v1813 = vunpack.c.h.b16 %v1727
    %v1814 = vunpack.c.l.b16 %v1728
    %v1815 = vunpack.c.h.b16 %v1728
    %v1816 = vunpack.c.l.b16 %v1729
    %v1817 = vunpack.c.h.b16 %v1729
    %v1818 = vunpack.c.l.b16 %v1730
    %v1819 = vunpack.c.h.b16 %v1730
    %v1820 = vunpack.c.l.b16 %v1731
    %v1821 = vunpack.c.h.b16 %v1731
    %v1822 = vunpack.c.l.b16 %v1732
    %v1823 = vunpack.c.h.b16 %v1732
    %v1824 = vunpack.c.l.b16 %v1733
    %v1825 = vunpack.c.h.b16 %v1733
    %v1826 = vunpack.c.l.b16 %v1734
    %v1827 = vunpack.c.h.b16 %v1734
    %v1828 = vunpack.c.l.b16 %v1735
    %v1829 = vunpack.c.h.b16 %v1735
    %v1830 = vunpack.c.l.b16 %v1736
    %v1831 = vunpack.c.h.b16 %v1736
    %v1832 = vunpack.c.l.b16 %v1737
    %v1833 = vunpack.c.h.b16 %v1737
    %v1834 = vpack.c.b16 %v1774, %v1770
    %v1835 = vpack.c.b16 %v1775, %v1771
    %v1836 = vpack.c.b16 %v1776, %v1772
    %v1837 = vpack.c.b16 %v1777, %v1773
    %v1838 = vpack.c.b16 %v1782, %v1778
    %v1839 = vpack.c.b16 %v1783, %v1779
    %v1840 = vpack.c.b16 %v1784, %v1780
    %v1841 = vpack.c.b16 %v1785, %v1781
    %v1842 = vpack.c.b16 %v1790, %v1786
    %v1843 = vpack.c.b16 %v1791, %v1787
    %v1844 = vpack.c.b16 %v1792, %v1788
    %v1845 = vpack.c.b16 %v1793, %v1789
    %v1846 = vpack.c.b16 %v1798, %v1794
    %v1847 = vpack.c.b16 %v1799, %v1795
    %v1848 = vpack.c.b16 %v1800, %v1796
    %v1849 = vpack.c.b16 %v1801, %v1797
    %v1850 = vpack.c.b16 %v1806, %v1802
    %v1851 = vpack.c.b16 %v1807, %v1803
    %v1852 = vpack.c.b16 %v1808, %v1804
    %v1853 = vpack.c.b16 %v1809, %v1805
    %v1854 = vpack.c.b16 %v1814, %v1810
    %v1855 = vpack.c.b16 %v1815, %v1811
    %v1856 = vpack.c.b16 %v1816, %v1812
    %v1857 = vpack.c.b16 %v1817, %v1813
    %v1858 = vpack.c.b16 %v1822, %v1818
    %v1859 = vpack.c.b16 %v1823, %v1819
    %v1860 = vpack.c.b16 %v1824, %v1820
    %v1861 = vpack.c.b16 %v1825, %v1821
    %v1862 = vpack.c.b16 %v1830, %v1826
    %v1863 = vpack.c.b16 %v1831, %v1827
    %v1864 = vpack.c.b16 %v1832, %v1828
    %v1865 = vpack.c.b16 %v1833, %v1829
    %1898 = vmatprep.subr.bf16.mxu0 %v1863
    %1899 = vmatpush1.bf16.msra.mxu0 %v1862
    %1900 = vmatprep.subr.bf16.mxu0 %v1859
    %1901 = vmatpush1.bf16.msra.mxu0 %v1858
    %1902 = vmatprep.subr.bf16.mxu0 %v1855
    %1903 = vmatpush1.bf16.msra.mxu0 %v1854
    %1904 = vmatprep.subr.bf16.mxu0 %v1851
    %1905 = vmatpush1.bf16.msra.mxu0 %v1850
    %1906 = vmatprep.subr.bf16.mxu0 %v1847
    %1907 = vmatpush1.bf16.msra.mxu0 %v1846
    %1908 = vmatprep.subr.bf16.mxu0 %v1843
    %1909 = vmatpush1.bf16.msra.mxu0 %v1842
    %1910 = vmatprep.subr.bf16.mxu0 %v1839
    %1911 = vmatpush1.bf16.msra.mxu0 %v1838
    %1912 = vmatprep.subr.bf16.mxu0 %v1835
    %1913 = vmatpush1.bf16.msra.mxu0 %v1834
    %1914 = vmatprep.subr.bf16.mxu0 0
    %1915 = vmatpush2.bf16.msra.mxu0 0
    %1916 = vmatprep.subr.bf16.mxu0 0
    %1917 = vmatpush2.bf16.msra.mxu0 0
    %1918 = vmatprep.subr.bf16.mxu0 0
    %1919 = vmatpush2.bf16.msra.mxu0 0
    %1920 = vmatprep.subr.bf16.mxu0 0
    %1921 = vmatpush2.bf16.msra.mxu0 0
    %1922 = vmatprep.subr.bf16.mxu0 0
    %1923 = vmatpush2.bf16.msra.mxu0 0
    %1924 = vmatprep.subr.bf16.mxu0 0
    %1925 = vmatpush2.bf16.msra.mxu0 0
    %1926 = vmatprep.subr.bf16.mxu0 0
    %1927 = vmatpush2.bf16.msra.mxu0 0
    %1928 = vmatprep.subr.bf16.mxu0 0
    %1929 = vmatpush2.bf16.msra.mxu0 0
    %1930 = vmatprep.mubr.bf16.mxu0 0
    %1931 = vmatmul.mubr.bf16.gmra.mxu0 %v1696
    %v1932 = vpop.f32.mrf.mxu0
    %v1933 = vadd.f32 0.0, %v1932
    %v1934 = vpop.f32.mrf.mxu0
    %v1935 = vadd.f32 0.0, %v1934
    %v1936 = vpop.f32.mrf.mxu0
    %v1937 = vpop.f32.mrf.mxu0
    %1938 = vdwg.mxu0
    %1939 = vmatprep.subr.bf16.mxu0 %v1865
    %1940 = vmatpush1.bf16.msra.mxu0 %v1864
    %1941 = vmatprep.subr.bf16.mxu0 %v1861
    %1942 = vmatpush1.bf16.msra.mxu0 %v1860
    %1943 = vmatprep.subr.bf16.mxu0 %v1857
    %1944 = vmatpush1.bf16.msra.mxu0 %v1856
    %1945 = vmatprep.subr.bf16.mxu0 %v1853
    %1946 = vmatpush1.bf16.msra.mxu0 %v1852
    %1947 = vmatprep.subr.bf16.mxu0 %v1849
    %1948 = vmatpush1.bf16.msra.mxu0 %v1848
    %1949 = vmatprep.subr.bf16.mxu0 %v1845
    %1950 = vmatpush1.bf16.msra.mxu0 %v1844
    %1951 = vmatprep.subr.bf16.mxu0 %v1841
    %1952 = vmatpush1.bf16.msra.mxu0 %v1840
    %1953 = vmatprep.subr.bf16.mxu0 %v1837
    %1954 = vmatpush1.bf16.msra.mxu0 %v1836
    %1955 = vmatprep.subr.bf16.mxu0 0
    %1956 = vmatpush2.bf16.msra.mxu0 0
    %1957 = vmatprep.subr.bf16.mxu0 0
    %1958 = vmatpush2.bf16.msra.mxu0 0
    %1959 = vmatprep.subr.bf16.mxu0 0
    %1960 = vmatpush2.bf16.msra.mxu0 0
    %1961 = vmatprep.subr.bf16.mxu0 0
    %1962 = vmatpush2.bf16.msra.mxu0 0
    %1963 = vmatprep.subr.bf16.mxu0 0
    %1964 = vmatpush2.bf16.msra.mxu0 0
    %1965 = vmatprep.subr.bf16.mxu0 0
    %1966 = vmatpush2.bf16.msra.mxu0 0
    %1967 = vmatprep.subr.bf16.mxu0 0
    %1968 = vmatpush2.bf16.msra.mxu0 0
    %1969 = vmatprep.subr.bf16.mxu0 0
    %1970 = vmatpush2.bf16.msra.mxu0 0
    %1971 = vmatprep.mubr.bf16.mxu0 0
    %1972 = vmatmul.mubr.bf16.gmra.mxu0 %v1696
    %v1973 = vpop.f32.mrf.mxu0
    %v1974 = vadd.f32 0.0, %v1973
    %v1975 = vpop.f32.mrf.mxu0
    %v1976 = vadd.f32 0.0, %v1975
    %v1977 = vpop.f32.mrf.mxu0
    %v1978 = vpop.f32.mrf.mxu0
    %1979 = vdwg.mxu0
    %v1980 = vadd.f32 %v1702, %v1933
    %v1981 = vadd.f32 %v1703, %v1935
    %v1982 = vadd.f32 %v1704, %v1974
    %v1983 = vadd.f32 %v1705, %v1976
    %v1984 = vmul.f32 %v1980, 0.5
    %v1985 = vtanh.pop %v1984
    %v1986 = vadd.f32 %v1985, 1.0
    %v1987 = vmul.f32 %v1986, 0.5
    %v1988 = vmul.f32 %v1981, 0.5
    %v1989 = vtanh.pop %v1988
    %v1990 = vadd.f32 %v1989, 1.0
    %v1991 = vmul.f32 %v1990, 0.5
    %v1992 = vtanh.pop %v1982
    %v1993 = vmul.f32 %v1983, 0.5
    %v1994 = vtanh.pop %v1993
    %v1995 = vadd.f32 %v1994, 1.0
    %v1996 = vmul.f32 %v1995, 0.5
    %v1997 = vmul.f32 %v1991, %v1693
    %v1998 = vmul.f32 %v1987, %v1992
    %v1999 = vadd.f32 %v1997, %v1998
    %v2000 = vtanh.pop %v1999
    %v2001 = vmul.f32 %v1996, %v2000
    %v2002 = vpack.c.bf16 %v2001, %v2001
    %s2003 = scalar_lea.vmem %s6, 16
    %2004 = vst [vmem:[%s2003] sm:$0xf] %v2002
    %s2005 = smul.u32 5, 4
    %s2006 = smul.addr %s2005, 8
    %s2007 = scalar_lea.vmem [#allocation2], %s2006
    %v2008 = vld [vmem:[%s2007] sm:$0xff]
    %v2009 = vld [vmem:[%s2007 + $0x8] sm:$0xff]
    %v2010 = vld [vmem:[%s2007 + $0x10] sm:$0xff]
    %v2011 = vld [vmem:[%s2007 + $0x18] sm:$0xff]
    %v2012 = vld [vmem:[#allocation5] sm:$0xff]
    %v2013 = vld [vmem:[#allocation5 + $0x8] sm:$0xff]
    %v2014 = vld [vmem:[#allocation5 + $0x10] sm:$0xff]
    %v2015 = vld [vmem:[#allocation5 + $0x18] sm:$0xff]
    %v2016 = vld [vmem:[#allocation5 + $0x20] sm:$0xff]
    %v2017 = vld [vmem:[#allocation5 + $0x28] sm:$0xff]
    %v2018 = vld [vmem:[#allocation5 + $0x30] sm:$0xff]
    %v2019 = vld [vmem:[#allocation5 + $0x38] sm:$0xff]
    %v2020 = vld [vmem:[#allocation5 + $0x40] sm:$0xff]
    %v2021 = vld [vmem:[#allocation5 + $0x48] sm:$0xff]
    %v2022 = vld [vmem:[#allocation5 + $0x50] sm:$0xff]
    %v2023 = vld [vmem:[#allocation5 + $0x58] sm:$0xff]
    %v2024 = vld [vmem:[#allocation5 + $0x60] sm:$0xff]
    %v2025 = vld [vmem:[#allocation5 + $0x68] sm:$0xff]
    %v2026 = vld [vmem:[#allocation5 + $0x70] sm:$0xff]
    %v2027 = vld [vmem:[#allocation5 + $0x78] sm:$0xff]
    %v2028 = vld [vmem:[#allocation5 + $0x80] sm:$0xff]
    %v2029 = vld [vmem:[#allocation5 + $0x88] sm:$0xff]
    %v2030 = vld [vmem:[#allocation5 + $0x90] sm:$0xff]
    %v2031 = vld [vmem:[#allocation5 + $0x98] sm:$0xff]
    %v2032 = vld [vmem:[#allocation5 + $0xa0] sm:$0xff]
    %v2033 = vld [vmem:[#allocation5 + $0xa8] sm:$0xff]
    %v2034 = vld [vmem:[#allocation5 + $0xb0] sm:$0xff]
    %v2035 = vld [vmem:[#allocation5 + $0xb8] sm:$0xff]
    %v2036 = vld [vmem:[#allocation5 + $0xc0] sm:$0xff]
    %v2037 = vld [vmem:[#allocation5 + $0xc8] sm:$0xff]
    %v2038 = vld [vmem:[#allocation5 + $0xd0] sm:$0xff]
    %v2039 = vld [vmem:[#allocation5 + $0xd8] sm:$0xff]
    %v2040 = vld [vmem:[#allocation5 + $0xe0] sm:$0xff]
    %v2041 = vld [vmem:[#allocation5 + $0xe8] sm:$0xff]
    %v2042 = vld [vmem:[#allocation5 + $0xf0] sm:$0xff]
    %v2043 = vld [vmem:[#allocation5 + $0xf8] sm:$0xff]
    %v2076 = vunpack.c.l.b16 %v2012
    %v2077 = vunpack.c.h.b16 %v2012
    %v2078 = vunpack.c.l.b16 %v2013
    %v2079 = vunpack.c.h.b16 %v2013
    %v2080 = vunpack.c.l.b16 %v2014
    %v2081 = vunpack.c.h.b16 %v2014
    %v2082 = vunpack.c.l.b16 %v2015
    %v2083 = vunpack.c.h.b16 %v2015
    %v2084 = vunpack.c.l.b16 %v2016
    %v2085 = vunpack.c.h.b16 %v2016
    %v2086 = vunpack.c.l.b16 %v2017
    %v2087 = vunpack.c.h.b16 %v2017
    %v2088 = vunpack.c.l.b16 %v2018
    %v2089 = vunpack.c.h.b16 %v2018
    %v2090 = vunpack.c.l.b16 %v2019
    %v2091 = vunpack.c.h.b16 %v2019
    %v2092 = vunpack.c.l.b16 %v2020
    %v2093 = vunpack.c.h.b16 %v2020
    %v2094 = vunpack.c.l.b16 %v2021
    %v2095 = vunpack.c.h.b16 %v2021
    %v2096 = vunpack.c.l.b16 %v2022
    %v2097 = vunpack.c.h.b16 %v2022
    %v2098 = vunpack.c.l.b16 %v2023
    %v2099 = vunpack.c.h.b16 %v2023
    %v2100 = vunpack.c.l.b16 %v2024
    %v2101 = vunpack.c.h.b16 %v2024
    %v2102 = vunpack.c.l.b16 %v2025
    %v2103 = vunpack.c.h.b16 %v2025
    %v2104 = vunpack.c.l.b16 %v2026
    %v2105 = vunpack.c.h.b16 %v2026
    %v2106 = vunpack.c.l.b16 %v2027
    %v2107 = vunpack.c.h.b16 %v2027
    %v2108 = vunpack.c.l.b16 %v2028
    %v2109 = vunpack.c.h.b16 %v2028
    %v2110 = vunpack.c.l.b16 %v2029
    %v2111 = vunpack.c.h.b16 %v2029
    %v2112 = vunpack.c.l.b16 %v2030
    %v2113 = vunpack.c.h.b16 %v2030
    %v2114 = vunpack.c.l.b16 %v2031
    %v2115 = vunpack.c.h.b16 %v2031
    %v2116 = vunpack.c.l.b16 %v2032
    %v2117 = vunpack.c.h.b16 %v2032
    %v2118 = vunpack.c.l.b16 %v2033
    %v2119 = vunpack.c.h.b16 %v2033
    %v2120 = vunpack.c.l.b16 %v2034
    %v2121 = vunpack.c.h.b16 %v2034
    %v2122 = vunpack.c.l.b16 %v2035
    %v2123 = vunpack.c.h.b16 %v2035
    %v2124 = vunpack.c.l.b16 %v2036
    %v2125 = vunpack.c.h.b16 %v2036
    %v2126 = vunpack.c.l.b16 %v2037
    %v2127 = vunpack.c.h.b16 %v2037
    %v2128 = vunpack.c.l.b16 %v2038
    %v2129 = vunpack.c.h.b16 %v2038
    %v2130 = vunpack.c.l.b16 %v2039
    %v2131 = vunpack.c.h.b16 %v2039
    %v2132 = vunpack.c.l.b16 %v2040
    %v2133 = vunpack.c.h.b16 %v2040
    %v2134 = vunpack.c.l.b16 %v2041
    %v2135 = vunpack.c.h.b16 %v2041
    %v2136 = vunpack.c.l.b16 %v2042
    %v2137 = vunpack.c.h.b16 %v2042
    %v2138 = vunpack.c.l.b16 %v2043
    %v2139 = vunpack.c.h.b16 %v2043
    %v2140 = vpack.c.b16 %v2080, %v2076
    %v2141 = vpack.c.b16 %v2081, %v2077
    %v2142 = vpack.c.b16 %v2082, %v2078
    %v2143 = vpack.c.b16 %v2083, %v2079
    %v2144 = vpack.c.b16 %v2088, %v2084
    %v2145 = vpack.c.b16 %v2089, %v2085
    %v2146 = vpack.c.b16 %v2090, %v2086
    %v2147 = vpack.c.b16 %v2091, %v2087
    %v2148 = vpack.c.b16 %v2096, %v2092
    %v2149 = vpack.c.b16 %v2097, %v2093
    %v2150 = vpack.c.b16 %v2098, %v2094
    %v2151 = vpack.c.b16 %v2099, %v2095
    %v2152 = vpack.c.b16 %v2104, %v2100
    %v2153 = vpack.c.b16 %v2105, %v2101
    %v2154 = vpack.c.b16 %v2106, %v2102
    %v2155 = vpack.c.b16 %v2107, %v2103
    %v2156 = vpack.c.b16 %v2112, %v2108
    %v2157 = vpack.c.b16 %v2113, %v2109
    %v2158 = vpack.c.b16 %v2114, %v2110
    %v2159 = vpack.c.b16 %v2115, %v2111
    %v2160 = vpack.c.b16 %v2120, %v2116
    %v2161 = vpack.c.b16 %v2121, %v2117
    %v2162 = vpack.c.b16 %v2122, %v2118
    %v2163 = vpack.c.b16 %v2123, %v2119
    %v2164 = vpack.c.b16 %v2128, %v2124
    %v2165 = vpack.c.b16 %v2129, %v2125
    %v2166 = vpack.c.b16 %v2130, %v2126
    %v2167 = vpack.c.b16 %v2131, %v2127
    %v2168 = vpack.c.b16 %v2136, %v2132
    %v2169 = vpack.c.b16 %v2137, %v2133
    %v2170 = vpack.c.b16 %v2138, %v2134
    %v2171 = vpack.c.b16 %v2139, %v2135
    %2204 = vmatprep.subr.bf16.mxu0 %v2169
    %2205 = vmatpush1.bf16.msra.mxu0 %v2168
    %2206 = vmatprep.subr.bf16.mxu0 %v2165
    %2207 = vmatpush1.bf16.msra.mxu0 %v2164
    %2208 = vmatprep.subr.bf16.mxu0 %v2161
    %2209 = vmatpush1.bf16.msra.mxu0 %v2160
    %2210 = vmatprep.subr.bf16.mxu0 %v2157
    %2211 = vmatpush1.bf16.msra.mxu0 %v2156
    %2212 = vmatprep.subr.bf16.mxu0 %v2153
    %2213 = vmatpush1.bf16.msra.mxu0 %v2152
    %2214 = vmatprep.subr.bf16.mxu0 %v2149
    %2215 = vmatpush1.bf16.msra.mxu0 %v2148
    %2216 = vmatprep.subr.bf16.mxu0 %v2145
    %2217 = vmatpush1.bf16.msra.mxu0 %v2144
    %2218 = vmatprep.subr.bf16.mxu0 %v2141
    %2219 = vmatpush1.bf16.msra.mxu0 %v2140
    %2220 = vmatprep.subr.bf16.mxu0 0
    %2221 = vmatpush2.bf16.msra.mxu0 0
    %2222 = vmatprep.subr.bf16.mxu0 0
    %2223 = vmatpush2.bf16.msra.mxu0 0
    %2224 = vmatprep.subr.bf16.mxu0 0
    %2225 = vmatpush2.bf16.msra.mxu0 0
    %2226 = vmatprep.subr.bf16.mxu0 0
    %2227 = vmatpush2.bf16.msra.mxu0 0
    %2228 = vmatprep.subr.bf16.mxu0 0
    %2229 = vmatpush2.bf16.msra.mxu0 0
    %2230 = vmatprep.subr.bf16.mxu0 0
    %2231 = vmatpush2.bf16.msra.mxu0 0
    %2232 = vmatprep.subr.bf16.mxu0 0
    %2233 = vmatpush2.bf16.msra.mxu0 0
    %2234 = vmatprep.subr.bf16.mxu0 0
    %2235 = vmatpush2.bf16.msra.mxu0 0
    %2236 = vmatprep.mubr.bf16.mxu0 0
    %2237 = vmatmul.mubr.bf16.gmra.mxu0 %v2002
    %v2238 = vpop.f32.mrf.mxu0
    %v2239 = vadd.f32 0.0, %v2238
    %v2240 = vpop.f32.mrf.mxu0
    %v2241 = vadd.f32 0.0, %v2240
    %v2242 = vpop.f32.mrf.mxu0
    %v2243 = vpop.f32.mrf.mxu0
    %2244 = vdwg.mxu0
    %2245 = vmatprep.subr.bf16.mxu0 %v2171
    %2246 = vmatpush1.bf16.msra.mxu0 %v2170
    %2247 = vmatprep.subr.bf16.mxu0 %v2167
    %2248 = vmatpush1.bf16.msra.mxu0 %v2166
    %2249 = vmatprep.subr.bf16.mxu0 %v2163
    %2250 = vmatpush1.bf16.msra.mxu0 %v2162
    %2251 = vmatprep.subr.bf16.mxu0 %v2159
    %2252 = vmatpush1.bf16.msra.mxu0 %v2158
    %2253 = vmatprep.subr.bf16.mxu0 %v2155
    %2254 = vmatpush1.bf16.msra.mxu0 %v2154
    %2255 = vmatprep.subr.bf16.mxu0 %v2151
    %2256 = vmatpush1.bf16.msra.mxu0 %v2150
    %2257 = vmatprep.subr.bf16.mxu0 %v2147
    %2258 = vmatpush1.bf16.msra.mxu0 %v2146
    %2259 = vmatprep.subr.bf16.mxu0 %v2143
    %2260 = vmatpush1.bf16.msra.mxu0 %v2142
    %2261 = vmatprep.subr.bf16.mxu0 0
    %2262 = vmatpush2.bf16.msra.mxu0 0
    %2263 = vmatprep.subr.bf16.mxu0 0
    %2264 = vmatpush2.bf16.msra.mxu0 0
    %2265 = vmatprep.subr.bf16.mxu0 0
    %2266 = vmatpush2.bf16.msra.mxu0 0
    %2267 = vmatprep.subr.bf16.mxu0 0
    %2268 = vmatpush2.bf16.msra.mxu0 0
    %2269 = vmatprep.subr.bf16.mxu0 0
    %2270 = vmatpush2.bf16.msra.mxu0 0
    %2271 = vmatprep.subr.bf16.mxu0 0
    %2272 = vmatpush2.bf16.msra.mxu0 0
    %2273 = vmatprep.subr.bf16.mxu0 0
    %2274 = vmatpush2.bf16.msra.mxu0 0
    %2275 = vmatprep.subr.bf16.mxu0 0
    %2276 = vmatpush2.bf16.msra.mxu0 0
    %2277 = vmatprep.mubr.bf16.mxu0 0
    %2278 = vmatmul.mubr.bf16.gmra.mxu0 %v2002
    %v2279 = vpop.f32.mrf.mxu0
    %v2280 = vadd.f32 0.0, %v2279
    %v2281 = vpop.f32.mrf.mxu0
    %v2282 = vadd.f32 0.0, %v2281
    %v2283 = vpop.f32.mrf.mxu0
    %v2284 = vpop.f32.mrf.mxu0
    %2285 = vdwg.mxu0
    %v2286 = vadd.f32 %v2008, %v2239
    %v2287 = vadd.f32 %v2009, %v2241
    %v2288 = vadd.f32 %v2010, %v2280
    %v2289 = vadd.f32 %v2011, %v2282
    %v2290 = vmul.f32 %v2286, 0.5
    %v2291 = vtanh.pop %v2290
    %v2292 = vadd.f32 %v2291, 1.0
    %v2293 = vmul.f32 %v2292, 0.5
    %v2294 = vmul.f32 %v2287, 0.5
    %v2295 = vtanh.pop %v2294
    %v2296 = vadd.f32 %v2295, 1.0
    %v2297 = vmul.f32 %v2296, 0.5
    %v2298 = vtanh.pop %v2288
    %v2299 = vmul.f32 %v2289, 0.5
    %v2300 = vtanh.pop %v2299
    %v2301 = vadd.f32 %v2300, 1.0
    %v2302 = vmul.f32 %v2301, 0.5
    %v2303 = vmul.f32 %v2297, %v1999
    %v2304 = vmul.f32 %v2293, %v2298
    %v2305 = vadd.f32 %v2303, %v2304
    %v2306 = vtanh.pop %v2305
    %v2307 = vmul.f32 %v2302, %v2306
    %v2308 = vpack.c.bf16 %v2307, %v2307
    %s2309 = scalar_lea.vmem %s6, 20
    %2310 = vst [vmem:[%s2309] sm:$0xf] %v2308
    %s2311 = smul.u32 6, 4
    %s2312 = smul.addr %s2311, 8
    %s2313 = scalar_lea.vmem [#allocation2], %s2312
    %v2314 = vld [vmem:[%s2313] sm:$0xff]
    %v2315 = vld [vmem:[%s2313 + $0x8] sm:$0xff]
    %v2316 = vld [vmem:[%s2313 + $0x10] sm:$0xff]
    %v2317 = vld [vmem:[%s2313 + $0x18] sm:$0xff]
    %v2318 = vld [vmem:[#allocation5] sm:$0xff]
    %v2319 = vld [vmem:[#allocation5 + $0x8] sm:$0xff]
    %v2320 = vld [vmem:[#allocation5 + $0x10] sm:$0xff]
    %v2321 = vld [vmem:[#allocation5 + $0x18] sm:$0xff]
    %v2322 = vld [vmem:[#allocation5 + $0x20] sm:$0xff]
    %v2323 = vld [vmem:[#allocation5 + $0x28] sm:$0xff]
    %v2324 = vld [vmem:[#allocation5 + $0x30] sm:$0xff]
    %v2325 = vld [vmem:[#allocation5 + $0x38] sm:$0xff]
    %v2326 = vld [vmem:[#allocation5 + $0x40] sm:$0xff]
    %v2327 = vld [vmem:[#allocation5 + $0x48] sm:$0xff]
    %v2328 = vld [vmem:[#allocation5 + $0x50] sm:$0xff]
    %v2329 = vld [vmem:[#allocation5 + $0x58] sm:$0xff]
    %v2330 = vld [vmem:[#allocation5 + $0x60] sm:$0xff]
    %v2331 = vld [vmem:[#allocation5 + $0x68] sm:$0xff]
    %v2332 = vld [vmem:[#allocation5 + $0x70] sm:$0xff]
    %v2333 = vld [vmem:[#allocation5 + $0x78] sm:$0xff]
    %v2334 = vld [vmem:[#allocation5 + $0x80] sm:$0xff]
    %v2335 = vld [vmem:[#allocation5 + $0x88] sm:$0xff]
    %v2336 = vld [vmem:[#allocation5 + $0x90] sm:$0xff]
    %v2337 = vld [vmem:[#allocation5 + $0x98] sm:$0xff]
    %v2338 = vld [vmem:[#allocation5 + $0xa0] sm:$0xff]
    %v2339 = vld [vmem:[#allocation5 + $0xa8] sm:$0xff]
    %v2340 = vld [vmem:[#allocation5 + $0xb0] sm:$0xff]
    %v2341 = vld [vmem:[#allocation5 + $0xb8] sm:$0xff]
    %v2342 = vld [vmem:[#allocation5 + $0xc0] sm:$0xff]
    %v2343 = vld [vmem:[#allocation5 + $0xc8] sm:$0xff]
    %v2344 = vld [vmem:[#allocation5 + $0xd0] sm:$0xff]
    %v2345 = vld [vmem:[#allocation5 + $0xd8] sm:$0xff]
    %v2346 = vld [vmem:[#allocation5 + $0xe0] sm:$0xff]
    %v2347 = vld [vmem:[#allocation5 + $0xe8] sm:$0xff]
    %v2348 = vld [vmem:[#allocation5 + $0xf0] sm:$0xff]
    %v2349 = vld [vmem:[#allocation5 + $0xf8] sm:$0xff]
    %v2382 = vunpack.c.l.b16 %v2318
    %v2383 = vunpack.c.h.b16 %v2318
    %v2384 = vunpack.c.l.b16 %v2319
    %v2385 = vunpack.c.h.b16 %v2319
    %v2386 = vunpack.c.l.b16 %v2320
    %v2387 = vunpack.c.h.b16 %v2320
    %v2388 = vunpack.c.l.b16 %v2321
    %v2389 = vunpack.c.h.b16 %v2321
    %v2390 = vunpack.c.l.b16 %v2322
    %v2391 = vunpack.c.h.b16 %v2322
    %v2392 = vunpack.c.l.b16 %v2323
    %v2393 = vunpack.c.h.b16 %v2323
    %v2394 = vunpack.c.l.b16 %v2324
    %v2395 = vunpack.c.h.b16 %v2324
    %v2396 = vunpack.c.l.b16 %v2325
    %v2397 = vunpack.c.h.b16 %v2325
    %v2398 = vunpack.c.l.b16 %v2326
    %v2399 = vunpack.c.h.b16 %v2326
    %v2400 = vunpack.c.l.b16 %v2327
    %v2401 = vunpack.c.h.b16 %v2327
    %v2402 = vunpack.c.l.b16 %v2328
    %v2403 = vunpack.c.h.b16 %v2328
    %v2404 = vunpack.c.l.b16 %v2329
    %v2405 = vunpack.c.h.b16 %v2329
    %v2406 = vunpack.c.l.b16 %v2330
    %v2407 = vunpack.c.h.b16 %v2330
    %v2408 = vunpack.c.l.b16 %v2331
    %v2409 = vunpack.c.h.b16 %v2331
    %v2410 = vunpack.c.l.b16 %v2332
    %v2411 = vunpack.c.h.b16 %v2332
    %v2412 = vunpack.c.l.b16 %v2333
    %v2413 = vunpack.c.h.b16 %v2333
    %v2414 = vunpack.c.l.b16 %v2334
    %v2415 = vunpack.c.h.b16 %v2334
    %v2416 = vunpack.c.l.b16 %v2335
    %v2417 = vunpack.c.h.b16 %v2335
    %v2418 = vunpack.c.l.b16 %v2336
    %v2419 = vunpack.c.h.b16 %v2336
    %v2420 = vunpack.c.l.b16 %v2337
    %v2421 = vunpack.c.h.b16 %v2337
    %v2422 = vunpack.c.l.b16 %v2338
    %v2423 = vunpack.c.h.b16 %v2338
    %v2424 = vunpack.c.l.b16 %v2339
    %v2425 = vunpack.c.h.b16 %v2339
    %v2426 = vunpack.c.l.b16 %v2340
    %v2427 = vunpack.c.h.b16 %v2340
    %v2428 = vunpack.c.l.b16 %v2341
    %v2429 = vunpack.c.h.b16 %v2341
    %v2430 = vunpack.c.l.b16 %v2342
    %v2431 = vunpack.c.h.b16 %v2342
    %v2432 = vunpack.c.l.b16 %v2343
    %v2433 = vunpack.c.h.b16 %v2343
    %v2434 = vunpack.c.l.b16 %v2344
    %v2435 = vunpack.c.h.b16 %v2344
    %v2436 = vunpack.c.l.b16 %v2345
    %v2437 = vunpack.c.h.b16 %v2345
    %v2438 = vunpack.c.l.b16 %v2346
    %v2439 = vunpack.c.h.b16 %v2346
    %v2440 = vunpack.c.l.b16 %v2347
    %v2441 = vunpack.c.h.b16 %v2347
    %v2442 = vunpack.c.l.b16 %v2348
    %v2443 = vunpack.c.h.b16 %v2348
    %v2444 = vunpack.c.l.b16 %v2349
    %v2445 = vunpack.c.h.b16 %v2349
    %v2446 = vpack.c.b16 %v2386, %v2382
    %v2447 = vpack.c.b16 %v2387, %v2383
    %v2448 = vpack.c.b16 %v2388, %v2384
    %v2449 = vpack.c.b16 %v2389, %v2385
    %v2450 = vpack.c.b16 %v2394, %v2390
    %v2451 = vpack.c.b16 %v2395, %v2391
    %v2452 = vpack.c.b16 %v2396, %v2392
    %v2453 = vpack.c.b16 %v2397, %v2393
    %v2454 = vpack.c.b16 %v2402, %v2398
    %v2455 = vpack.c.b16 %v2403, %v2399
    %v2456 = vpack.c.b16 %v2404, %v2400
    %v2457 = vpack.c.b16 %v2405, %v2401
    %v2458 = vpack.c.b16 %v2410, %v2406
    %v2459 = vpack.c.b16 %v2411, %v2407
    %v2460 = vpack.c.b16 %v2412, %v2408
    %v2461 = vpack.c.b16 %v2413, %v2409
    %v2462 = vpack.c.b16 %v2418, %v2414
    %v2463 = vpack.c.b16 %v2419, %v2415
    %v2464 = vpack.c.b16 %v2420, %v2416
    %v2465 = vpack.c.b16 %v2421, %v2417
    %v2466 = vpack.c.b16 %v2426, %v2422
    %v2467 = vpack.c.b16 %v2427, %v2423
    %v2468 = vpack.c.b16 %v2428, %v2424
    %v2469 = vpack.c.b16 %v2429, %v2425
    %v2470 = vpack.c.b16 %v2434, %v2430
    %v2471 = vpack.c.b16 %v2435, %v2431
    %v2472 = vpack.c.b16 %v2436, %v2432
    %v2473 = vpack.c.b16 %v2437, %v2433
    %v2474 = vpack.c.b16 %v2442, %v2438
    %v2475 = vpack.c.b16 %v2443, %v2439
    %v2476 = vpack.c.b16 %v2444, %v2440
    %v2477 = vpack.c.b16 %v2445, %v2441
    %2510 = vmatprep.subr.bf16.mxu0 %v2475
    %2511 = vmatpush1.bf16.msra.mxu0 %v2474
    %2512 = vmatprep.subr.bf16.mxu0 %v2471
    %2513 = vmatpush1.bf16.msra.mxu0 %v2470
    %2514 = vmatprep.subr.bf16.mxu0 %v2467
    %2515 = vmatpush1.bf16.msra.mxu0 %v2466
    %2516 = vmatprep.subr.bf16.mxu0 %v2463
    %2517 = vmatpush1.bf16.msra.mxu0 %v2462
    %2518 = vmatprep.subr.bf16.mxu0 %v2459
    %2519 = vmatpush1.bf16.msra.mxu0 %v2458
    %2520 = vmatprep.subr.bf16.mxu0 %v2455
    %2521 = vmatpush1.bf16.msra.mxu0 %v2454
    %2522 = vmatprep.subr.bf16.mxu0 %v2451
    %2523 = vmatpush1.bf16.msra.mxu0 %v2450
    %2524 = vmatprep.subr.bf16.mxu0 %v2447
    %2525 = vmatpush1.bf16.msra.mxu0 %v2446
    %2526 = vmatprep.subr.bf16.mxu0 0
    %2527 = vmatpush2.bf16.msra.mxu0 0
    %2528 = vmatprep.subr.bf16.mxu0 0
    %2529 = vmatpush2.bf16.msra.mxu0 0
    %2530 = vmatprep.subr.bf16.mxu0 0
    %2531 = vmatpush2.bf16.msra.mxu0 0
    %2532 = vmatprep.subr.bf16.mxu0 0
    %2533 = vmatpush2.bf16.msra.mxu0 0
    %2534 = vmatprep.subr.bf16.mxu0 0
    %2535 = vmatpush2.bf16.msra.mxu0 0
    %2536 = vmatprep.subr.bf16.mxu0 0
    %2537 = vmatpush2.bf16.msra.mxu0 0
    %2538 = vmatprep.subr.bf16.mxu0 0
    %2539 = vmatpush2.bf16.msra.mxu0 0
    %2540 = vmatprep.subr.bf16.mxu0 0
    %2541 = vmatpush2.bf16.msra.mxu0 0
    %2542 = vmatprep.mubr.bf16.mxu0 0
    %2543 = vmatmul.mubr.bf16.gmra.mxu0 %v2308
    %v2544 = vpop.f32.mrf.mxu0
    %v2545 = vadd.f32 0.0, %v2544
    %v2546 = vpop.f32.mrf.mxu0
    %v2547 = vadd.f32 0.0, %v2546
    %v2548 = vpop.f32.mrf.mxu0
    %v2549 = vpop.f32.mrf.mxu0
    %2550 = vdwg.mxu0
    %2551 = vmatprep.subr.bf16.mxu0 %v2477
    %2552 = vmatpush1.bf16.msra.mxu0 %v2476
    %2553 = vmatprep.subr.bf16.mxu0 %v2473
    %2554 = vmatpush1.bf16.msra.mxu0 %v2472
    %2555 = vmatprep.subr.bf16.mxu0 %v2469
    %2556 = vmatpush1.bf16.msra.mxu0 %v2468
    %2557 = vmatprep.subr.bf16.mxu0 %v2465
    %2558 = vmatpush1.bf16.msra.mxu0 %v2464
    %2559 = vmatprep.subr.bf16.mxu0 %v2461
    %2560 = vmatpush1.bf16.msra.mxu0 %v2460
    %2561 = vmatprep.subr.bf16.mxu0 %v2457
    %2562 = vmatpush1.bf16.msra.mxu0 %v2456
    %2563 = vmatprep.subr.bf16.mxu0 %v2453
    %2564 = vmatpush1.bf16.msra.mxu0 %v2452
    %2565 = vmatprep.subr.bf16.mxu0 %v2449
    %2566 = vmatpush1.bf16.msra.mxu0 %v2448
    %2567 = vmatprep.subr.bf16.mxu0 0
    %2568 = vmatpush2.bf16.msra.mxu0 0
    %2569 = vmatprep.subr.bf16.mxu0 0
    %2570 = vmatpush2.bf16.msra.mxu0 0
    %2571 = vmatprep.subr.bf16.mxu0 0
    %2572 = vmatpush2.bf16.msra.mxu0 0
    %2573 = vmatprep.subr.bf16.mxu0 0
    %2574 = vmatpush2.bf16.msra.mxu0 0
    %2575 = vmatprep.subr.bf16.mxu0 0
    %2576 = vmatpush2.bf16.msra.mxu0 0
    %2577 = vmatprep.subr.bf16.mxu0 0
    %2578 = vmatpush2.bf16.msra.mxu0 0
    %2579 = vmatprep.subr.bf16.mxu0 0
    %2580 = vmatpush2.bf16.msra.mxu0 0
    %2581 = vmatprep.subr.bf16.mxu0 0
    %2582 = vmatpush2.bf16.msra.mxu0 0
    %2583 = vmatprep.mubr.bf16.mxu0 0
    %2584 = vmatmul.mubr.bf16.gmra.mxu0 %v2308
    %v2585 = vpop.f32.mrf.mxu0
    %v2586 = vadd.f32 0.0, %v2585
    %v2587 = vpop.f32.mrf.mxu0
    %v2588 = vadd.f32 0.0, %v2587
    %v2589 = vpop.f32.mrf.mxu0
    %v2590 = vpop.f32.mrf.mxu0
    %2591 = vdwg.mxu0
    %v2592 = vadd.f32 %v2314, %v2545
    %v2593 = vadd.f32 %v2315, %v2547
    %v2594 = vadd.f32 %v2316, %v2586
    %v2595 = vadd.f32 %v2317, %v2588
    %v2596 = vmul.f32 %v2592, 0.5
    %v2597 = vtanh.pop %v2596
    %v2598 = vadd.f32 %v2597, 1.0
    %v2599 = vmul.f32 %v2598, 0.5
    %v2600 = vmul.f32 %v2593, 0.5
    %v2601 = vtanh.pop %v2600
    %v2602 = vadd.f32 %v2601, 1.0
    %v2603 = vmul.f32 %v2602, 0.5
    %v2604 = vtanh.pop %v2594
    %v2605 = vmul.f32 %v2595, 0.5
    %v2606 = vtanh.pop %v2605
    %v2607 = vadd.f32 %v2606, 1.0
    %v2608 = vmul.f32 %v2607, 0.5
    %v2609 = vmul.f32 %v2603, %v2305
    %v2610 = vmul.f32 %v2599, %v2604
    %v2611 = vadd.f32 %v2609, %v2610
    %v2612 = vtanh.pop %v2611
    %v2613 = vmul.f32 %v2608, %v2612
    %v2614 = vpack.c.bf16 %v2613, %v2613
    %s2615 = scalar_lea.vmem %s6, 24
    %2616 = vst [vmem:[%s2615] sm:$0xf] %v2614
    %s2617 = smul.u32 7, 4
    %s2618 = smul.addr %s2617, 8
    %s2619 = scalar_lea.vmem [#allocation2], %s2618
    %v2620 = vld [vmem:[%s2619] sm:$0xff]
    %v2621 = vld [vmem:[%s2619 + $0x8] sm:$0xff]
    %v2622 = vld [vmem:[%s2619 + $0x10] sm:$0xff]
    %v2623 = vld [vmem:[%s2619 + $0x18] sm:$0xff]
    %v2624 = vld [vmem:[#allocation5] sm:$0xff]
    %v2625 = vld [vmem:[#allocation5 + $0x8] sm:$0xff]
    %v2626 = vld [vmem:[#allocation5 + $0x10] sm:$0xff]
    %v2627 = vld [vmem:[#allocation5 + $0x18] sm:$0xff]
    %v2628 = vld [vmem:[#allocation5 + $0x20] sm:$0xff]
    %v2629 = vld [vmem:[#allocation5 + $0x28] sm:$0xff]
    %v2630 = vld [vmem:[#allocation5 + $0x30] sm:$0xff]
    %v2631 = vld [vmem:[#allocation5 + $0x38] sm:$0xff]
    %v2632 = vld [vmem:[#allocation5 + $0x40] sm:$0xff]
    %v2633 = vld [vmem:[#allocation5 + $0x48] sm:$0xff]
    %v2634 = vld [vmem:[#allocation5 + $0x50] sm:$0xff]
    %v2635 = vld [vmem:[#allocation5 + $0x58] sm:$0xff]
    %v2636 = vld [vmem:[#allocation5 + $0x60] sm:$0xff]
    %v2637 = vld [vmem:[#allocation5 + $0x68] sm:$0xff]
    %v2638 = vld [vmem:[#allocation5 + $0x70] sm:$0xff]
    %v2639 = vld [vmem:[#allocation5 + $0x78] sm:$0xff]
    %v2640 = vld [vmem:[#allocation5 + $0x80] sm:$0xff]
    %v2641 = vld [vmem:[#allocation5 + $0x88] sm:$0xff]
    %v2642 = vld [vmem:[#allocation5 + $0x90] sm:$0xff]
    %v2643 = vld [vmem:[#allocation5 + $0x98] sm:$0xff]
    %v2644 = vld [vmem:[#allocation5 + $0xa0] sm:$0xff]
    %v2645 = vld [vmem:[#allocation5 + $0xa8] sm:$0xff]
    %v2646 = vld [vmem:[#allocation5 + $0xb0] sm:$0xff]
    %v2647 = vld [vmem:[#allocation5 + $0xb8] sm:$0xff]
    %v2648 = vld [vmem:[#allocation5 + $0xc0] sm:$0xff]
    %v2649 = vld [vmem:[#allocation5 + $0xc8] sm:$0xff]
    %v2650 = vld [vmem:[#allocation5 + $0xd0] sm:$0xff]
    %v2651 = vld [vmem:[#allocation5 + $0xd8] sm:$0xff]
    %v2652 = vld [vmem:[#allocation5 + $0xe0] sm:$0xff]
    %v2653 = vld [vmem:[#allocation5 + $0xe8] sm:$0xff]
    %v2654 = vld [vmem:[#allocation5 + $0xf0] sm:$0xff]
    %v2655 = vld [vmem:[#allocation5 + $0xf8] sm:$0xff]
    %v2688 = vunpack.c.l.b16 %v2624
    %v2689 = vunpack.c.h.b16 %v2624
    %v2690 = vunpack.c.l.b16 %v2625
    %v2691 = vunpack.c.h.b16 %v2625
    %v2692 = vunpack.c.l.b16 %v2626
    %v2693 = vunpack.c.h.b16 %v2626
    %v2694 = vunpack.c.l.b16 %v2627
    %v2695 = vunpack.c.h.b16 %v2627
    %v2696 = vunpack.c.l.b16 %v2628
    %v2697 = vunpack.c.h.b16 %v2628
    %v2698 = vunpack.c.l.b16 %v2629
    %v2699 = vunpack.c.h.b16 %v2629
    %v2700 = vunpack.c.l.b16 %v2630
    %v2701 = vunpack.c.h.b16 %v2630
    %v2702 = vunpack.c.l.b16 %v2631
    %v2703 = vunpack.c.h.b16 %v2631
    %v2704 = vunpack.c.l.b16 %v2632
    %v2705 = vunpack.c.h.b16 %v2632
    %v2706 = vunpack.c.l.b16 %v2633
    %v2707 = vunpack.c.h.b16 %v2633
    %v2708 = vunpack.c.l.b16 %v2634
    %v2709 = vunpack.c.h.b16 %v2634
    %v2710 = vunpack.c.l.b16 %v2635
    %v2711 = vunpack.c.h.b16 %v2635
    %v2712 = vunpack.c.l.b16 %v2636
    %v2713 = vunpack.c.h.b16 %v2636
    %v2714 = vunpack.c.l.b16 %v2637
    %v2715 = vunpack.c.h.b16 %v2637
    %v2716 = vunpack.c.l.b16 %v2638
    %v2717 = vunpack.c.h.b16 %v2638
    %v2718 = vunpack.c.l.b16 %v2639
    %v2719 = vunpack.c.h.b16 %v2639
    %v2720 = vunpack.c.l.b16 %v2640
    %v2721 = vunpack.c.h.b16 %v2640
    %v2722 = vunpack.c.l.b16 %v2641
    %v2723 = vunpack.c.h.b16 %v2641
    %v2724 = vunpack.c.l.b16 %v2642
    %v2725 = vunpack.c.h.b16 %v2642
    %v2726 = vunpack.c.l.b16 %v2643
    %v2727 = vunpack.c.h.b16 %v2643
    %v2728 = vunpack.c.l.b16 %v2644
    %v2729 = vunpack.c.h.b16 %v2644
    %v2730 = vunpack.c.l.b16 %v2645
    %v2731 = vunpack.c.h.b16 %v2645
    %v2732 = vunpack.c.l.b16 %v2646
    %v2733 = vunpack.c.h.b16 %v2646
    %v2734 = vunpack.c.l.b16 %v2647
    %v2735 = vunpack.c.h.b16 %v2647
    %v2736 = vunpack.c.l.b16 %v2648
    %v2737 = vunpack.c.h.b16 %v2648
    %v2738 = vunpack.c.l.b16 %v2649
    %v2739 = vunpack.c.h.b16 %v2649
    %v2740 = vunpack.c.l.b16 %v2650
    %v2741 = vunpack.c.h.b16 %v2650
    %v2742 = vunpack.c.l.b16 %v2651
    %v2743 = vunpack.c.h.b16 %v2651
    %v2744 = vunpack.c.l.b16 %v2652
    %v2745 = vunpack.c.h.b16 %v2652
    %v2746 = vunpack.c.l.b16 %v2653
    %v2747 = vunpack.c.h.b16 %v2653
    %v2748 = vunpack.c.l.b16 %v2654
    %v2749 = vunpack.c.h.b16 %v2654
    %v2750 = vunpack.c.l.b16 %v2655
    %v2751 = vunpack.c.h.b16 %v2655
    %v2752 = vpack.c.b16 %v2692, %v2688
    %v2753 = vpack.c.b16 %v2693, %v2689
    %v2754 = vpack.c.b16 %v2694, %v2690
    %v2755 = vpack.c.b16 %v2695, %v2691
    %v2756 = vpack.c.b16 %v2700, %v2696
    %v2757 = vpack.c.b16 %v2701, %v2697
    %v2758 = vpack.c.b16 %v2702, %v2698
    %v2759 = vpack.c.b16 %v2703, %v2699
    %v2760 = vpack.c.b16 %v2708, %v2704
    %v2761 = vpack.c.b16 %v2709, %v2705
    %v2762 = vpack.c.b16 %v2710, %v2706
    %v2763 = vpack.c.b16 %v2711, %v2707
    %v2764 = vpack.c.b16 %v2716, %v2712
    %v2765 = vpack.c.b16 %v2717, %v2713
    %v2766 = vpack.c.b16 %v2718, %v2714
    %v2767 = vpack.c.b16 %v2719, %v2715
    %v2768 = vpack.c.b16 %v2724, %v2720
    %v2769 = vpack.c.b16 %v2725, %v2721
    %v2770 = vpack.c.b16 %v2726, %v2722
    %v2771 = vpack.c.b16 %v2727, %v2723
    %v2772 = vpack.c.b16 %v2732, %v2728
    %v2773 = vpack.c.b16 %v2733, %v2729
    %v2774 = vpack.c.b16 %v2734, %v2730
    %v2775 = vpack.c.b16 %v2735, %v2731
    %v2776 = vpack.c.b16 %v2740, %v2736
    %v2777 = vpack.c.b16 %v2741, %v2737
    %v2778 = vpack.c.b16 %v2742, %v2738
    %v2779 = vpack.c.b16 %v2743, %v2739
    %v2780 = vpack.c.b16 %v2748, %v2744
    %v2781 = vpack.c.b16 %v2749, %v2745
    %v2782 = vpack.c.b16 %v2750, %v2746
    %v2783 = vpack.c.b16 %v2751, %v2747
    %2816 = vmatprep.subr.bf16.mxu0 %v2781
    %2817 = vmatpush1.bf16.msra.mxu0 %v2780
    %2818 = vmatprep.subr.bf16.mxu0 %v2777
    %2819 = vmatpush1.bf16.msra.mxu0 %v2776
    %2820 = vmatprep.subr.bf16.mxu0 %v2773
    %2821 = vmatpush1.bf16.msra.mxu0 %v2772
    %2822 = vmatprep.subr.bf16.mxu0 %v2769
    %2823 = vmatpush1.bf16.msra.mxu0 %v2768
    %2824 = vmatprep.subr.bf16.mxu0 %v2765
    %2825 = vmatpush1.bf16.msra.mxu0 %v2764
    %2826 = vmatprep.subr.bf16.mxu0 %v2761
    %2827 = vmatpush1.bf16.msra.mxu0 %v2760
    %2828 = vmatprep.subr.bf16.mxu0 %v2757
    %2829 = vmatpush1.bf16.msra.mxu0 %v2756
    %2830 = vmatprep.subr.bf16.mxu0 %v2753
    %2831 = vmatpush1.bf16.msra.mxu0 %v2752
    %2832 = vmatprep.subr.bf16.mxu0 0
    %2833 = vmatpush2.bf16.msra.mxu0 0
    %2834 = vmatprep.subr.bf16.mxu0 0
    %2835 = vmatpush2.bf16.msra.mxu0 0
    %2836 = vmatprep.subr.bf16.mxu0 0
    %2837 = vmatpush2.bf16.msra.mxu0 0
    %2838 = vmatprep.subr.bf16.mxu0 0
    %2839 = vmatpush2.bf16.msra.mxu0 0
    %2840 = vmatprep.subr.bf16.mxu0 0
    %2841 = vmatpush2.bf16.msra.mxu0 0
    %2842 = vmatprep.subr.bf16.mxu0 0
    %2843 = vmatpush2.bf16.msra.mxu0 0
    %2844 = vmatprep.subr.bf16.mxu0 0
    %2845 = vmatpush2.bf16.msra.mxu0 0
    %2846 = vmatprep.subr.bf16.mxu0 0
    %2847 = vmatpush2.bf16.msra.mxu0 0
    %2848 = vmatprep.mubr.bf16.mxu0 0
    %2849 = vmatmul.mubr.bf16.gmra.mxu0 %v2614
    %v2850 = vpop.f32.mrf.mxu0
    %v2851 = vadd.f32 0.0, %v2850
    %v2852 = vpop.f32.mrf.mxu0
    %v2853 = vadd.f32 0.0, %v2852
    %v2854 = vpop.f32.mrf.mxu0
    %v2855 = vpop.f32.mrf.mxu0
    %2856 = vdwg.mxu0
    %2857 = vmatprep.subr.bf16.mxu0 %v2783
    %2858 = vmatpush1.bf16.msra.mxu0 %v2782
    %2859 = vmatprep.subr.bf16.mxu0 %v2779
    %2860 = vmatpush1.bf16.msra.mxu0 %v2778
    %2861 = vmatprep.subr.bf16.mxu0 %v2775
    %2862 = vmatpush1.bf16.msra.mxu0 %v2774
    %2863 = vmatprep.subr.bf16.mxu0 %v2771
    %2864 = vmatpush1.bf16.msra.mxu0 %v2770
    %2865 = vmatprep.subr.bf16.mxu0 %v2767
    %2866 = vmatpush1.bf16.msra.mxu0 %v2766
    %2867 = vmatprep.subr.bf16.mxu0 %v2763
    %2868 = vmatpush1.bf16.msra.mxu0 %v2762
    %2869 = vmatprep.subr.bf16.mxu0 %v2759
    %2870 = vmatpush1.bf16.msra.mxu0 %v2758
    %2871 = vmatprep.subr.bf16.mxu0 %v2755
    %2872 = vmatpush1.bf16.msra.mxu0 %v2754
    %2873 = vmatprep.subr.bf16.mxu0 0
    %2874 = vmatpush2.bf16.msra.mxu0 0
    %2875 = vmatprep.subr.bf16.mxu0 0
    %2876 = vmatpush2.bf16.msra.mxu0 0
    %2877 = vmatprep.subr.bf16.mxu0 0
    %2878 = vmatpush2.bf16.msra.mxu0 0
    %2879 = vmatprep.subr.bf16.mxu0 0
    %2880 = vmatpush2.bf16.msra.mxu0 0
    %2881 = vmatprep.subr.bf16.mxu0 0
    %2882 = vmatpush2.bf16.msra.mxu0 0
    %2883 = vmatprep.subr.bf16.mxu0 0
    %2884 = vmatpush2.bf16.msra.mxu0 0
    %2885 = vmatprep.subr.bf16.mxu0 0
    %2886 = vmatpush2.bf16.msra.mxu0 0
    %2887 = vmatprep.subr.bf16.mxu0 0
    %2888 = vmatpush2.bf16.msra.mxu0 0
    %2889 = vmatprep.mubr.bf16.mxu0 0
    %2890 = vmatmul.mubr.bf16.gmra.mxu0 %v2614
    %v2891 = vpop.f32.mrf.mxu0
    %v2892 = vadd.f32 0.0, %v2891
    %v2893 = vpop.f32.mrf.mxu0
    %v2894 = vadd.f32 0.0, %v2893
    %v2895 = vpop.f32.mrf.mxu0
    %v2896 = vpop.f32.mrf.mxu0
    %2897 = vdwg.mxu0
    %v2898 = vadd.f32 %v2620, %v2851
    %v2899 = vadd.f32 %v2621, %v2853
    %v2900 = vadd.f32 %v2622, %v2892
    %v2901 = vadd.f32 %v2623, %v2894
    %v2902 = vmul.f32 %v2898, 0.5
    %v2903 = vtanh.pop %v2902
    %v2904 = vadd.f32 %v2903, 1.0
    %v2905 = vmul.f32 %v2904, 0.5
    %v2906 = vmul.f32 %v2899, 0.5
    %v2907 = vtanh.pop %v2906
    %v2908 = vadd.f32 %v2907, 1.0
    %v2909 = vmul.f32 %v2908, 0.5
    %v2910 = vtanh.pop %v2900
    %v2911 = vmul.f32 %v2901, 0.5
    %v2912 = vtanh.pop %v2911
    %v2913 = vadd.f32 %v2912, 1.0
    %v2914 = vmul.f32 %v2913, 0.5
    %v2915 = vmul.f32 %v2909, %v2611
    %v2916 = vmul.f32 %v2905, %v2910
    %v2917 = vadd.f32 %v2915, %v2916
    %v2918 = vtanh.pop %v2917
    %v2919 = vmul.f32 %v2914, %v2918
    %v2920 = vpack.c.bf16 %v2919, %v2919
    %s2921 = scalar_lea.vmem %s6, 28
    %2922 = vst [vmem:[%s2921] sm:$0xf] %v2920
    %2923 = vst [vmem:[#allocation3] sm:$0xff] %v2919
    %2924 = vst [vmem:[#allocation4] sm:$0xff] %v2917
    // Predicated region
    $region34: #{forward.5} parent=1 // pred_check
      %p2925 = pneg %p41
    $region35: #{forward.5} parent=1 // pred_check_branch
      %2927 = sbr.rel (%p2925) target = $region37
    $region36: #{forward.5} parent=1 // pred_region
      %2928 = vst [vmem:[%s7] sm:$0xff] %v2919
      %2929 = vst [vmem:[%s8] sm:$0xff] %v2917
    $region37: #{forward.5} parent=1 // pred_fallthru
      _
    // Predicated region
    $region38: #{forward.5} parent=1 // pred_check
      _
    $region39: #{forward.5} parent=1 // pred_check_branch
      %2931 = sbr.rel (0) target = $region41
    $region40: #{forward.5} parent=1 // pred_region
      _
    $region41: #{forward.5} parent=1 // pred_fallthru
      _
    // Predicated region
    $region42: #{forward.5} parent=1 // pred_check
      _
    $region43: #{forward.5} parent=1 // pred_check_branch
      %2933 = sbr.rel (0) target = $region45
    $region44: #{forward.5} parent=1 // pred_region
      _
    $region45: #{forward.5} parent=1 // pred_fallthru
      _
    // Predicated region
    $region46: #{forward.5} parent=1 // pred_check
      _
    $region47: #{forward.5} parent=1 // pred_check_branch
      %2935 = sbr.rel (0) target = $region49
    $region48: #{forward.5} parent=1 // pred_region
      _
    $region49: #{forward.5} parent=1 // pred_fallthru
      _
    // Predicated region
    $region50: #{forward.5} parent=1 // pred_check
      _
    $region51: #{forward.5} parent=1 // pred_check_branch
      %2937 = sbr.rel (0) target = $region53
    $region52: #{forward.5} parent=1 // pred_region
      _
    $region53: #{forward.5} parent=1 // pred_fallthru
      _
    // Predicated region
    $region54: #{forward.5} parent=1 // pred_check
      _
    $region55: #{forward.5} parent=1 // pred_check_branch
      %2939 = sbr.rel (0) target = $region57
    $region56: #{forward.5} parent=1 // pred_region
      _
    $region57: #{forward.5} parent=1 // pred_fallthru
      _
    // Predicated region
    $region58: #{forward.5} parent=1 // pred_check
      _
    $region59: #{forward.5} parent=1 // pred_check_branch
      %2941 = sbr.rel (0) target = $region61
    $region60: #{forward.5} parent=1 // pred_region
      _
    $region61: #{forward.5} parent=1 // pred_fallthru
      _
    %2942 = vsyncpa [#allocation6], 1

// kernel: forward.6
$region0: #{forward.6}
  #allocation0 [shape = 'u32[]', space=smem, size = 0x4, offset = 0x4, fixed_abs, tag = 'smem constant byte address 0x4 - core index']
  #allocation1 [shape = 'u32[144,128]{1,0:T(1,128)}', space=vmem, size = 0x12000, scoped, tag = 'internal scratch']
  #allocation2 [shape = 'f32[64,512]{1,0:T(8,128)}', space=vmem, size = 0x20000, scoped, tag = 'scratch operand']
  #allocation3 [shape = 'f32[8,128]{1,0:T(8,128)}', space=vmem, size = 0x1000, scoped, tag = 'scratch operand']
  #allocation4 [shape = 'f32[8,128]{1,0:T(8,128)}', space=vmem, size = 0x1000, scoped, tag = 'scratch operand']
  %s0 = inlined_call_operand.vmem [shape: bf16[64,128], index: 0, kind: input, shape index: {}]
  %s1 = inlined_call_operand.vmem [shape: bf16[128,512], index: 1, kind: input, shape index: {}]
  %s2 = inlined_call_operand.vmem [shape: f32[1,512], index: 2, kind: input, shape index: {}]
  %s3 = inlined_call_operand.vmem [shape: bf16[128,512], index: 3, kind: input, shape index: {}]
  %s4 = inlined_call_operand.vmem [shape: f32[8,128], index: 4, kind: input, shape index: {}]
  %s5 = inlined_call_operand.vmem [shape: f32[8,128], index: 5, kind: input, shape index: {}]
  %s6 = inlined_call_operand.vmem [shape: bf16[64,128], index: 6, kind: output, shape index: {0}]
  %s7 = inlined_call_operand.vmem [shape: f32[8,128], index: 7, kind: output, shape index: {1}]
  %s8 = inlined_call_operand.vmem [shape: f32[8,128], index: 8, kind: output, shape index: {2}]
  %9 = xla_tuple %s6, %s7, %s8
  %s10 = sld [smem:[#allocation0]]
  $region58: #{forward.6} parent=0
    _
  %s12 = ssub.s32 1, %s10
  %s13 = scalar_select 0, %s12, %s10
  // Predicated region
  $region2: #{forward.6} parent=0 // pred_check
    _
  $region3: #{forward.6} parent=0 // pred_check_branch
    %15 = sbr.rel (0) target = $region5
  $region4: #{forward.6} parent=0 // pred_region
    _
  $region5: #{forward.6} parent=0 // pred_fallthru
    _
  // Predicated region
  $region6: #{forward.6} parent=0 // pred_check
    _
  $region7: #{forward.6} parent=0 // pred_check_branch
    %17 = sbr.rel (0) target = $region9
  $region8: #{forward.6} parent=0 // pred_region
    _
  $region9: #{forward.6} parent=0 // pred_fallthru
    _
  // Predicated region
  $region10: #{forward.6} parent=0 // pred_check
    _
  $region11: #{forward.6} parent=0 // pred_check_branch
    %19 = sbr.rel (0) target = $region13
  $region12: #{forward.6} parent=0 // pred_region
    _
  $region13: #{forward.6} parent=0 // pred_fallthru
    _
  // Predicated region
  $region14: #{forward.6} parent=0 // pred_check
    _
  $region15: #{forward.6} parent=0 // pred_check_branch
    %21 = sbr.rel (0) target = $region17
  $region16: #{forward.6} parent=0 // pred_region
    _
  $region17: #{forward.6} parent=0 // pred_fallthru
    _
  // Predicated region
  $region18: #{forward.6} parent=0 // pred_check
    _
  $region19: #{forward.6} parent=0 // pred_check_branch
    %23 = sbr.rel (0) target = $region21
  $region20: #{forward.6} parent=0 // pred_region
    _
  $region21: #{forward.6} parent=0 // pred_fallthru
    _
  // Predicated region
  $region22: #{forward.6} parent=0 // pred_check
    _
  $region23: #{forward.6} parent=0 // pred_check_branch
    %25 = sbr.rel (0) target = $region25
  $region24: #{forward.6} parent=0 // pred_region
    _
  $region25: #{forward.6} parent=0 // pred_fallthru
    _
  %p27 = scmp.eq.s32.totalorder 0, 0
  // Predicated region
  $region26: #{forward.6} parent=0 // pred_check
    %p28 = pneg %p27
  $region27: #{forward.6} parent=0 // pred_check_branch
    %30 = sbr.rel (%p28) target = $region29
  $region28: #{forward.6} parent=0 // pred_region
    %v31 = vld [vmem:[%s4] sm:$0xff]
    %32 = vst [vmem:[#allocation3] sm:$0xff] %v31
    %v33 = vld [vmem:[%s5] sm:$0xff]
    %34 = vst [vmem:[#allocation4] sm:$0xff] %v33
  $region29: #{forward.6} parent=0 // pred_fallthru
    _
  %v35 = vld [vmem:[%s0] sm:$0xf]
  %v36 = vld [vmem:[%s0 + $0x4] sm:$0xf]
  %v37 = vld [vmem:[%s0 + $0x8] sm:$0xf]
  %v38 = vld [vmem:[%s0 + $0xc] sm:$0xf]
  %v39 = vld [vmem:[%s0 + $0x10] sm:$0xf]
  %v40 = vld [vmem:[%s0 + $0x14] sm:$0xf]
  %v41 = vld [vmem:[%s0 + $0x18] sm:$0xf]
  %v42 = vld [vmem:[%s0 + $0x1c] sm:$0xf]
  %v43 = vld [vmem:[%s1] sm:$0xff]
  %v44 = vld [vmem:[%s1 + $0x8] sm:$0xff]
  %v45 = vld [vmem:[%s1 + $0x10] sm:$0xff]
  %v46 = vld [vmem:[%s1 + $0x18] sm:$0xff]
  %v47 = vld [vmem:[%s1 + $0x20] sm:$0xff]
  %v48 = vld [vmem:[%s1 + $0x28] sm:$0xff]
  %v49 = vld [vmem:[%s1 + $0x30] sm:$0xff]
  %v50 = vld [vmem:[%s1 + $0x38] sm:$0xff]
  %v51 = vld [vmem:[%s1 + $0x40] sm:$0xff]
  %v52 = vld [vmem:[%s1 + $0x48] sm:$0xff]
  %v53 = vld [vmem:[%s1 + $0x50] sm:$0xff]
  %v54 = vld [vmem:[%s1 + $0x58] sm:$0xff]
  %v55 = vld [vmem:[%s1 + $0x60] sm:$0xff]
  %v56 = vld [vmem:[%s1 + $0x68] sm:$0xff]
  %v57 = vld [vmem:[%s1 + $0x70] sm:$0xff]
  %v58 = vld [vmem:[%s1 + $0x78] sm:$0xff]
  %v59 = vld [vmem:[%s1 + $0x80] sm:$0xff]
  %v60 = vld [vmem:[%s1 + $0x88] sm:$0xff]
  %v61 = vld [vmem:[%s1 + $0x90] sm:$0xff]
  %v62 = vld [vmem:[%s1 + $0x98] sm:$0xff]
  %v63 = vld [vmem:[%s1 + $0xa0] sm:$0xff]
  %v64 = vld [vmem:[%s1 + $0xa8] sm:$0xff]
  %v65 = vld [vmem:[%s1 + $0xb0] sm:$0xff]
  %v66 = vld [vmem:[%s1 + $0xb8] sm:$0xff]
  %v67 = vld [vmem:[%s1 + $0xc0] sm:$0xff]
  %v68 = vld [vmem:[%s1 + $0xc8] sm:$0xff]
  %v69 = vld [vmem:[%s1 + $0xd0] sm:$0xff]
  %v70 = vld [vmem:[%s1 + $0xd8] sm:$0xff]
  %v71 = vld [vmem:[%s1 + $0xe0] sm:$0xff]
  %v72 = vld [vmem:[%s1 + $0xe8] sm:$0xff]
  %v73 = vld [vmem:[%s1 + $0xf0] sm:$0xff]
  %v74 = vld [vmem:[%s1 + $0xf8] sm:$0xff]
  %v75 = vld [vmem:[%s2] sm:$0xf]
  %v77 = vlaneseq
  %v78 = vshrl.u32 %v77, 7
  %v79 = vsub.s32 0, %v78
  %v80 = vrot.slane %v75, %v79
  %v81 = vlaneseq
  %v82 = vshrl.u32 %v81, 7
  %v83 = vsub.s32 1, %v82
  %v84 = vrot.slane %v75, %v83
  %v85 = vlaneseq
  %v86 = vshrl.u32 %v85, 7
  %v87 = vsub.s32 2, %v86
  %v88 = vrot.slane %v75, %v87
  %v89 = vlaneseq
  %v90 = vshrl.u32 %v89, 7
  %v91 = vsub.s32 3, %v90
  %v92 = vrot.slane %v75, %v91
  %v105 = vunpack.c.l.b16 %v35
  %v106 = vunpack.c.l.b16 %v36
  %v107 = vunpack.c.l.b16 %v37
  %v108 = vunpack.c.l.b16 %v38
  %v109 = vunpack.c.l.b16 %v39
  %v110 = vunpack.c.l.b16 %v40
  %v111 = vunpack.c.l.b16 %v41
  %v112 = vunpack.c.l.b16 %v42
  %v113 = vpack.c.b16 %v106, %v105
  %v114 = vpack.c.b16 %v108, %v107
  %v115 = vpack.c.b16 %v110, %v109
  %v116 = vpack.c.b16 %v112, %v111
  %v153 = vunpack.c.l.b16 %v43
  %v154 = vunpack.c.h.b16 %v43
  %v155 = vunpack.c.l.b16 %v44
  %v156 = vunpack.c.h.b16 %v44
  %v157 = vunpack.c.l.b16 %v45
  %v158 = vunpack.c.h.b16 %v45
  %v159 = vunpack.c.l.b16 %v46
  %v160 = vunpack.c.h.b16 %v46
  %v161 = vunpack.c.l.b16 %v47
  %v162 = vunpack.c.h.b16 %v47
  %v163 = vunpack.c.l.b16 %v48
  %v164 = vunpack.c.h.b16 %v48
  %v165 = vunpack.c.l.b16 %v49
  %v166 = vunpack.c.h.b16 %v49
  %v167 = vunpack.c.l.b16 %v50
  %v168 = vunpack.c.h.b16 %v50
  %v169 = vunpack.c.l.b16 %v51
  %v170 = vunpack.c.h.b16 %v51
  %v171 = vunpack.c.l.b16 %v52
  %v172 = vunpack.c.h.b16 %v52
  %v173 = vunpack.c.l.b16 %v53
  %v174 = vunpack.c.h.b16 %v53
  %v175 = vunpack.c.l.b16 %v54
  %v176 = vunpack.c.h.b16 %v54
  %v177 = vunpack.c.l.b16 %v55
  %v178 = vunpack.c.h.b16 %v55
  %v179 = vunpack.c.l.b16 %v56
  %v180 = vunpack.c.h.b16 %v56
  %v181 = vunpack.c.l.b16 %v57
  %v182 = vunpack.c.h.b16 %v57
  %v183 = vunpack.c.l.b16 %v58
  %v184 = vunpack.c.h.b16 %v58
  %v185 = vunpack.c.l.b16 %v59
  %v186 = vunpack.c.h.b16 %v59
  %v187 = vunpack.c.l.b16 %v60
  %v188 = vunpack.c.h.b16 %v60
  %v189 = vunpack.c.l.b16 %v61
  %v190 = vunpack.c.h.b16 %v61
  %v191 = vunpack.c.l.b16 %v62
  %v192 = vunpack.c.h.b16 %v62
  %v193 = vunpack.c.l.b16 %v63
  %v194 = vunpack.c.h.b16 %v63
  %v195 = vunpack.c.l.b16 %v64
  %v196 = vunpack.c.h.b16 %v64
  %v197 = vunpack.c.l.b16 %v65
  %v198 = vunpack.c.h.b16 %v65
  %v199 = vunpack.c.l.b16 %v66
  %v200 = vunpack.c.h.b16 %v66
  %v201 = vunpack.c.l.b16 %v67
  %v202 = vunpack.c.h.b16 %v67
  %v203 = vunpack.c.l.b16 %v68
  %v204 = vunpack.c.h.b16 %v68
  %v205 = vunpack.c.l.b16 %v69
  %v206 = vunpack.c.h.b16 %v69
  %v207 = vunpack.c.l.b16 %v70
  %v208 = vunpack.c.h.b16 %v70
  %v209 = vunpack.c.l.b16 %v71
  %v210 = vunpack.c.h.b16 %v71
  %v211 = vunpack.c.l.b16 %v72
  %v212 = vunpack.c.h.b16 %v72
  %v213 = vunpack.c.l.b16 %v73
  %v214 = vunpack.c.h.b16 %v73
  %v215 = vunpack.c.l.b16 %v74
  %v216 = vunpack.c.h.b16 %v74
  %v217 = vpack.c.b16 %v157, %v153
  %v218 = vpack.c.b16 %v158, %v154
  %v219 = vpack.c.b16 %v159, %v155
  %v220 = vpack.c.b16 %v160, %v156
  %v221 = vpack.c.b16 %v165, %v161
  %v222 = vpack.c.b16 %v166, %v162
  %v223 = vpack.c.b16 %v167, %v163
  %v224 = vpack.c.b16 %v168, %v164
  %v225 = vpack.c.b16 %v173, %v169
  %v226 = vpack.c.b16 %v174, %v170
  %v227 = vpack.c.b16 %v175, %v171
  %v228 = vpack.c.b16 %v176, %v172
  %v229 = vpack.c.b16 %v181, %v177
  %v230 = vpack.c.b16 %v182, %v178
  %v231 = vpack.c.b16 %v183, %v179
  %v232 = vpack.c.b16 %v184, %v180
  %v233 = vpack.c.b16 %v189, %v185
  %v234 = vpack.c.b16 %v190, %v186
  %v235 = vpack.c.b16 %v191, %v187
  %v236 = vpack.c.b16 %v192, %v188
  %v237 = vpack.c.b16 %v197, %v193
  %v238 = vpack.c.b16 %v198, %v194
  %v239 = vpack.c.b16 %v199, %v195
  %v240 = vpack.c.b16 %v200, %v196
  %v241 = vpack.c.b16 %v205, %v201
  %v242 = vpack.c.b16 %v206, %v202
  %v243 = vpack.c.b16 %v207, %v203
  %v244 = vpack.c.b16 %v208, %v204
  %v245 = vpack.c.b16 %v213, %v209
  %v246 = vpack.c.b16 %v214, %v210
  %v247 = vpack.c.b16 %v215, %v211
  %v248 = vpack.c.b16 %v216, %v212
  %281 = vmatprep.subr.bf16.mxu0 %v246
  %282 = vmatpush1.bf16.msra.mxu0 %v245
  %283 = vmatprep.subr.bf16.mxu0 %v242
  %284 = vmatpush1.bf16.msra.mxu0 %v241
  %285 = vmatprep.subr.bf16.mxu0 %v238
  %286 = vmatpush1.bf16.msra.mxu0 %v237
  %287 = vmatprep.subr.bf16.mxu0 %v234
  %288 = vmatpush1.bf16.msra.mxu0 %v233
  %289 = vmatprep.subr.bf16.mxu0 %v230
  %290 = vmatpush1.bf16.msra.mxu0 %v229
  %291 = vmatprep.subr.bf16.mxu0 %v226
  %292 = vmatpush1.bf16.msra.mxu0 %v225
  %293 = vmatprep.subr.bf16.mxu0 %v222
  %294 = vmatpush1.bf16.msra.mxu0 %v221
  %295 = vmatprep.subr.bf16.mxu0 %v218
  %296 = vmatpush1.bf16.msra.mxu0 %v217
  %297 = vmatprep.subr.bf16.mxu0 0
  %298 = vmatpush2.bf16.msra.mxu0 0
  %299 = vmatprep.subr.bf16.mxu0 0
  %300 = vmatpush2.bf16.msra.mxu0 0
  %301 = vmatprep.subr.bf16.mxu0 0
  %302 = vmatpush2.bf16.msra.mxu0 0
  %303 = vmatprep.subr.bf16.mxu0 0
  %304 = vmatpush2.bf16.msra.mxu0 0
  %305 = vmatprep.subr.bf16.mxu0 0
  %306 = vmatpush2.bf16.msra.mxu0 0
  %307 = vmatprep.subr.bf16.mxu0 0
  %308 = vmatpush2.bf16.msra.mxu0 0
  %309 = vmatprep.subr.bf16.mxu0 0
  %310 = vmatpush2.bf16.msra.mxu0 0
  %311 = vmatprep.subr.bf16.mxu0 0
  %312 = vmatpush2.bf16.msra.mxu0 0
  %313 = vmatprep.mubr.bf16.mxu0 0
  %314 = vmatmul.mubr.bf16.gmra.mxu0 %v113
  %v315 = vpop.f32.mrf.mxu0
  %v316 = vadd.f32 %v80, %v315
  %v317 = vpop.f32.mrf.mxu0
  %v318 = vadd.f32 %v84, %v317
  %v319 = vpop.f32.mrf.mxu0
  %v320 = vadd.f32 %v80, %v319
  %v321 = vpop.f32.mrf.mxu0
  %v322 = vadd.f32 %v84, %v321
  %323 = vmatprep.mubr.bf16.mxu0 0
  %324 = vmatmul.mubr.bf16.gmra.mxu0 %v114
  %v325 = vpop.f32.mrf.mxu0
  %v326 = vadd.f32 %v80, %v325
  %v327 = vpop.f32.mrf.mxu0
  %v328 = vadd.f32 %v84, %v327
  %v329 = vpop.f32.mrf.mxu0
  %v330 = vadd.f32 %v80, %v329
  %v331 = vpop.f32.mrf.mxu0
  %v332 = vadd.f32 %v84, %v331
  %333 = vmatprep.mubr.bf16.mxu0 0
  %334 = vmatmul.mubr.bf16.gmra.mxu0 %v115
  %v335 = vpop.f32.mrf.mxu0
  %v336 = vadd.f32 %v80, %v335
  %v337 = vpop.f32.mrf.mxu0
  %v338 = vadd.f32 %v84, %v337
  %v339 = vpop.f32.mrf.mxu0
  %v340 = vadd.f32 %v80, %v339
  %v341 = vpop.f32.mrf.mxu0
  %v342 = vadd.f32 %v84, %v341
  %343 = vmatprep.mubr.bf16.mxu0 0
  %344 = vmatmul.mubr.bf16.gmra.mxu0 %v116
  %v345 = vpop.f32.mrf.mxu0
  %v346 = vadd.f32 %v80, %v345
  %v347 = vpop.f32.mrf.mxu0
  %v348 = vadd.f32 %v84, %v347
  %v349 = vpop.f32.mrf.mxu0
  %v350 = vadd.f32 %v80, %v349
  %v351 = vpop.f32.mrf.mxu0
  %v352 = vadd.f32 %v84, %v351
  %353 = vdwg.mxu0
  %354 = vmatprep.subr.bf16.mxu0 %v248
  %355 = vmatpush1.bf16.msra.mxu0 %v247
  %356 = vmatprep.subr.bf16.mxu0 %v244
  %357 = vmatpush1.bf16.msra.mxu0 %v243
  %358 = vmatprep.subr.bf16.mxu0 %v240
  %359 = vmatpush1.bf16.msra.mxu0 %v239
  %360 = vmatprep.subr.bf16.mxu0 %v236
  %361 = vmatpush1.bf16.msra.mxu0 %v235
  %362 = vmatprep.subr.bf16.mxu0 %v232
  %363 = vmatpush1.bf16.msra.mxu0 %v231
  %364 = vmatprep.subr.bf16.mxu0 %v228
  %365 = vmatpush1.bf16.msra.mxu0 %v227
  %366 = vmatprep.subr.bf16.mxu0 %v224
  %367 = vmatpush1.bf16.msra.mxu0 %v223
  %368 = vmatprep.subr.bf16.mxu0 %v220
  %369 = vmatpush1.bf16.msra.mxu0 %v219
  %370 = vmatprep.subr.bf16.mxu0 0
  %371 = vmatpush2.bf16.msra.mxu0 0
  %372 = vmatprep.subr.bf16.mxu0 0
  %373 = vmatpush2.bf16.msra.mxu0 0
  %374 = vmatprep.subr.bf16.mxu0 0
  %375 = vmatpush2.bf16.msra.mxu0 0
  %376 = vmatprep.subr.bf16.mxu0 0
  %377 = vmatpush2.bf16.msra.mxu0 0
  %378 = vmatprep.subr.bf16.mxu0 0
  %379 = vmatpush2.bf16.msra.mxu0 0
  %380 = vmatprep.subr.bf16.mxu0 0
  %381 = vmatpush2.bf16.msra.mxu0 0
  %382 = vmatprep.subr.bf16.mxu0 0
  %383 = vmatpush2.bf16.msra.mxu0 0
  %384 = vmatprep.subr.bf16.mxu0 0
  %385 = vmatpush2.bf16.msra.mxu0 0
  %386 = vmatprep.mubr.bf16.mxu0 0
  %387 = vmatmul.mubr.bf16.gmra.mxu0 %v113
  %v388 = vpop.f32.mrf.mxu0
  %v389 = vadd.f32 %v88, %v388
  %v390 = vpop.f32.mrf.mxu0
  %v391 = vadd.f32 %v92, %v390
  %v392 = vpop.f32.mrf.mxu0
  %v393 = vadd.f32 %v88, %v392
  %v394 = vpop.f32.mrf.mxu0
  %v395 = vadd.f32 %v92, %v394
  %396 = vmatprep.mubr.bf16.mxu0 0
  %397 = vmatmul.mubr.bf16.gmra.mxu0 %v114
  %v398 = vpop.f32.mrf.mxu0
  %v399 = vadd.f32 %v88, %v398
  %v400 = vpop.f32.mrf.mxu0
  %v401 = vadd.f32 %v92, %v400
  %v402 = vpop.f32.mrf.mxu0
  %v403 = vadd.f32 %v88, %v402
  %v404 = vpop.f32.mrf.mxu0
  %v405 = vadd.f32 %v92, %v404
  %406 = vmatprep.mubr.bf16.mxu0 0
  %407 = vmatmul.mubr.bf16.gmra.mxu0 %v115
  %v408 = vpop.f32.mrf.mxu0
  %v409 = vadd.f32 %v88, %v408
  %v410 = vpop.f32.mrf.mxu0
  %v411 = vadd.f32 %v92, %v410
  %v412 = vpop.f32.mrf.mxu0
  %v413 = vadd.f32 %v88, %v412
  %v414 = vpop.f32.mrf.mxu0
  %v415 = vadd.f32 %v92, %v414
  %416 = vmatprep.mubr.bf16.mxu0 0
  %417 = vmatmul.mubr.bf16.gmra.mxu0 %v116
  %v418 = vpop.f32.mrf.mxu0
  %v419 = vadd.f32 %v88, %v418
  %v420 = vpop.f32.mrf.mxu0
  %v421 = vadd.f32 %v92, %v420
  %v422 = vpop.f32.mrf.mxu0
  %v423 = vadd.f32 %v88, %v422
  %v424 = vpop.f32.mrf.mxu0
  %v425 = vadd.f32 %v92, %v424
  %426 = vdwg.mxu0
  %427 = vst [vmem:[#allocation2] sm:$0xff] %v316
  %428 = vst [vmem:[#allocation2 + $0x8] sm:$0xff] %v318
  %429 = vst [vmem:[#allocation2 + $0x10] sm:$0xff] %v389
  %430 = vst [vmem:[#allocation2 + $0x18] sm:$0xff] %v391
  %431 = vst [vmem:[#allocation2 + $0x20] sm:$0xff] %v320
  %432 = vst [vmem:[#allocation2 + $0x28] sm:$0xff] %v322
  %433 = vst [vmem:[#allocation2 + $0x30] sm:$0xff] %v393
  %434 = vst [vmem:[#allocation2 + $0x38] sm:$0xff] %v395
  %435 = vst [vmem:[#allocation2 + $0x40] sm:$0xff] %v326
  %436 = vst [vmem:[#allocation2 + $0x48] sm:$0xff] %v328
  %437 = vst [vmem:[#allocation2 + $0x50] sm:$0xff] %v399
  %438 = vst [vmem:[#allocation2 + $0x58] sm:$0xff] %v401
  %439 = vst [vmem:[#allocation2 + $0x60] sm:$0xff] %v330
  %440 = vst [vmem:[#allocation2 + $0x68] sm:$0xff] %v332
  %441 = vst [vmem:[#allocation2 + $0x70] sm:$0xff] %v403
  %442 = vst [vmem:[#allocation2 + $0x78] sm:$0xff] %v405
  %443 = vst [vmem:[#allocation2 + $0x80] sm:$0xff] %v336
  %444 = vst [vmem:[#allocation2 + $0x88] sm:$0xff] %v338
  %445 = vst [vmem:[#allocation2 + $0x90] sm:$0xff] %v409
  %446 = vst [vmem:[#allocation2 + $0x98] sm:$0xff] %v411
  %447 = vst [vmem:[#allocation2 + $0xa0] sm:$0xff] %v340
  %448 = vst [vmem:[#allocation2 + $0xa8] sm:$0xff] %v342
  %449 = vst [vmem:[#allocation2 + $0xb0] sm:$0xff] %v413
  %450 = vst [vmem:[#allocation2 + $0xb8] sm:$0xff] %v415
  %451 = vst [vmem:[#allocation2 + $0xc0] sm:$0xff] %v346
  %452 = vst [vmem:[#allocation2 + $0xc8] sm:$0xff] %v348
  %453 = vst [vmem:[#allocation2 + $0xd0] sm:$0xff] %v419
  %454 = vst [vmem:[#allocation2 + $0xd8] sm:$0xff] %v421
  %455 = vst [vmem:[#allocation2 + $0xe0] sm:$0xff] %v350
  %456 = vst [vmem:[#allocation2 + $0xe8] sm:$0xff] %v352
  %457 = vst [vmem:[#allocation2 + $0xf0] sm:$0xff] %v423
  %458 = vst [vmem:[#allocation2 + $0xf8] sm:$0xff] %v425
  %v459 = vld [vmem:[#allocation3] sm:$0xff]
  %v460 = vld [vmem:[#allocation4] sm:$0xff]
  %s461 = smul.u32 0, 4
  %s462 = smul.addr %s461, 8
  %s463 = scalar_lea.vmem [#allocation2], %s462
  %v464 = vld [vmem:[%s463] sm:$0xff]
  %v465 = vld [vmem:[%s463 + $0x8] sm:$0xff]
  %v466 = vld [vmem:[%s463 + $0x10] sm:$0xff]
  %v467 = vld [vmem:[%s463 + $0x18] sm:$0xff]
  %v468 = vpack.c.bf16 %v459, %v459
  %v469 = vld [vmem:[%s3] sm:$0xff]
  %v470 = vld [vmem:[%s3 + $0x8] sm:$0xff]
  %v471 = vld [vmem:[%s3 + $0x10] sm:$0xff]
  %v472 = vld [vmem:[%s3 + $0x18] sm:$0xff]
  %v473 = vld [vmem:[%s3 + $0x20] sm:$0xff]
  %v474 = vld [vmem:[%s3 + $0x28] sm:$0xff]
  %v475 = vld [vmem:[%s3 + $0x30] sm:$0xff]
  %v476 = vld [vmem:[%s3 + $0x38] sm:$0xff]
  %v477 = vld [vmem:[%s3 + $0x40] sm:$0xff]
  %v478 = vld [vmem:[%s3 + $0x48] sm:$0xff]
  %v479 = vld [vmem:[%s3 + $0x50] sm:$0xff]
  %v480 = vld [vmem:[%s3 + $0x58] sm:$0xff]
  %v481 = vld [vmem:[%s3 + $0x60] sm:$0xff]
  %v482 = vld [vmem:[%s3 + $0x68] sm:$0xff]
  %v483 = vld [vmem:[%s3 + $0x70] sm:$0xff]
  %v484 = vld [vmem:[%s3 + $0x78] sm:$0xff]
  %v485 = vld [vmem:[%s3 + $0x80] sm:$0xff]
  %v486 = vld [vmem:[%s3 + $0x88] sm:$0xff]
  %v487 = vld [vmem:[%s3 + $0x90] sm:$0xff]
  %v488 = vld [vmem:[%s3 + $0x98] sm:$0xff]
  %v489 = vld [vmem:[%s3 + $0xa0] sm:$0xff]
  %v490 = vld [vmem:[%s3 + $0xa8] sm:$0xff]
  %v491 = vld [vmem:[%s3 + $0xb0] sm:$0xff]
  %v492 = vld [vmem:[%s3 + $0xb8] sm:$0xff]
  %v493 = vld [vmem:[%s3 + $0xc0] sm:$0xff]
  %v494 = vld [vmem:[%s3 + $0xc8] sm:$0xff]
  %v495 = vld [vmem:[%s3 + $0xd0] sm:$0xff]
  %v496 = vld [vmem:[%s3 + $0xd8] sm:$0xff]
  %v497 = vld [vmem:[%s3 + $0xe0] sm:$0xff]
  %v498 = vld [vmem:[%s3 + $0xe8] sm:$0xff]
  %v499 = vld [vmem:[%s3 + $0xf0] sm:$0xff]
  %v500 = vld [vmem:[%s3 + $0xf8] sm:$0xff]
  %v533 = vunpack.c.l.b16 %v469
  %v534 = vunpack.c.h.b16 %v469
  %v535 = vunpack.c.l.b16 %v470
  %v536 = vunpack.c.h.b16 %v470
  %v537 = vunpack.c.l.b16 %v471
  %v538 = vunpack.c.h.b16 %v471
  %v539 = vunpack.c.l.b16 %v472
  %v540 = vunpack.c.h.b16 %v472
  %v541 = vunpack.c.l.b16 %v473
  %v542 = vunpack.c.h.b16 %v473
  %v543 = vunpack.c.l.b16 %v474
  %v544 = vunpack.c.h.b16 %v474
  %v545 = vunpack.c.l.b16 %v475
  %v546 = vunpack.c.h.b16 %v475
  %v547 = vunpack.c.l.b16 %v476
  %v548 = vunpack.c.h.b16 %v476
  %v549 = vunpack.c.l.b16 %v477
  %v550 = vunpack.c.h.b16 %v477
  %v551 = vunpack.c.l.b16 %v478
  %v552 = vunpack.c.h.b16 %v478
  %v553 = vunpack.c.l.b16 %v479
  %v554 = vunpack.c.h.b16 %v479
  %v555 = vunpack.c.l.b16 %v480
  %v556 = vunpack.c.h.b16 %v480
  %v557 = vunpack.c.l.b16 %v481
  %v558 = vunpack.c.h.b16 %v481
  %v559 = vunpack.c.l.b16 %v482
  %v560 = vunpack.c.h.b16 %v482
  %v561 = vunpack.c.l.b16 %v483
  %v562 = vunpack.c.h.b16 %v483
  %v563 = vunpack.c.l.b16 %v484
  %v564 = vunpack.c.h.b16 %v484
  %v565 = vunpack.c.l.b16 %v485
  %v566 = vunpack.c.h.b16 %v485
  %v567 = vunpack.c.l.b16 %v486
  %v568 = vunpack.c.h.b16 %v486
  %v569 = vunpack.c.l.b16 %v487
  %v570 = vunpack.c.h.b16 %v487
  %v571 = vunpack.c.l.b16 %v488
  %v572 = vunpack.c.h.b16 %v488
  %v573 = vunpack.c.l.b16 %v489
  %v574 = vunpack.c.h.b16 %v489
  %v575 = vunpack.c.l.b16 %v490
  %v576 = vunpack.c.h.b16 %v490
  %v577 = vunpack.c.l.b16 %v491
  %v578 = vunpack.c.h.b16 %v491
  %v579 = vunpack.c.l.b16 %v492
  %v580 = vunpack.c.h.b16 %v492
  %v581 = vunpack.c.l.b16 %v493
  %v582 = vunpack.c.h.b16 %v493
  %v583 = vunpack.c.l.b16 %v494
  %v584 = vunpack.c.h.b16 %v494
  %v585 = vunpack.c.l.b16 %v495
  %v586 = vunpack.c.h.b16 %v495
  %v587 = vunpack.c.l.b16 %v496
  %v588 = vunpack.c.h.b16 %v496
  %v589 = vunpack.c.l.b16 %v497
  %v590 = vunpack.c.h.b16 %v497
  %v591 = vunpack.c.l.b16 %v498
  %v592 = vunpack.c.h.b16 %v498
  %v593 = vunpack.c.l.b16 %v499
  %v594 = vunpack.c.h.b16 %v499
  %v595 = vunpack.c.l.b16 %v500
  %v596 = vunpack.c.h.b16 %v500
  %v597 = vpack.c.b16 %v537, %v533
  %v598 = vpack.c.b16 %v538, %v534
  %v599 = vpack.c.b16 %v539, %v535
  %v600 = vpack.c.b16 %v540, %v536
  %v601 = vpack.c.b16 %v545, %v541
  %v602 = vpack.c.b16 %v546, %v542
  %v603 = vpack.c.b16 %v547, %v543
  %v604 = vpack.c.b16 %v548, %v544
  %v605 = vpack.c.b16 %v553, %v549
  %v606 = vpack.c.b16 %v554, %v550
  %v607 = vpack.c.b16 %v555, %v551
  %v608 = vpack.c.b16 %v556, %v552
  %v609 = vpack.c.b16 %v561, %v557
  %v610 = vpack.c.b16 %v562, %v558
  %v611 = vpack.c.b16 %v563, %v559
  %v612 = vpack.c.b16 %v564, %v560
  %v613 = vpack.c.b16 %v569, %v565
  %v614 = vpack.c.b16 %v570, %v566
  %v615 = vpack.c.b16 %v571, %v567
  %v616 = vpack.c.b16 %v572, %v568
  %v617 = vpack.c.b16 %v577, %v573
  %v618 = vpack.c.b16 %v578, %v574
  %v619 = vpack.c.b16 %v579, %v575
  %v620 = vpack.c.b16 %v580, %v576
  %v621 = vpack.c.b16 %v585, %v581
  %v622 = vpack.c.b16 %v586, %v582
  %v623 = vpack.c.b16 %v587, %v583
  %v624 = vpack.c.b16 %v588, %v584
  %v625 = vpack.c.b16 %v593, %v589
  %v626 = vpack.c.b16 %v594, %v590
  %v627 = vpack.c.b16 %v595, %v591
  %v628 = vpack.c.b16 %v596, %v592
  %661 = vmatprep.subr.bf16.mxu0 %v626
  %662 = vmatpush1.bf16.msra.mxu0 %v625
  %663 = vmatprep.subr.bf16.mxu0 %v622
  %664 = vmatpush1.bf16.msra.mxu0 %v621
  %665 = vmatprep.subr.bf16.mxu0 %v618
  %666 = vmatpush1.bf16.msra.mxu0 %v617
  %667 = vmatprep.subr.bf16.mxu0 %v614
  %668 = vmatpush1.bf16.msra.mxu0 %v613
  %669 = vmatprep.subr.bf16.mxu0 %v610
  %670 = vmatpush1.bf16.msra.mxu0 %v609
  %671 = vmatprep.subr.bf16.mxu0 %v606
  %672 = vmatpush1.bf16.msra.mxu0 %v605
  %673 = vmatprep.subr.bf16.mxu0 %v602
  %674 = vmatpush1.bf16.msra.mxu0 %v601
  %675 = vmatprep.subr.bf16.mxu0 %v598
  %676 = vmatpush1.bf16.msra.mxu0 %v597
  %677 = vmatprep.subr.bf16.mxu0 0
  %678 = vmatpush2.bf16.msra.mxu0 0
  %679 = vmatprep.subr.bf16.mxu0 0
  %680 = vmatpush2.bf16.msra.mxu0 0
  %681 = vmatprep.subr.bf16.mxu0 0
  %682 = vmatpush2.bf16.msra.mxu0 0
  %683 = vmatprep.subr.bf16.mxu0 0
  %684 = vmatpush2.bf16.msra.mxu0 0
  %685 = vmatprep.subr.bf16.mxu0 0
  %686 = vmatpush2.bf16.msra.mxu0 0
  %687 = vmatprep.subr.bf16.mxu0 0
  %688 = vmatpush2.bf16.msra.mxu0 0
  %689 = vmatprep.subr.bf16.mxu0 0
  %690 = vmatpush2.bf16.msra.mxu0 0
  %691 = vmatprep.subr.bf16.mxu0 0
  %692 = vmatpush2.bf16.msra.mxu0 0
  %693 = vmatprep.mubr.bf16.mxu0 0
  %694 = vmatmul.mubr.bf16.gmra.mxu0 %v468
  %v695 = vpop.f32.mrf.mxu0
  %v696 = vadd.f32 0.0, %v695
  %v697 = vpop.f32.mrf.mxu0
  %v698 = vadd.f32 0.0, %v697
  %v699 = vpop.f32.mrf.mxu0
  %v700 = vpop.f32.mrf.mxu0
  %701 = vdwg.mxu0
  %702 = vmatprep.subr.bf16.mxu0 %v628
  %703 = vmatpush1.bf16.msra.mxu0 %v627
  %704 = vmatprep.subr.bf16.mxu0 %v624
  %705 = vmatpush1.bf16.msra.mxu0 %v623
  %706 = vmatprep.subr.bf16.mxu0 %v620
  %707 = vmatpush1.bf16.msra.mxu0 %v619
  %708 = vmatprep.subr.bf16.mxu0 %v616
  %709 = vmatpush1.bf16.msra.mxu0 %v615
  %710 = vmatprep.subr.bf16.mxu0 %v612
  %711 = vmatpush1.bf16.msra.mxu0 %v611
  %712 = vmatprep.subr.bf16.mxu0 %v608
  %713 = vmatpush1.bf16.msra.mxu0 %v607
  %714 = vmatprep.subr.bf16.mxu0 %v604
  %715 = vmatpush1.bf16.msra.mxu0 %v603
  %716 = vmatprep.subr.bf16.mxu0 %v600
  %717 = vmatpush1.bf16.msra.mxu0 %v599
  %718 = vmatprep.subr.bf16.mxu0 0
  %719 = vmatpush2.bf16.msra.mxu0 0
  %720 = vmatprep.subr.bf16.mxu0 0
  %721 = vmatpush2.bf16.msra.mxu0 0
  %722 = vmatprep.subr.bf16.mxu0 0
  %723 = vmatpush2.bf16.msra.mxu0 0
  %724 = vmatprep.subr.bf16.mxu0 0
  %725 = vmatpush2.bf16.msra.mxu0 0
  %726 = vmatprep.subr.bf16.mxu0 0
  %727 = vmatpush2.bf16.msra.mxu0 0
  %728 = vmatprep.subr.bf16.mxu0 0
  %729 = vmatpush2.bf16.msra.mxu0 0
  %730 = vmatprep.subr.bf16.mxu0 0
  %731 = vmatpush2.bf16.msra.mxu0 0
  %732 = vmatprep.subr.bf16.mxu0 0
  %733 = vmatpush2.bf16.msra.mxu0 0
  %734 = vmatprep.mubr.bf16.mxu0 0
  %735 = vmatmul.mubr.bf16.gmra.mxu0 %v468
  %v736 = vpop.f32.mrf.mxu0
  %v737 = vadd.f32 0.0, %v736
  %v738 = vpop.f32.mrf.mxu0
  %v739 = vadd.f32 0.0, %v738
  %v740 = vpop.f32.mrf.mxu0
  %v741 = vpop.f32.mrf.mxu0
  %742 = vdwg.mxu0
  %v743 = vadd.f32 %v464, %v696
  %v744 = vadd.f32 %v465, %v698
  %v745 = vadd.f32 %v466, %v737
  %v746 = vadd.f32 %v467, %v739
  %v747 = vmul.f32 %v743, 0.5
  %v748 = vtanh.pop %v747
  %v749 = vadd.f32 %v748, 1.0
  %v750 = vmul.f32 %v749, 0.5
  %v751 = vmul.f32 %v744, 0.5
  %v752 = vtanh.pop %v751
  %v753 = vadd.f32 %v752, 1.0
  %v754 = vmul.f32 %v753, 0.5
  %v755 = vtanh.pop %v745
  %v756 = vmul.f32 %v746, 0.5
  %v757 = vtanh.pop %v756
  %v758 = vadd.f32 %v757, 1.0
  %v759 = vmul.f32 %v758, 0.5
  %v760 = vmul.f32 %v754, %v460
  %v761 = vmul.f32 %v750, %v755
  %v762 = vadd.f32 %v760, %v761
  %v763 = vtanh.pop %v762
  %v764 = vmul.f32 %v759, %v763
  %v765 = vpack.c.bf16 %v764, %v764
  %766 = vst [vmem:[%s6] sm:$0xf] %v765
  %s767 = smul.u32 1, 4
  %s768 = smul.addr %s767, 8
  %s769 = scalar_lea.vmem [#allocation2], %s768
  %v770 = vld [vmem:[%s769] sm:$0xff]
  %v771 = vld [vmem:[%s769 + $0x8] sm:$0xff]
  %v772 = vld [vmem:[%s769 + $0x10] sm:$0xff]
  %v773 = vld [vmem:[%s769 + $0x18] sm:$0xff]
  %v774 = vld [vmem:[%s3] sm:$0xff]
  %v775 = vld [vmem:[%s3 + $0x8] sm:$0xff]
  %v776 = vld [vmem:[%s3 + $0x10] sm:$0xff]
  %v777 = vld [vmem:[%s3 + $0x18] sm:$0xff]
  %v778 = vld [vmem:[%s3 + $0x20] sm:$0xff]
  %v779 = vld [vmem:[%s3 + $0x28] sm:$0xff]
  %v780 = vld [vmem:[%s3 + $0x30] sm:$0xff]
  %v781 = vld [vmem:[%s3 + $0x38] sm:$0xff]
  %v782 = vld [vmem:[%s3 + $0x40] sm:$0xff]
  %v783 = vld [vmem:[%s3 + $0x48] sm:$0xff]
  %v784 = vld [vmem:[%s3 + $0x50] sm:$0xff]
  %v785 = vld [vmem:[%s3 + $0x58] sm:$0xff]
  %v786 = vld [vmem:[%s3 + $0x60] sm:$0xff]
  %v787 = vld [vmem:[%s3 + $0x68] sm:$0xff]
  %v788 = vld [vmem:[%s3 + $0x70] sm:$0xff]
  %v789 = vld [vmem:[%s3 + $0x78] sm:$0xff]
  %v790 = vld [vmem:[%s3 + $0x80] sm:$0xff]
  %v791 = vld [vmem:[%s3 + $0x88] sm:$0xff]
  %v792 = vld [vmem:[%s3 + $0x90] sm:$0xff]
  %v793 = vld [vmem:[%s3 + $0x98] sm:$0xff]
  %v794 = vld [vmem:[%s3 + $0xa0] sm:$0xff]
  %v795 = vld [vmem:[%s3 + $0xa8] sm:$0xff]
  %v796 = vld [vmem:[%s3 + $0xb0] sm:$0xff]
  %v797 = vld [vmem:[%s3 + $0xb8] sm:$0xff]
  %v798 = vld [vmem:[%s3 + $0xc0] sm:$0xff]
  %v799 = vld [vmem:[%s3 + $0xc8] sm:$0xff]
  %v800 = vld [vmem:[%s3 + $0xd0] sm:$0xff]
  %v801 = vld [vmem:[%s3 + $0xd8] sm:$0xff]
  %v802 = vld [vmem:[%s3 + $0xe0] sm:$0xff]
  %v803 = vld [vmem:[%s3 + $0xe8] sm:$0xff]
  %v804 = vld [vmem:[%s3 + $0xf0] sm:$0xff]
  %v805 = vld [vmem:[%s3 + $0xf8] sm:$0xff]
  %v838 = vunpack.c.l.b16 %v774
  %v839 = vunpack.c.h.b16 %v774
  %v840 = vunpack.c.l.b16 %v775
  %v841 = vunpack.c.h.b16 %v775
  %v842 = vunpack.c.l.b16 %v776
  %v843 = vunpack.c.h.b16 %v776
  %v844 = vunpack.c.l.b16 %v777
  %v845 = vunpack.c.h.b16 %v777
  %v846 = vunpack.c.l.b16 %v778
  %v847 = vunpack.c.h.b16 %v778
  %v848 = vunpack.c.l.b16 %v779
  %v849 = vunpack.c.h.b16 %v779
  %v850 = vunpack.c.l.b16 %v780
  %v851 = vunpack.c.h.b16 %v780
  %v852 = vunpack.c.l.b16 %v781
  %v853 = vunpack.c.h.b16 %v781
  %v854 = vunpack.c.l.b16 %v782
  %v855 = vunpack.c.h.b16 %v782
  %v856 = vunpack.c.l.b16 %v783
  %v857 = vunpack.c.h.b16 %v783
  %v858 = vunpack.c.l.b16 %v784
  %v859 = vunpack.c.h.b16 %v784
  %v860 = vunpack.c.l.b16 %v785
  %v861 = vunpack.c.h.b16 %v785
  %v862 = vunpack.c.l.b16 %v786
  %v863 = vunpack.c.h.b16 %v786
  %v864 = vunpack.c.l.b16 %v787
  %v865 = vunpack.c.h.b16 %v787
  %v866 = vunpack.c.l.b16 %v788
  %v867 = vunpack.c.h.b16 %v788
  %v868 = vunpack.c.l.b16 %v789
  %v869 = vunpack.c.h.b16 %v789
  %v870 = vunpack.c.l.b16 %v790
  %v871 = vunpack.c.h.b16 %v790
  %v872 = vunpack.c.l.b16 %v791
  %v873 = vunpack.c.h.b16 %v791
  %v874 = vunpack.c.l.b16 %v792
  %v875 = vunpack.c.h.b16 %v792
  %v876 = vunpack.c.l.b16 %v793
  %v877 = vunpack.c.h.b16 %v793
  %v878 = vunpack.c.l.b16 %v794
  %v879 = vunpack.c.h.b16 %v794
  %v880 = vunpack.c.l.b16 %v795
  %v881 = vunpack.c.h.b16 %v795
  %v882 = vunpack.c.l.b16 %v796
  %v883 = vunpack.c.h.b16 %v796
  %v884 = vunpack.c.l.b16 %v797
  %v885 = vunpack.c.h.b16 %v797
  %v886 = vunpack.c.l.b16 %v798
  %v887 = vunpack.c.h.b16 %v798
  %v888 = vunpack.c.l.b16 %v799
  %v889 = vunpack.c.h.b16 %v799
  %v890 = vunpack.c.l.b16 %v800
  %v891 = vunpack.c.h.b16 %v800
  %v892 = vunpack.c.l.b16 %v801
  %v893 = vunpack.c.h.b16 %v801
  %v894 = vunpack.c.l.b16 %v802
  %v895 = vunpack.c.h.b16 %v802
  %v896 = vunpack.c.l.b16 %v803
  %v897 = vunpack.c.h.b16 %v803
  %v898 = vunpack.c.l.b16 %v804
  %v899 = vunpack.c.h.b16 %v804
  %v900 = vunpack.c.l.b16 %v805
  %v901 = vunpack.c.h.b16 %v805
  %v902 = vpack.c.b16 %v842, %v838
  %v903 = vpack.c.b16 %v843, %v839
  %v904 = vpack.c.b16 %v844, %v840
  %v905 = vpack.c.b16 %v845, %v841
  %v906 = vpack.c.b16 %v850, %v846
  %v907 = vpack.c.b16 %v851, %v847
  %v908 = vpack.c.b16 %v852, %v848
  %v909 = vpack.c.b16 %v853, %v849
  %v910 = vpack.c.b16 %v858, %v854
  %v911 = vpack.c.b16 %v859, %v855
  %v912 = vpack.c.b16 %v860, %v856
  %v913 = vpack.c.b16 %v861, %v857
  %v914 = vpack.c.b16 %v866, %v862
  %v915 = vpack.c.b16 %v867, %v863
  %v916 = vpack.c.b16 %v868, %v864
  %v917 = vpack.c.b16 %v869, %v865
  %v918 = vpack.c.b16 %v874, %v870
  %v919 = vpack.c.b16 %v875, %v871
  %v920 = vpack.c.b16 %v876, %v872
  %v921 = vpack.c.b16 %v877, %v873
  %v922 = vpack.c.b16 %v882, %v878
  %v923 = vpack.c.b16 %v883, %v879
  %v924 = vpack.c.b16 %v884, %v880
  %v925 = vpack.c.b16 %v885, %v881
  %v926 = vpack.c.b16 %v890, %v886
  %v927 = vpack.c.b16 %v891, %v887
  %v928 = vpack.c.b16 %v892, %v888
  %v929 = vpack.c.b16 %v893, %v889
  %v930 = vpack.c.b16 %v898, %v894
  %v931 = vpack.c.b16 %v899, %v895
  %v932 = vpack.c.b16 %v900, %v896
  %v933 = vpack.c.b16 %v901, %v897
  %966 = vmatprep.subr.bf16.mxu0 %v931
  %967 = vmatpush1.bf16.msra.mxu0 %v930
  %968 = vmatprep.subr.bf16.mxu0 %v927
  %969 = vmatpush1.bf16.msra.mxu0 %v926
  %970 = vmatprep.subr.bf16.mxu0 %v923
  %971 = vmatpush1.bf16.msra.mxu0 %v922
  %972 = vmatprep.subr.bf16.mxu0 %v919
  %973 = vmatpush1.bf16.msra.mxu0 %v918
  %974 = vmatprep.subr.bf16.mxu0 %v915
  %975 = vmatpush1.bf16.msra.mxu0 %v914
  %976 = vmatprep.subr.bf16.mxu0 %v911
  %977 = vmatpush1.bf16.msra.mxu0 %v910
  %978 = vmatprep.subr.bf16.mxu0 %v907
  %979 = vmatpush1.bf16.msra.mxu0 %v906
  %980 = vmatprep.subr.bf16.mxu0 %v903
  %981 = vmatpush1.bf16.msra.mxu0 %v902
  %982 = vmatprep.subr.bf16.mxu0 0
  %983 = vmatpush2.bf16.msra.mxu0 0
  %984 = vmatprep.subr.bf16.mxu0 0
  %985 = vmatpush2.bf16.msra.mxu0 0
  %986 = vmatprep.subr.bf16.mxu0 0
  %987 = vmatpush2.bf16.msra.mxu0 0
  %988 = vmatprep.subr.bf16.mxu0 0
  %989 = vmatpush2.bf16.msra.mxu0 0
  %990 = vmatprep.subr.bf16.mxu0 0
  %991 = vmatpush2.bf16.msra.mxu0 0
  %992 = vmatprep.subr.bf16.mxu0 0
  %993 = vmatpush2.bf16.msra.mxu0 0
  %994 = vmatprep.subr.bf16.mxu0 0
  %995 = vmatpush2.bf16.msra.mxu0 0
  %996 = vmatprep.subr.bf16.mxu0 0
  %997 = vmatpush2.bf16.msra.mxu0 0
  %998 = vmatprep.mubr.bf16.mxu0 0
  %999 = vmatmul.mubr.bf16.gmra.mxu0 %v765
  %v1000 = vpop.f32.mrf.mxu0
  %v1001 = vadd.f32 0.0, %v1000
  %v1002 = vpop.f32.mrf.mxu0
  %v1003 = vadd.f32 0.0, %v1002
  %v1004 = vpop.f32.mrf.mxu0
  %v1005 = vpop.f32.mrf.mxu0
  %1006 = vdwg.mxu0
  %1007 = vmatprep.subr.bf16.mxu0 %v933
  %1008 = vmatpush1.bf16.msra.mxu0 %v932
  %1009 = vmatprep.subr.bf16.mxu0 %v929
  %1010 = vmatpush1.bf16.msra.mxu0 %v928
  %1011 = vmatprep.subr.bf16.mxu0 %v925
  %1012 = vmatpush1.bf16.msra.mxu0 %v924
  %1013 = vmatprep.subr.bf16.mxu0 %v921
  %1014 = vmatpush1.bf16.msra.mxu0 %v920
  %1015 = vmatprep.subr.bf16.mxu0 %v917
  %1016 = vmatpush1.bf16.msra.mxu0 %v916
  %1017 = vmatprep.subr.bf16.mxu0 %v913
  %1018 = vmatpush1.bf16.msra.mxu0 %v912
  %1019 = vmatprep.subr.bf16.mxu0 %v909
  %1020 = vmatpush1.bf16.msra.mxu0 %v908
  %1021 = vmatprep.subr.bf16.mxu0 %v905
  %1022 = vmatpush1.bf16.msra.mxu0 %v904
  %1023 = vmatprep.subr.bf16.mxu0 0
  %1024 = vmatpush2.bf16.msra.mxu0 0
  %1025 = vmatprep.subr.bf16.mxu0 0
  %1026 = vmatpush2.bf16.msra.mxu0 0
  %1027 = vmatprep.subr.bf16.mxu0 0
  %1028 = vmatpush2.bf16.msra.mxu0 0
  %1029 = vmatprep.subr.bf16.mxu0 0
  %1030 = vmatpush2.bf16.msra.mxu0 0
  %1031 = vmatprep.subr.bf16.mxu0 0
  %1032 = vmatpush2.bf16.msra.mxu0 0
  %1033 = vmatprep.subr.bf16.mxu0 0
  %1034 = vmatpush2.bf16.msra.mxu0 0
  %1035 = vmatprep.subr.bf16.mxu0 0
  %1036 = vmatpush2.bf16.msra.mxu0 0
  %1037 = vmatprep.subr.bf16.mxu0 0
  %1038 = vmatpush2.bf16.msra.mxu0 0
  %1039 = vmatprep.mubr.bf16.mxu0 0
  %1040 = vmatmul.mubr.bf16.gmra.mxu0 %v765
  %v1041 = vpop.f32.mrf.mxu0
  %v1042 = vadd.f32 0.0, %v1041
  %v1043 = vpop.f32.mrf.mxu0
  %v1044 = vadd.f32 0.0, %v1043
  %v1045 = vpop.f32.mrf.mxu0
  %v1046 = vpop.f32.mrf.mxu0
  %1047 = vdwg.mxu0
  %v1048 = vadd.f32 %v770, %v1001
  %v1049 = vadd.f32 %v771, %v1003
  %v1050 = vadd.f32 %v772, %v1042
  %v1051 = vadd.f32 %v773, %v1044
  %v1052 = vmul.f32 %v1048, 0.5
  %v1053 = vtanh.pop %v1052
  %v1054 = vadd.f32 %v1053, 1.0
  %v1055 = vmul.f32 %v1054, 0.5
  %v1056 = vmul.f32 %v1049, 0.5
  %v1057 = vtanh.pop %v1056
  %v1058 = vadd.f32 %v1057, 1.0
  %v1059 = vmul.f32 %v1058, 0.5
  %v1060 = vtanh.pop %v1050
  %v1061 = vmul.f32 %v1051, 0.5
  %v1062 = vtanh.pop %v1061
  %v1063 = vadd.f32 %v1062, 1.0
  %v1064 = vmul.f32 %v1063, 0.5
  %v1065 = vmul.f32 %v1059, %v762
  %v1066 = vmul.f32 %v1055, %v1060
  %v1067 = vadd.f32 %v1065, %v1066
  %v1068 = vtanh.pop %v1067
  %v1069 = vmul.f32 %v1064, %v1068
  %v1070 = vpack.c.bf16 %v1069, %v1069
  %s1071 = scalar_lea.vmem %s6, 4
  %1072 = vst [vmem:[%s1071] sm:$0xf] %v1070
  %s1073 = smul.u32 2, 4
  %s1074 = smul.addr %s1073, 8
  %s1075 = scalar_lea.vmem [#allocation2], %s1074
  %v1076 = vld [vmem:[%s1075] sm:$0xff]
  %v1077 = vld [vmem:[%s1075 + $0x8] sm:$0xff]
  %v1078 = vld [vmem:[%s1075 + $0x10] sm:$0xff]
  %v1079 = vld [vmem:[%s1075 + $0x18] sm:$0xff]
  %v1080 = vld [vmem:[%s3] sm:$0xff]
  %v1081 = vld [vmem:[%s3 + $0x8] sm:$0xff]
  %v1082 = vld [vmem:[%s3 + $0x10] sm:$0xff]
  %v1083 = vld [vmem:[%s3 + $0x18] sm:$0xff]
  %v1084 = vld [vmem:[%s3 + $0x20] sm:$0xff]
  %v1085 = vld [vmem:[%s3 + $0x28] sm:$0xff]
  %v1086 = vld [vmem:[%s3 + $0x30] sm:$0xff]
  %v1087 = vld [vmem:[%s3 + $0x38] sm:$0xff]
  %v1088 = vld [vmem:[%s3 + $0x40] sm:$0xff]
  %v1089 = vld [vmem:[%s3 + $0x48] sm:$0xff]
  %v1090 = vld [vmem:[%s3 + $0x50] sm:$0xff]
  %v1091 = vld [vmem:[%s3 + $0x58] sm:$0xff]
  %v1092 = vld [vmem:[%s3 + $0x60] sm:$0xff]
  %v1093 = vld [vmem:[%s3 + $0x68] sm:$0xff]
  %v1094 = vld [vmem:[%s3 + $0x70] sm:$0xff]
  %v1095 = vld [vmem:[%s3 + $0x78] sm:$0xff]
  %v1096 = vld [vmem:[%s3 + $0x80] sm:$0xff]
  %v1097 = vld [vmem:[%s3 + $0x88] sm:$0xff]
  %v1098 = vld [vmem:[%s3 + $0x90] sm:$0xff]
  %v1099 = vld [vmem:[%s3 + $0x98] sm:$0xff]
  %v1100 = vld [vmem:[%s3 + $0xa0] sm:$0xff]
  %v1101 = vld [vmem:[%s3 + $0xa8] sm:$0xff]
  %v1102 = vld [vmem:[%s3 + $0xb0] sm:$0xff]
  %v1103 = vld [vmem:[%s3 + $0xb8] sm:$0xff]
  %v1104 = vld [vmem:[%s3 + $0xc0] sm:$0xff]
  %v1105 = vld [vmem:[%s3 + $0xc8] sm:$0xff]
  %v1106 = vld [vmem:[%s3 + $0xd0] sm:$0xff]
  %v1107 = vld [vmem:[%s3 + $0xd8] sm:$0xff]
  %v1108 = vld [vmem:[%s3 + $0xe0] sm:$0xff]
  %v1109 = vld [vmem:[%s3 + $0xe8] sm:$0xff]
  %v1110 = vld [vmem:[%s3 + $0xf0] sm:$0xff]
  %v1111 = vld [vmem:[%s3 + $0xf8] sm:$0xff]
  %v1144 = vunpack.c.l.b16 %v1080
  %v1145 = vunpack.c.h.b16 %v1080
  %v1146 = vunpack.c.l.b16 %v1081
  %v1147 = vunpack.c.h.b16 %v1081
  %v1148 = vunpack.c.l.b16 %v1082
  %v1149 = vunpack.c.h.b16 %v1082
  %v1150 = vunpack.c.l.b16 %v1083
  %v1151 = vunpack.c.h.b16 %v1083
  %v1152 = vunpack.c.l.b16 %v1084
  %v1153 = vunpack.c.h.b16 %v1084
  %v1154 = vunpack.c.l.b16 %v1085
  %v1155 = vunpack.c.h.b16 %v1085
  %v1156 = vunpack.c.l.b16 %v1086
  %v1157 = vunpack.c.h.b16 %v1086
  %v1158 = vunpack.c.l.b16 %v1087
  %v1159 = vunpack.c.h.b16 %v1087
  %v1160 = vunpack.c.l.b16 %v1088
  %v1161 = vunpack.c.h.b16 %v1088
  %v1162 = vunpack.c.l.b16 %v1089
  %v1163 = vunpack.c.h.b16 %v1089
  %v1164 = vunpack.c.l.b16 %v1090
  %v1165 = vunpack.c.h.b16 %v1090
  %v1166 = vunpack.c.l.b16 %v1091
  %v1167 = vunpack.c.h.b16 %v1091
  %v1168 = vunpack.c.l.b16 %v1092
  %v1169 = vunpack.c.h.b16 %v1092
  %v1170 = vunpack.c.l.b16 %v1093
  %v1171 = vunpack.c.h.b16 %v1093
  %v1172 = vunpack.c.l.b16 %v1094
  %v1173 = vunpack.c.h.b16 %v1094
  %v1174 = vunpack.c.l.b16 %v1095
  %v1175 = vunpack.c.h.b16 %v1095
  %v1176 = vunpack.c.l.b16 %v1096
  %v1177 = vunpack.c.h.b16 %v1096
  %v1178 = vunpack.c.l.b16 %v1097
  %v1179 = vunpack.c.h.b16 %v1097
  %v1180 = vunpack.c.l.b16 %v1098
  %v1181 = vunpack.c.h.b16 %v1098
  %v1182 = vunpack.c.l.b16 %v1099
  %v1183 = vunpack.c.h.b16 %v1099
  %v1184 = vunpack.c.l.b16 %v1100
  %v1185 = vunpack.c.h.b16 %v1100
  %v1186 = vunpack.c.l.b16 %v1101
  %v1187 = vunpack.c.h.b16 %v1101
  %v1188 = vunpack.c.l.b16 %v1102
  %v1189 = vunpack.c.h.b16 %v1102
  %v1190 = vunpack.c.l.b16 %v1103
  %v1191 = vunpack.c.h.b16 %v1103
  %v1192 = vunpack.c.l.b16 %v1104
  %v1193 = vunpack.c.h.b16 %v1104
  %v1194 = vunpack.c.l.b16 %v1105
  %v1195 = vunpack.c.h.b16 %v1105
  %v1196 = vunpack.c.l.b16 %v1106
  %v1197 = vunpack.c.h.b16 %v1106
  %v1198 = vunpack.c.l.b16 %v1107
  %v1199 = vunpack.c.h.b16 %v1107
  %v1200 = vunpack.c.l.b16 %v1108
  %v1201 = vunpack.c.h.b16 %v1108
  %v1202 = vunpack.c.l.b16 %v1109
  %v1203 = vunpack.c.h.b16 %v1109
  %v1204 = vunpack.c.l.b16 %v1110
  %v1205 = vunpack.c.h.b16 %v1110
  %v1206 = vunpack.c.l.b16 %v1111
  %v1207 = vunpack.c.h.b16 %v1111
  %v1208 = vpack.c.b16 %v1148, %v1144
  %v1209 = vpack.c.b16 %v1149, %v1145
  %v1210 = vpack.c.b16 %v1150, %v1146
  %v1211 = vpack.c.b16 %v1151, %v1147
  %v1212 = vpack.c.b16 %v1156, %v1152
  %v1213 = vpack.c.b16 %v1157, %v1153
  %v1214 = vpack.c.b16 %v1158, %v1154
  %v1215 = vpack.c.b16 %v1159, %v1155
  %v1216 = vpack.c.b16 %v1164, %v1160
  %v1217 = vpack.c.b16 %v1165, %v1161
  %v1218 = vpack.c.b16 %v1166, %v1162
  %v1219 = vpack.c.b16 %v1167, %v1163
  %v1220 = vpack.c.b16 %v1172, %v1168
  %v1221 = vpack.c.b16 %v1173, %v1169
  %v1222 = vpack.c.b16 %v1174, %v1170
  %v1223 = vpack.c.b16 %v1175, %v1171
  %v1224 = vpack.c.b16 %v1180, %v1176
  %v1225 = vpack.c.b16 %v1181, %v1177
  %v1226 = vpack.c.b16 %v1182, %v1178
  %v1227 = vpack.c.b16 %v1183, %v1179
  %v1228 = vpack.c.b16 %v1188, %v1184
  %v1229 = vpack.c.b16 %v1189, %v1185
  %v1230 = vpack.c.b16 %v1190, %v1186
  %v1231 = vpack.c.b16 %v1191, %v1187
  %v1232 = vpack.c.b16 %v1196, %v1192
  %v1233 = vpack.c.b16 %v1197, %v1193
  %v1234 = vpack.c.b16 %v1198, %v1194
  %v1235 = vpack.c.b16 %v1199, %v1195
  %v1236 = vpack.c.b16 %v1204, %v1200
  %v1237 = vpack.c.b16 %v1205, %v1201
  %v1238 = vpack.c.b16 %v1206, %v1202
  %v1239 = vpack.c.b16 %v1207, %v1203
  %1272 = vmatprep.subr.bf16.mxu0 %v1237
  %1273 = vmatpush1.bf16.msra.mxu0 %v1236
  %1274 = vmatprep.subr.bf16.mxu0 %v1233
  %1275 = vmatpush1.bf16.msra.mxu0 %v1232
  %1276 = vmatprep.subr.bf16.mxu0 %v1229
  %1277 = vmatpush1.bf16.msra.mxu0 %v1228
  %1278 = vmatprep.subr.bf16.mxu0 %v1225
  %1279 = vmatpush1.bf16.msra.mxu0 %v1224
  %1280 = vmatprep.subr.bf16.mxu0 %v1221
  %1281 = vmatpush1.bf16.msra.mxu0 %v1220
  %1282 = vmatprep.subr.bf16.mxu0 %v1217
  %1283 = vmatpush1.bf16.msra.mxu0 %v1216
  %1284 = vmatprep.subr.bf16.mxu0 %v1213
  %1285 = vmatpush1.bf16.msra.mxu0 %v1212
  %1286 = vmatprep.subr.bf16.mxu0 %v1209
  %1287 = vmatpush1.bf16.msra.mxu0 %v1208
  %1288 = vmatprep.subr.bf16.mxu0 0
  %1289 = vmatpush2.bf16.msra.mxu0 0
  %1290 = vmatprep.subr.bf16.mxu0 0
  %1291 = vmatpush2.bf16.msra.mxu0 0
  %1292 = vmatprep.subr.bf16.mxu0 0
  %1293 = vmatpush2.bf16.msra.mxu0 0
  %1294 = vmatprep.subr.bf16.mxu0 0
  %1295 = vmatpush2.bf16.msra.mxu0 0
  %1296 = vmatprep.subr.bf16.mxu0 0
  %1297 = vmatpush2.bf16.msra.mxu0 0
  %1298 = vmatprep.subr.bf16.mxu0 0
  %1299 = vmatpush2.bf16.msra.mxu0 0
  %1300 = vmatprep.subr.bf16.mxu0 0
  %1301 = vmatpush2.bf16.msra.mxu0 0
  %1302 = vmatprep.subr.bf16.mxu0 0
  %1303 = vmatpush2.bf16.msra.mxu0 0
  %1304 = vmatprep.mubr.bf16.mxu0 0
  %1305 = vmatmul.mubr.bf16.gmra.mxu0 %v1070
  %v1306 = vpop.f32.mrf.mxu0
  %v1307 = vadd.f32 0.0, %v1306
  %v1308 = vpop.f32.mrf.mxu0
  %v1309 = vadd.f32 0.0, %v1308
  %v1310 = vpop.f32.mrf.mxu0
  %v1311 = vpop.f32.mrf.mxu0
  %1312 = vdwg.mxu0
  %1313 = vmatprep.subr.bf16.mxu0 %v1239
  %1314 = vmatpush1.bf16.msra.mxu0 %v1238
  %1315 = vmatprep.subr.bf16.mxu0 %v1235
  %1316 = vmatpush1.bf16.msra.mxu0 %v1234
  %1317 = vmatprep.subr.bf16.mxu0 %v1231
  %1318 = vmatpush1.bf16.msra.mxu0 %v1230
  %1319 = vmatprep.subr.bf16.mxu0 %v1227
  %1320 = vmatpush1.bf16.msra.mxu0 %v1226
  %1321 = vmatprep.subr.bf16.mxu0 %v1223
  %1322 = vmatpush1.bf16.msra.mxu0 %v1222
  %1323 = vmatprep.subr.bf16.mxu0 %v1219
  %1324 = vmatpush1.bf16.msra.mxu0 %v1218
  %1325 = vmatprep.subr.bf16.mxu0 %v1215
  %1326 = vmatpush1.bf16.msra.mxu0 %v1214
  %1327 = vmatprep.subr.bf16.mxu0 %v1211
  %1328 = vmatpush1.bf16.msra.mxu0 %v1210
  %1329 = vmatprep.subr.bf16.mxu0 0
  %1330 = vmatpush2.bf16.msra.mxu0 0
  %1331 = vmatprep.subr.bf16.mxu0 0
  %1332 = vmatpush2.bf16.msra.mxu0 0
  %1333 = vmatprep.subr.bf16.mxu0 0
  %1334 = vmatpush2.bf16.msra.mxu0 0
  %1335 = vmatprep.subr.bf16.mxu0 0
  %1336 = vmatpush2.bf16.msra.mxu0 0
  %1337 = vmatprep.subr.bf16.mxu0 0
  %1338 = vmatpush2.bf16.msra.mxu0 0
  %1339 = vmatprep.subr.bf16.mxu0 0
  %1340 = vmatpush2.bf16.msra.mxu0 0
  %1341 = vmatprep.subr.bf16.mxu0 0
  %1342 = vmatpush2.bf16.msra.mxu0 0
  %1343 = vmatprep.subr.bf16.mxu0 0
  %1344 = vmatpush2.bf16.msra.mxu0 0
  %1345 = vmatprep.mubr.bf16.mxu0 0
  %1346 = vmatmul.mubr.bf16.gmra.mxu0 %v1070
  %v1347 = vpop.f32.mrf.mxu0
  %v1348 = vadd.f32 0.0, %v1347
  %v1349 = vpop.f32.mrf.mxu0
  %v1350 = vadd.f32 0.0, %v1349
  %v1351 = vpop.f32.mrf.mxu0
  %v1352 = vpop.f32.mrf.mxu0
  %1353 = vdwg.mxu0
  %v1354 = vadd.f32 %v1076, %v1307
  %v1355 = vadd.f32 %v1077, %v1309
  %v1356 = vadd.f32 %v1078, %v1348
  %v1357 = vadd.f32 %v1079, %v1350
  %v1358 = vmul.f32 %v1354, 0.5
  %v1359 = vtanh.pop %v1358
  %v1360 = vadd.f32 %v1359, 1.0
  %v1361 = vmul.f32 %v1360, 0.5
  %v1362 = vmul.f32 %v1355, 0.5
  %v1363 = vtanh.pop %v1362
  %v1364 = vadd.f32 %v1363, 1.0
  %v1365 = vmul.f32 %v1364, 0.5
  %v1366 = vtanh.pop %v1356
  %v1367 = vmul.f32 %v1357, 0.5
  %v1368 = vtanh.pop %v1367
  %v1369 = vadd.f32 %v1368, 1.0
  %v1370 = vmul.f32 %v1369, 0.5
  %v1371 = vmul.f32 %v1365, %v1067
  %v1372 = vmul.f32 %v1361, %v1366
  %v1373 = vadd.f32 %v1371, %v1372
  %v1374 = vtanh.pop %v1373
  %v1375 = vmul.f32 %v1370, %v1374
  %v1376 = vpack.c.bf16 %v1375, %v1375
  %s1377 = scalar_lea.vmem %s6, 8
  %1378 = vst [vmem:[%s1377] sm:$0xf] %v1376
  %s1379 = smul.u32 3, 4
  %s1380 = smul.addr %s1379, 8
  %s1381 = scalar_lea.vmem [#allocation2], %s1380
  %v1382 = vld [vmem:[%s1381] sm:$0xff]
  %v1383 = vld [vmem:[%s1381 + $0x8] sm:$0xff]
  %v1384 = vld [vmem:[%s1381 + $0x10] sm:$0xff]
  %v1385 = vld [vmem:[%s1381 + $0x18] sm:$0xff]
  %v1386 = vld [vmem:[%s3] sm:$0xff]
  %v1387 = vld [vmem:[%s3 + $0x8] sm:$0xff]
  %v1388 = vld [vmem:[%s3 + $0x10] sm:$0xff]
  %v1389 = vld [vmem:[%s3 + $0x18] sm:$0xff]
  %v1390 = vld [vmem:[%s3 + $0x20] sm:$0xff]
  %v1391 = vld [vmem:[%s3 + $0x28] sm:$0xff]
  %v1392 = vld [vmem:[%s3 + $0x30] sm:$0xff]
  %v1393 = vld [vmem:[%s3 + $0x38] sm:$0xff]
  %v1394 = vld [vmem:[%s3 + $0x40] sm:$0xff]
  %v1395 = vld [vmem:[%s3 + $0x48] sm:$0xff]
  %v1396 = vld [vmem:[%s3 + $0x50] sm:$0xff]
  %v1397 = vld [vmem:[%s3 + $0x58] sm:$0xff]
  %v1398 = vld [vmem:[%s3 + $0x60] sm:$0xff]
  %v1399 = vld [vmem:[%s3 + $0x68] sm:$0xff]
  %v1400 = vld [vmem:[%s3 + $0x70] sm:$0xff]
  %v1401 = vld [vmem:[%s3 + $0x78] sm:$0xff]
  %v1402 = vld [vmem:[%s3 + $0x80] sm:$0xff]
  %v1403 = vld [vmem:[%s3 + $0x88] sm:$0xff]
  %v1404 = vld [vmem:[%s3 + $0x90] sm:$0xff]
  %v1405 = vld [vmem:[%s3 + $0x98] sm:$0xff]
  %v1406 = vld [vmem:[%s3 + $0xa0] sm:$0xff]
  %v1407 = vld [vmem:[%s3 + $0xa8] sm:$0xff]
  %v1408 = vld [vmem:[%s3 + $0xb0] sm:$0xff]
  %v1409 = vld [vmem:[%s3 + $0xb8] sm:$0xff]
  %v1410 = vld [vmem:[%s3 + $0xc0] sm:$0xff]
  %v1411 = vld [vmem:[%s3 + $0xc8] sm:$0xff]
  %v1412 = vld [vmem:[%s3 + $0xd0] sm:$0xff]
  %v1413 = vld [vmem:[%s3 + $0xd8] sm:$0xff]
  %v1414 = vld [vmem:[%s3 + $0xe0] sm:$0xff]
  %v1415 = vld [vmem:[%s3 + $0xe8] sm:$0xff]
  %v1416 = vld [vmem:[%s3 + $0xf0] sm:$0xff]
  %v1417 = vld [vmem:[%s3 + $0xf8] sm:$0xff]
  %v1450 = vunpack.c.l.b16 %v1386
  %v1451 = vunpack.c.h.b16 %v1386
  %v1452 = vunpack.c.l.b16 %v1387
  %v1453 = vunpack.c.h.b16 %v1387
  %v1454 = vunpack.c.l.b16 %v1388
  %v1455 = vunpack.c.h.b16 %v1388
  %v1456 = vunpack.c.l.b16 %v1389
  %v1457 = vunpack.c.h.b16 %v1389
  %v1458 = vunpack.c.l.b16 %v1390
  %v1459 = vunpack.c.h.b16 %v1390
  %v1460 = vunpack.c.l.b16 %v1391
  %v1461 = vunpack.c.h.b16 %v1391
  %v1462 = vunpack.c.l.b16 %v1392
  %v1463 = vunpack.c.h.b16 %v1392
  %v1464 = vunpack.c.l.b16 %v1393
  %v1465 = vunpack.c.h.b16 %v1393
  %v1466 = vunpack.c.l.b16 %v1394
  %v1467 = vunpack.c.h.b16 %v1394
  %v1468 = vunpack.c.l.b16 %v1395
  %v1469 = vunpack.c.h.b16 %v1395
  %v1470 = vunpack.c.l.b16 %v1396
  %v1471 = vunpack.c.h.b16 %v1396
  %v1472 = vunpack.c.l.b16 %v1397
  %v1473 = vunpack.c.h.b16 %v1397
  %v1474 = vunpack.c.l.b16 %v1398
  %v1475 = vunpack.c.h.b16 %v1398
  %v1476 = vunpack.c.l.b16 %v1399
  %v1477 = vunpack.c.h.b16 %v1399
  %v1478 = vunpack.c.l.b16 %v1400
  %v1479 = vunpack.c.h.b16 %v1400
  %v1480 = vunpack.c.l.b16 %v1401
  %v1481 = vunpack.c.h.b16 %v1401
  %v1482 = vunpack.c.l.b16 %v1402
  %v1483 = vunpack.c.h.b16 %v1402
  %v1484 = vunpack.c.l.b16 %v1403
  %v1485 = vunpack.c.h.b16 %v1403
  %v1486 = vunpack.c.l.b16 %v1404
  %v1487 = vunpack.c.h.b16 %v1404
  %v1488 = vunpack.c.l.b16 %v1405
  %v1489 = vunpack.c.h.b16 %v1405
  %v1490 = vunpack.c.l.b16 %v1406
  %v1491 = vunpack.c.h.b16 %v1406
  %v1492 = vunpack.c.l.b16 %v1407
  %v1493 = vunpack.c.h.b16 %v1407
  %v1494 = vunpack.c.l.b16 %v1408
  %v1495 = vunpack.c.h.b16 %v1408
  %v1496 = vunpack.c.l.b16 %v1409
  %v1497 = vunpack.c.h.b16 %v1409
  %v1498 = vunpack.c.l.b16 %v1410
  %v1499 = vunpack.c.h.b16 %v1410
  %v1500 = vunpack.c.l.b16 %v1411
  %v1501 = vunpack.c.h.b16 %v1411
  %v1502 = vunpack.c.l.b16 %v1412
  %v1503 = vunpack.c.h.b16 %v1412
  %v1504 = vunpack.c.l.b16 %v1413
  %v1505 = vunpack.c.h.b16 %v1413
  %v1506 = vunpack.c.l.b16 %v1414
  %v1507 = vunpack.c.h.b16 %v1414
  %v1508 = vunpack.c.l.b16 %v1415
  %v1509 = vunpack.c.h.b16 %v1415
  %v1510 = vunpack.c.l.b16 %v1416
  %v1511 = vunpack.c.h.b16 %v1416
  %v1512 = vunpack.c.l.b16 %v1417
  %v1513 = vunpack.c.h.b16 %v1417
  %v1514 = vpack.c.b16 %v1454, %v1450
  %v1515 = vpack.c.b16 %v1455, %v1451
  %v1516 = vpack.c.b16 %v1456, %v1452
  %v1517 = vpack.c.b16 %v1457, %v1453
  %v1518 = vpack.c.b16 %v1462, %v1458
  %v1519 = vpack.c.b16 %v1463, %v1459
  %v1520 = vpack.c.b16 %v1464, %v1460
  %v1521 = vpack.c.b16 %v1465, %v1461
  %v1522 = vpack.c.b16 %v1470, %v1466
  %v1523 = vpack.c.b16 %v1471, %v1467
  %v1524 = vpack.c.b16 %v1472, %v1468
  %v1525 = vpack.c.b16 %v1473, %v1469
  %v1526 = vpack.c.b16 %v1478, %v1474
  %v1527 = vpack.c.b16 %v1479, %v1475
  %v1528 = vpack.c.b16 %v1480, %v1476
  %v1529 = vpack.c.b16 %v1481, %v1477
  %v1530 = vpack.c.b16 %v1486, %v1482
  %v1531 = vpack.c.b16 %v1487, %v1483
  %v1532 = vpack.c.b16 %v1488, %v1484
  %v1533 = vpack.c.b16 %v1489, %v1485
  %v1534 = vpack.c.b16 %v1494, %v1490
  %v1535 = vpack.c.b16 %v1495, %v1491
  %v1536 = vpack.c.b16 %v1496, %v1492
  %v1537 = vpack.c.b16 %v1497, %v1493
  %v1538 = vpack.c.b16 %v1502, %v1498
  %v1539 = vpack.c.b16 %v1503, %v1499
  %v1540 = vpack.c.b16 %v1504, %v1500
  %v1541 = vpack.c.b16 %v1505, %v1501
  %v1542 = vpack.c.b16 %v1510, %v1506
  %v1543 = vpack.c.b16 %v1511, %v1507
  %v1544 = vpack.c.b16 %v1512, %v1508
  %v1545 = vpack.c.b16 %v1513, %v1509
  %1578 = vmatprep.subr.bf16.mxu0 %v1543
  %1579 = vmatpush1.bf16.msra.mxu0 %v1542
  %1580 = vmatprep.subr.bf16.mxu0 %v1539
  %1581 = vmatpush1.bf16.msra.mxu0 %v1538
  %1582 = vmatprep.subr.bf16.mxu0 %v1535
  %1583 = vmatpush1.bf16.msra.mxu0 %v1534
  %1584 = vmatprep.subr.bf16.mxu0 %v1531
  %1585 = vmatpush1.bf16.msra.mxu0 %v1530
  %1586 = vmatprep.subr.bf16.mxu0 %v1527
  %1587 = vmatpush1.bf16.msra.mxu0 %v1526
  %1588 = vmatprep.subr.bf16.mxu0 %v1523
  %1589 = vmatpush1.bf16.msra.mxu0 %v1522
  %1590 = vmatprep.subr.bf16.mxu0 %v1519
  %1591 = vmatpush1.bf16.msra.mxu0 %v1518
  %1592 = vmatprep.subr.bf16.mxu0 %v1515
  %1593 = vmatpush1.bf16.msra.mxu0 %v1514
  %1594 = vmatprep.subr.bf16.mxu0 0
  %1595 = vmatpush2.bf16.msra.mxu0 0
  %1596 = vmatprep.subr.bf16.mxu0 0
  %1597 = vmatpush2.bf16.msra.mxu0 0
  %1598 = vmatprep.subr.bf16.mxu0 0
  %1599 = vmatpush2.bf16.msra.mxu0 0
  %1600 = vmatprep.subr.bf16.mxu0 0
  %1601 = vmatpush2.bf16.msra.mxu0 0
  %1602 = vmatprep.subr.bf16.mxu0 0
  %1603 = vmatpush2.bf16.msra.mxu0 0
  %1604 = vmatprep.subr.bf16.mxu0 0
  %1605 = vmatpush2.bf16.msra.mxu0 0
  %1606 = vmatprep.subr.bf16.mxu0 0
  %1607 = vmatpush2.bf16.msra.mxu0 0
  %1608 = vmatprep.subr.bf16.mxu0 0
  %1609 = vmatpush2.bf16.msra.mxu0 0
  %1610 = vmatprep.mubr.bf16.mxu0 0
  %1611 = vmatmul.mubr.bf16.gmra.mxu0 %v1376
  %v1612 = vpop.f32.mrf.mxu0
  %v1613 = vadd.f32 0.0, %v1612
  %v1614 = vpop.f32.mrf.mxu0
  %v1615 = vadd.f32 0.0, %v1614
  %v1616 = vpop.f32.mrf.mxu0
  %v1617 = vpop.f32.mrf.mxu0
  %1618 = vdwg.mxu0
  %1619 = vmatprep.subr.bf16.mxu0 %v1545
  %1620 = vmatpush1.bf16.msra.mxu0 %v1544
  %1621 = vmatprep.subr.bf16.mxu0 %v1541
  %1622 = vmatpush1.bf16.msra.mxu0 %v1540
  %1623 = vmatprep.subr.bf16.mxu0 %v1537
  %1624 = vmatpush1.bf16.msra.mxu0 %v1536
  %1625 = vmatprep.subr.bf16.mxu0 %v1533
  %1626 = vmatpush1.bf16.msra.mxu0 %v1532
  %1627 = vmatprep.subr.bf16.mxu0 %v1529
  %1628 = vmatpush1.bf16.msra.mxu0 %v1528
  %1629 = vmatprep.subr.bf16.mxu0 %v1525
  %1630 = vmatpush1.bf16.msra.mxu0 %v1524
  %1631 = vmatprep.subr.bf16.mxu0 %v1521
  %1632 = vmatpush1.bf16.msra.mxu0 %v1520
  %1633 = vmatprep.subr.bf16.mxu0 %v1517
  %1634 = vmatpush1.bf16.msra.mxu0 %v1516
  %1635 = vmatprep.subr.bf16.mxu0 0
  %1636 = vmatpush2.bf16.msra.mxu0 0
  %1637 = vmatprep.subr.bf16.mxu0 0
  %1638 = vmatpush2.bf16.msra.mxu0 0
  %1639 = vmatprep.subr.bf16.mxu0 0
  %1640 = vmatpush2.bf16.msra.mxu0 0
  %1641 = vmatprep.subr.bf16.mxu0 0
  %1642 = vmatpush2.bf16.msra.mxu0 0
  %1643 = vmatprep.subr.bf16.mxu0 0
  %1644 = vmatpush2.bf16.msra.mxu0 0
  %1645 = vmatprep.subr.bf16.mxu0 0
  %1646 = vmatpush2.bf16.msra.mxu0 0
  %1647 = vmatprep.subr.bf16.mxu0 0
  %1648 = vmatpush2.bf16.msra.mxu0 0
  %1649 = vmatprep.subr.bf16.mxu0 0
  %1650 = vmatpush2.bf16.msra.mxu0 0
  %1651 = vmatprep.mubr.bf16.mxu0 0
  %1652 = vmatmul.mubr.bf16.gmra.mxu0 %v1376
  %v1653 = vpop.f32.mrf.mxu0
  %v1654 = vadd.f32 0.0, %v1653
  %v1655 = vpop.f32.mrf.mxu0
  %v1656 = vadd.f32 0.0, %v1655
  %v1657 = vpop.f32.mrf.mxu0
  %v1658 = vpop.f32.mrf.mxu0
  %1659 = vdwg.mxu0
  %v1660 = vadd.f32 %v1382, %v1613
  %v1661 = vadd.f32 %v1383, %v1615
  %v1662 = vadd.f32 %v1384, %v1654
  %v1663 = vadd.f32 %v1385, %v1656
  %v1664 = vmul.f32 %v1660, 0.5
  %v1665 = vtanh.pop %v1664
  %v1666 = vadd.f32 %v1665, 1.0
  %v1667 = vmul.f32 %v1666, 0.5
  %v1668 = vmul.f32 %v1661, 0.5
  %v1669 = vtanh.pop %v1668
  %v1670 = vadd.f32 %v1669, 1.0
  %v1671 = vmul.f32 %v1670, 0.5
  %v1672 = vtanh.pop %v1662
  %v1673 = vmul.f32 %v1663, 0.5
  %v1674 = vtanh.pop %v1673
  %v1675 = vadd.f32 %v1674, 1.0
  %v1676 = vmul.f32 %v1675, 0.5
  %v1677 = vmul.f32 %v1671, %v1373
  %v1678 = vmul.f32 %v1667, %v1672
  %v1679 = vadd.f32 %v1677, %v1678
  %v1680 = vtanh.pop %v1679
  %v1681 = vmul.f32 %v1676, %v1680
  %v1682 = vpack.c.bf16 %v1681, %v1681
  %s1683 = scalar_lea.vmem %s6, 12
  %1684 = vst [vmem:[%s1683] sm:$0xf] %v1682
  %s1685 = smul.u32 4, 4
  %s1686 = smul.addr %s1685, 8
  %s1687 = scalar_lea.vmem [#allocation2], %s1686
  %v1688 = vld [vmem:[%s1687] sm:$0xff]
  %v1689 = vld [vmem:[%s1687 + $0x8] sm:$0xff]
  %v1690 = vld [vmem:[%s1687 + $0x10] sm:$0xff]
  %v1691 = vld [vmem:[%s1687 + $0x18] sm:$0xff]
  %v1692 = vld [vmem:[%s3] sm:$0xff]
  %v1693 = vld [vmem:[%s3 + $0x8] sm:$0xff]
  %v1694 = vld [vmem:[%s3 + $0x10] sm:$0xff]
  %v1695 = vld [vmem:[%s3 + $0x18] sm:$0xff]
  %v1696 = vld [vmem:[%s3 + $0x20] sm:$0xff]
  %v1697 = vld [vmem:[%s3 + $0x28] sm:$0xff]
  %v1698 = vld [vmem:[%s3 + $0x30] sm:$0xff]
  %v1699 = vld [vmem:[%s3 + $0x38] sm:$0xff]
  %v1700 = vld [vmem:[%s3 + $0x40] sm:$0xff]
  %v1701 = vld [vmem:[%s3 + $0x48] sm:$0xff]
  %v1702 = vld [vmem:[%s3 + $0x50] sm:$0xff]
  %v1703 = vld [vmem:[%s3 + $0x58] sm:$0xff]
  %v1704 = vld [vmem:[%s3 + $0x60] sm:$0xff]
  %v1705 = vld [vmem:[%s3 + $0x68] sm:$0xff]
  %v1706 = vld [vmem:[%s3 + $0x70] sm:$0xff]
  %v1707 = vld [vmem:[%s3 + $0x78] sm:$0xff]
  %v1708 = vld [vmem:[%s3 + $0x80] sm:$0xff]
  %v1709 = vld [vmem:[%s3 + $0x88] sm:$0xff]
  %v1710 = vld [vmem:[%s3 + $0x90] sm:$0xff]
  %v1711 = vld [vmem:[%s3 + $0x98] sm:$0xff]
  %v1712 = vld [vmem:[%s3 + $0xa0] sm:$0xff]
  %v1713 = vld [vmem:[%s3 + $0xa8] sm:$0xff]
  %v1714 = vld [vmem:[%s3 + $0xb0] sm:$0xff]
  %v1715 = vld [vmem:[%s3 + $0xb8] sm:$0xff]
  %v1716 = vld [vmem:[%s3 + $0xc0] sm:$0xff]
  %v1717 = vld [vmem:[%s3 + $0xc8] sm:$0xff]
  %v1718 = vld [vmem:[%s3 + $0xd0] sm:$0xff]
  %v1719 = vld [vmem:[%s3 + $0xd8] sm:$0xff]
  %v1720 = vld [vmem:[%s3 + $0xe0] sm:$0xff]
  %v1721 = vld [vmem:[%s3 + $0xe8] sm:$0xff]
  %v1722 = vld [vmem:[%s3 + $0xf0] sm:$0xff]
  %v1723 = vld [vmem:[%s3 + $0xf8] sm:$0xff]
  %v1756 = vunpack.c.l.b16 %v1692
  %v1757 = vunpack.c.h.b16 %v1692
  %v1758 = vunpack.c.l.b16 %v1693
  %v1759 = vunpack.c.h.b16 %v1693
  %v1760 = vunpack.c.l.b16 %v1694
  %v1761 = vunpack.c.h.b16 %v1694
  %v1762 = vunpack.c.l.b16 %v1695
  %v1763 = vunpack.c.h.b16 %v1695
  %v1764 = vunpack.c.l.b16 %v1696
  %v1765 = vunpack.c.h.b16 %v1696
  %v1766 = vunpack.c.l.b16 %v1697
  %v1767 = vunpack.c.h.b16 %v1697
  %v1768 = vunpack.c.l.b16 %v1698
  %v1769 = vunpack.c.h.b16 %v1698
  %v1770 = vunpack.c.l.b16 %v1699
  %v1771 = vunpack.c.h.b16 %v1699
  %v1772 = vunpack.c.l.b16 %v1700
  %v1773 = vunpack.c.h.b16 %v1700
  %v1774 = vunpack.c.l.b16 %v1701
  %v1775 = vunpack.c.h.b16 %v1701
  %v1776 = vunpack.c.l.b16 %v1702
  %v1777 = vunpack.c.h.b16 %v1702
  %v1778 = vunpack.c.l.b16 %v1703
  %v1779 = vunpack.c.h.b16 %v1703
  %v1780 = vunpack.c.l.b16 %v1704
  %v1781 = vunpack.c.h.b16 %v1704
  %v1782 = vunpack.c.l.b16 %v1705
  %v1783 = vunpack.c.h.b16 %v1705
  %v1784 = vunpack.c.l.b16 %v1706
  %v1785 = vunpack.c.h.b16 %v1706
  %v1786 = vunpack.c.l.b16 %v1707
  %v1787 = vunpack.c.h.b16 %v1707
  %v1788 = vunpack.c.l.b16 %v1708
  %v1789 = vunpack.c.h.b16 %v1708
  %v1790 = vunpack.c.l.b16 %v1709
  %v1791 = vunpack.c.h.b16 %v1709
  %v1792 = vunpack.c.l.b16 %v1710
  %v1793 = vunpack.c.h.b16 %v1710
  %v1794 = vunpack.c.l.b16 %v1711
  %v1795 = vunpack.c.h.b16 %v1711
  %v1796 = vunpack.c.l.b16 %v1712
  %v1797 = vunpack.c.h.b16 %v1712
  %v1798 = vunpack.c.l.b16 %v1713
  %v1799 = vunpack.c.h.b16 %v1713
  %v1800 = vunpack.c.l.b16 %v1714
  %v1801 = vunpack.c.h.b16 %v1714
  %v1802 = vunpack.c.l.b16 %v1715
  %v1803 = vunpack.c.h.b16 %v1715
  %v1804 = vunpack.c.l.b16 %v1716
  %v1805 = vunpack.c.h.b16 %v1716
  %v1806 = vunpack.c.l.b16 %v1717
  %v1807 = vunpack.c.h.b16 %v1717
  %v1808 = vunpack.c.l.b16 %v1718
  %v1809 = vunpack.c.h.b16 %v1718
  %v1810 = vunpack.c.l.b16 %v1719
  %v1811 = vunpack.c.h.b16 %v1719
  %v1812 = vunpack.c.l.b16 %v1720
  %v1813 = vunpack.c.h.b16 %v1720
  %v1814 = vunpack.c.l.b16 %v1721
  %v1815 = vunpack.c.h.b16 %v1721
  %v1816 = vunpack.c.l.b16 %v1722
  %v1817 = vunpack.c.h.b16 %v1722
  %v1818 = vunpack.c.l.b16 %v1723
  %v1819 = vunpack.c.h.b16 %v1723
  %v1820 = vpack.c.b16 %v1760, %v1756
  %v1821 = vpack.c.b16 %v1761, %v1757
  %v1822 = vpack.c.b16 %v1762, %v1758
  %v1823 = vpack.c.b16 %v1763, %v1759
  %v1824 = vpack.c.b16 %v1768, %v1764
  %v1825 = vpack.c.b16 %v1769, %v1765
  %v1826 = vpack.c.b16 %v1770, %v1766
  %v1827 = vpack.c.b16 %v1771, %v1767
  %v1828 = vpack.c.b16 %v1776, %v1772
  %v1829 = vpack.c.b16 %v1777, %v1773
  %v1830 = vpack.c.b16 %v1778, %v1774
  %v1831 = vpack.c.b16 %v1779, %v1775
  %v1832 = vpack.c.b16 %v1784, %v1780
  %v1833 = vpack.c.b16 %v1785, %v1781
  %v1834 = vpack.c.b16 %v1786, %v1782
  %v1835 = vpack.c.b16 %v1787, %v1783
  %v1836 = vpack.c.b16 %v1792, %v1788
  %v1837 = vpack.c.b16 %v1793, %v1789
  %v1838 = vpack.c.b16 %v1794, %v1790
  %v1839 = vpack.c.b16 %v1795, %v1791
  %v1840 = vpack.c.b16 %v1800, %v1796
  %v1841 = vpack.c.b16 %v1801, %v1797
  %v1842 = vpack.c.b16 %v1802, %v1798
  %v1843 = vpack.c.b16 %v1803, %v1799
  %v1844 = vpack.c.b16 %v1808, %v1804
  %v1845 = vpack.c.b16 %v1809, %v1805
  %v1846 = vpack.c.b16 %v1810, %v1806
  %v1847 = vpack.c.b16 %v1811, %v1807
  %v1848 = vpack.c.b16 %v1816, %v1812
  %v1849 = vpack.c.b16 %v1817, %v1813
  %v1850 = vpack.c.b16 %v1818, %v1814
  %v1851 = vpack.c.b16 %v1819, %v1815
  %1884 = vmatprep.subr.bf16.mxu0 %v1849
  %1885 = vmatpush1.bf16.msra.mxu0 %v1848
  %1886 = vmatprep.subr.bf16.mxu0 %v1845
  %1887 = vmatpush1.bf16.msra.mxu0 %v1844
  %1888 = vmatprep.subr.bf16.mxu0 %v1841
  %1889 = vmatpush1.bf16.msra.mxu0 %v1840
  %1890 = vmatprep.subr.bf16.mxu0 %v1837
  %1891 = vmatpush1.bf16.msra.mxu0 %v1836
  %1892 = vmatprep.subr.bf16.mxu0 %v1833
  %1893 = vmatpush1.bf16.msra.mxu0 %v1832
  %1894 = vmatprep.subr.bf16.mxu0 %v1829
  %1895 = vmatpush1.bf16.msra.mxu0 %v1828
  %1896 = vmatprep.subr.bf16.mxu0 %v1825
  %1897 = vmatpush1.bf16.msra.mxu0 %v1824
  %1898 = vmatprep.subr.bf16.mxu0 %v1821
  %1899 = vmatpush1.bf16.msra.mxu0 %v1820
  %1900 = vmatprep.subr.bf16.mxu0 0
  %1901 = vmatpush2.bf16.msra.mxu0 0
  %1902 = vmatprep.subr.bf16.mxu0 0
  %1903 = vmatpush2.bf16.msra.mxu0 0
  %1904 = vmatprep.subr.bf16.mxu0 0
  %1905 = vmatpush2.bf16.msra.mxu0 0
  %1906 = vmatprep.subr.bf16.mxu0 0
  %1907 = vmatpush2.bf16.msra.mxu0 0
  %1908 = vmatprep.subr.bf16.mxu0 0
  %1909 = vmatpush2.bf16.msra.mxu0 0
  %1910 = vmatprep.subr.bf16.mxu0 0
  %1911 = vmatpush2.bf16.msra.mxu0 0
  %1912 = vmatprep.subr.bf16.mxu0 0
  %1913 = vmatpush2.bf16.msra.mxu0 0
  %1914 = vmatprep.subr.bf16.mxu0 0
  %1915 = vmatpush2.bf16.msra.mxu0 0
  %1916 = vmatprep.mubr.bf16.mxu0 0
  %1917 = vmatmul.mubr.bf16.gmra.mxu0 %v1682
  %v1918 = vpop.f32.mrf.mxu0
  %v1919 = vadd.f32 0.0, %v1918
  %v1920 = vpop.f32.mrf.mxu0
  %v1921 = vadd.f32 0.0, %v1920
  %v1922 = vpop.f32.mrf.mxu0
  %v1923 = vpop.f32.mrf.mxu0
  %1924 = vdwg.mxu0
  %1925 = vmatprep.subr.bf16.mxu0 %v1851
  %1926 = vmatpush1.bf16.msra.mxu0 %v1850
  %1927 = vmatprep.subr.bf16.mxu0 %v1847
  %1928 = vmatpush1.bf16.msra.mxu0 %v1846
  %1929 = vmatprep.subr.bf16.mxu0 %v1843
  %1930 = vmatpush1.bf16.msra.mxu0 %v1842
  %1931 = vmatprep.subr.bf16.mxu0 %v1839
  %1932 = vmatpush1.bf16.msra.mxu0 %v1838
  %1933 = vmatprep.subr.bf16.mxu0 %v1835
  %1934 = vmatpush1.bf16.msra.mxu0 %v1834
  %1935 = vmatprep.subr.bf16.mxu0 %v1831
  %1936 = vmatpush1.bf16.msra.mxu0 %v1830
  %1937 = vmatprep.subr.bf16.mxu0 %v1827
  %1938 = vmatpush1.bf16.msra.mxu0 %v1826
  %1939 = vmatprep.subr.bf16.mxu0 %v1823
  %1940 = vmatpush1.bf16.msra.mxu0 %v1822
  %1941 = vmatprep.subr.bf16.mxu0 0
  %1942 = vmatpush2.bf16.msra.mxu0 0
  %1943 = vmatprep.subr.bf16.mxu0 0
  %1944 = vmatpush2.bf16.msra.mxu0 0
  %1945 = vmatprep.subr.bf16.mxu0 0
  %1946 = vmatpush2.bf16.msra.mxu0 0
  %1947 = vmatprep.subr.bf16.mxu0 0
  %1948 = vmatpush2.bf16.msra.mxu0 0
  %1949 = vmatprep.subr.bf16.mxu0 0
  %1950 = vmatpush2.bf16.msra.mxu0 0
  %1951 = vmatprep.subr.bf16.mxu0 0
  %1952 = vmatpush2.bf16.msra.mxu0 0
  %1953 = vmatprep.subr.bf16.mxu0 0
  %1954 = vmatpush2.bf16.msra.mxu0 0
  %1955 = vmatprep.subr.bf16.mxu0 0
  %1956 = vmatpush2.bf16.msra.mxu0 0
  %1957 = vmatprep.mubr.bf16.mxu0 0
  %1958 = vmatmul.mubr.bf16.gmra.mxu0 %v1682
  %v1959 = vpop.f32.mrf.mxu0
  %v1960 = vadd.f32 0.0, %v1959
  %v1961 = vpop.f32.mrf.mxu0
  %v1962 = vadd.f32 0.0, %v1961
  %v1963 = vpop.f32.mrf.mxu0
  %v1964 = vpop.f32.mrf.mxu0
  %1965 = vdwg.mxu0
  %v1966 = vadd.f32 %v1688, %v1919
  %v1967 = vadd.f32 %v1689, %v1921
  %v1968 = vadd.f32 %v1690, %v1960
  %v1969 = vadd.f32 %v1691, %v1962
  %v1970 = vmul.f32 %v1966, 0.5
  %v1971 = vtanh.pop %v1970
  %v1972 = vadd.f32 %v1971, 1.0
  %v1973 = vmul.f32 %v1972, 0.5
  %v1974 = vmul.f32 %v1967, 0.5
  %v1975 = vtanh.pop %v1974
  %v1976 = vadd.f32 %v1975, 1.0
  %v1977 = vmul.f32 %v1976, 0.5
  %v1978 = vtanh.pop %v1968
  %v1979 = vmul.f32 %v1969, 0.5
  %v1980 = vtanh.pop %v1979
  %v1981 = vadd.f32 %v1980, 1.0
  %v1982 = vmul.f32 %v1981, 0.5
  %v1983 = vmul.f32 %v1977, %v1679
  %v1984 = vmul.f32 %v1973, %v1978
  %v1985 = vadd.f32 %v1983, %v1984
  %v1986 = vtanh.pop %v1985
  %v1987 = vmul.f32 %v1982, %v1986
  %v1988 = vpack.c.bf16 %v1987, %v1987
  %s1989 = scalar_lea.vmem %s6, 16
  %1990 = vst [vmem:[%s1989] sm:$0xf] %v1988
  %s1991 = smul.u32 5, 4
  %s1992 = smul.addr %s1991, 8
  %s1993 = scalar_lea.vmem [#allocation2], %s1992
  %v1994 = vld [vmem:[%s1993] sm:$0xff]
  %v1995 = vld [vmem:[%s1993 + $0x8] sm:$0xff]
  %v1996 = vld [vmem:[%s1993 + $0x10] sm:$0xff]
  %v1997 = vld [vmem:[%s1993 + $0x18] sm:$0xff]
  %v1998 = vld [vmem:[%s3] sm:$0xff]
  %v1999 = vld [vmem:[%s3 + $0x8] sm:$0xff]
  %v2000 = vld [vmem:[%s3 + $0x10] sm:$0xff]
  %v2001 = vld [vmem:[%s3 + $0x18] sm:$0xff]
  %v2002 = vld [vmem:[%s3 + $0x20] sm:$0xff]
  %v2003 = vld [vmem:[%s3 + $0x28] sm:$0xff]
  %v2004 = vld [vmem:[%s3 + $0x30] sm:$0xff]
  %v2005 = vld [vmem:[%s3 + $0x38] sm:$0xff]
  %v2006 = vld [vmem:[%s3 + $0x40] sm:$0xff]
  %v2007 = vld [vmem:[%s3 + $0x48] sm:$0xff]
  %v2008 = vld [vmem:[%s3 + $0x50] sm:$0xff]
  %v2009 = vld [vmem:[%s3 + $0x58] sm:$0xff]
  %v2010 = vld [vmem:[%s3 + $0x60] sm:$0xff]
  %v2011 = vld [vmem:[%s3 + $0x68] sm:$0xff]
  %v2012 = vld [vmem:[%s3 + $0x70] sm:$0xff]
  %v2013 = vld [vmem:[%s3 + $0x78] sm:$0xff]
  %v2014 = vld [vmem:[%s3 + $0x80] sm:$0xff]
  %v2015 = vld [vmem:[%s3 + $0x88] sm:$0xff]
  %v2016 = vld [vmem:[%s3 + $0x90] sm:$0xff]
  %v2017 = vld [vmem:[%s3 + $0x98] sm:$0xff]
  %v2018 = vld [vmem:[%s3 + $0xa0] sm:$0xff]
  %v2019 = vld [vmem:[%s3 + $0xa8] sm:$0xff]
  %v2020 = vld [vmem:[%s3 + $0xb0] sm:$0xff]
  %v2021 = vld [vmem:[%s3 + $0xb8] sm:$0xff]
  %v2022 = vld [vmem:[%s3 + $0xc0] sm:$0xff]
  %v2023 = vld [vmem:[%s3 + $0xc8] sm:$0xff]
  %v2024 = vld [vmem:[%s3 + $0xd0] sm:$0xff]
  %v2025 = vld [vmem:[%s3 + $0xd8] sm:$0xff]
  %v2026 = vld [vmem:[%s3 + $0xe0] sm:$0xff]
  %v2027 = vld [vmem:[%s3 + $0xe8] sm:$0xff]
  %v2028 = vld [vmem:[%s3 + $0xf0] sm:$0xff]
  %v2029 = vld [vmem:[%s3 + $0xf8] sm:$0xff]
  %v2062 = vunpack.c.l.b16 %v1998
  %v2063 = vunpack.c.h.b16 %v1998
  %v2064 = vunpack.c.l.b16 %v1999
  %v2065 = vunpack.c.h.b16 %v1999
  %v2066 = vunpack.c.l.b16 %v2000
  %v2067 = vunpack.c.h.b16 %v2000
  %v2068 = vunpack.c.l.b16 %v2001
  %v2069 = vunpack.c.h.b16 %v2001
  %v2070 = vunpack.c.l.b16 %v2002
  %v2071 = vunpack.c.h.b16 %v2002
  %v2072 = vunpack.c.l.b16 %v2003
  %v2073 = vunpack.c.h.b16 %v2003
  %v2074 = vunpack.c.l.b16 %v2004
  %v2075 = vunpack.c.h.b16 %v2004
  %v2076 = vunpack.c.l.b16 %v2005
  %v2077 = vunpack.c.h.b16 %v2005
  %v2078 = vunpack.c.l.b16 %v2006
  %v2079 = vunpack.c.h.b16 %v2006
  %v2080 = vunpack.c.l.b16 %v2007
  %v2081 = vunpack.c.h.b16 %v2007
  %v2082 = vunpack.c.l.b16 %v2008
  %v2083 = vunpack.c.h.b16 %v2008
  %v2084 = vunpack.c.l.b16 %v2009
  %v2085 = vunpack.c.h.b16 %v2009
  %v2086 = vunpack.c.l.b16 %v2010
  %v2087 = vunpack.c.h.b16 %v2010
  %v2088 = vunpack.c.l.b16 %v2011
  %v2089 = vunpack.c.h.b16 %v2011
  %v2090 = vunpack.c.l.b16 %v2012
  %v2091 = vunpack.c.h.b16 %v2012
  %v2092 = vunpack.c.l.b16 %v2013
  %v2093 = vunpack.c.h.b16 %v2013
  %v2094 = vunpack.c.l.b16 %v2014
  %v2095 = vunpack.c.h.b16 %v2014
  %v2096 = vunpack.c.l.b16 %v2015
  %v2097 = vunpack.c.h.b16 %v2015
  %v2098 = vunpack.c.l.b16 %v2016
  %v2099 = vunpack.c.h.b16 %v2016
  %v2100 = vunpack.c.l.b16 %v2017
  %v2101 = vunpack.c.h.b16 %v2017
  %v2102 = vunpack.c.l.b16 %v2018
  %v2103 = vunpack.c.h.b16 %v2018
  %v2104 = vunpack.c.l.b16 %v2019
  %v2105 = vunpack.c.h.b16 %v2019
  %v2106 = vunpack.c.l.b16 %v2020
  %v2107 = vunpack.c.h.b16 %v2020
  %v2108 = vunpack.c.l.b16 %v2021
  %v2109 = vunpack.c.h.b16 %v2021
  %v2110 = vunpack.c.l.b16 %v2022
  %v2111 = vunpack.c.h.b16 %v2022
  %v2112 = vunpack.c.l.b16 %v2023
  %v2113 = vunpack.c.h.b16 %v2023
  %v2114 = vunpack.c.l.b16 %v2024
  %v2115 = vunpack.c.h.b16 %v2024
  %v2116 = vunpack.c.l.b16 %v2025
  %v2117 = vunpack.c.h.b16 %v2025
  %v2118 = vunpack.c.l.b16 %v2026
  %v2119 = vunpack.c.h.b16 %v2026
  %v2120 = vunpack.c.l.b16 %v2027
  %v2121 = vunpack.c.h.b16 %v2027
  %v2122 = vunpack.c.l.b16 %v2028
  %v2123 = vunpack.c.h.b16 %v2028
  %v2124 = vunpack.c.l.b16 %v2029
  %v2125 = vunpack.c.h.b16 %v2029
  %v2126 = vpack.c.b16 %v2066, %v2062
  %v2127 = vpack.c.b16 %v2067, %v2063
  %v2128 = vpack.c.b16 %v2068, %v2064
  %v2129 = vpack.c.b16 %v2069, %v2065
  %v2130 = vpack.c.b16 %v2074, %v2070
  %v2131 = vpack.c.b16 %v2075, %v2071
  %v2132 = vpack.c.b16 %v2076, %v2072
  %v2133 = vpack.c.b16 %v2077, %v2073
  %v2134 = vpack.c.b16 %v2082, %v2078
  %v2135 = vpack.c.b16 %v2083, %v2079
  %v2136 = vpack.c.b16 %v2084, %v2080
  %v2137 = vpack.c.b16 %v2085, %v2081
  %v2138 = vpack.c.b16 %v2090, %v2086
  %v2139 = vpack.c.b16 %v2091, %v2087
  %v2140 = vpack.c.b16 %v2092, %v2088
  %v2141 = vpack.c.b16 %v2093, %v2089
  %v2142 = vpack.c.b16 %v2098, %v2094
  %v2143 = vpack.c.b16 %v2099, %v2095
  %v2144 = vpack.c.b16 %v2100, %v2096
  %v2145 = vpack.c.b16 %v2101, %v2097
  %v2146 = vpack.c.b16 %v2106, %v2102
  %v2147 = vpack.c.b16 %v2107, %v2103
  %v2148 = vpack.c.b16 %v2108, %v2104
  %v2149 = vpack.c.b16 %v2109, %v2105
  %v2150 = vpack.c.b16 %v2114, %v2110
  %v2151 = vpack.c.b16 %v2115, %v2111
  %v2152 = vpack.c.b16 %v2116, %v2112
  %v2153 = vpack.c.b16 %v2117, %v2113
  %v2154 = vpack.c.b16 %v2122, %v2118
  %v2155 = vpack.c.b16 %v2123, %v2119
  %v2156 = vpack.c.b16 %v2124, %v2120
  %v2157 = vpack.c.b16 %v2125, %v2121
  %2190 = vmatprep.subr.bf16.mxu0 %v2155
  %2191 = vmatpush1.bf16.msra.mxu0 %v2154
  %2192 = vmatprep.subr.bf16.mxu0 %v2151
  %2193 = vmatpush1.bf16.msra.mxu0 %v2150
  %2194 = vmatprep.subr.bf16.mxu0 %v2147
  %2195 = vmatpush1.bf16.msra.mxu0 %v2146
  %2196 = vmatprep.subr.bf16.mxu0 %v2143
  %2197 = vmatpush1.bf16.msra.mxu0 %v2142
  %2198 = vmatprep.subr.bf16.mxu0 %v2139
  %2199 = vmatpush1.bf16.msra.mxu0 %v2138
  %2200 = vmatprep.subr.bf16.mxu0 %v2135
  %2201 = vmatpush1.bf16.msra.mxu0 %v2134
  %2202 = vmatprep.subr.bf16.mxu0 %v2131
  %2203 = vmatpush1.bf16.msra.mxu0 %v2130
  %2204 = vmatprep.subr.bf16.mxu0 %v2127
  %2205 = vmatpush1.bf16.msra.mxu0 %v2126
  %2206 = vmatprep.subr.bf16.mxu0 0
  %2207 = vmatpush2.bf16.msra.mxu0 0
  %2208 = vmatprep.subr.bf16.mxu0 0
  %2209 = vmatpush2.bf16.msra.mxu0 0
  %2210 = vmatprep.subr.bf16.mxu0 0
  %2211 = vmatpush2.bf16.msra.mxu0 0
  %2212 = vmatprep.subr.bf16.mxu0 0
  %2213 = vmatpush2.bf16.msra.mxu0 0
  %2214 = vmatprep.subr.bf16.mxu0 0
  %2215 = vmatpush2.bf16.msra.mxu0 0
  %2216 = vmatprep.subr.bf16.mxu0 0
  %2217 = vmatpush2.bf16.msra.mxu0 0
  %2218 = vmatprep.subr.bf16.mxu0 0
  %2219 = vmatpush2.bf16.msra.mxu0 0
  %2220 = vmatprep.subr.bf16.mxu0 0
  %2221 = vmatpush2.bf16.msra.mxu0 0
  %2222 = vmatprep.mubr.bf16.mxu0 0
  %2223 = vmatmul.mubr.bf16.gmra.mxu0 %v1988
  %v2224 = vpop.f32.mrf.mxu0
  %v2225 = vadd.f32 0.0, %v2224
  %v2226 = vpop.f32.mrf.mxu0
  %v2227 = vadd.f32 0.0, %v2226
  %v2228 = vpop.f32.mrf.mxu0
  %v2229 = vpop.f32.mrf.mxu0
  %2230 = vdwg.mxu0
  %2231 = vmatprep.subr.bf16.mxu0 %v2157
  %2232 = vmatpush1.bf16.msra.mxu0 %v2156
  %2233 = vmatprep.subr.bf16.mxu0 %v2153
  %2234 = vmatpush1.bf16.msra.mxu0 %v2152
  %2235 = vmatprep.subr.bf16.mxu0 %v2149
  %2236 = vmatpush1.bf16.msra.mxu0 %v2148
  %2237 = vmatprep.subr.bf16.mxu0 %v2145
  %2238 = vmatpush1.bf16.msra.mxu0 %v2144
  %2239 = vmatprep.subr.bf16.mxu0 %v2141
  %2240 = vmatpush1.bf16.msra.mxu0 %v2140
  %2241 = vmatprep.subr.bf16.mxu0 %v2137
  %2242 = vmatpush1.bf16.msra.mxu0 %v2136
  %2243 = vmatprep.subr.bf16.mxu0 %v2133
  %2244 = vmatpush1.bf16.msra.mxu0 %v2132
  %2245 = vmatprep.subr.bf16.mxu0 %v2129
  %2246 = vmatpush1.bf16.msra.mxu0 %v2128
  %2247 = vmatprep.subr.bf16.mxu0 0
  %2248 = vmatpush2.bf16.msra.mxu0 0
  %2249 = vmatprep.subr.bf16.mxu0 0
  %2250 = vmatpush2.bf16.msra.mxu0 0
  %2251 = vmatprep.subr.bf16.mxu0 0
  %2252 = vmatpush2.bf16.msra.mxu0 0
  %2253 = vmatprep.subr.bf16.mxu0 0
  %2254 = vmatpush2.bf16.msra.mxu0 0
  %2255 = vmatprep.subr.bf16.mxu0 0
  %2256 = vmatpush2.bf16.msra.mxu0 0
  %2257 = vmatprep.subr.bf16.mxu0 0
  %2258 = vmatpush2.bf16.msra.mxu0 0
  %2259 = vmatprep.subr.bf16.mxu0 0
  %2260 = vmatpush2.bf16.msra.mxu0 0
  %2261 = vmatprep.subr.bf16.mxu0 0
  %2262 = vmatpush2.bf16.msra.mxu0 0
  %2263 = vmatprep.mubr.bf16.mxu0 0
  %2264 = vmatmul.mubr.bf16.gmra.mxu0 %v1988
  %v2265 = vpop.f32.mrf.mxu0
  %v2266 = vadd.f32 0.0, %v2265
  %v2267 = vpop.f32.mrf.mxu0
  %v2268 = vadd.f32 0.0, %v2267
  %v2269 = vpop.f32.mrf.mxu0
  %v2270 = vpop.f32.mrf.mxu0
  %2271 = vdwg.mxu0
  %v2272 = vadd.f32 %v1994, %v2225
  %v2273 = vadd.f32 %v1995, %v2227
  %v2274 = vadd.f32 %v1996, %v2266
  %v2275 = vadd.f32 %v1997, %v2268
  %v2276 = vmul.f32 %v2272, 0.5
  %v2277 = vtanh.pop %v2276
  %v2278 = vadd.f32 %v2277, 1.0
  %v2279 = vmul.f32 %v2278, 0.5
  %v2280 = vmul.f32 %v2273, 0.5
  %v2281 = vtanh.pop %v2280
  %v2282 = vadd.f32 %v2281, 1.0
  %v2283 = vmul.f32 %v2282, 0.5
  %v2284 = vtanh.pop %v2274
  %v2285 = vmul.f32 %v2275, 0.5
  %v2286 = vtanh.pop %v2285
  %v2287 = vadd.f32 %v2286, 1.0
  %v2288 = vmul.f32 %v2287, 0.5
  %v2289 = vmul.f32 %v2283, %v1985
  %v2290 = vmul.f32 %v2279, %v2284
  %v2291 = vadd.f32 %v2289, %v2290
  %v2292 = vtanh.pop %v2291
  %v2293 = vmul.f32 %v2288, %v2292
  %v2294 = vpack.c.bf16 %v2293, %v2293
  %s2295 = scalar_lea.vmem %s6, 20
  %2296 = vst [vmem:[%s2295] sm:$0xf] %v2294
  %s2297 = smul.u32 6, 4
  %s2298 = smul.addr %s2297, 8
  %s2299 = scalar_lea.vmem [#allocation2], %s2298
  %v2300 = vld [vmem:[%s2299] sm:$0xff]
  %v2301 = vld [vmem:[%s2299 + $0x8] sm:$0xff]
  %v2302 = vld [vmem:[%s2299 + $0x10] sm:$0xff]
  %v2303 = vld [vmem:[%s2299 + $0x18] sm:$0xff]
  %v2304 = vld [vmem:[%s3] sm:$0xff]
  %v2305 = vld [vmem:[%s3 + $0x8] sm:$0xff]
  %v2306 = vld [vmem:[%s3 + $0x10] sm:$0xff]
  %v2307 = vld [vmem:[%s3 + $0x18] sm:$0xff]
  %v2308 = vld [vmem:[%s3 + $0x20] sm:$0xff]
  %v2309 = vld [vmem:[%s3 + $0x28] sm:$0xff]
  %v2310 = vld [vmem:[%s3 + $0x30] sm:$0xff]
  %v2311 = vld [vmem:[%s3 + $0x38] sm:$0xff]
  %v2312 = vld [vmem:[%s3 + $0x40] sm:$0xff]
  %v2313 = vld [vmem:[%s3 + $0x48] sm:$0xff]
  %v2314 = vld [vmem:[%s3 + $0x50] sm:$0xff]
  %v2315 = vld [vmem:[%s3 + $0x58] sm:$0xff]
  %v2316 = vld [vmem:[%s3 + $0x60] sm:$0xff]
  %v2317 = vld [vmem:[%s3 + $0x68] sm:$0xff]
  %v2318 = vld [vmem:[%s3 + $0x70] sm:$0xff]
  %v2319 = vld [vmem:[%s3 + $0x78] sm:$0xff]
  %v2320 = vld [vmem:[%s3 + $0x80] sm:$0xff]
  %v2321 = vld [vmem:[%s3 + $0x88] sm:$0xff]
  %v2322 = vld [vmem:[%s3 + $0x90] sm:$0xff]
  %v2323 = vld [vmem:[%s3 + $0x98] sm:$0xff]
  %v2324 = vld [vmem:[%s3 + $0xa0] sm:$0xff]
  %v2325 = vld [vmem:[%s3 + $0xa8] sm:$0xff]
  %v2326 = vld [vmem:[%s3 + $0xb0] sm:$0xff]
  %v2327 = vld [vmem:[%s3 + $0xb8] sm:$0xff]
  %v2328 = vld [vmem:[%s3 + $0xc0] sm:$0xff]
  %v2329 = vld [vmem:[%s3 + $0xc8] sm:$0xff]
  %v2330 = vld [vmem:[%s3 + $0xd0] sm:$0xff]
  %v2331 = vld [vmem:[%s3 + $0xd8] sm:$0xff]
  %v2332 = vld [vmem:[%s3 + $0xe0] sm:$0xff]
  %v2333 = vld [vmem:[%s3 + $0xe8] sm:$0xff]
  %v2334 = vld [vmem:[%s3 + $0xf0] sm:$0xff]
  %v2335 = vld [vmem:[%s3 + $0xf8] sm:$0xff]
  %v2368 = vunpack.c.l.b16 %v2304
  %v2369 = vunpack.c.h.b16 %v2304
  %v2370 = vunpack.c.l.b16 %v2305
  %v2371 = vunpack.c.h.b16 %v2305
  %v2372 = vunpack.c.l.b16 %v2306
  %v2373 = vunpack.c.h.b16 %v2306
  %v2374 = vunpack.c.l.b16 %v2307
  %v2375 = vunpack.c.h.b16 %v2307
  %v2376 = vunpack.c.l.b16 %v2308
  %v2377 = vunpack.c.h.b16 %v2308
  %v2378 = vunpack.c.l.b16 %v2309
  %v2379 = vunpack.c.h.b16 %v2309
  %v2380 = vunpack.c.l.b16 %v2310
  %v2381 = vunpack.c.h.b16 %v2310
  %v2382 = vunpack.c.l.b16 %v2311
  %v2383 = vunpack.c.h.b16 %v2311
  %v2384 = vunpack.c.l.b16 %v2312
  %v2385 = vunpack.c.h.b16 %v2312
  %v2386 = vunpack.c.l.b16 %v2313
  %v2387 = vunpack.c.h.b16 %v2313
  %v2388 = vunpack.c.l.b16 %v2314
  %v2389 = vunpack.c.h.b16 %v2314
  %v2390 = vunpack.c.l.b16 %v2315
  %v2391 = vunpack.c.h.b16 %v2315
  %v2392 = vunpack.c.l.b16 %v2316
  %v2393 = vunpack.c.h.b16 %v2316
  %v2394 = vunpack.c.l.b16 %v2317
  %v2395 = vunpack.c.h.b16 %v2317
  %v2396 = vunpack.c.l.b16 %v2318
  %v2397 = vunpack.c.h.b16 %v2318
  %v2398 = vunpack.c.l.b16 %v2319
  %v2399 = vunpack.c.h.b16 %v2319
  %v2400 = vunpack.c.l.b16 %v2320
  %v2401 = vunpack.c.h.b16 %v2320
  %v2402 = vunpack.c.l.b16 %v2321
  %v2403 = vunpack.c.h.b16 %v2321
  %v2404 = vunpack.c.l.b16 %v2322
  %v2405 = vunpack.c.h.b16 %v2322
  %v2406 = vunpack.c.l.b16 %v2323
  %v2407 = vunpack.c.h.b16 %v2323
  %v2408 = vunpack.c.l.b16 %v2324
  %v2409 = vunpack.c.h.b16 %v2324
  %v2410 = vunpack.c.l.b16 %v2325
  %v2411 = vunpack.c.h.b16 %v2325
  %v2412 = vunpack.c.l.b16 %v2326
  %v2413 = vunpack.c.h.b16 %v2326
  %v2414 = vunpack.c.l.b16 %v2327
  %v2415 = vunpack.c.h.b16 %v2327
  %v2416 = vunpack.c.l.b16 %v2328
  %v2417 = vunpack.c.h.b16 %v2328
  %v2418 = vunpack.c.l.b16 %v2329
  %v2419 = vunpack.c.h.b16 %v2329
  %v2420 = vunpack.c.l.b16 %v2330
  %v2421 = vunpack.c.h.b16 %v2330
  %v2422 = vunpack.c.l.b16 %v2331
  %v2423 = vunpack.c.h.b16 %v2331
  %v2424 = vunpack.c.l.b16 %v2332
  %v2425 = vunpack.c.h.b16 %v2332
  %v2426 = vunpack.c.l.b16 %v2333
  %v2427 = vunpack.c.h.b16 %v2333
  %v2428 = vunpack.c.l.b16 %v2334
  %v2429 = vunpack.c.h.b16 %v2334
  %v2430 = vunpack.c.l.b16 %v2335
  %v2431 = vunpack.c.h.b16 %v2335
  %v2432 = vpack.c.b16 %v2372, %v2368
  %v2433 = vpack.c.b16 %v2373, %v2369
  %v2434 = vpack.c.b16 %v2374, %v2370
  %v2435 = vpack.c.b16 %v2375, %v2371
  %v2436 = vpack.c.b16 %v2380, %v2376
  %v2437 = vpack.c.b16 %v2381, %v2377
  %v2438 = vpack.c.b16 %v2382, %v2378
  %v2439 = vpack.c.b16 %v2383, %v2379
  %v2440 = vpack.c.b16 %v2388, %v2384
  %v2441 = vpack.c.b16 %v2389, %v2385
  %v2442 = vpack.c.b16 %v2390, %v2386
  %v2443 = vpack.c.b16 %v2391, %v2387
  %v2444 = vpack.c.b16 %v2396, %v2392
  %v2445 = vpack.c.b16 %v2397, %v2393
  %v2446 = vpack.c.b16 %v2398, %v2394
  %v2447 = vpack.c.b16 %v2399, %v2395
  %v2448 = vpack.c.b16 %v2404, %v2400
  %v2449 = vpack.c.b16 %v2405, %v2401
  %v2450 = vpack.c.b16 %v2406, %v2402
  %v2451 = vpack.c.b16 %v2407, %v2403
  %v2452 = vpack.c.b16 %v2412, %v2408
  %v2453 = vpack.c.b16 %v2413, %v2409
  %v2454 = vpack.c.b16 %v2414, %v2410
  %v2455 = vpack.c.b16 %v2415, %v2411
  %v2456 = vpack.c.b16 %v2420, %v2416
  %v2457 = vpack.c.b16 %v2421, %v2417
  %v2458 = vpack.c.b16 %v2422, %v2418
  %v2459 = vpack.c.b16 %v2423, %v2419
  %v2460 = vpack.c.b16 %v2428, %v2424
  %v2461 = vpack.c.b16 %v2429, %v2425
  %v2462 = vpack.c.b16 %v2430, %v2426
  %v2463 = vpack.c.b16 %v2431, %v2427
  %2496 = vmatprep.subr.bf16.mxu0 %v2461
  %2497 = vmatpush1.bf16.msra.mxu0 %v2460
  %2498 = vmatprep.subr.bf16.mxu0 %v2457
  %2499 = vmatpush1.bf16.msra.mxu0 %v2456
  %2500 = vmatprep.subr.bf16.mxu0 %v2453
  %2501 = vmatpush1.bf16.msra.mxu0 %v2452
  %2502 = vmatprep.subr.bf16.mxu0 %v2449
  %2503 = vmatpush1.bf16.msra.mxu0 %v2448
  %2504 = vmatprep.subr.bf16.mxu0 %v2445
  %2505 = vmatpush1.bf16.msra.mxu0 %v2444
  %2506 = vmatprep.subr.bf16.mxu0 %v2441
  %2507 = vmatpush1.bf16.msra.mxu0 %v2440
  %2508 = vmatprep.subr.bf16.mxu0 %v2437
  %2509 = vmatpush1.bf16.msra.mxu0 %v2436
  %2510 = vmatprep.subr.bf16.mxu0 %v2433
  %2511 = vmatpush1.bf16.msra.mxu0 %v2432
  %2512 = vmatprep.subr.bf16.mxu0 0
  %2513 = vmatpush2.bf16.msra.mxu0 0
  %2514 = vmatprep.subr.bf16.mxu0 0
  %2515 = vmatpush2.bf16.msra.mxu0 0
  %2516 = vmatprep.subr.bf16.mxu0 0
  %2517 = vmatpush2.bf16.msra.mxu0 0
  %2518 = vmatprep.subr.bf16.mxu0 0
  %2519 = vmatpush2.bf16.msra.mxu0 0
  %2520 = vmatprep.subr.bf16.mxu0 0
  %2521 = vmatpush2.bf16.msra.mxu0 0
  %2522 = vmatprep.subr.bf16.mxu0 0
  %2523 = vmatpush2.bf16.msra.mxu0 0
  %2524 = vmatprep.subr.bf16.mxu0 0
  %2525 = vmatpush2.bf16.msra.mxu0 0
  %2526 = vmatprep.subr.bf16.mxu0 0
  %2527 = vmatpush2.bf16.msra.mxu0 0
  %2528 = vmatprep.mubr.bf16.mxu0 0
  %2529 = vmatmul.mubr.bf16.gmra.mxu0 %v2294
  %v2530 = vpop.f32.mrf.mxu0
  %v2531 = vadd.f32 0.0, %v2530
  %v2532 = vpop.f32.mrf.mxu0
  %v2533 = vadd.f32 0.0, %v2532
  %v2534 = vpop.f32.mrf.mxu0
  %v2535 = vpop.f32.mrf.mxu0
  %2536 = vdwg.mxu0
  %2537 = vmatprep.subr.bf16.mxu0 %v2463
  %2538 = vmatpush1.bf16.msra.mxu0 %v2462
  %2539 = vmatprep.subr.bf16.mxu0 %v2459
  %2540 = vmatpush1.bf16.msra.mxu0 %v2458
  %2541 = vmatprep.subr.bf16.mxu0 %v2455
  %2542 = vmatpush1.bf16.msra.mxu0 %v2454
  %2543 = vmatprep.subr.bf16.mxu0 %v2451
  %2544 = vmatpush1.bf16.msra.mxu0 %v2450
  %2545 = vmatprep.subr.bf16.mxu0 %v2447
  %2546 = vmatpush1.bf16.msra.mxu0 %v2446
  %2547 = vmatprep.subr.bf16.mxu0 %v2443
  %2548 = vmatpush1.bf16.msra.mxu0 %v2442
  %2549 = vmatprep.subr.bf16.mxu0 %v2439
  %2550 = vmatpush1.bf16.msra.mxu0 %v2438
  %2551 = vmatprep.subr.bf16.mxu0 %v2435
  %2552 = vmatpush1.bf16.msra.mxu0 %v2434
  %2553 = vmatprep.subr.bf16.mxu0 0
  %2554 = vmatpush2.bf16.msra.mxu0 0
  %2555 = vmatprep.subr.bf16.mxu0 0
  %2556 = vmatpush2.bf16.msra.mxu0 0
  %2557 = vmatprep.subr.bf16.mxu0 0
  %2558 = vmatpush2.bf16.msra.mxu0 0
  %2559 = vmatprep.subr.bf16.mxu0 0
  %2560 = vmatpush2.bf16.msra.mxu0 0
  %2561 = vmatprep.subr.bf16.mxu0 0
  %2562 = vmatpush2.bf16.msra.mxu0 0
  %2563 = vmatprep.subr.bf16.mxu0 0
  %2564 = vmatpush2.bf16.msra.mxu0 0
  %2565 = vmatprep.subr.bf16.mxu0 0
  %2566 = vmatpush2.bf16.msra.mxu0 0
  %2567 = vmatprep.subr.bf16.mxu0 0
  %2568 = vmatpush2.bf16.msra.mxu0 0
  %2569 = vmatprep.mubr.bf16.mxu0 0
  %2570 = vmatmul.mubr.bf16.gmra.mxu0 %v2294
  %v2571 = vpop.f32.mrf.mxu0
  %v2572 = vadd.f32 0.0, %v2571
  %v2573 = vpop.f32.mrf.mxu0
  %v2574 = vadd.f32 0.0, %v2573
  %v2575 = vpop.f32.mrf.mxu0
  %v2576 = vpop.f32.mrf.mxu0
  %2577 = vdwg.mxu0
  %v2578 = vadd.f32 %v2300, %v2531
  %v2579 = vadd.f32 %v2301, %v2533
  %v2580 = vadd.f32 %v2302, %v2572
  %v2581 = vadd.f32 %v2303, %v2574
  %v2582 = vmul.f32 %v2578, 0.5
  %v2583 = vtanh.pop %v2582
  %v2584 = vadd.f32 %v2583, 1.0
  %v2585 = vmul.f32 %v2584, 0.5
  %v2586 = vmul.f32 %v2579, 0.5
  %v2587 = vtanh.pop %v2586
  %v2588 = vadd.f32 %v2587, 1.0
  %v2589 = vmul.f32 %v2588, 0.5
  %v2590 = vtanh.pop %v2580
  %v2591 = vmul.f32 %v2581, 0.5
  %v2592 = vtanh.pop %v2591
  %v2593 = vadd.f32 %v2592, 1.0
  %v2594 = vmul.f32 %v2593, 0.5
  %v2595 = vmul.f32 %v2589, %v2291
  %v2596 = vmul.f32 %v2585, %v2590
  %v2597 = vadd.f32 %v2595, %v2596
  %v2598 = vtanh.pop %v2597
  %v2599 = vmul.f32 %v2594, %v2598
  %v2600 = vpack.c.bf16 %v2599, %v2599
  %s2601 = scalar_lea.vmem %s6, 24
  %2602 = vst [vmem:[%s2601] sm:$0xf] %v2600
  %s2603 = smul.u32 7, 4
  %s2604 = smul.addr %s2603, 8
  %s2605 = scalar_lea.vmem [#allocation2], %s2604
  %v2606 = vld [vmem:[%s2605] sm:$0xff]
  %v2607 = vld [vmem:[%s2605 + $0x8] sm:$0xff]
  %v2608 = vld [vmem:[%s2605 + $0x10] sm:$0xff]
  %v2609 = vld [vmem:[%s2605 + $0x18] sm:$0xff]
  %v2610 = vld [vmem:[%s3] sm:$0xff]
  %v2611 = vld [vmem:[%s3 + $0x8] sm:$0xff]
  %v2612 = vld [vmem:[%s3 + $0x10] sm:$0xff]
  %v2613 = vld [vmem:[%s3 + $0x18] sm:$0xff]
  %v2614 = vld [vmem:[%s3 + $0x20] sm:$0xff]
  %v2615 = vld [vmem:[%s3 + $0x28] sm:$0xff]
  %v2616 = vld [vmem:[%s3 + $0x30] sm:$0xff]
  %v2617 = vld [vmem:[%s3 + $0x38] sm:$0xff]
  %v2618 = vld [vmem:[%s3 + $0x40] sm:$0xff]
  %v2619 = vld [vmem:[%s3 + $0x48] sm:$0xff]
  %v2620 = vld [vmem:[%s3 + $0x50] sm:$0xff]
  %v2621 = vld [vmem:[%s3 + $0x58] sm:$0xff]
  %v2622 = vld [vmem:[%s3 + $0x60] sm:$0xff]
  %v2623 = vld [vmem:[%s3 + $0x68] sm:$0xff]
  %v2624 = vld [vmem:[%s3 + $0x70] sm:$0xff]
  %v2625 = vld [vmem:[%s3 + $0x78] sm:$0xff]
  %v2626 = vld [vmem:[%s3 + $0x80] sm:$0xff]
  %v2627 = vld [vmem:[%s3 + $0x88] sm:$0xff]
  %v2628 = vld [vmem:[%s3 + $0x90] sm:$0xff]
  %v2629 = vld [vmem:[%s3 + $0x98] sm:$0xff]
  %v2630 = vld [vmem:[%s3 + $0xa0] sm:$0xff]
  %v2631 = vld [vmem:[%s3 + $0xa8] sm:$0xff]
  %v2632 = vld [vmem:[%s3 + $0xb0] sm:$0xff]
  %v2633 = vld [vmem:[%s3 + $0xb8] sm:$0xff]
  %v2634 = vld [vmem:[%s3 + $0xc0] sm:$0xff]
  %v2635 = vld [vmem:[%s3 + $0xc8] sm:$0xff]
  %v2636 = vld [vmem:[%s3 + $0xd0] sm:$0xff]
  %v2637 = vld [vmem:[%s3 + $0xd8] sm:$0xff]
  %v2638 = vld [vmem:[%s3 + $0xe0] sm:$0xff]
  %v2639 = vld [vmem:[%s3 + $0xe8] sm:$0xff]
  %v2640 = vld [vmem:[%s3 + $0xf0] sm:$0xff]
  %v2641 = vld [vmem:[%s3 + $0xf8] sm:$0xff]
  %v2674 = vunpack.c.l.b16 %v2610
  %v2675 = vunpack.c.h.b16 %v2610
  %v2676 = vunpack.c.l.b16 %v2611
  %v2677 = vunpack.c.h.b16 %v2611
  %v2678 = vunpack.c.l.b16 %v2612
  %v2679 = vunpack.c.h.b16 %v2612
  %v2680 = vunpack.c.l.b16 %v2613
  %v2681 = vunpack.c.h.b16 %v2613
  %v2682 = vunpack.c.l.b16 %v2614
  %v2683 = vunpack.c.h.b16 %v2614
  %v2684 = vunpack.c.l.b16 %v2615
  %v2685 = vunpack.c.h.b16 %v2615
  %v2686 = vunpack.c.l.b16 %v2616
  %v2687 = vunpack.c.h.b16 %v2616
  %v2688 = vunpack.c.l.b16 %v2617
  %v2689 = vunpack.c.h.b16 %v2617
  %v2690 = vunpack.c.l.b16 %v2618
  %v2691 = vunpack.c.h.b16 %v2618
  %v2692 = vunpack.c.l.b16 %v2619
  %v2693 = vunpack.c.h.b16 %v2619
  %v2694 = vunpack.c.l.b16 %v2620
  %v2695 = vunpack.c.h.b16 %v2620
  %v2696 = vunpack.c.l.b16 %v2621
  %v2697 = vunpack.c.h.b16 %v2621
  %v2698 = vunpack.c.l.b16 %v2622
  %v2699 = vunpack.c.h.b16 %v2622
  %v2700 = vunpack.c.l.b16 %v2623
  %v2701 = vunpack.c.h.b16 %v2623
  %v2702 = vunpack.c.l.b16 %v2624
  %v2703 = vunpack.c.h.b16 %v2624
  %v2704 = vunpack.c.l.b16 %v2625
  %v2705 = vunpack.c.h.b16 %v2625
  %v2706 = vunpack.c.l.b16 %v2626
  %v2707 = vunpack.c.h.b16 %v2626
  %v2708 = vunpack.c.l.b16 %v2627
  %v2709 = vunpack.c.h.b16 %v2627
  %v2710 = vunpack.c.l.b16 %v2628
  %v2711 = vunpack.c.h.b16 %v2628
  %v2712 = vunpack.c.l.b16 %v2629
  %v2713 = vunpack.c.h.b16 %v2629
  %v2714 = vunpack.c.l.b16 %v2630
  %v2715 = vunpack.c.h.b16 %v2630
  %v2716 = vunpack.c.l.b16 %v2631
  %v2717 = vunpack.c.h.b16 %v2631
  %v2718 = vunpack.c.l.b16 %v2632
  %v2719 = vunpack.c.h.b16 %v2632
  %v2720 = vunpack.c.l.b16 %v2633
  %v2721 = vunpack.c.h.b16 %v2633
  %v2722 = vunpack.c.l.b16 %v2634
  %v2723 = vunpack.c.h.b16 %v2634
  %v2724 = vunpack.c.l.b16 %v2635
  %v2725 = vunpack.c.h.b16 %v2635
  %v2726 = vunpack.c.l.b16 %v2636
  %v2727 = vunpack.c.h.b16 %v2636
  %v2728 = vunpack.c.l.b16 %v2637
  %v2729 = vunpack.c.h.b16 %v2637
  %v2730 = vunpack.c.l.b16 %v2638
  %v2731 = vunpack.c.h.b16 %v2638
  %v2732 = vunpack.c.l.b16 %v2639
  %v2733 = vunpack.c.h.b16 %v2639
  %v2734 = vunpack.c.l.b16 %v2640
  %v2735 = vunpack.c.h.b16 %v2640
  %v2736 = vunpack.c.l.b16 %v2641
  %v2737 = vunpack.c.h.b16 %v2641
  %v2738 = vpack.c.b16 %v2678, %v2674
  %v2739 = vpack.c.b16 %v2679, %v2675
  %v2740 = vpack.c.b16 %v2680, %v2676
  %v2741 = vpack.c.b16 %v2681, %v2677
  %v2742 = vpack.c.b16 %v2686, %v2682
  %v2743 = vpack.c.b16 %v2687, %v2683
  %v2744 = vpack.c.b16 %v2688, %v2684
  %v2745 = vpack.c.b16 %v2689, %v2685
  %v2746 = vpack.c.b16 %v2694, %v2690
  %v2747 = vpack.c.b16 %v2695, %v2691
  %v2748 = vpack.c.b16 %v2696, %v2692
  %v2749 = vpack.c.b16 %v2697, %v2693
  %v2750 = vpack.c.b16 %v2702, %v2698
  %v2751 = vpack.c.b16 %v2703, %v2699
  %v2752 = vpack.c.b16 %v2704, %v2700
  %v2753 = vpack.c.b16 %v2705, %v2701
  %v2754 = vpack.c.b16 %v2710, %v2706
  %v2755 = vpack.c.b16 %v2711, %v2707
  %v2756 = vpack.c.b16 %v2712, %v2708
  %v2757 = vpack.c.b16 %v2713, %v2709
  %v2758 = vpack.c.b16 %v2718, %v2714
  %v2759 = vpack.c.b16 %v2719, %v2715
  %v2760 = vpack.c.b16 %v2720, %v2716
  %v2761 = vpack.c.b16 %v2721, %v2717
  %v2762 = vpack.c.b16 %v2726, %v2722
  %v2763 = vpack.c.b16 %v2727, %v2723
  %v2764 = vpack.c.b16 %v2728, %v2724
  %v2765 = vpack.c.b16 %v2729, %v2725
  %v2766 = vpack.c.b16 %v2734, %v2730
  %v2767 = vpack.c.b16 %v2735, %v2731
  %v2768 = vpack.c.b16 %v2736, %v2732
  %v2769 = vpack.c.b16 %v2737, %v2733
  %2802 = vmatprep.subr.bf16.mxu0 %v2767
  %2803 = vmatpush1.bf16.msra.mxu0 %v2766
  %2804 = vmatprep.subr.bf16.mxu0 %v2763
  %2805 = vmatpush1.bf16.msra.mxu0 %v2762
  %2806 = vmatprep.subr.bf16.mxu0 %v2759
  %2807 = vmatpush1.bf16.msra.mxu0 %v2758
  %2808 = vmatprep.subr.bf16.mxu0 %v2755
  %2809 = vmatpush1.bf16.msra.mxu0 %v2754
  %2810 = vmatprep.subr.bf16.mxu0 %v2751
  %2811 = vmatpush1.bf16.msra.mxu0 %v2750
  %2812 = vmatprep.subr.bf16.mxu0 %v2747
  %2813 = vmatpush1.bf16.msra.mxu0 %v2746
  %2814 = vmatprep.subr.bf16.mxu0 %v2743
  %2815 = vmatpush1.bf16.msra.mxu0 %v2742
  %2816 = vmatprep.subr.bf16.mxu0 %v2739
  %2817 = vmatpush1.bf16.msra.mxu0 %v2738
  %2818 = vmatprep.subr.bf16.mxu0 0
  %2819 = vmatpush2.bf16.msra.mxu0 0
  %2820 = vmatprep.subr.bf16.mxu0 0
  %2821 = vmatpush2.bf16.msra.mxu0 0
  %2822 = vmatprep.subr.bf16.mxu0 0
  %2823 = vmatpush2.bf16.msra.mxu0 0
  %2824 = vmatprep.subr.bf16.mxu0 0
  %2825 = vmatpush2.bf16.msra.mxu0 0
  %2826 = vmatprep.subr.bf16.mxu0 0
  %2827 = vmatpush2.bf16.msra.mxu0 0
  %2828 = vmatprep.subr.bf16.mxu0 0
  %2829 = vmatpush2.bf16.msra.mxu0 0
  %2830 = vmatprep.subr.bf16.mxu0 0
  %2831 = vmatpush2.bf16.msra.mxu0 0
  %2832 = vmatprep.subr.bf16.mxu0 0
  %2833 = vmatpush2.bf16.msra.mxu0 0
  %2834 = vmatprep.mubr.bf16.mxu0 0
  %2835 = vmatmul.mubr.bf16.gmra.mxu0 %v2600
  %v2836 = vpop.f32.mrf.mxu0
  %v2837 = vadd.f32 0.0, %v2836
  %v2838 = vpop.f32.mrf.mxu0
  %v2839 = vadd.f32 0.0, %v2838
  %v2840 = vpop.f32.mrf.mxu0
  %v2841 = vpop.f32.mrf.mxu0
  %2842 = vdwg.mxu0
  %2843 = vmatprep.subr.bf16.mxu0 %v2769
  %2844 = vmatpush1.bf16.msra.mxu0 %v2768
  %2845 = vmatprep.subr.bf16.mxu0 %v2765
  %2846 = vmatpush1.bf16.msra.mxu0 %v2764
  %2847 = vmatprep.subr.bf16.mxu0 %v2761
  %2848 = vmatpush1.bf16.msra.mxu0 %v2760
  %2849 = vmatprep.subr.bf16.mxu0 %v2757
  %2850 = vmatpush1.bf16.msra.mxu0 %v2756
  %2851 = vmatprep.subr.bf16.mxu0 %v2753
  %2852 = vmatpush1.bf16.msra.mxu0 %v2752
  %2853 = vmatprep.subr.bf16.mxu0 %v2749
  %2854 = vmatpush1.bf16.msra.mxu0 %v2748
  %2855 = vmatprep.subr.bf16.mxu0 %v2745
  %2856 = vmatpush1.bf16.msra.mxu0 %v2744
  %2857 = vmatprep.subr.bf16.mxu0 %v2741
  %2858 = vmatpush1.bf16.msra.mxu0 %v2740
  %2859 = vmatprep.subr.bf16.mxu0 0
  %2860 = vmatpush2.bf16.msra.mxu0 0
  %2861 = vmatprep.subr.bf16.mxu0 0
  %2862 = vmatpush2.bf16.msra.mxu0 0
  %2863 = vmatprep.subr.bf16.mxu0 0
  %2864 = vmatpush2.bf16.msra.mxu0 0
  %2865 = vmatprep.subr.bf16.mxu0 0
  %2866 = vmatpush2.bf16.msra.mxu0 0
  %2867 = vmatprep.subr.bf16.mxu0 0
  %2868 = vmatpush2.bf16.msra.mxu0 0
  %2869 = vmatprep.subr.bf16.mxu0 0
  %2870 = vmatpush2.bf16.msra.mxu0 0
  %2871 = vmatprep.subr.bf16.mxu0 0
  %2872 = vmatpush2.bf16.msra.mxu0 0
  %2873 = vmatprep.subr.bf16.mxu0 0
  %2874 = vmatpush2.bf16.msra.mxu0 0
  %2875 = vmatprep.mubr.bf16.mxu0 0
  %2876 = vmatmul.mubr.bf16.gmra.mxu0 %v2600
  %v2877 = vpop.f32.mrf.mxu0
  %v2878 = vadd.f32 0.0, %v2877
  %v2879 = vpop.f32.mrf.mxu0
  %v2880 = vadd.f32 0.0, %v2879
  %v2881 = vpop.f32.mrf.mxu0
  %v2882 = vpop.f32.mrf.mxu0
  %2883 = vdwg.mxu0
  %v2884 = vadd.f32 %v2606, %v2837
  %v2885 = vadd.f32 %v2607, %v2839
  %v2886 = vadd.f32 %v2608, %v2878
  %v2887 = vadd.f32 %v2609, %v2880
  %v2888 = vmul.f32 %v2884, 0.5
  %v2889 = vtanh.pop %v2888
  %v2890 = vadd.f32 %v2889, 1.0
  %v2891 = vmul.f32 %v2890, 0.5
  %v2892 = vmul.f32 %v2885, 0.5
  %v2893 = vtanh.pop %v2892
  %v2894 = vadd.f32 %v2893, 1.0
  %v2895 = vmul.f32 %v2894, 0.5
  %v2896 = vtanh.pop %v2886
  %v2897 = vmul.f32 %v2887, 0.5
  %v2898 = vtanh.pop %v2897
  %v2899 = vadd.f32 %v2898, 1.0
  %v2900 = vmul.f32 %v2899, 0.5
  %v2901 = vmul.f32 %v2895, %v2597
  %v2902 = vmul.f32 %v2891, %v2896
  %v2903 = vadd.f32 %v2901, %v2902
  %v2904 = vtanh.pop %v2903
  %v2905 = vmul.f32 %v2900, %v2904
  %v2906 = vpack.c.bf16 %v2905, %v2905
  %s2907 = scalar_lea.vmem %s6, 28
  %2908 = vst [vmem:[%s2907] sm:$0xf] %v2906
  %2909 = vst [vmem:[#allocation3] sm:$0xff] %v2905
  %2910 = vst [vmem:[#allocation4] sm:$0xff] %v2903
  // Predicated region
  $region30: #{forward.6} parent=0 // pred_check
    %p2911 = pneg %p27
  $region31: #{forward.6} parent=0 // pred_check_branch
    %2913 = sbr.rel (%p2911) target = $region33
  $region32: #{forward.6} parent=0 // pred_region
    %2914 = vst [vmem:[%s7] sm:$0xff] %v2905
    %2915 = vst [vmem:[%s8] sm:$0xff] %v2903
  $region33: #{forward.6} parent=0 // pred_fallthru
    _
  // Predicated region
  $region34: #{forward.6} parent=0 // pred_check
    _
  $region35: #{forward.6} parent=0 // pred_check_branch
    %2917 = sbr.rel (0) target = $region37
  $region36: #{forward.6} parent=0 // pred_region
    _
  $region37: #{forward.6} parent=0 // pred_fallthru
    _
  // Predicated region
  $region38: #{forward.6} parent=0 // pred_check
    _
  $region39: #{forward.6} parent=0 // pred_check_branch
    %2919 = sbr.rel (0) target = $region41
  $region40: #{forward.6} parent=0 // pred_region
    _
  $region41: #{forward.6} parent=0 // pred_fallthru
    _
  // Predicated region
  $region42: #{forward.6} parent=0 // pred_check
    _
  $region43: #{forward.6} parent=0 // pred_check_branch
    %2921 = sbr.rel (0) target = $region45
  $region44: #{forward.6} parent=0 // pred_region
    _
  $region45: #{forward.6} parent=0 // pred_fallthru
    _
  // Predicated region
  $region46: #{forward.6} parent=0 // pred_check
    _
  $region47: #{forward.6} parent=0 // pred_check_branch
    %2923 = sbr.rel (0) target = $region49
  $region48: #{forward.6} parent=0 // pred_region
    _
  $region49: #{forward.6} parent=0 // pred_fallthru
    _
  // Predicated region
  $region50: #{forward.6} parent=0 // pred_check
    _
  $region51: #{forward.6} parent=0 // pred_check_branch
    %2925 = sbr.rel (0) target = $region53
  $region52: #{forward.6} parent=0 // pred_region
    _
  $region53: #{forward.6} parent=0 // pred_fallthru
    _
  // Predicated region
  $region54: #{forward.6} parent=0 // pred_check
    _
  $region55: #{forward.6} parent=0 // pred_check_branch
    %2927 = sbr.rel (0) target = $region57
  $region56: #{forward.6} parent=0 // pred_region
    _
  $region57: #{forward.6} parent=0 // pred_fallthru
    _

</llo_original>
